<compile_context>
chip_gen: v7x
topology: tpu7x:2x2x1
jax: 0.10.0
libtpu: 0.0.40
codegen_flags: <defaults>
</compile_context>

<pallas_src>
import math

import jax
import jax.numpy as jnp
from jax.experimental import pallas as pl
from jax.experimental.pallas import tpu as pltpu

FEAT_DIM = 2560        # pretrained feature width (fixed by the module: Linear(2560, ...))
BOTTLENECK = 128       # adapter bottleneck_dim
NUM_CLASSES = 10
NC_PAD = 128           # classifier output padded to a lane-dense width
TN = 1280              # FEAT_DIM streaming tile (2 tiles -> 2 grid steps)
N_TILES = FEAT_DIM // TN


def adapter_kernel(
    x_ref,    # (B, IN)            bf16, resident
    wf_ref,   # (IN, TN)           bf16 tile of frozen feature projection (backbone stand-in)
    bf_ref,   # (1, TN)            f32 tile
    w1_ref,   # (TN, 128)          bf16 tile of adapter down-projection
    b1_ref,   # (1, 128)           f32, resident
    w2_ref,   # (128, FEAT_DIM)    bf16, resident
    b2_ref,   # (1, FEAT_DIM)      f32, resident
    wc_ref,   # (FEAT_DIM, NC_PAD) bf16, resident (zero-padded classifier)
    bc_ref,   # (1, NC_PAD)        f32, resident (zero-padded)
    out_ref,  # (B, NC_PAD)        f32, resident output (written once, last step)
    h_acc,    # (B, 128)           f32 VMEM scratch: adapter bottleneck accumulator
):
    i = pl.program_id(0)

    @pl.when(i == 0)
    def _init():
        h_acc[...] = jnp.zeros_like(h_acc)

    # Phase 0 (every step): frozen-backbone feature tile, folded straight into
    # the adapter down-projection (K-accumulation over FEAT_DIM tiles).
    feat = jnp.dot(x_ref[...], wf_ref[...],
                   preferred_element_type=jnp.float32) + bf_ref[...]
    h_acc[...] += jnp.dot(feat.astype(jnp.bfloat16), w1_ref[...],
                          preferred_element_type=jnp.float32)

    # Phase 1 (last step only, all operands resident): +b1, ReLU (Dropout =
    # identity in eval), up-projection, +b2, ReLU, classifier (+bc).
    @pl.when(i == pl.num_programs(0) - 1)
    def _finalize():
        h = jnp.maximum(h_acc[...] + b1_ref[...], 0.0)
        a = jnp.dot(h.astype(jnp.bfloat16), w2_ref[...],
                    preferred_element_type=jnp.float32) + b2_ref[...]
        a = jnp.maximum(a, 0.0)
        out_ref[...] = (jnp.dot(a.astype(jnp.bfloat16), wc_ref[...],
                                preferred_element_type=jnp.float32) + bc_ref[...])


def prepare_params(params):
    """One-time (load-time) parameter preparation.

    bf16 cast of all matmul weights, contraction-dim padding of the frozen
    feature projection, and lane-dense (128-col) padding of the classifier.
    Doing this here instead of in the per-call wrapper removes ~15-20 MB of
    per-forward HBM traffic (casts/pads used to run as separate XLA ops).
    """
    wf, bf, w1, b1, w2, b2, wc, bc = params
    pad_in = (-wf.shape[0]) % 128
    if pad_in:
        wf = jnp.pad(wf, ((0, pad_in), (0, 0)))
    wc_p = jnp.pad(wc, ((0, 0), (0, NC_PAD - NUM_CLASSES)))
    bc_p = jnp.pad(bc, ((0, 0), (0, NC_PAD - NUM_CLASSES)))
    return (wf.astype(jnp.bfloat16), bf,
            w1.astype(jnp.bfloat16), b1,
            w2.astype(jnp.bfloat16), b2,
            wc_p.astype(jnp.bfloat16), bc_p)


def baseline_adapter_transformer(x_nchw, prepared):
    wf_bf, bf, w1_bf, b1, w2_bf, b2, wc_bf, bc_p = prepared
    B = x_nchw.shape[0]
    in_p = wf_bf.shape[0]

    x_flat = x_nchw.reshape(B, -1)
    pad_in = in_p - x_flat.shape[1]
    if pad_in:                     # no-op for the 1024-wide example input
        x_flat = jnp.pad(x_flat, ((0, 0), (0, pad_in)))
    x_bf = x_flat.astype(jnp.bfloat16)

    tile_col = lambda i: (0, i)    # wf, bf: FEAT_DIM column tiles
    tile_row = lambda i: (i, 0)    # w1:      FEAT_DIM row tiles
    const = lambda i: (0, 0)       # resident operands

    out_padded = pl.pallas_call(
        adapter_kernel,
        out_shape=jax.ShapeDtypeStruct((B, NC_PAD), jnp.float32),
        grid_spec=pltpu.PrefetchScalarGridSpec(
            num_scalar_prefetch=0,
            grid=(N_TILES,),
            in_specs=[
                pl.BlockSpec((B, in_p), const),             # x (resident)
                pl.BlockSpec((in_p, TN), tile_col),         # wf tile (streamed)
                pl.BlockSpec((1, TN), tile_col),            # bf tile (streamed)
                pl.BlockSpec((TN, BOTTLENECK), tile_row),   # w1 tile (streamed)
                pl.BlockSpec((1, BOTTLENECK), const),       # b1 (resident)
                pl.BlockSpec((BOTTLENECK, FEAT_DIM), const),# w2 (resident)
                pl.BlockSpec((1, FEAT_DIM), const),         # b2 (resident)
                pl.BlockSpec((FEAT_DIM, NC_PAD), const),    # wc (resident)
                pl.BlockSpec((1, NC_PAD), const),           # bc (resident)
            ],
            out_specs=pl.BlockSpec((B, NC_PAD), const),     # resident output
            scratch_shapes=[pltpu.VMEM((B, BOTTLENECK), jnp.float32)],
        ),
        compiler_params=pltpu.CompilerParams(
            # Single grid axis carries the FEAT_DIM reduction -> "arbitrary".
            # (v7x: at B=2 there is no batch to shard across the 2 TCs; a
            #  leading "parallel" batch axis would be added once B grows.)
            dimension_semantics=("arbitrary",),
            vmem_limit_bytes=32 << 20,   # working set ~8 MiB double-buffered
        ),
    )(x_bf, wf_bf, bf, w1_bf, b1, w2_bf, b2, wc_bf, bc_p)

    return out_padded[:, :NUM_CLASSES]


def init_params(key, in_dim):
    """Deterministic PyTorch-Linear-style init: uniform(-1/sqrt(fan_in), 1/sqrt(fan_in))."""
    def linear(k, fan_in, fan_out):
        kw, kb = jax.random.split(k)
        bound = 1.0 / math.sqrt(fan_in)
        w = jax.random.uniform(kw, (fan_in, fan_out), jnp.float32, -bound, bound)
        b = jax.random.uniform(kb, (1, fan_out), jnp.float32, -bound, bound)
        return w, b

    kf, k1, k2, kc = jax.random.split(key, 4)
    wf, bf = linear(kf, in_dim, FEAT_DIM)        # frozen stand-in feature extractor
    w1, b1 = linear(k1, FEAT_DIM, BOTTLENECK)    # adapter down-proj
    w2, b2 = linear(k2, BOTTLENECK, FEAT_DIM)    # adapter up-proj
    wc, bc = linear(kc, FEAT_DIM, NUM_CLASSES)   # classifier
    return wf, bf, w1, b1, w2, b2, wc, bc


def reference_forward(x_nchw, params):
    """Pure-JAX reference mirroring the kernel's bf16-operand / f32-accumulate numerics."""
    wf, bf, w1, b1, w2, b2, wc, bc = params
    x = x_nchw.reshape(x_nchw.shape[0], -1)
    dot = lambda a, b: jnp.dot(a.astype(jnp.bfloat16), b.astype(jnp.bfloat16),
                               preferred_element_type=jnp.float32)
    feat = dot(x, wf) + bf
    h = jnp.maximum(dot(feat, w1) + b1, 0.0)
    a = jnp.maximum(dot(h, w2) + b2, 0.0)
    return dot(a, wc) + bc


if __name__ == "__main__":
    key = jax.random.PRNGKey(0)
    kx, kp = jax.random.split(key)

    # Small NCHW input consistent with an image-model forward: (B=2, C=4, H=16, W=16)
    x = jax.random.normal(kx, (2, 4, 16, 16), dtype=jnp.float32)
    params = init_params(kp, in_dim=4 * 16 * 16)
    prepared = prepare_params(params)   # one-time bf16 cast + padding (not per forward)

    forward = jax.jit(baseline_adapter_transformer)
    out = jax.block_until_ready(forward(x, prepared))
    ref = reference_forward(x, params)

    assert out.shape == (2, NUM_CLASSES), out.shape
    assert jnp.allclose(out, ref, atol=1e-2, rtol=1e-2), (
        f"mismatch vs reference, max abs diff = {jnp.max(jnp.abs(out - ref))}")

    print("KERNEL_OK")
</pallas_src>

<mosaic_0001>
module attributes {stable_mosaic.version = 11 : i64} {
  func.func @adapter_kernel(%arg0: i32, %arg1: memref<2x1024xbf16, #tpu.memory_space<vmem>>, %arg2: memref<1024x1280xbf16, #tpu.memory_space<vmem>>, %arg3: memref<1x1280xf32, #tpu.memory_space<vmem>>, %arg4: memref<1280x128xbf16, #tpu.memory_space<vmem>>, %arg5: memref<1x128xf32, #tpu.memory_space<vmem>>, %arg6: memref<128x2560xbf16, #tpu.memory_space<vmem>>, %arg7: memref<1x2560xf32, #tpu.memory_space<vmem>>, %arg8: memref<2560x128xbf16, #tpu.memory_space<vmem>>, %arg9: memref<1x128xf32, #tpu.memory_space<vmem>>, %arg10: memref<2x128xf32, #tpu.memory_space<vmem>>, %arg11: memref<2x128xf32, #tpu.memory_space<vmem>>) attributes {dimension_semantics = [#tpu.dimension_semantics<arbitrary>], iteration_bounds = array<i64: 2>, scalar_prefetch = 0 : i64, scratch_operands = 1 : i64, tpu.core_type = #tpu.core_type<tc>, window_params = [{pipeline_mode = #tpu.pipeline_mode<synchronous>, transform_indices = @transform_0, window_bounds = array<i64: 2, 1024>}, {transform_indices = @transform_1, window_bounds = array<i64: 1024, 1280>}, {transform_indices = @transform_2, window_bounds = array<i64: 1, 1280>}, {transform_indices = @transform_3, window_bounds = array<i64: 1280, 128>}, {pipeline_mode = #tpu.pipeline_mode<synchronous>, transform_indices = @transform_4, window_bounds = array<i64: 1, 128>}, {pipeline_mode = #tpu.pipeline_mode<synchronous>, transform_indices = @transform_5, window_bounds = array<i64: 128, 2560>}, {pipeline_mode = #tpu.pipeline_mode<synchronous>, transform_indices = @transform_6, window_bounds = array<i64: 1, 2560>}, {pipeline_mode = #tpu.pipeline_mode<synchronous>, transform_indices = @transform_7, window_bounds = array<i64: 2560, 128>}, {pipeline_mode = #tpu.pipeline_mode<synchronous>, transform_indices = @transform_8, window_bounds = array<i64: 1, 128>}, {pipeline_mode = #tpu.pipeline_mode<synchronous>, transform_indices = @transform_9, window_bounds = array<i64: 2, 128>}]} {
    %c0_i32 = arith.constant 0 : i32
    %0 = arith.cmpi eq, %arg0, %c0_i32 : i32
    %1 = arith.extui %0 : i1 to i32
    %c0_i32_0 = arith.constant 0 : i32
    %2 = arith.cmpi ne, %1, %c0_i32_0 : i32
    scf.if %2 {
      %cst_14 = arith.constant 0.000000e+00 : f32
      %18 = vector.broadcast %cst_14 : f32 to vector<2x128xf32>
      %c0_15 = arith.constant 0 : index
      %c0_16 = arith.constant 0 : index
      %19 = vector.load %arg11[%c0_15, %c0_16] : memref<2x128xf32, #tpu.memory_space<vmem>>, vector<2x128xf32>
      tpu.vector_store %arg11[%c0_15, %c0_16], %18 {strides = array<i32>} : memref<2x128xf32, #tpu.memory_space<vmem>>, vector<2x128xf32>,
    } else {
    }
    %c0 = arith.constant 0 : index
    %c0_1 = arith.constant 0 : index
    %3 = vector.load %arg1[%c0, %c0_1] : memref<2x1024xbf16, #tpu.memory_space<vmem>>, vector<2x1024xbf16>
    %c0_2 = arith.constant 0 : index
    %c0_3 = arith.constant 0 : index
    %4 = vector.load %arg2[%c0_2, %c0_3] : memref<1024x1280xbf16, #tpu.memory_space<vmem>>, vector<1024x1280xbf16>
    %cst = arith.constant dense<0.000000e+00> : vector<2x1280xf32>
    %5 = tpu.matmul %3, %4, %cst {dimension_numbers = #tpu.dot_dimension_numbers<[1], [0], [0], [1], [0, 0, 1, 1], [], []>} : vector<2x1024xbf16>, vector<1024x1280xbf16>, vector<2x1280xf32> -> vector<2x1280xf32>
    %c0_4 = arith.constant 0 : index
    %c0_5 = arith.constant 0 : index
    %6 = vector.load %arg3[%c0_4, %c0_5] : memref<1x1280xf32, #tpu.memory_space<vmem>>, vector<1x1280xf32>
    %7 = vector.broadcast %6 : vector<1x1280xf32> to vector<2x1280xf32>
    %8 = arith.addf %5, %7 : vector<2x1280xf32>
    %c0_6 = arith.constant 0 : index
    %c0_7 = arith.constant 0 : index
    %9 = vector.load %arg11[%c0_6, %c0_7] : memref<2x128xf32, #tpu.memory_space<vmem>>, vector<2x128xf32>
    %10 = arith.truncf %8 : vector<2x1280xf32> to vector<2x1280xbf16>
    %c0_8 = arith.constant 0 : index
    %c0_9 = arith.constant 0 : index
    %11 = vector.load %arg4[%c0_8, %c0_9] : memref<1280x128xbf16, #tpu.memory_space<vmem>>, vector<1280x128xbf16>
    %cst_10 = arith.constant dense<0.000000e+00> : vector<2x128xf32>
    %12 = tpu.matmul %10, %11, %cst_10 {dimension_numbers = #tpu.dot_dimension_numbers<[1], [0], [0], [1], [0, 0, 1, 1], [], []>} : vector<2x1280xbf16>, vector<1280x128xbf16>, vector<2x128xf32> -> vector<2x128xf32>
    %13 = arith.addf %9, %12 : vector<2x128xf32>
    %c0_11 = arith.constant 0 : index
    %c0_12 = arith.constant 0 : index
    %14 = vector.load %arg11[%c0_11, %c0_12] : memref<2x128xf32, #tpu.memory_space<vmem>>, vector<2x128xf32>
    tpu.vector_store %arg11[%c0_11, %c0_12], %13 {strides = array<i32>} : memref<2x128xf32, #tpu.memory_space<vmem>>, vector<2x128xf32>,
    %c1_i32 = arith.constant 1 : i32
    %15 = arith.cmpi eq, %arg0, %c1_i32 : i32
    %16 = arith.extui %15 : i1 to i32
    %c0_i32_13 = arith.constant 0 : i32
    %17 = arith.cmpi ne, %16, %c0_i32_13 : i32
    scf.if %17 {
      %c0_14 = arith.constant 0 : index
      %c0_15 = arith.constant 0 : index
      %18 = vector.load %arg11[%c0_14, %c0_15] : memref<2x128xf32, #tpu.memory_space<vmem>>, vector<2x128xf32>
      %c0_16 = arith.constant 0 : index
      %c0_17 = arith.constant 0 : index
      %19 = vector.load %arg5[%c0_16, %c0_17] : memref<1x128xf32, #tpu.memory_space<vmem>>, vector<1x128xf32>
      %20 = vector.broadcast %19 : vector<1x128xf32> to vector<2x128xf32>
      %21 = arith.addf %18, %20 : vector<2x128xf32>
      %cst_18 = arith.constant 0.000000e+00 : f32
      %22 = vector.broadcast %cst_18 : f32 to vector<2x128xf32>
      %23 = arith.maximumf %21, %22 : vector<2x128xf32>
      %24 = arith.truncf %23 : vector<2x128xf32> to vector<2x128xbf16>
      %c0_19 = arith.constant 0 : index
      %c0_20 = arith.constant 0 : index
      %25 = vector.load %arg6[%c0_19, %c0_20] : memref<128x2560xbf16, #tpu.memory_space<vmem>>, vector<128x2560xbf16>
      %cst_21 = arith.constant dense<0.000000e+00> : vector<2x2560xf32>
      %26 = tpu.matmul %24, %25, %cst_21 {dimension_numbers = #tpu.dot_dimension_numbers<[1], [0], [0], [1], [0, 0, 1, 1], [], []>} : vector<2x128xbf16>, vector<128x2560xbf16>, vector<2x2560xf32> -> vector<2x2560xf32>
      %c0_22 = arith.constant 0 : index
      %c0_23 = arith.constant 0 : index
      %27 = vector.load %arg7[%c0_22, %c0_23] : memref<1x2560xf32, #tpu.memory_space<vmem>>, vector<1x2560xf32>
      %28 = vector.broadcast %27 : vector<1x2560xf32> to vector<2x2560xf32>
      %29 = arith.addf %26, %28 : vector<2x2560xf32>
      %cst_24 = arith.constant 0.000000e+00 : f32
      %30 = vector.broadcast %cst_24 : f32 to vector<2x2560xf32>
      %31 = arith.maximumf %29, %30 : vector<2x2560xf32>
      %32 = arith.truncf %31 : vector<2x2560xf32> to vector<2x2560xbf16>
      %c0_25 = arith.constant 0 : index
      %c0_26 = arith.constant 0 : index
      %33 = vector.load %arg8[%c0_25, %c0_26] : memref<2560x128xbf16, #tpu.memory_space<vmem>>, vector<2560x128xbf16>
      %cst_27 = arith.constant dense<0.000000e+00> : vector<2x128xf32>
      %34 = tpu.matmul %32, %33, %cst_27 {dimension_numbers = #tpu.dot_dimension_numbers<[1], [0], [0], [1], [0, 0, 1, 1], [], []>} : vector<2x2560xbf16>, vector<2560x128xbf16>, vector<2x128xf32> -> vector<2x128xf32>
      %c0_28 = arith.constant 0 : index
      %c0_29 = arith.constant 0 : index
      %35 = vector.load %arg9[%c0_28, %c0_29] : memref<1x128xf32, #tpu.memory_space<vmem>>, vector<1x128xf32>
      %36 = vector.broadcast %35 : vector<1x128xf32> to vector<2x128xf32>
      %37 = arith.addf %34, %36 : vector<2x128xf32>
      %c0_30 = arith.constant 0 : index
      %c0_31 = arith.constant 0 : index
      %38 = vector.load %arg10[%c0_30, %c0_31] : memref<2x128xf32, #tpu.memory_space<vmem>>, vector<2x128xf32>
      tpu.vector_store %arg10[%c0_30, %c0_31], %37 {strides = array<i32>} : memref<2x128xf32, #tpu.memory_space<vmem>>, vector<2x128xf32>,
    } else {
    }
    return
  }
  func.func @transform_0(%arg0: i32) -> (i32, i32) {
    %c0_i32 = arith.constant 0 : i32
    %c0_i32_0 = arith.constant 0 : i32
    %c0_i32_1 = arith.constant 0 : i32
    return %c0_i32, %c0_i32_0 : i32, i32
  }
  func.func @transform_1(%arg0: i32) -> (i32, i32) {
    %c0_i32 = arith.constant 0 : i32
    %c0_i32_0 = arith.constant 0 : i32
    return %c0_i32, %arg0 : i32, i32
  }
  func.func @transform_2(%arg0: i32) -> (i32, i32) {
    %c0_i32 = arith.constant 0 : i32
    %c0_i32_0 = arith.constant 0 : i32
    return %c0_i32, %arg0 : i32, i32
  }
  func.func @transform_3(%arg0: i32) -> (i32, i32) {
    %c0_i32 = arith.constant 0 : i32
    %c0_i32_0 = arith.constant 0 : i32
    return %arg0, %c0_i32 : i32, i32
  }
  func.func @transform_4(%arg0: i32) -> (i32, i32) {
    %c0_i32 = arith.constant 0 : i32
    %c0_i32_0 = arith.constant 0 : i32
    %c0_i32_1 = arith.constant 0 : i32
    return %c0_i32, %c0_i32_0 : i32, i32
  }
  func.func @transform_5(%arg0: i32) -> (i32, i32) {
    %c0_i32 = arith.constant 0 : i32
    %c0_i32_0 = arith.constant 0 : i32
    %c0_i32_1 = arith.constant 0 : i32
    return %c0_i32, %c0_i32_0 : i32, i32
  }
  func.func @transform_6(%arg0: i32) -> (i32, i32) {
    %c0_i32 = arith.constant 0 : i32
    %c0_i32_0 = arith.constant 0 : i32
    %c0_i32_1 = arith.constant 0 : i32
    return %c0_i32, %c0_i32_0 : i32, i32
  }
  func.func @transform_7(%arg0: i32) -> (i32, i32) {
    %c0_i32 = arith.constant 0 : i32
    %c0_i32_0 = arith.constant 0 : i32
    %c0_i32_1 = arith.constant 0 : i32
    return %c0_i32, %c0_i32_0 : i32, i32
  }
  func.func @transform_8(%arg0: i32) -> (i32, i32) {
    %c0_i32 = arith.constant 0 : i32
    %c0_i32_0 = arith.constant 0 : i32
    %c0_i32_1 = arith.constant 0 : i32
    return %c0_i32, %c0_i32_0 : i32, i32
  }
  func.func @transform_9(%arg0: i32) -> (i32, i32) {
    %c0_i32 = arith.constant 0 : i32
    %c0_i32_0 = arith.constant 0 : i32
    %c0_i32_1 = arith.constant 0 : i32
    return %c0_i32, %c0_i32_0 : i32, i32
  }
}

</mosaic_0001>

<llo_original>
// kernel: baseline_adapter_transformer.1
$region0: #{baseline_adapter_transformer.1}
  #allocation0 [shape = 'u32[]', space=smem, size = 0x4, offset = 0x4, fixed_abs, tag = 'smem constant byte address 0x4 - core index']
  #allocation1 [shape = 'u32[144,128]{1,0:T(1,128)}', space=vmem, size = 0x12000, scoped, tag = 'internal scratch']
  #allocation2 [shape = 'f32[2,128]{1,0:T(2,128)}', space=vmem, size = 0x400, scoped, tag = 'scratch operand']
  %s0 = inlined_call_operand.vmem [shape: bf16[2,1024], index: 0, kind: input, shape index: {}]
  %s1 = inlined_call_operand.hbm [shape: bf16[1024,2560], index: 1, kind: input, shape index: {}]
  %s2 = inlined_call_operand.hbm [shape: f32[1,2560], index: 2, kind: input, shape index: {}]
  %s3 = inlined_call_operand.hbm [shape: bf16[2560,128], index: 3, kind: input, shape index: {}]
  %s4 = inlined_call_operand.hbm [shape: f32[1,128], index: 4, kind: input, shape index: {}]
  %s5 = inlined_call_operand.hbm [shape: bf16[128,2560], index: 5, kind: input, shape index: {}]
  %s6 = inlined_call_operand.hbm [shape: f32[1,2560], index: 6, kind: input, shape index: {}]
  %s7 = inlined_call_operand.hbm [shape: bf16[2560,128], index: 7, kind: input, shape index: {}]
  %s8 = inlined_call_operand.hbm [shape: f32[1,128], index: 8, kind: input, shape index: {}]
  %s9 = inlined_call_operand.hbm [shape: f32[2,128], index: 9, kind: output, shape index: {}]
  %s10 = sld [smem:[#allocation0]]
  $region109: #{baseline_adapter_transformer.1} parent=0
    _
  %s12 = ssub.s32 1, %s10
  %s13 = scalar_select 0, %s12, %s10
  $region1: #{baseline_adapter_transformer.1} parent=0
    #allocation3 [shape = 'u8[5242880]{0}', space=vmem, size = 0x500000, scoped, tag = 'input window, operand 1']
    #allocation4 [shape = 's32[2]{0}', space=sflag, size = 0x8, scoped, tag = 'scoped memory for baseline_adapter_transformer.1']
    #allocation5 [shape = 's32[2]{0}', space=sflag, size = 0x8, scoped, tag = 'scoped memory for baseline_adapter_transformer.1']
    #allocation6 [shape = 'u8[10240]{0}', space=vmem, size = 0x2800, scoped, tag = 'input window, operand 2']
    #allocation7 [shape = 's32[2]{0}', space=sflag, size = 0x8, scoped, tag = 'scoped memory for baseline_adapter_transformer.1']
    #allocation8 [shape = 'u8[655360]{0}', space=vmem, size = 0xa0000, scoped, tag = 'input window, operand 3']
    #allocation9 [shape = 'u8[512]{0}', space=vmem, size = 0x400, scoped, tag = 'input window, operand 4, single buffered']
    #allocation10 [shape = 's32[1]{0}', space=sflag, size = 0x4, scoped, tag = 'scoped memory for baseline_adapter_transformer.1']
    #allocation11 [shape = 'u8[655360]{0}', space=vmem, size = 0xa0000, scoped, tag = 'input window, operand 5, single buffered']
    #allocation12 [shape = 'u8[10240]{0}', space=vmem, size = 0x2800, scoped, tag = 'input window, operand 6, single buffered']
    #allocation13 [shape = 's32[1]{0}', space=sflag, size = 0x4, scoped, tag = 'scoped memory for baseline_adapter_transformer.1']
    #allocation14 [shape = 'u8[655360]{0}', space=vmem, size = 0xa0000, scoped, tag = 'input window, operand 7, single buffered']
    #allocation15 [shape = 'u8[512]{0}', space=vmem, size = 0x400, scoped, tag = 'input window, operand 8, single buffered']
    #allocation16 [shape = 's32[1]{0}', space=sflag, size = 0x4, scoped, tag = 'scoped memory for baseline_adapter_transformer.1']
    #allocation17 [shape = 'u8[1024]{0}', space=vmem, size = 0x400, scoped, tag = 'output window, operand 0, single buffered']
    %14 = vsyncpa [#allocation4], 0
    %s15 = scalar_lea.sflag [#allocation4], 1
    %16 = vsyncpa %s15, 0
    %17 = vsyncpa [#allocation7], 0
    %s18 = scalar_lea.sflag [#allocation7], 1
    %19 = vsyncpa %s18, 0
    %20 = vsyncpa [#allocation10], 0
    %21 = vsyncpa [#allocation13], 0
    %22 = vsyncpa [#allocation16], 0
    %23 = vsyncpa [#allocation5], 0
    loop: start=0, step=1, limit=4
    $region2: #{baseline_adapter_transformer.1} parent=1 // loop_pre_header
      _
    $region3: #{baseline_adapter_transformer.1} parent=1 // loop_header
      %s25 = sphi 0, %s29
      %p26 = scmp.ge.s32.totalorder %s25, 4
      %s33 = sphi 0, %s33
      %s35 = sphi 0, %s33
      %s36 = sphi 0, %s35
      %s50 = sphi 0, %s36
      %s56 = sphi 0, %s58
      %s59 = sphi 0, %s56
      %s60 = sphi 0, %s59
      %s76 = sphi 0, %s60
      %s82 = sphi 0, %s84
      %s85 = sphi 0, %s82
      %s86 = sphi 0, %s85
      %s102 = sphi 0, %s86
      %s108 = sphi 0, %s110
      %s111 = sphi 0, %s108
      %s112 = sphi 0, %s111
      %s128 = sphi 0, %s112
      %s132 = sphi 0, %s132
      %s134 = sphi 0, %s132
      %s135 = sphi 0, %s134
      %s149 = sphi 0, %s135
      %s153 = sphi 0, %s153
      %s155 = sphi 0, %s153
      %s156 = sphi 0, %s155
      %s170 = sphi 0, %s156
      %s174 = sphi 0, %s174
      %s176 = sphi 0, %s174
      %s177 = sphi 0, %s176
      %s191 = sphi 0, %s177
      %s195 = sphi 0, %s195
      %s197 = sphi 0, %s195
      %s198 = sphi 0, %s197
      %s212 = sphi 0, %s198
      %s216 = sphi 0, %s216
      %s218 = sphi 0, %s216
      %s219 = sphi 0, %s218
      %s233 = sphi 0, %s219
      %s237 = sphi 0, %s237
      %s239 = sphi 0, %s237
      %s240 = sphi 0, %s239
      %s254 = sphi 0, %s240
    $region4: #{baseline_adapter_transformer.1} parent=1 // loop_header_branch
      %28 = sbr.rel (%p26) target = $region8
    $region5: #{baseline_adapter_transformer.1} parent=1 // loop_body
      %s30 = ssub.s32 %s25, 1
      %s31 = ssub.s32 %s25, 2
      %s32 = sadd.s32 %s25, 1
      %s34 = sadd.s32 %s33, 1
      %p37 = scmp.eq.s32.totalorder %s25, 1
      %p38 = scmp.ne.s32.totalorder %s33, %s35
      %p39 = scmp.eq.s32.totalorder %s25, 0
      %p40 = por %p38, %p39
      %p41 = scmp.ne.s32.totalorder %s33, %s35
      %p42 = scmp.eq.s32.totalorder %s30, 1
      %p43 = por %p41, %p42
      %p44 = scmp.ne.s32.totalorder %s35, %s36
      %p45 = scmp.eq.s32.totalorder %s30, 0
      %p46 = por %p44, %p45
      %p47 = scmp.ne.s32.totalorder %s35, %s36
      %p48 = scmp.eq.s32.totalorder %s31, 1
      %p49 = por %p47, %p48
      %p51 = scmp.ne.s32.totalorder %s36, %s50
      %p52 = scmp.eq.s32.totalorder %s31, 0
      %p53 = por %p51, %p52
      %s54 = ssub.s32 %s25, %s32
      %p55 = scmp.eq.s32.totalorder %s54, 0
      %s57 = sadd.s32 %s56, 1
      %s58 = scalar_select %p55, %s56, %s57
      %p61 = pneg %p55
      %p62 = scmp.eq.s32.totalorder %s25, 1
      %p63 = por %p61, %p62
      %p64 = scmp.ne.s32.totalorder %s56, %s59
      %p65 = scmp.eq.s32.totalorder %s25, 0
      %p66 = por %p64, %p65
      %p67 = scmp.ne.s32.totalorder %s56, %s59
      %p68 = scmp.eq.s32.totalorder %s30, 1
      %p69 = por %p67, %p68
      %p70 = scmp.ne.s32.totalorder %s59, %s60
      %p71 = scmp.eq.s32.totalorder %s30, 0
      %p72 = por %p70, %p71
      %p73 = scmp.ne.s32.totalorder %s59, %s60
      %p74 = scmp.eq.s32.totalorder %s31, 1
      %p75 = por %p73, %p74
      %p77 = scmp.ne.s32.totalorder %s60, %s76
      %p78 = scmp.eq.s32.totalorder %s31, 0
      %p79 = por %p77, %p78
      %s80 = ssub.s32 %s25, %s32
      %p81 = scmp.eq.s32.totalorder %s80, 0
      %s83 = sadd.s32 %s82, 1
      %s84 = scalar_select %p81, %s82, %s83
      %p87 = pneg %p81
      %p88 = scmp.eq.s32.totalorder %s25, 1
      %p89 = por %p87, %p88
      %p90 = scmp.ne.s32.totalorder %s82, %s85
      %p91 = scmp.eq.s32.totalorder %s25, 0
      %p92 = por %p90, %p91
      %p93 = scmp.ne.s32.totalorder %s82, %s85
      %p94 = scmp.eq.s32.totalorder %s30, 1
      %p95 = por %p93, %p94
      %p96 = scmp.ne.s32.totalorder %s85, %s86
      %p97 = scmp.eq.s32.totalorder %s30, 0
      %p98 = por %p96, %p97
      %p99 = scmp.ne.s32.totalorder %s85, %s86
      %p100 = scmp.eq.s32.totalorder %s31, 1
      %p101 = por %p99, %p100
      %p103 = scmp.ne.s32.totalorder %s86, %s102
      %p104 = scmp.eq.s32.totalorder %s31, 0
      %p105 = por %p103, %p104
      %s106 = ssub.s32 %s25, %s32
      %p107 = scmp.eq.s32.totalorder %s106, 0
      %s109 = sadd.s32 %s108, 1
      %s110 = scalar_select %p107, %s108, %s109
      %p113 = pneg %p107
      %p114 = scmp.eq.s32.totalorder %s25, 1
      %p115 = por %p113, %p114
      %p116 = scmp.ne.s32.totalorder %s108, %s111
      %p117 = scmp.eq.s32.totalorder %s25, 0
      %p118 = por %p116, %p117
      %p119 = scmp.ne.s32.totalorder %s108, %s111
      %p120 = scmp.eq.s32.totalorder %s30, 1
      %p121 = por %p119, %p120
      %p122 = scmp.ne.s32.totalorder %s111, %s112
      %p123 = scmp.eq.s32.totalorder %s30, 0
      %p124 = por %p122, %p123
      %p125 = scmp.ne.s32.totalorder %s111, %s112
      %p126 = scmp.eq.s32.totalorder %s31, 1
      %p127 = por %p125, %p126
      %p129 = scmp.ne.s32.totalorder %s112, %s128
      %p130 = scmp.eq.s32.totalorder %s31, 0
      %p131 = por %p129, %p130
      %s133 = sadd.s32 %s132, 1
      %p136 = scmp.eq.s32.totalorder %s25, 1
      %p137 = scmp.ne.s32.totalorder %s132, %s134
      %p138 = scmp.eq.s32.totalorder %s25, 0
      %p139 = por %p137, %p138
      %p140 = scmp.ne.s32.totalorder %s132, %s134
      %p141 = scmp.eq.s32.totalorder %s30, 1
      %p142 = por %p140, %p141
      %p143 = scmp.ne.s32.totalorder %s134, %s135
      %p144 = scmp.eq.s32.totalorder %s30, 0
      %p145 = por %p143, %p144
      %p146 = scmp.ne.s32.totalorder %s134, %s135
      %p147 = scmp.eq.s32.totalorder %s31, 1
      %p148 = por %p146, %p147
      %p150 = scmp.ne.s32.totalorder %s135, %s149
      %p151 = scmp.eq.s32.totalorder %s31, 0
      %p152 = por %p150, %p151
      %s154 = sadd.s32 %s153, 1
      %p157 = scmp.eq.s32.totalorder %s25, 1
      %p158 = scmp.ne.s32.totalorder %s153, %s155
      %p159 = scmp.eq.s32.totalorder %s25, 0
      %p160 = por %p158, %p159
      %p161 = scmp.ne.s32.totalorder %s153, %s155
      %p162 = scmp.eq.s32.totalorder %s30, 1
      %p163 = por %p161, %p162
      %p164 = scmp.ne.s32.totalorder %s155, %s156
      %p165 = scmp.eq.s32.totalorder %s30, 0
      %p166 = por %p164, %p165
      %p167 = scmp.ne.s32.totalorder %s155, %s156
      %p168 = scmp.eq.s32.totalorder %s31, 1
      %p169 = por %p167, %p168
      %p171 = scmp.ne.s32.totalorder %s156, %s170
      %p172 = scmp.eq.s32.totalorder %s31, 0
      %p173 = por %p171, %p172
      %s175 = sadd.s32 %s174, 1
      %p178 = scmp.eq.s32.totalorder %s25, 1
      %p179 = scmp.ne.s32.totalorder %s174, %s176
      %p180 = scmp.eq.s32.totalorder %s25, 0
      %p181 = por %p179, %p180
      %p182 = scmp.ne.s32.totalorder %s174, %s176
      %p183 = scmp.eq.s32.totalorder %s30, 1
      %p184 = por %p182, %p183
      %p185 = scmp.ne.s32.totalorder %s176, %s177
      %p186 = scmp.eq.s32.totalorder %s30, 0
      %p187 = por %p185, %p186
      %p188 = scmp.ne.s32.totalorder %s176, %s177
      %p189 = scmp.eq.s32.totalorder %s31, 1
      %p190 = por %p188, %p189
      %p192 = scmp.ne.s32.totalorder %s177, %s191
      %p193 = scmp.eq.s32.totalorder %s31, 0
      %p194 = por %p192, %p193
      %s196 = sadd.s32 %s195, 1
      %p199 = scmp.eq.s32.totalorder %s25, 1
      %p200 = scmp.ne.s32.totalorder %s195, %s197
      %p201 = scmp.eq.s32.totalorder %s25, 0
      %p202 = por %p200, %p201
      %p203 = scmp.ne.s32.totalorder %s195, %s197
      %p204 = scmp.eq.s32.totalorder %s30, 1
      %p205 = por %p203, %p204
      %p206 = scmp.ne.s32.totalorder %s197, %s198
      %p207 = scmp.eq.s32.totalorder %s30, 0
      %p208 = por %p206, %p207
      %p209 = scmp.ne.s32.totalorder %s197, %s198
      %p210 = scmp.eq.s32.totalorder %s31, 1
      %p211 = por %p209, %p210
      %p213 = scmp.ne.s32.totalorder %s198, %s212
      %p214 = scmp.eq.s32.totalorder %s31, 0
      %p215 = por %p213, %p214
      %s217 = sadd.s32 %s216, 1
      %p220 = scmp.eq.s32.totalorder %s25, 1
      %p221 = scmp.ne.s32.totalorder %s216, %s218
      %p222 = scmp.eq.s32.totalorder %s25, 0
      %p223 = por %p221, %p222
      %p224 = scmp.ne.s32.totalorder %s216, %s218
      %p225 = scmp.eq.s32.totalorder %s30, 1
      %p226 = por %p224, %p225
      %p227 = scmp.ne.s32.totalorder %s218, %s219
      %p228 = scmp.eq.s32.totalorder %s30, 0
      %p229 = por %p227, %p228
      %p230 = scmp.ne.s32.totalorder %s218, %s219
      %p231 = scmp.eq.s32.totalorder %s31, 1
      %p232 = por %p230, %p231
      %p234 = scmp.ne.s32.totalorder %s219, %s233
      %p235 = scmp.eq.s32.totalorder %s31, 0
      %p236 = por %p234, %p235
      %s238 = sadd.s32 %s237, 1
      %p241 = scmp.eq.s32.totalorder %s25, 1
      %p242 = scmp.ne.s32.totalorder %s237, %s239
      %p243 = scmp.eq.s32.totalorder %s25, 0
      %p244 = por %p242, %p243
      %p245 = scmp.ne.s32.totalorder %s237, %s239
      %p246 = scmp.eq.s32.totalorder %s30, 1
      %p247 = por %p245, %p246
      %p248 = scmp.ne.s32.totalorder %s239, %s240
      %p249 = scmp.eq.s32.totalorder %s30, 0
      %p250 = por %p248, %p249
      %p251 = scmp.ne.s32.totalorder %s239, %s240
      %p252 = scmp.eq.s32.totalorder %s31, 1
      %p253 = por %p251, %p252
      %p255 = scmp.ne.s32.totalorder %s240, %s254
      %p256 = scmp.eq.s32.totalorder %s31, 0
      %p257 = por %p255, %p256
      %p258 = scmp.le.s32.totalorder 1, %s25
      %p259 = scmp.lt.s32.totalorder %s25, 3
      %p260 = pnand %p258, %p259
      %p261 = pneg %p260
      // Predicated region
      $region9: #{baseline_adapter_transformer.1} parent=5 // pred_check
        _
      $region10: #{baseline_adapter_transformer.1} parent=5 // pred_check_branch
        %263 = sbr.rel (%p260) target = $region12
      $region11: #{baseline_adapter_transformer.1} parent=5 // pred_region
        %s264 = ssub.s32 %s25, 1
        // Predicated region
        $region13: #{baseline_adapter_transformer.1} parent=11 // pred_check
          %p265 = pneg %p46
        $region14: #{baseline_adapter_transformer.1} parent=11 // pred_check_branch
          %267 = sbr.rel (%p265) target = $region16
        $region15: #{baseline_adapter_transformer.1} parent=11 // pred_region
          _
        $region16: #{baseline_adapter_transformer.1} parent=11 // pred_fallthru
          _
        // Predicated region
        $region17: #{baseline_adapter_transformer.1} parent=11 // pred_check
          %p268 = pneg %p145
        $region18: #{baseline_adapter_transformer.1} parent=11 // pred_check_branch
          %270 = sbr.rel (%p268) target = $region20
        $region19: #{baseline_adapter_transformer.1} parent=11 // pred_region
          %s272 = ssub.s32 16, 16
          %273 = vsyncadd [#allocation10], %s272
          %s275 = sshll.u32 [#allocation9], 4
          %s276 = int_to_ptr.vmem [resolvable:$true] %s275
          %278 = dma.hbm_to_vmem [thread:$0]  %s4, 16, %s276, [#allocation10]
        $region20: #{baseline_adapter_transformer.1} parent=11 // pred_fallthru
          _
        // Predicated region
        $region21: #{baseline_adapter_transformer.1} parent=11 // pred_check
          %p279 = pneg %p166
        $region22: #{baseline_adapter_transformer.1} parent=11 // pred_check_branch
          %281 = sbr.rel (%p279) target = $region24
        $region23: #{baseline_adapter_transformer.1} parent=11 // pred_region
          %s283 = ssub.s32 20480, 20480
          %284 = vsyncadd [#allocation10], %s283
          %s285 = sshll.u32 [#allocation11], 4
          %s286 = int_to_ptr.vmem [resolvable:$true] %s285
          %291 = dma.hbm_to_vmem [thread:$0]  %s5, 20480, %s286, [#allocation10], 1280, 1280, 80
        $region24: #{baseline_adapter_transformer.1} parent=11 // pred_fallthru
          _
        // Predicated region
        $region25: #{baseline_adapter_transformer.1} parent=11 // pred_check
          %p292 = pneg %p187
        $region26: #{baseline_adapter_transformer.1} parent=11 // pred_check_branch
          %294 = sbr.rel (%p292) target = $region28
        $region27: #{baseline_adapter_transformer.1} parent=11 // pred_region
          %s296 = ssub.s32 320, 320
          %297 = vsyncadd [#allocation13], %s296
          %s299 = sshll.u32 [#allocation12], 4
          %s300 = int_to_ptr.vmem [resolvable:$true] %s299
          %302 = dma.hbm_to_vmem [thread:$0]  %s6, 320, %s300, [#allocation13]
        $region28: #{baseline_adapter_transformer.1} parent=11 // pred_fallthru
          _
        // Predicated region
        $region29: #{baseline_adapter_transformer.1} parent=11 // pred_check
          %p303 = pneg %p208
        $region30: #{baseline_adapter_transformer.1} parent=11 // pred_check_branch
          %305 = sbr.rel (%p303) target = $region32
        $region31: #{baseline_adapter_transformer.1} parent=11 // pred_region
          %s307 = ssub.s32 20480, 20480
          %308 = vsyncadd [#allocation13], %s307
          %s309 = sshll.u32 [#allocation14], 4
          %s310 = int_to_ptr.vmem [resolvable:$true] %s309
          %315 = dma.hbm_to_vmem [thread:$0]  %s7, 20480, %s310, [#allocation13], 64, 64, 4
        $region32: #{baseline_adapter_transformer.1} parent=11 // pred_fallthru
          _
        // Predicated region
        $region33: #{baseline_adapter_transformer.1} parent=11 // pred_check
          %p316 = pneg %p229
        $region34: #{baseline_adapter_transformer.1} parent=11 // pred_check_branch
          %318 = sbr.rel (%p316) target = $region36
        $region35: #{baseline_adapter_transformer.1} parent=11 // pred_region
          %s320 = ssub.s32 16, 16
          %321 = vsyncadd [#allocation16], %s320
          %s323 = sshll.u32 [#allocation15], 4
          %s324 = int_to_ptr.vmem [resolvable:$true] %s323
          %326 = dma.hbm_to_vmem [thread:$0]  %s8, 16, %s324, [#allocation16]
        $region36: #{baseline_adapter_transformer.1} parent=11 // pred_fallthru
          _
      $region12: #{baseline_adapter_transformer.1} parent=5 // pred_fallthru
        _
      %p327 = scmp.lt.s32.totalorder %s25, 2
      // Predicated region
      $region37: #{baseline_adapter_transformer.1} parent=5 // pred_check
        %p328 = pneg %p327
      $region38: #{baseline_adapter_transformer.1} parent=5 // pred_check_branch
        %330 = sbr.rel (%p328) target = $region40
      $region39: #{baseline_adapter_transformer.1} parent=5 // pred_region
        // Predicated region
        $region41: #{baseline_adapter_transformer.1} parent=39 // pred_check
          %p331 = pneg %p66
        $region42: #{baseline_adapter_transformer.1} parent=39 // pred_check_branch
          %333 = sbr.rel (%p331) target = $region44
        $region43: #{baseline_adapter_transformer.1} parent=39 // pred_region
          %s334 = sand.u32 %s56, 1
          %s335 = scalar_lea.sflag [#allocation4], %s334
          %s336 = sand.u32 %s56, 1
          %s337 = smul.addr %s336, 5120
          %s338 = scalar_lea.vmem [#allocation3], %s337
          %s339 = smul.u32 10, %s25
          %s341 = ssub.s32 81920, 81920
          %342 = vsyncadd %s335, %s341
          %s343 = smul.addr %s339, 64
          %s344 = scalar_lea.hbm %s1, %s343
          %s345 = sshll.u32 %s338, 4
          %s346 = int_to_ptr.vmem [resolvable:$true] %s345
          %351 = dma.hbm_to_vmem [thread:$0]  %s344, 81920, %s346, %s335, 1280, 640, 40
        $region44: #{baseline_adapter_transformer.1} parent=39 // pred_fallthru
          _
        // Predicated region
        $region45: #{baseline_adapter_transformer.1} parent=39 // pred_check
          %p352 = pneg %p92
        $region46: #{baseline_adapter_transformer.1} parent=39 // pred_check_branch
          %354 = sbr.rel (%p352) target = $region48
        $region47: #{baseline_adapter_transformer.1} parent=39 // pred_region
          %s355 = sand.u32 %s25, 1
          %s356 = scalar_lea.sflag [#allocation7], %s355
          %s357 = sand.u32 %s82, 1
          %s358 = smul.addr %s357, 10
          %s359 = scalar_lea.vmem [#allocation6], %s358
          %s360 = smul.u32 10, %s25
          %s362 = ssub.s32 160, 160
          %363 = vsyncadd %s356, %s362
          %s364 = smul.addr %s360, 16
          %s365 = scalar_lea.hbm %s2, %s364
          %s367 = sshll.u32 %s359, 4
          %s368 = int_to_ptr.vmem [resolvable:$true] %s367
          %370 = dma.hbm_to_vmem [thread:$0]  %s365, 160, %s368, %s356
        $region48: #{baseline_adapter_transformer.1} parent=39 // pred_fallthru
          _
        // Predicated region
        $region49: #{baseline_adapter_transformer.1} parent=39 // pred_check
          %p371 = pneg %p118
        $region50: #{baseline_adapter_transformer.1} parent=39 // pred_check_branch
          %373 = sbr.rel (%p371) target = $region52
        $region51: #{baseline_adapter_transformer.1} parent=39 // pred_region
          %s374 = sand.u32 %s25, 1
          %s375 = scalar_lea.sflag [#allocation7], %s374
          %s376 = sand.u32 %s108, 1
          %s377 = smul.addr %s376, 640
          %s378 = scalar_lea.vmem [#allocation8], %s377
          %s379 = smul.u32 160, %s25
          %s381 = ssub.s32 10240, 10240
          %382 = vsyncadd %s375, %s381
          %s383 = smul.addr %s379, 64
          %s384 = scalar_lea.hbm %s3, %s383
          %s385 = sshll.u32 %s378, 4
          %s386 = int_to_ptr.vmem [resolvable:$true] %s385
          %391 = dma.hbm_to_vmem [thread:$0]  %s384, 10240, %s386, %s375, 64, 64, 4
        $region52: #{baseline_adapter_transformer.1} parent=39 // pred_fallthru
          _
      $region40: #{baseline_adapter_transformer.1} parent=5 // pred_fallthru
        _
      %p392 = scmp.le.s32.totalorder 1, %s25
      %p393 = scmp.lt.s32.totalorder %s25, 3
      %p394 = pnand %p392, %p393
      %p395 = pneg %p394
      // Predicated region
      $region53: #{baseline_adapter_transformer.1} parent=5 // pred_check
        _
      $region54: #{baseline_adapter_transformer.1} parent=5 // pred_check_branch
        %397 = sbr.rel (%p394) target = $region56
      $region55: #{baseline_adapter_transformer.1} parent=5 // pred_region
        %s398 = ssub.s32 %s25, 1
        %s399 = sand.u32 %s59, 1
        %s400 = scalar_lea.sflag [#allocation4], %s399
        %s401 = sand.u32 %s59, 1
        %s402 = smul.addr %s401, 5120
        %s403 = scalar_lea.vmem [#allocation3], %s402
        // Predicated region
        $region57: #{baseline_adapter_transformer.1} parent=55 // pred_check
          %p404 = pneg %p72
        $region58: #{baseline_adapter_transformer.1} parent=55 // pred_check_branch
          %406 = sbr.rel (%p404) target = $region60
        $region59: #{baseline_adapter_transformer.1} parent=55 // pred_region
          %407 = dma.done %s400, 81920
        $region60: #{baseline_adapter_transformer.1} parent=55 // pred_fallthru
          _
        %s408 = sand.u32 %s30, 1
        %s409 = scalar_lea.sflag [#allocation7], %s408
        %s410 = sand.u32 %s85, 1
        %s411 = smul.addr %s410, 10
        %s412 = scalar_lea.vmem [#allocation6], %s411
        // Predicated region
        $region61: #{baseline_adapter_transformer.1} parent=55 // pred_check
          %p413 = pneg %p98
        $region62: #{baseline_adapter_transformer.1} parent=55 // pred_check_branch
          %415 = sbr.rel (%p413) target = $region64
        $region63: #{baseline_adapter_transformer.1} parent=55 // pred_region
          %416 = dma.done %s409, 160
        $region64: #{baseline_adapter_transformer.1} parent=55 // pred_fallthru
          _
        %s417 = sand.u32 %s30, 1
        %s418 = scalar_lea.sflag [#allocation7], %s417
        %s419 = sand.u32 %s111, 1
        %s420 = smul.addr %s419, 640
        %s421 = scalar_lea.vmem [#allocation8], %s420
        // Predicated region
        $region65: #{baseline_adapter_transformer.1} parent=55 // pred_check
          %p422 = pneg %p124
        $region66: #{baseline_adapter_transformer.1} parent=55 // pred_check_branch
          %424 = sbr.rel (%p422) target = $region68
        $region67: #{baseline_adapter_transformer.1} parent=55 // pred_region
          %425 = dma.done %s418, 10240
        $region68: #{baseline_adapter_transformer.1} parent=55 // pred_fallthru
          _
        // Predicated region
        $region69: #{baseline_adapter_transformer.1} parent=55 // pred_check
          %p426 = pneg %p145
        $region70: #{baseline_adapter_transformer.1} parent=55 // pred_check_branch
          %428 = sbr.rel (%p426) target = $region72
        $region71: #{baseline_adapter_transformer.1} parent=55 // pred_region
          %429 = dma.done [#allocation10], 16
        $region72: #{baseline_adapter_transformer.1} parent=55 // pred_fallthru
          _
        // Predicated region
        $region73: #{baseline_adapter_transformer.1} parent=55 // pred_check
          %p430 = pneg %p166
        $region74: #{baseline_adapter_transformer.1} parent=55 // pred_check_branch
          %432 = sbr.rel (%p430) target = $region76
        $region75: #{baseline_adapter_transformer.1} parent=55 // pred_region
          %433 = dma.done [#allocation10], 20480
        $region76: #{baseline_adapter_transformer.1} parent=55 // pred_fallthru
          _
        // Predicated region
        $region77: #{baseline_adapter_transformer.1} parent=55 // pred_check
          %p434 = pneg %p187
        $region78: #{baseline_adapter_transformer.1} parent=55 // pred_check_branch
          %436 = sbr.rel (%p434) target = $region80
        $region79: #{baseline_adapter_transformer.1} parent=55 // pred_region
          %437 = dma.done [#allocation13], 320
        $region80: #{baseline_adapter_transformer.1} parent=55 // pred_fallthru
          _
        // Predicated region
        $region81: #{baseline_adapter_transformer.1} parent=55 // pred_check
          %p438 = pneg %p208
        $region82: #{baseline_adapter_transformer.1} parent=55 // pred_check_branch
          %440 = sbr.rel (%p438) target = $region84
        $region83: #{baseline_adapter_transformer.1} parent=55 // pred_region
          %441 = dma.done [#allocation13], 20480
        $region84: #{baseline_adapter_transformer.1} parent=55 // pred_fallthru
          _
        // Predicated region
        $region85: #{baseline_adapter_transformer.1} parent=55 // pred_check
          %p442 = pneg %p229
        $region86: #{baseline_adapter_transformer.1} parent=55 // pred_check_branch
          %444 = sbr.rel (%p442) target = $region88
        $region87: #{baseline_adapter_transformer.1} parent=55 // pred_region
          %445 = dma.done [#allocation16], 16
        $region88: #{baseline_adapter_transformer.1} parent=55 // pred_fallthru
          _
        %p446 = pneg %p46
        %p447 = pneg %p43
        %s448 = sand.u32 %s59, 1
        %s449 = scalar_lea.sflag [#allocation4], %s448
        %s450 = sand.u32 %s59, 1
        %s451 = smul.addr %s450, 5120
        %s452 = scalar_lea.vmem [#allocation3], %s451
        %p453 = pneg %p72
        %p454 = pneg %p69
        %s455 = sand.u32 %s30, 1
        %s456 = scalar_lea.sflag [#allocation7], %s455
        %s457 = sand.u32 %s85, 1
        %s458 = smul.addr %s457, 10
        %s459 = scalar_lea.vmem [#allocation6], %s458
        %p460 = pneg %p98
        %p461 = pneg %p95
        %s462 = sand.u32 %s30, 1
        %s463 = scalar_lea.sflag [#allocation7], %s462
        %s464 = sand.u32 %s111, 1
        %s465 = smul.addr %s464, 640
        %s466 = scalar_lea.vmem [#allocation8], %s465
        %p467 = pneg %p124
        %p468 = pneg %p121
        %p469 = pneg %p145
        %p470 = pneg %p142
        %p471 = pneg %p166
        %p472 = pneg %p163
        %p473 = pneg %p187
        %p474 = pneg %p184
        %p475 = pneg %p208
        %p476 = pneg %p205
        %p477 = pneg %p229
        %p478 = pneg %p226
        %p479 = pneg %p250
        %p480 = pneg %p247
        %s481 = smul.u32 10, %s30
        %s482 = smul.u32 10, %s30
        %s483 = smul.u32 160, %s30
        %p485 = scmp.eq.s32.totalorder %s30, 0
        // Predicated region
        $region89: #{baseline_adapter_transformer.1} parent=55 // pred_check
          %p486 = pneg %p485
        $region90: #{baseline_adapter_transformer.1} parent=55 // pred_check_branch
          %488 = sbr.rel (%p486) target = $region92
        $region91: #{baseline_adapter_transformer.1} parent=55 // pred_region
          %489 = vst [vmem:[#allocation2] sm:$0x3] 0.0
        $region92: #{baseline_adapter_transformer.1} parent=55 // pred_fallthru
          _
        %v490 = vld [vmem:[%s0] sm:$0xff]
        %v491 = vld [vmem:[%s403] sm:$0xff]
        %v492 = vld [vmem:[%s403 + $0x8] sm:$0xff]
        %v493 = vld [vmem:[%s403 + $0x10] sm:$0xff]
        %v494 = vld [vmem:[%s403 + $0x18] sm:$0xff]
        %v495 = vld [vmem:[%s403 + $0x20] sm:$0xff]
        %v496 = vld [vmem:[%s403 + $0x28] sm:$0xff]
        %v497 = vld [vmem:[%s403 + $0x30] sm:$0xff]
        %v498 = vld [vmem:[%s403 + $0x38] sm:$0xff]
        %v499 = vld [vmem:[%s403 + $0x40] sm:$0xff]
        %v500 = vld [vmem:[%s403 + $0x48] sm:$0xff]
        %v501 = vld [vmem:[%s403 + $0x50] sm:$0xff]
        %v502 = vld [vmem:[%s403 + $0x58] sm:$0xff]
        %v503 = vld [vmem:[%s403 + $0x60] sm:$0xff]
        %v504 = vld [vmem:[%s403 + $0x68] sm:$0xff]
        %v505 = vld [vmem:[%s403 + $0x70] sm:$0xff]
        %v506 = vld [vmem:[%s403 + $0x78] sm:$0xff]
        %v507 = vld [vmem:[%s403 + $0x80] sm:$0xff]
        %v508 = vld [vmem:[%s403 + $0x88] sm:$0xff]
        %v509 = vld [vmem:[%s403 + $0x90] sm:$0xff]
        %v510 = vld [vmem:[%s403 + $0x98] sm:$0xff]
        %v511 = vld [vmem:[%s403 + $0xa0] sm:$0xff]
        %v512 = vld [vmem:[%s403 + $0xa8] sm:$0xff]
        %v513 = vld [vmem:[%s403 + $0xb0] sm:$0xff]
        %v514 = vld [vmem:[%s403 + $0xb8] sm:$0xff]
        %v515 = vld [vmem:[%s403 + $0xc0] sm:$0xff]
        %v516 = vld [vmem:[%s403 + $0xc8] sm:$0xff]
        %v517 = vld [vmem:[%s403 + $0xd0] sm:$0xff]
        %v518 = vld [vmem:[%s403 + $0xd8] sm:$0xff]
        %v519 = vld [vmem:[%s403 + $0xe0] sm:$0xff]
        %v520 = vld [vmem:[%s403 + $0xe8] sm:$0xff]
        %v521 = vld [vmem:[%s403 + $0xf0] sm:$0xff]
        %v522 = vld [vmem:[%s403 + $0xf8] sm:$0xff]
        %v523 = vld [vmem:[%s403 + $0x100] sm:$0xff]
        %v524 = vld [vmem:[%s403 + $0x108] sm:$0xff]
        %v525 = vld [vmem:[%s403 + $0x110] sm:$0xff]
        %v526 = vld [vmem:[%s403 + $0x118] sm:$0xff]
        %v527 = vld [vmem:[%s403 + $0x120] sm:$0xff]
        %v528 = vld [vmem:[%s403 + $0x128] sm:$0xff]
        %v529 = vld [vmem:[%s403 + $0x130] sm:$0xff]
        %v530 = vld [vmem:[%s403 + $0x138] sm:$0xff]
        %v531 = vld [vmem:[%s403 + $0x140] sm:$0xff]
        %v532 = vld [vmem:[%s403 + $0x148] sm:$0xff]
        %v533 = vld [vmem:[%s403 + $0x150] sm:$0xff]
        %v534 = vld [vmem:[%s403 + $0x158] sm:$0xff]
        %v535 = vld [vmem:[%s403 + $0x160] sm:$0xff]
        %v536 = vld [vmem:[%s403 + $0x168] sm:$0xff]
        %v537 = vld [vmem:[%s403 + $0x170] sm:$0xff]
        %v538 = vld [vmem:[%s403 + $0x178] sm:$0xff]
        %v539 = vld [vmem:[%s403 + $0x180] sm:$0xff]
        %v540 = vld [vmem:[%s403 + $0x188] sm:$0xff]
        %v541 = vld [vmem:[%s403 + $0x190] sm:$0xff]
        %v542 = vld [vmem:[%s403 + $0x198] sm:$0xff]
        %v543 = vld [vmem:[%s403 + $0x1a0] sm:$0xff]
        %v544 = vld [vmem:[%s403 + $0x1a8] sm:$0xff]
        %v545 = vld [vmem:[%s403 + $0x1b0] sm:$0xff]
        %v546 = vld [vmem:[%s403 + $0x1b8] sm:$0xff]
        %v547 = vld [vmem:[%s403 + $0x1c0] sm:$0xff]
        %v548 = vld [vmem:[%s403 + $0x1c8] sm:$0xff]
        %v549 = vld [vmem:[%s403 + $0x1d0] sm:$0xff]
        %v550 = vld [vmem:[%s403 + $0x1d8] sm:$0xff]
        %v551 = vld [vmem:[%s403 + $0x1e0] sm:$0xff]
        %v552 = vld [vmem:[%s403 + $0x1e8] sm:$0xff]
        %v553 = vld [vmem:[%s403 + $0x1f0] sm:$0xff]
        %v554 = vld [vmem:[%s403 + $0x1f8] sm:$0xff]
        %v555 = vld [vmem:[%s403 + $0x200] sm:$0xff]
        %v556 = vld [vmem:[%s403 + $0x208] sm:$0xff]
        %v557 = vld [vmem:[%s403 + $0x210] sm:$0xff]
        %v558 = vld [vmem:[%s403 + $0x218] sm:$0xff]
        %v559 = vld [vmem:[%s403 + $0x220] sm:$0xff]
        %v560 = vld [vmem:[%s403 + $0x228] sm:$0xff]
        %v561 = vld [vmem:[%s403 + $0x230] sm:$0xff]
        %v562 = vld [vmem:[%s403 + $0x238] sm:$0xff]
        %v563 = vld [vmem:[%s403 + $0x240] sm:$0xff]
        %v564 = vld [vmem:[%s403 + $0x248] sm:$0xff]
        %v565 = vld [vmem:[%s403 + $0x250] sm:$0xff]
        %v566 = vld [vmem:[%s403 + $0x258] sm:$0xff]
        %v567 = vld [vmem:[%s403 + $0x260] sm:$0xff]
        %v568 = vld [vmem:[%s403 + $0x268] sm:$0xff]
        %v569 = vld [vmem:[%s403 + $0x270] sm:$0xff]
        %v570 = vld [vmem:[%s403 + $0x278] sm:$0xff]
        %v571 = vld [vmem:[%s403 + $0x280] sm:$0xff]
        %v572 = vld [vmem:[%s403 + $0x288] sm:$0xff]
        %v573 = vld [vmem:[%s403 + $0x290] sm:$0xff]
        %v574 = vld [vmem:[%s403 + $0x298] sm:$0xff]
        %v575 = vld [vmem:[%s403 + $0x2a0] sm:$0xff]
        %v576 = vld [vmem:[%s403 + $0x2a8] sm:$0xff]
        %v577 = vld [vmem:[%s403 + $0x2b0] sm:$0xff]
        %v578 = vld [vmem:[%s403 + $0x2b8] sm:$0xff]
        %v579 = vld [vmem:[%s403 + $0x2c0] sm:$0xff]
        %v580 = vld [vmem:[%s403 + $0x2c8] sm:$0xff]
        %v581 = vld [vmem:[%s403 + $0x2d0] sm:$0xff]
        %v582 = vld [vmem:[%s403 + $0x2d8] sm:$0xff]
        %v583 = vld [vmem:[%s403 + $0x2e0] sm:$0xff]
        %v584 = vld [vmem:[%s403 + $0x2e8] sm:$0xff]
        %v585 = vld [vmem:[%s403 + $0x2f0] sm:$0xff]
        %v586 = vld [vmem:[%s403 + $0x2f8] sm:$0xff]
        %v587 = vld [vmem:[%s403 + $0x300] sm:$0xff]
        %v588 = vld [vmem:[%s403 + $0x308] sm:$0xff]
        %v589 = vld [vmem:[%s403 + $0x310] sm:$0xff]
        %v590 = vld [vmem:[%s403 + $0x318] sm:$0xff]
        %v591 = vld [vmem:[%s403 + $0x320] sm:$0xff]
        %v592 = vld [vmem:[%s403 + $0x328] sm:$0xff]
        %v593 = vld [vmem:[%s403 + $0x330] sm:$0xff]
        %v594 = vld [vmem:[%s403 + $0x338] sm:$0xff]
        %v595 = vld [vmem:[%s403 + $0x340] sm:$0xff]
        %v596 = vld [vmem:[%s403 + $0x348] sm:$0xff]
        %v597 = vld [vmem:[%s403 + $0x350] sm:$0xff]
        %v598 = vld [vmem:[%s403 + $0x358] sm:$0xff]
        %v599 = vld [vmem:[%s403 + $0x360] sm:$0xff]
        %v600 = vld [vmem:[%s403 + $0x368] sm:$0xff]
        %v601 = vld [vmem:[%s403 + $0x370] sm:$0xff]
        %v602 = vld [vmem:[%s403 + $0x378] sm:$0xff]
        %v603 = vld [vmem:[%s403 + $0x380] sm:$0xff]
        %v604 = vld [vmem:[%s403 + $0x388] sm:$0xff]
        %v605 = vld [vmem:[%s403 + $0x390] sm:$0xff]
        %v606 = vld [vmem:[%s403 + $0x398] sm:$0xff]
        %v607 = vld [vmem:[%s403 + $0x3a0] sm:$0xff]
        %v608 = vld [vmem:[%s403 + $0x3a8] sm:$0xff]
        %v609 = vld [vmem:[%s403 + $0x3b0] sm:$0xff]
        %v610 = vld [vmem:[%s403 + $0x3b8] sm:$0xff]
        %v611 = vld [vmem:[%s403 + $0x3c0] sm:$0xff]
        %v612 = vld [vmem:[%s403 + $0x3c8] sm:$0xff]
        %v613 = vld [vmem:[%s403 + $0x3d0] sm:$0xff]
        %v614 = vld [vmem:[%s403 + $0x3d8] sm:$0xff]
        %v615 = vld [vmem:[%s403 + $0x3e0] sm:$0xff]
        %v616 = vld [vmem:[%s403 + $0x3e8] sm:$0xff]
        %v617 = vld [vmem:[%s403 + $0x3f0] sm:$0xff]
        %v618 = vld [vmem:[%s403 + $0x3f8] sm:$0xff]
        %v619 = vld [vmem:[%s403 + $0x400] sm:$0xff]
        %v620 = vld [vmem:[%s403 + $0x408] sm:$0xff]
        %v621 = vld [vmem:[%s403 + $0x410] sm:$0xff]
        %v622 = vld [vmem:[%s403 + $0x418] sm:$0xff]
        %v623 = vld [vmem:[%s403 + $0x420] sm:$0xff]
        %v624 = vld [vmem:[%s403 + $0x428] sm:$0xff]
        %v625 = vld [vmem:[%s403 + $0x430] sm:$0xff]
        %v626 = vld [vmem:[%s403 + $0x438] sm:$0xff]
        %v627 = vld [vmem:[%s403 + $0x440] sm:$0xff]
        %v628 = vld [vmem:[%s403 + $0x448] sm:$0xff]
        %v629 = vld [vmem:[%s403 + $0x450] sm:$0xff]
        %v630 = vld [vmem:[%s403 + $0x458] sm:$0xff]
        %v631 = vld [vmem:[%s403 + $0x460] sm:$0xff]
        %v632 = vld [vmem:[%s403 + $0x468] sm:$0xff]
        %v633 = vld [vmem:[%s403 + $0x470] sm:$0xff]
        %v634 = vld [vmem:[%s403 + $0x478] sm:$0xff]
        %v635 = vld [vmem:[%s403 + $0x480] sm:$0xff]
        %v636 = vld [vmem:[%s403 + $0x488] sm:$0xff]
        %v637 = vld [vmem:[%s403 + $0x490] sm:$0xff]
        %v638 = vld [vmem:[%s403 + $0x498] sm:$0xff]
        %v639 = vld [vmem:[%s403 + $0x4a0] sm:$0xff]
        %v640 = vld [vmem:[%s403 + $0x4a8] sm:$0xff]
        %v641 = vld [vmem:[%s403 + $0x4b0] sm:$0xff]
        %v642 = vld [vmem:[%s403 + $0x4b8] sm:$0xff]
        %v643 = vld [vmem:[%s403 + $0x4c0] sm:$0xff]
        %v644 = vld [vmem:[%s403 + $0x4c8] sm:$0xff]
        %v645 = vld [vmem:[%s403 + $0x4d0] sm:$0xff]
        %v646 = vld [vmem:[%s403 + $0x4d8] sm:$0xff]
        %v647 = vld [vmem:[%s403 + $0x4e0] sm:$0xff]
        %v648 = vld [vmem:[%s403 + $0x4e8] sm:$0xff]
        %v649 = vld [vmem:[%s403 + $0x4f0] sm:$0xff]
        %v650 = vld [vmem:[%s403 + $0x4f8] sm:$0xff]
        %v651 = vld [vmem:[%s403 + $0x500] sm:$0xff]
        %v652 = vld [vmem:[%s403 + $0x508] sm:$0xff]
        %v653 = vld [vmem:[%s403 + $0x510] sm:$0xff]
        %v654 = vld [vmem:[%s403 + $0x518] sm:$0xff]
        %v655 = vld [vmem:[%s403 + $0x520] sm:$0xff]
        %v656 = vld [vmem:[%s403 + $0x528] sm:$0xff]
        %v657 = vld [vmem:[%s403 + $0x530] sm:$0xff]
        %v658 = vld [vmem:[%s403 + $0x538] sm:$0xff]
        %v659 = vld [vmem:[%s403 + $0x540] sm:$0xff]
        %v660 = vld [vmem:[%s403 + $0x548] sm:$0xff]
        %v661 = vld [vmem:[%s403 + $0x550] sm:$0xff]
        %v662 = vld [vmem:[%s403 + $0x558] sm:$0xff]
        %v663 = vld [vmem:[%s403 + $0x560] sm:$0xff]
        %v664 = vld [vmem:[%s403 + $0x568] sm:$0xff]
        %v665 = vld [vmem:[%s403 + $0x570] sm:$0xff]
        %v666 = vld [vmem:[%s403 + $0x578] sm:$0xff]
        %v667 = vld [vmem:[%s403 + $0x580] sm:$0xff]
        %v668 = vld [vmem:[%s403 + $0x588] sm:$0xff]
        %v669 = vld [vmem:[%s403 + $0x590] sm:$0xff]
        %v670 = vld [vmem:[%s403 + $0x598] sm:$0xff]
        %v671 = vld [vmem:[%s403 + $0x5a0] sm:$0xff]
        %v672 = vld [vmem:[%s403 + $0x5a8] sm:$0xff]
        %v673 = vld [vmem:[%s403 + $0x5b0] sm:$0xff]
        %v674 = vld [vmem:[%s403 + $0x5b8] sm:$0xff]
        %v675 = vld [vmem:[%s403 + $0x5c0] sm:$0xff]
        %v676 = vld [vmem:[%s403 + $0x5c8] sm:$0xff]
        %v677 = vld [vmem:[%s403 + $0x5d0] sm:$0xff]
        %v678 = vld [vmem:[%s403 + $0x5d8] sm:$0xff]
        %v679 = vld [vmem:[%s403 + $0x5e0] sm:$0xff]
        %v680 = vld [vmem:[%s403 + $0x5e8] sm:$0xff]
        %v681 = vld [vmem:[%s403 + $0x5f0] sm:$0xff]
        %v682 = vld [vmem:[%s403 + $0x5f8] sm:$0xff]
        %v683 = vld [vmem:[%s403 + $0x600] sm:$0xff]
        %v684 = vld [vmem:[%s403 + $0x608] sm:$0xff]
        %v685 = vld [vmem:[%s403 + $0x610] sm:$0xff]
        %v686 = vld [vmem:[%s403 + $0x618] sm:$0xff]
        %v687 = vld [vmem:[%s403 + $0x620] sm:$0xff]
        %v688 = vld [vmem:[%s403 + $0x628] sm:$0xff]
        %v689 = vld [vmem:[%s403 + $0x630] sm:$0xff]
        %v690 = vld [vmem:[%s403 + $0x638] sm:$0xff]
        %v691 = vld [vmem:[%s403 + $0x640] sm:$0xff]
        %v692 = vld [vmem:[%s403 + $0x648] sm:$0xff]
        %v693 = vld [vmem:[%s403 + $0x650] sm:$0xff]
        %v694 = vld [vmem:[%s403 + $0x658] sm:$0xff]
        %v695 = vld [vmem:[%s403 + $0x660] sm:$0xff]
        %v696 = vld [vmem:[%s403 + $0x668] sm:$0xff]
        %v697 = vld [vmem:[%s403 + $0x670] sm:$0xff]
        %v698 = vld [vmem:[%s403 + $0x678] sm:$0xff]
        %v699 = vld [vmem:[%s403 + $0x680] sm:$0xff]
        %v700 = vld [vmem:[%s403 + $0x688] sm:$0xff]
        %v701 = vld [vmem:[%s403 + $0x690] sm:$0xff]
        %v702 = vld [vmem:[%s403 + $0x698] sm:$0xff]
        %v703 = vld [vmem:[%s403 + $0x6a0] sm:$0xff]
        %v704 = vld [vmem:[%s403 + $0x6a8] sm:$0xff]
        %v705 = vld [vmem:[%s403 + $0x6b0] sm:$0xff]
        %v706 = vld [vmem:[%s403 + $0x6b8] sm:$0xff]
        %v707 = vld [vmem:[%s403 + $0x6c0] sm:$0xff]
        %v708 = vld [vmem:[%s403 + $0x6c8] sm:$0xff]
        %v709 = vld [vmem:[%s403 + $0x6d0] sm:$0xff]
        %v710 = vld [vmem:[%s403 + $0x6d8] sm:$0xff]
        %v711 = vld [vmem:[%s403 + $0x6e0] sm:$0xff]
        %v712 = vld [vmem:[%s403 + $0x6e8] sm:$0xff]
        %v713 = vld [vmem:[%s403 + $0x6f0] sm:$0xff]
        %v714 = vld [vmem:[%s403 + $0x6f8] sm:$0xff]
        %v715 = vld [vmem:[%s403 + $0x700] sm:$0xff]
        %v716 = vld [vmem:[%s403 + $0x708] sm:$0xff]
        %v717 = vld [vmem:[%s403 + $0x710] sm:$0xff]
        %v718 = vld [vmem:[%s403 + $0x718] sm:$0xff]
        %v719 = vld [vmem:[%s403 + $0x720] sm:$0xff]
        %v720 = vld [vmem:[%s403 + $0x728] sm:$0xff]
        %v721 = vld [vmem:[%s403 + $0x730] sm:$0xff]
        %v722 = vld [vmem:[%s403 + $0x738] sm:$0xff]
        %v723 = vld [vmem:[%s403 + $0x740] sm:$0xff]
        %v724 = vld [vmem:[%s403 + $0x748] sm:$0xff]
        %v725 = vld [vmem:[%s403 + $0x750] sm:$0xff]
        %v726 = vld [vmem:[%s403 + $0x758] sm:$0xff]
        %v727 = vld [vmem:[%s403 + $0x760] sm:$0xff]
        %v728 = vld [vmem:[%s403 + $0x768] sm:$0xff]
        %v729 = vld [vmem:[%s403 + $0x770] sm:$0xff]
        %v730 = vld [vmem:[%s403 + $0x778] sm:$0xff]
        %v731 = vld [vmem:[%s403 + $0x780] sm:$0xff]
        %v732 = vld [vmem:[%s403 + $0x788] sm:$0xff]
        %v733 = vld [vmem:[%s403 + $0x790] sm:$0xff]
        %v734 = vld [vmem:[%s403 + $0x798] sm:$0xff]
        %v735 = vld [vmem:[%s403 + $0x7a0] sm:$0xff]
        %v736 = vld [vmem:[%s403 + $0x7a8] sm:$0xff]
        %v737 = vld [vmem:[%s403 + $0x7b0] sm:$0xff]
        %v738 = vld [vmem:[%s403 + $0x7b8] sm:$0xff]
        %v739 = vld [vmem:[%s403 + $0x7c0] sm:$0xff]
        %v740 = vld [vmem:[%s403 + $0x7c8] sm:$0xff]
        %v741 = vld [vmem:[%s403 + $0x7d0] sm:$0xff]
        %v742 = vld [vmem:[%s403 + $0x7d8] sm:$0xff]
        %v743 = vld [vmem:[%s403 + $0x7e0] sm:$0xff]
        %v744 = vld [vmem:[%s403 + $0x7e8] sm:$0xff]
        %v745 = vld [vmem:[%s403 + $0x7f0] sm:$0xff]
        %v746 = vld [vmem:[%s403 + $0x7f8] sm:$0xff]
        %v747 = vld [vmem:[%s403 + $0x800] sm:$0xff]
        %v748 = vld [vmem:[%s403 + $0x808] sm:$0xff]
        %v749 = vld [vmem:[%s403 + $0x810] sm:$0xff]
        %v750 = vld [vmem:[%s403 + $0x818] sm:$0xff]
        %v751 = vld [vmem:[%s403 + $0x820] sm:$0xff]
        %v752 = vld [vmem:[%s403 + $0x828] sm:$0xff]
        %v753 = vld [vmem:[%s403 + $0x830] sm:$0xff]
        %v754 = vld [vmem:[%s403 + $0x838] sm:$0xff]
        %v755 = vld [vmem:[%s403 + $0x840] sm:$0xff]
        %v756 = vld [vmem:[%s403 + $0x848] sm:$0xff]
        %v757 = vld [vmem:[%s403 + $0x850] sm:$0xff]
        %v758 = vld [vmem:[%s403 + $0x858] sm:$0xff]
        %v759 = vld [vmem:[%s403 + $0x860] sm:$0xff]
        %v760 = vld [vmem:[%s403 + $0x868] sm:$0xff]
        %v761 = vld [vmem:[%s403 + $0x870] sm:$0xff]
        %v762 = vld [vmem:[%s403 + $0x878] sm:$0xff]
        %v763 = vld [vmem:[%s403 + $0x880] sm:$0xff]
        %v764 = vld [vmem:[%s403 + $0x888] sm:$0xff]
        %v765 = vld [vmem:[%s403 + $0x890] sm:$0xff]
        %v766 = vld [vmem:[%s403 + $0x898] sm:$0xff]
        %v767 = vld [vmem:[%s403 + $0x8a0] sm:$0xff]
        %v768 = vld [vmem:[%s403 + $0x8a8] sm:$0xff]
        %v769 = vld [vmem:[%s403 + $0x8b0] sm:$0xff]
        %v770 = vld [vmem:[%s403 + $0x8b8] sm:$0xff]
        %v771 = vld [vmem:[%s403 + $0x8c0] sm:$0xff]
        %v772 = vld [vmem:[%s403 + $0x8c8] sm:$0xff]
        %v773 = vld [vmem:[%s403 + $0x8d0] sm:$0xff]
        %v774 = vld [vmem:[%s403 + $0x8d8] sm:$0xff]
        %v775 = vld [vmem:[%s403 + $0x8e0] sm:$0xff]
        %v776 = vld [vmem:[%s403 + $0x8e8] sm:$0xff]
        %v777 = vld [vmem:[%s403 + $0x8f0] sm:$0xff]
        %v778 = vld [vmem:[%s403 + $0x8f8] sm:$0xff]
        %v779 = vld [vmem:[%s403 + $0x900] sm:$0xff]
        %v780 = vld [vmem:[%s403 + $0x908] sm:$0xff]
        %v781 = vld [vmem:[%s403 + $0x910] sm:$0xff]
        %v782 = vld [vmem:[%s403 + $0x918] sm:$0xff]
        %v783 = vld [vmem:[%s403 + $0x920] sm:$0xff]
        %v784 = vld [vmem:[%s403 + $0x928] sm:$0xff]
        %v785 = vld [vmem:[%s403 + $0x930] sm:$0xff]
        %v786 = vld [vmem:[%s403 + $0x938] sm:$0xff]
        %v787 = vld [vmem:[%s403 + $0x940] sm:$0xff]
        %v788 = vld [vmem:[%s403 + $0x948] sm:$0xff]
        %v789 = vld [vmem:[%s403 + $0x950] sm:$0xff]
        %v790 = vld [vmem:[%s403 + $0x958] sm:$0xff]
        %v791 = vld [vmem:[%s403 + $0x960] sm:$0xff]
        %v792 = vld [vmem:[%s403 + $0x968] sm:$0xff]
        %v793 = vld [vmem:[%s403 + $0x970] sm:$0xff]
        %v794 = vld [vmem:[%s403 + $0x978] sm:$0xff]
        %v795 = vld [vmem:[%s403 + $0x980] sm:$0xff]
        %v796 = vld [vmem:[%s403 + $0x988] sm:$0xff]
        %v797 = vld [vmem:[%s403 + $0x990] sm:$0xff]
        %v798 = vld [vmem:[%s403 + $0x998] sm:$0xff]
        %v799 = vld [vmem:[%s403 + $0x9a0] sm:$0xff]
        %v800 = vld [vmem:[%s403 + $0x9a8] sm:$0xff]
        %v801 = vld [vmem:[%s403 + $0x9b0] sm:$0xff]
        %v802 = vld [vmem:[%s403 + $0x9b8] sm:$0xff]
        %v803 = vld [vmem:[%s403 + $0x9c0] sm:$0xff]
        %v804 = vld [vmem:[%s403 + $0x9c8] sm:$0xff]
        %v805 = vld [vmem:[%s403 + $0x9d0] sm:$0xff]
        %v806 = vld [vmem:[%s403 + $0x9d8] sm:$0xff]
        %v807 = vld [vmem:[%s403 + $0x9e0] sm:$0xff]
        %v808 = vld [vmem:[%s403 + $0x9e8] sm:$0xff]
        %v809 = vld [vmem:[%s403 + $0x9f0] sm:$0xff]
        %v810 = vld [vmem:[%s403 + $0x9f8] sm:$0xff]
        %v811 = vld [vmem:[%s403 + $0xa00] sm:$0xff]
        %v812 = vld [vmem:[%s403 + $0xa08] sm:$0xff]
        %v813 = vld [vmem:[%s403 + $0xa10] sm:$0xff]
        %v814 = vld [vmem:[%s403 + $0xa18] sm:$0xff]
        %v815 = vld [vmem:[%s403 + $0xa20] sm:$0xff]
        %v816 = vld [vmem:[%s403 + $0xa28] sm:$0xff]
        %v817 = vld [vmem:[%s403 + $0xa30] sm:$0xff]
        %v818 = vld [vmem:[%s403 + $0xa38] sm:$0xff]
        %v819 = vld [vmem:[%s403 + $0xa40] sm:$0xff]
        %v820 = vld [vmem:[%s403 + $0xa48] sm:$0xff]
        %v821 = vld [vmem:[%s403 + $0xa50] sm:$0xff]
        %v822 = vld [vmem:[%s403 + $0xa58] sm:$0xff]
        %v823 = vld [vmem:[%s403 + $0xa60] sm:$0xff]
        %v824 = vld [vmem:[%s403 + $0xa68] sm:$0xff]
        %v825 = vld [vmem:[%s403 + $0xa70] sm:$0xff]
        %v826 = vld [vmem:[%s403 + $0xa78] sm:$0xff]
        %v827 = vld [vmem:[%s403 + $0xa80] sm:$0xff]
        %v828 = vld [vmem:[%s403 + $0xa88] sm:$0xff]
        %v829 = vld [vmem:[%s403 + $0xa90] sm:$0xff]
        %v830 = vld [vmem:[%s403 + $0xa98] sm:$0xff]
        %v831 = vld [vmem:[%s403 + $0xaa0] sm:$0xff]
        %v832 = vld [vmem:[%s403 + $0xaa8] sm:$0xff]
        %v833 = vld [vmem:[%s403 + $0xab0] sm:$0xff]
        %v834 = vld [vmem:[%s403 + $0xab8] sm:$0xff]
        %v835 = vld [vmem:[%s403 + $0xac0] sm:$0xff]
        %v836 = vld [vmem:[%s403 + $0xac8] sm:$0xff]
        %v837 = vld [vmem:[%s403 + $0xad0] sm:$0xff]
        %v838 = vld [vmem:[%s403 + $0xad8] sm:$0xff]
        %v839 = vld [vmem:[%s403 + $0xae0] sm:$0xff]
        %v840 = vld [vmem:[%s403 + $0xae8] sm:$0xff]
        %v841 = vld [vmem:[%s403 + $0xaf0] sm:$0xff]
        %v842 = vld [vmem:[%s403 + $0xaf8] sm:$0xff]
        %v843 = vld [vmem:[%s403 + $0xb00] sm:$0xff]
        %v844 = vld [vmem:[%s403 + $0xb08] sm:$0xff]
        %v845 = vld [vmem:[%s403 + $0xb10] sm:$0xff]
        %v846 = vld [vmem:[%s403 + $0xb18] sm:$0xff]
        %v847 = vld [vmem:[%s403 + $0xb20] sm:$0xff]
        %v848 = vld [vmem:[%s403 + $0xb28] sm:$0xff]
        %v849 = vld [vmem:[%s403 + $0xb30] sm:$0xff]
        %v850 = vld [vmem:[%s403 + $0xb38] sm:$0xff]
        %v851 = vld [vmem:[%s403 + $0xb40] sm:$0xff]
        %v852 = vld [vmem:[%s403 + $0xb48] sm:$0xff]
        %v853 = vld [vmem:[%s403 + $0xb50] sm:$0xff]
        %v854 = vld [vmem:[%s403 + $0xb58] sm:$0xff]
        %v855 = vld [vmem:[%s403 + $0xb60] sm:$0xff]
        %v856 = vld [vmem:[%s403 + $0xb68] sm:$0xff]
        %v857 = vld [vmem:[%s403 + $0xb70] sm:$0xff]
        %v858 = vld [vmem:[%s403 + $0xb78] sm:$0xff]
        %v859 = vld [vmem:[%s403 + $0xb80] sm:$0xff]
        %v860 = vld [vmem:[%s403 + $0xb88] sm:$0xff]
        %v861 = vld [vmem:[%s403 + $0xb90] sm:$0xff]
        %v862 = vld [vmem:[%s403 + $0xb98] sm:$0xff]
        %v863 = vld [vmem:[%s403 + $0xba0] sm:$0xff]
        %v864 = vld [vmem:[%s403 + $0xba8] sm:$0xff]
        %v865 = vld [vmem:[%s403 + $0xbb0] sm:$0xff]
        %v866 = vld [vmem:[%s403 + $0xbb8] sm:$0xff]
        %v867 = vld [vmem:[%s403 + $0xbc0] sm:$0xff]
        %v868 = vld [vmem:[%s403 + $0xbc8] sm:$0xff]
        %v869 = vld [vmem:[%s403 + $0xbd0] sm:$0xff]
        %v870 = vld [vmem:[%s403 + $0xbd8] sm:$0xff]
        %v871 = vld [vmem:[%s403 + $0xbe0] sm:$0xff]
        %v872 = vld [vmem:[%s403 + $0xbe8] sm:$0xff]
        %v873 = vld [vmem:[%s403 + $0xbf0] sm:$0xff]
        %v874 = vld [vmem:[%s403 + $0xbf8] sm:$0xff]
        %v875 = vld [vmem:[%s403 + $0xc00] sm:$0xff]
        %v876 = vld [vmem:[%s403 + $0xc08] sm:$0xff]
        %v877 = vld [vmem:[%s403 + $0xc10] sm:$0xff]
        %v878 = vld [vmem:[%s403 + $0xc18] sm:$0xff]
        %v879 = vld [vmem:[%s403 + $0xc20] sm:$0xff]
        %v880 = vld [vmem:[%s403 + $0xc28] sm:$0xff]
        %v881 = vld [vmem:[%s403 + $0xc30] sm:$0xff]
        %v882 = vld [vmem:[%s403 + $0xc38] sm:$0xff]
        %v883 = vld [vmem:[%s403 + $0xc40] sm:$0xff]
        %v884 = vld [vmem:[%s403 + $0xc48] sm:$0xff]
        %v885 = vld [vmem:[%s403 + $0xc50] sm:$0xff]
        %v886 = vld [vmem:[%s403 + $0xc58] sm:$0xff]
        %v887 = vld [vmem:[%s403 + $0xc60] sm:$0xff]
        %v888 = vld [vmem:[%s403 + $0xc68] sm:$0xff]
        %v889 = vld [vmem:[%s403 + $0xc70] sm:$0xff]
        %v890 = vld [vmem:[%s403 + $0xc78] sm:$0xff]
        %v891 = vld [vmem:[%s403 + $0xc80] sm:$0xff]
        %v892 = vld [vmem:[%s403 + $0xc88] sm:$0xff]
        %v893 = vld [vmem:[%s403 + $0xc90] sm:$0xff]
        %v894 = vld [vmem:[%s403 + $0xc98] sm:$0xff]
        %v895 = vld [vmem:[%s403 + $0xca0] sm:$0xff]
        %v896 = vld [vmem:[%s403 + $0xca8] sm:$0xff]
        %v897 = vld [vmem:[%s403 + $0xcb0] sm:$0xff]
        %v898 = vld [vmem:[%s403 + $0xcb8] sm:$0xff]
        %v899 = vld [vmem:[%s403 + $0xcc0] sm:$0xff]
        %v900 = vld [vmem:[%s403 + $0xcc8] sm:$0xff]
        %v901 = vld [vmem:[%s403 + $0xcd0] sm:$0xff]
        %v902 = vld [vmem:[%s403 + $0xcd8] sm:$0xff]
        %v903 = vld [vmem:[%s403 + $0xce0] sm:$0xff]
        %v904 = vld [vmem:[%s403 + $0xce8] sm:$0xff]
        %v905 = vld [vmem:[%s403 + $0xcf0] sm:$0xff]
        %v906 = vld [vmem:[%s403 + $0xcf8] sm:$0xff]
        %v907 = vld [vmem:[%s403 + $0xd00] sm:$0xff]
        %v908 = vld [vmem:[%s403 + $0xd08] sm:$0xff]
        %v909 = vld [vmem:[%s403 + $0xd10] sm:$0xff]
        %v910 = vld [vmem:[%s403 + $0xd18] sm:$0xff]
        %v911 = vld [vmem:[%s403 + $0xd20] sm:$0xff]
        %v912 = vld [vmem:[%s403 + $0xd28] sm:$0xff]
        %v913 = vld [vmem:[%s403 + $0xd30] sm:$0xff]
        %v914 = vld [vmem:[%s403 + $0xd38] sm:$0xff]
        %v915 = vld [vmem:[%s403 + $0xd40] sm:$0xff]
        %v916 = vld [vmem:[%s403 + $0xd48] sm:$0xff]
        %v917 = vld [vmem:[%s403 + $0xd50] sm:$0xff]
        %v918 = vld [vmem:[%s403 + $0xd58] sm:$0xff]
        %v919 = vld [vmem:[%s403 + $0xd60] sm:$0xff]
        %v920 = vld [vmem:[%s403 + $0xd68] sm:$0xff]
        %v921 = vld [vmem:[%s403 + $0xd70] sm:$0xff]
        %v922 = vld [vmem:[%s403 + $0xd78] sm:$0xff]
        %v923 = vld [vmem:[%s403 + $0xd80] sm:$0xff]
        %v924 = vld [vmem:[%s403 + $0xd88] sm:$0xff]
        %v925 = vld [vmem:[%s403 + $0xd90] sm:$0xff]
        %v926 = vld [vmem:[%s403 + $0xd98] sm:$0xff]
        %v927 = vld [vmem:[%s403 + $0xda0] sm:$0xff]
        %v928 = vld [vmem:[%s403 + $0xda8] sm:$0xff]
        %v929 = vld [vmem:[%s403 + $0xdb0] sm:$0xff]
        %v930 = vld [vmem:[%s403 + $0xdb8] sm:$0xff]
        %v931 = vld [vmem:[%s403 + $0xdc0] sm:$0xff]
        %v932 = vld [vmem:[%s403 + $0xdc8] sm:$0xff]
        %v933 = vld [vmem:[%s403 + $0xdd0] sm:$0xff]
        %v934 = vld [vmem:[%s403 + $0xdd8] sm:$0xff]
        %v935 = vld [vmem:[%s403 + $0xde0] sm:$0xff]
        %v936 = vld [vmem:[%s403 + $0xde8] sm:$0xff]
        %v937 = vld [vmem:[%s403 + $0xdf0] sm:$0xff]
        %v938 = vld [vmem:[%s403 + $0xdf8] sm:$0xff]
        %v939 = vld [vmem:[%s403 + $0xe00] sm:$0xff]
        %v940 = vld [vmem:[%s403 + $0xe08] sm:$0xff]
        %v941 = vld [vmem:[%s403 + $0xe10] sm:$0xff]
        %v942 = vld [vmem:[%s403 + $0xe18] sm:$0xff]
        %v943 = vld [vmem:[%s403 + $0xe20] sm:$0xff]
        %v944 = vld [vmem:[%s403 + $0xe28] sm:$0xff]
        %v945 = vld [vmem:[%s403 + $0xe30] sm:$0xff]
        %v946 = vld [vmem:[%s403 + $0xe38] sm:$0xff]
        %v947 = vld [vmem:[%s403 + $0xe40] sm:$0xff]
        %v948 = vld [vmem:[%s403 + $0xe48] sm:$0xff]
        %v949 = vld [vmem:[%s403 + $0xe50] sm:$0xff]
        %v950 = vld [vmem:[%s403 + $0xe58] sm:$0xff]
        %v951 = vld [vmem:[%s403 + $0xe60] sm:$0xff]
        %v952 = vld [vmem:[%s403 + $0xe68] sm:$0xff]
        %v953 = vld [vmem:[%s403 + $0xe70] sm:$0xff]
        %v954 = vld [vmem:[%s403 + $0xe78] sm:$0xff]
        %v955 = vld [vmem:[%s403 + $0xe80] sm:$0xff]
        %v956 = vld [vmem:[%s403 + $0xe88] sm:$0xff]
        %v957 = vld [vmem:[%s403 + $0xe90] sm:$0xff]
        %v958 = vld [vmem:[%s403 + $0xe98] sm:$0xff]
        %v959 = vld [vmem:[%s403 + $0xea0] sm:$0xff]
        %v960 = vld [vmem:[%s403 + $0xea8] sm:$0xff]
        %v961 = vld [vmem:[%s403 + $0xeb0] sm:$0xff]
        %v962 = vld [vmem:[%s403 + $0xeb8] sm:$0xff]
        %v963 = vld [vmem:[%s403 + $0xec0] sm:$0xff]
        %v964 = vld [vmem:[%s403 + $0xec8] sm:$0xff]
        %v965 = vld [vmem:[%s403 + $0xed0] sm:$0xff]
        %v966 = vld [vmem:[%s403 + $0xed8] sm:$0xff]
        %v967 = vld [vmem:[%s403 + $0xee0] sm:$0xff]
        %v968 = vld [vmem:[%s403 + $0xee8] sm:$0xff]
        %v969 = vld [vmem:[%s403 + $0xef0] sm:$0xff]
        %v970 = vld [vmem:[%s403 + $0xef8] sm:$0xff]
        %v971 = vld [vmem:[%s403 + $0xf00] sm:$0xff]
        %v972 = vld [vmem:[%s403 + $0xf08] sm:$0xff]
        %v973 = vld [vmem:[%s403 + $0xf10] sm:$0xff]
        %v974 = vld [vmem:[%s403 + $0xf18] sm:$0xff]
        %v975 = vld [vmem:[%s403 + $0xf20] sm:$0xff]
        %v976 = vld [vmem:[%s403 + $0xf28] sm:$0xff]
        %v977 = vld [vmem:[%s403 + $0xf30] sm:$0xff]
        %v978 = vld [vmem:[%s403 + $0xf38] sm:$0xff]
        %v979 = vld [vmem:[%s403 + $0xf40] sm:$0xff]
        %v980 = vld [vmem:[%s403 + $0xf48] sm:$0xff]
        %v981 = vld [vmem:[%s403 + $0xf50] sm:$0xff]
        %v982 = vld [vmem:[%s403 + $0xf58] sm:$0xff]
        %v983 = vld [vmem:[%s403 + $0xf60] sm:$0xff]
        %v984 = vld [vmem:[%s403 + $0xf68] sm:$0xff]
        %v985 = vld [vmem:[%s403 + $0xf70] sm:$0xff]
        %v986 = vld [vmem:[%s403 + $0xf78] sm:$0xff]
        %v987 = vld [vmem:[%s403 + $0xf80] sm:$0xff]
        %v988 = vld [vmem:[%s403 + $0xf88] sm:$0xff]
        %v989 = vld [vmem:[%s403 + $0xf90] sm:$0xff]
        %v990 = vld [vmem:[%s403 + $0xf98] sm:$0xff]
        %v991 = vld [vmem:[%s403 + $0xfa0] sm:$0xff]
        %v992 = vld [vmem:[%s403 + $0xfa8] sm:$0xff]
        %v993 = vld [vmem:[%s403 + $0xfb0] sm:$0xff]
        %v994 = vld [vmem:[%s403 + $0xfb8] sm:$0xff]
        %v995 = vld [vmem:[%s403 + $0xfc0] sm:$0xff]
        %v996 = vld [vmem:[%s403 + $0xfc8] sm:$0xff]
        %v997 = vld [vmem:[%s403 + $0xfd0] sm:$0xff]
        %v998 = vld [vmem:[%s403 + $0xfd8] sm:$0xff]
        %v999 = vld [vmem:[%s403 + $0xfe0] sm:$0xff]
        %v1000 = vld [vmem:[%s403 + $0xfe8] sm:$0xff]
        %v1001 = vld [vmem:[%s403 + $0xff0] sm:$0xff]
        %v1002 = vld [vmem:[%s403 + $0xff8] sm:$0xff]
        %v1003 = vld [vmem:[%s403 + $0x1000] sm:$0xff]
        %v1004 = vld [vmem:[%s403 + $0x1008] sm:$0xff]
        %v1005 = vld [vmem:[%s403 + $0x1010] sm:$0xff]
        %v1006 = vld [vmem:[%s403 + $0x1018] sm:$0xff]
        %v1007 = vld [vmem:[%s403 + $0x1020] sm:$0xff]
        %v1008 = vld [vmem:[%s403 + $0x1028] sm:$0xff]
        %v1009 = vld [vmem:[%s403 + $0x1030] sm:$0xff]
        %v1010 = vld [vmem:[%s403 + $0x1038] sm:$0xff]
        %v1011 = vld [vmem:[%s403 + $0x1040] sm:$0xff]
        %v1012 = vld [vmem:[%s403 + $0x1048] sm:$0xff]
        %v1013 = vld [vmem:[%s403 + $0x1050] sm:$0xff]
        %v1014 = vld [vmem:[%s403 + $0x1058] sm:$0xff]
        %v1015 = vld [vmem:[%s403 + $0x1060] sm:$0xff]
        %v1016 = vld [vmem:[%s403 + $0x1068] sm:$0xff]
        %v1017 = vld [vmem:[%s403 + $0x1070] sm:$0xff]
        %v1018 = vld [vmem:[%s403 + $0x1078] sm:$0xff]
        %v1019 = vld [vmem:[%s403 + $0x1080] sm:$0xff]
        %v1020 = vld [vmem:[%s403 + $0x1088] sm:$0xff]
        %v1021 = vld [vmem:[%s403 + $0x1090] sm:$0xff]
        %v1022 = vld [vmem:[%s403 + $0x1098] sm:$0xff]
        %v1023 = vld [vmem:[%s403 + $0x10a0] sm:$0xff]
        %v1024 = vld [vmem:[%s403 + $0x10a8] sm:$0xff]
        %v1025 = vld [vmem:[%s403 + $0x10b0] sm:$0xff]
        %v1026 = vld [vmem:[%s403 + $0x10b8] sm:$0xff]
        %v1027 = vld [vmem:[%s403 + $0x10c0] sm:$0xff]
        %v1028 = vld [vmem:[%s403 + $0x10c8] sm:$0xff]
        %v1029 = vld [vmem:[%s403 + $0x10d0] sm:$0xff]
        %v1030 = vld [vmem:[%s403 + $0x10d8] sm:$0xff]
        %v1031 = vld [vmem:[%s403 + $0x10e0] sm:$0xff]
        %v1032 = vld [vmem:[%s403 + $0x10e8] sm:$0xff]
        %v1033 = vld [vmem:[%s403 + $0x10f0] sm:$0xff]
        %v1034 = vld [vmem:[%s403 + $0x10f8] sm:$0xff]
        %v1035 = vld [vmem:[%s403 + $0x1100] sm:$0xff]
        %v1036 = vld [vmem:[%s403 + $0x1108] sm:$0xff]
        %v1037 = vld [vmem:[%s403 + $0x1110] sm:$0xff]
        %v1038 = vld [vmem:[%s403 + $0x1118] sm:$0xff]
        %v1039 = vld [vmem:[%s403 + $0x1120] sm:$0xff]
        %v1040 = vld [vmem:[%s403 + $0x1128] sm:$0xff]
        %v1041 = vld [vmem:[%s403 + $0x1130] sm:$0xff]
        %v1042 = vld [vmem:[%s403 + $0x1138] sm:$0xff]
        %v1043 = vld [vmem:[%s403 + $0x1140] sm:$0xff]
        %v1044 = vld [vmem:[%s403 + $0x1148] sm:$0xff]
        %v1045 = vld [vmem:[%s403 + $0x1150] sm:$0xff]
        %v1046 = vld [vmem:[%s403 + $0x1158] sm:$0xff]
        %v1047 = vld [vmem:[%s403 + $0x1160] sm:$0xff]
        %v1048 = vld [vmem:[%s403 + $0x1168] sm:$0xff]
        %v1049 = vld [vmem:[%s403 + $0x1170] sm:$0xff]
        %v1050 = vld [vmem:[%s403 + $0x1178] sm:$0xff]
        %v1051 = vld [vmem:[%s403 + $0x1180] sm:$0xff]
        %v1052 = vld [vmem:[%s403 + $0x1188] sm:$0xff]
        %v1053 = vld [vmem:[%s403 + $0x1190] sm:$0xff]
        %v1054 = vld [vmem:[%s403 + $0x1198] sm:$0xff]
        %v1055 = vld [vmem:[%s403 + $0x11a0] sm:$0xff]
        %v1056 = vld [vmem:[%s403 + $0x11a8] sm:$0xff]
        %v1057 = vld [vmem:[%s403 + $0x11b0] sm:$0xff]
        %v1058 = vld [vmem:[%s403 + $0x11b8] sm:$0xff]
        %v1059 = vld [vmem:[%s403 + $0x11c0] sm:$0xff]
        %v1060 = vld [vmem:[%s403 + $0x11c8] sm:$0xff]
        %v1061 = vld [vmem:[%s403 + $0x11d0] sm:$0xff]
        %v1062 = vld [vmem:[%s403 + $0x11d8] sm:$0xff]
        %v1063 = vld [vmem:[%s403 + $0x11e0] sm:$0xff]
        %v1064 = vld [vmem:[%s403 + $0x11e8] sm:$0xff]
        %v1065 = vld [vmem:[%s403 + $0x11f0] sm:$0xff]
        %v1066 = vld [vmem:[%s403 + $0x11f8] sm:$0xff]
        %v1067 = vld [vmem:[%s403 + $0x1200] sm:$0xff]
        %v1068 = vld [vmem:[%s403 + $0x1208] sm:$0xff]
        %v1069 = vld [vmem:[%s403 + $0x1210] sm:$0xff]
        %v1070 = vld [vmem:[%s403 + $0x1218] sm:$0xff]
        %v1071 = vld [vmem:[%s403 + $0x1220] sm:$0xff]
        %v1072 = vld [vmem:[%s403 + $0x1228] sm:$0xff]
        %v1073 = vld [vmem:[%s403 + $0x1230] sm:$0xff]
        %v1074 = vld [vmem:[%s403 + $0x1238] sm:$0xff]
        %v1075 = vld [vmem:[%s403 + $0x1240] sm:$0xff]
        %v1076 = vld [vmem:[%s403 + $0x1248] sm:$0xff]
        %v1077 = vld [vmem:[%s403 + $0x1250] sm:$0xff]
        %v1078 = vld [vmem:[%s403 + $0x1258] sm:$0xff]
        %v1079 = vld [vmem:[%s403 + $0x1260] sm:$0xff]
        %v1080 = vld [vmem:[%s403 + $0x1268] sm:$0xff]
        %v1081 = vld [vmem:[%s403 + $0x1270] sm:$0xff]
        %v1082 = vld [vmem:[%s403 + $0x1278] sm:$0xff]
        %v1083 = vld [vmem:[%s403 + $0x1280] sm:$0xff]
        %v1084 = vld [vmem:[%s403 + $0x1288] sm:$0xff]
        %v1085 = vld [vmem:[%s403 + $0x1290] sm:$0xff]
        %v1086 = vld [vmem:[%s403 + $0x1298] sm:$0xff]
        %v1087 = vld [vmem:[%s403 + $0x12a0] sm:$0xff]
        %v1088 = vld [vmem:[%s403 + $0x12a8] sm:$0xff]
        %v1089 = vld [vmem:[%s403 + $0x12b0] sm:$0xff]
        %v1090 = vld [vmem:[%s403 + $0x12b8] sm:$0xff]
        %v1091 = vld [vmem:[%s403 + $0x12c0] sm:$0xff]
        %v1092 = vld [vmem:[%s403 + $0x12c8] sm:$0xff]
        %v1093 = vld [vmem:[%s403 + $0x12d0] sm:$0xff]
        %v1094 = vld [vmem:[%s403 + $0x12d8] sm:$0xff]
        %v1095 = vld [vmem:[%s403 + $0x12e0] sm:$0xff]
        %v1096 = vld [vmem:[%s403 + $0x12e8] sm:$0xff]
        %v1097 = vld [vmem:[%s403 + $0x12f0] sm:$0xff]
        %v1098 = vld [vmem:[%s403 + $0x12f8] sm:$0xff]
        %v1099 = vld [vmem:[%s403 + $0x1300] sm:$0xff]
        %v1100 = vld [vmem:[%s403 + $0x1308] sm:$0xff]
        %v1101 = vld [vmem:[%s403 + $0x1310] sm:$0xff]
        %v1102 = vld [vmem:[%s403 + $0x1318] sm:$0xff]
        %v1103 = vld [vmem:[%s403 + $0x1320] sm:$0xff]
        %v1104 = vld [vmem:[%s403 + $0x1328] sm:$0xff]
        %v1105 = vld [vmem:[%s403 + $0x1330] sm:$0xff]
        %v1106 = vld [vmem:[%s403 + $0x1338] sm:$0xff]
        %v1107 = vld [vmem:[%s403 + $0x1340] sm:$0xff]
        %v1108 = vld [vmem:[%s403 + $0x1348] sm:$0xff]
        %v1109 = vld [vmem:[%s403 + $0x1350] sm:$0xff]
        %v1110 = vld [vmem:[%s403 + $0x1358] sm:$0xff]
        %v1111 = vld [vmem:[%s403 + $0x1360] sm:$0xff]
        %v1112 = vld [vmem:[%s403 + $0x1368] sm:$0xff]
        %v1113 = vld [vmem:[%s403 + $0x1370] sm:$0xff]
        %v1114 = vld [vmem:[%s403 + $0x1378] sm:$0xff]
        %v1115 = vld [vmem:[%s403 + $0x1380] sm:$0xff]
        %v1116 = vld [vmem:[%s403 + $0x1388] sm:$0xff]
        %v1117 = vld [vmem:[%s403 + $0x1390] sm:$0xff]
        %v1118 = vld [vmem:[%s403 + $0x1398] sm:$0xff]
        %v1119 = vld [vmem:[%s403 + $0x13a0] sm:$0xff]
        %v1120 = vld [vmem:[%s403 + $0x13a8] sm:$0xff]
        %v1121 = vld [vmem:[%s403 + $0x13b0] sm:$0xff]
        %v1122 = vld [vmem:[%s403 + $0x13b8] sm:$0xff]
        %v1123 = vld [vmem:[%s403 + $0x13c0] sm:$0xff]
        %v1124 = vld [vmem:[%s403 + $0x13c8] sm:$0xff]
        %v1125 = vld [vmem:[%s403 + $0x13d0] sm:$0xff]
        %v1126 = vld [vmem:[%s403 + $0x13d8] sm:$0xff]
        %v1127 = vld [vmem:[%s403 + $0x13e0] sm:$0xff]
        %v1128 = vld [vmem:[%s403 + $0x13e8] sm:$0xff]
        %v1129 = vld [vmem:[%s403 + $0x13f0] sm:$0xff]
        %v1130 = vld [vmem:[%s403 + $0x13f8] sm:$0xff]
        %v1131 = vld [vmem:[%s412] sm:$0xff]
        %v1132 = vld [vmem:[%s412 + $0x8] sm:$0x3]
        %v1135 = vlaneseq
        %v1136 = vshrl.u32 %v1135, 7
        %v1137 = vsub.s32 0, %v1136
        %v1138 = vrot.slane %v1131, %v1137
        %v1139 = vlaneseq
        %v1140 = vshrl.u32 %v1139, 7
        %v1141 = vsub.s32 1, %v1140
        %v1142 = vrot.slane %v1131, %v1141
        %v1143 = vlaneseq
        %v1144 = vshrl.u32 %v1143, 7
        %v1145 = vsub.s32 2, %v1144
        %v1146 = vrot.slane %v1131, %v1145
        %v1147 = vlaneseq
        %v1148 = vshrl.u32 %v1147, 7
        %v1149 = vsub.s32 3, %v1148
        %v1150 = vrot.slane %v1131, %v1149
        %v1151 = vlaneseq
        %v1152 = vshrl.u32 %v1151, 7
        %v1153 = vsub.s32 4, %v1152
        %v1154 = vrot.slane %v1131, %v1153
        %v1155 = vlaneseq
        %v1156 = vshrl.u32 %v1155, 7
        %v1157 = vsub.s32 5, %v1156
        %v1158 = vrot.slane %v1131, %v1157
        %v1159 = vlaneseq
        %v1160 = vshrl.u32 %v1159, 7
        %v1161 = vsub.s32 6, %v1160
        %v1162 = vrot.slane %v1131, %v1161
        %v1163 = vlaneseq
        %v1164 = vshrl.u32 %v1163, 7
        %v1165 = vsub.s32 7, %v1164
        %v1166 = vrot.slane %v1131, %v1165
        %v1167 = vlaneseq
        %v1168 = vshrl.u32 %v1167, 7
        %v1169 = vsub.s32 0, %v1168
        %v1170 = vrot.slane %v1132, %v1169
        %v1171 = vlaneseq
        %v1172 = vshrl.u32 %v1171, 7
        %v1173 = vsub.s32 1, %v1172
        %v1174 = vrot.slane %v1132, %v1173
        %v1186 = vcombine.high %v490, %v490
        %v1188 = vunpack.c.l.s4 1966171168
        %v1189 = vunpack.c.0.s8 %v1188
        %v1190 = vlaneseq
        %v1191 = vshrl.u32 %v1190, 7
        %v1192 = vsub.s32 %v1189, %v1191
        %v1193 = vrot.slane %v490, %v1192
        %v1195 = vunpack.c.l.s4 1966171168
        %v1196 = vunpack.c.0.s8 %v1195
        %v1197 = vlaneseq
        %v1198 = vshrl.u32 %v1197, 7
        %v1199 = vsub.s32 %v1196, %v1198
        %v1200 = vrot.slane %v1186, %v1199
        %v1201 = vcombine.high %v1193, %v1193
        %v1202 = vcombine.high %v1200, %v1200
        %v1204 = vunpack.c.l.s4 1966171168
        %v1205 = vunpack.c.0.s8 %v1204
        %v1206 = vlaneseq
        %v1207 = vshrl.u32 %v1206, 7
        %v1208 = vsub.s32 %v1205, %v1207
        %v1209 = vrot.slane %v1193, %v1208
        %v1211 = vunpack.c.l.s4 1966171168
        %v1212 = vunpack.c.0.s8 %v1211
        %v1213 = vlaneseq
        %v1214 = vshrl.u32 %v1213, 7
        %v1215 = vsub.s32 %v1212, %v1214
        %v1216 = vrot.slane %v1200, %v1215
        %v1218 = vunpack.c.l.s4 1966171168
        %v1219 = vunpack.c.0.s8 %v1218
        %v1220 = vlaneseq
        %v1221 = vshrl.u32 %v1220, 7
        %v1222 = vsub.s32 %v1219, %v1221
        %v1223 = vrot.slane %v1201, %v1222
        %v1225 = vunpack.c.l.s4 1966171168
        %v1226 = vunpack.c.0.s8 %v1225
        %v1227 = vlaneseq
        %v1228 = vshrl.u32 %v1227, 7
        %v1229 = vsub.s32 %v1226, %v1228
        %v1230 = vrot.slane %v1202, %v1229
        %v1231 = vcombine.high %v1209, %v1209
        %v1232 = vcombine.high %v1216, %v1216
        %v1233 = vcombine.high %v1223, %v1223
        %v1234 = vcombine.high %v1230, %v1230
        %v1883 = vunpack.c.l.b16 %v491
        %v1884 = vunpack.c.h.b16 %v491
        %v1885 = vunpack.c.l.b16 %v492
        %v1886 = vunpack.c.h.b16 %v492
        %v1887 = vunpack.c.l.b16 %v493
        %v1888 = vunpack.c.h.b16 %v493
        %v1889 = vunpack.c.l.b16 %v494
        %v1890 = vunpack.c.h.b16 %v494
        %v1891 = vunpack.c.l.b16 %v495
        %v1892 = vunpack.c.h.b16 %v495
        %v1893 = vunpack.c.l.b16 %v496
        %v1894 = vunpack.c.h.b16 %v496
        %v1895 = vunpack.c.l.b16 %v497
        %v1896 = vunpack.c.h.b16 %v497
        %v1897 = vunpack.c.l.b16 %v498
        %v1898 = vunpack.c.h.b16 %v498
        %v1899 = vunpack.c.l.b16 %v499
        %v1900 = vunpack.c.h.b16 %v499
        %v1901 = vunpack.c.l.b16 %v500
        %v1902 = vunpack.c.h.b16 %v500
        %v1903 = vunpack.c.l.b16 %v501
        %v1904 = vunpack.c.h.b16 %v501
        %v1905 = vunpack.c.l.b16 %v502
        %v1906 = vunpack.c.h.b16 %v502
        %v1907 = vunpack.c.l.b16 %v503
        %v1908 = vunpack.c.h.b16 %v503
        %v1909 = vunpack.c.l.b16 %v504
        %v1910 = vunpack.c.h.b16 %v504
        %v1911 = vunpack.c.l.b16 %v505
        %v1912 = vunpack.c.h.b16 %v505
        %v1913 = vunpack.c.l.b16 %v506
        %v1914 = vunpack.c.h.b16 %v506
        %v1915 = vunpack.c.l.b16 %v507
        %v1916 = vunpack.c.h.b16 %v507
        %v1917 = vunpack.c.l.b16 %v508
        %v1918 = vunpack.c.h.b16 %v508
        %v1919 = vunpack.c.l.b16 %v509
        %v1920 = vunpack.c.h.b16 %v509
        %v1921 = vunpack.c.l.b16 %v510
        %v1922 = vunpack.c.h.b16 %v510
        %v1923 = vunpack.c.l.b16 %v511
        %v1924 = vunpack.c.h.b16 %v511
        %v1925 = vunpack.c.l.b16 %v512
        %v1926 = vunpack.c.h.b16 %v512
        %v1927 = vunpack.c.l.b16 %v513
        %v1928 = vunpack.c.h.b16 %v513
        %v1929 = vunpack.c.l.b16 %v514
        %v1930 = vunpack.c.h.b16 %v514
        %v1931 = vunpack.c.l.b16 %v515
        %v1932 = vunpack.c.h.b16 %v515
        %v1933 = vunpack.c.l.b16 %v516
        %v1934 = vunpack.c.h.b16 %v516
        %v1935 = vunpack.c.l.b16 %v517
        %v1936 = vunpack.c.h.b16 %v517
        %v1937 = vunpack.c.l.b16 %v518
        %v1938 = vunpack.c.h.b16 %v518
        %v1939 = vunpack.c.l.b16 %v519
        %v1940 = vunpack.c.h.b16 %v519
        %v1941 = vunpack.c.l.b16 %v520
        %v1942 = vunpack.c.h.b16 %v520
        %v1943 = vunpack.c.l.b16 %v521
        %v1944 = vunpack.c.h.b16 %v521
        %v1945 = vunpack.c.l.b16 %v522
        %v1946 = vunpack.c.h.b16 %v522
        %v1947 = vunpack.c.l.b16 %v523
        %v1948 = vunpack.c.h.b16 %v523
        %v1949 = vunpack.c.l.b16 %v524
        %v1950 = vunpack.c.h.b16 %v524
        %v1951 = vunpack.c.l.b16 %v525
        %v1952 = vunpack.c.h.b16 %v525
        %v1953 = vunpack.c.l.b16 %v526
        %v1954 = vunpack.c.h.b16 %v526
        %v1955 = vunpack.c.l.b16 %v527
        %v1956 = vunpack.c.h.b16 %v527
        %v1957 = vunpack.c.l.b16 %v528
        %v1958 = vunpack.c.h.b16 %v528
        %v1959 = vunpack.c.l.b16 %v529
        %v1960 = vunpack.c.h.b16 %v529
        %v1961 = vunpack.c.l.b16 %v530
        %v1962 = vunpack.c.h.b16 %v530
        %v1963 = vunpack.c.l.b16 %v531
        %v1964 = vunpack.c.h.b16 %v531
        %v1965 = vunpack.c.l.b16 %v532
        %v1966 = vunpack.c.h.b16 %v532
        %v1967 = vunpack.c.l.b16 %v533
        %v1968 = vunpack.c.h.b16 %v533
        %v1969 = vunpack.c.l.b16 %v534
        %v1970 = vunpack.c.h.b16 %v534
        %v1971 = vunpack.c.l.b16 %v535
        %v1972 = vunpack.c.h.b16 %v535
        %v1973 = vunpack.c.l.b16 %v536
        %v1974 = vunpack.c.h.b16 %v536
        %v1975 = vunpack.c.l.b16 %v537
        %v1976 = vunpack.c.h.b16 %v537
        %v1977 = vunpack.c.l.b16 %v538
        %v1978 = vunpack.c.h.b16 %v538
        %v1979 = vunpack.c.l.b16 %v539
        %v1980 = vunpack.c.h.b16 %v539
        %v1981 = vunpack.c.l.b16 %v540
        %v1982 = vunpack.c.h.b16 %v540
        %v1983 = vunpack.c.l.b16 %v541
        %v1984 = vunpack.c.h.b16 %v541
        %v1985 = vunpack.c.l.b16 %v542
        %v1986 = vunpack.c.h.b16 %v542
        %v1987 = vunpack.c.l.b16 %v543
        %v1988 = vunpack.c.h.b16 %v543
        %v1989 = vunpack.c.l.b16 %v544
        %v1990 = vunpack.c.h.b16 %v544
        %v1991 = vunpack.c.l.b16 %v545
        %v1992 = vunpack.c.h.b16 %v545
        %v1993 = vunpack.c.l.b16 %v546
        %v1994 = vunpack.c.h.b16 %v546
        %v1995 = vunpack.c.l.b16 %v547
        %v1996 = vunpack.c.h.b16 %v547
        %v1997 = vunpack.c.l.b16 %v548
        %v1998 = vunpack.c.h.b16 %v548
        %v1999 = vunpack.c.l.b16 %v549
        %v2000 = vunpack.c.h.b16 %v549
        %v2001 = vunpack.c.l.b16 %v550
        %v2002 = vunpack.c.h.b16 %v550
        %v2003 = vunpack.c.l.b16 %v551
        %v2004 = vunpack.c.h.b16 %v551
        %v2005 = vunpack.c.l.b16 %v552
        %v2006 = vunpack.c.h.b16 %v552
        %v2007 = vunpack.c.l.b16 %v553
        %v2008 = vunpack.c.h.b16 %v553
        %v2009 = vunpack.c.l.b16 %v554
        %v2010 = vunpack.c.h.b16 %v554
        %v2011 = vunpack.c.l.b16 %v555
        %v2012 = vunpack.c.h.b16 %v555
        %v2013 = vunpack.c.l.b16 %v556
        %v2014 = vunpack.c.h.b16 %v556
        %v2015 = vunpack.c.l.b16 %v557
        %v2016 = vunpack.c.h.b16 %v557
        %v2017 = vunpack.c.l.b16 %v558
        %v2018 = vunpack.c.h.b16 %v558
        %v2019 = vunpack.c.l.b16 %v559
        %v2020 = vunpack.c.h.b16 %v559
        %v2021 = vunpack.c.l.b16 %v560
        %v2022 = vunpack.c.h.b16 %v560
        %v2023 = vunpack.c.l.b16 %v561
        %v2024 = vunpack.c.h.b16 %v561
        %v2025 = vunpack.c.l.b16 %v562
        %v2026 = vunpack.c.h.b16 %v562
        %v2027 = vunpack.c.l.b16 %v563
        %v2028 = vunpack.c.h.b16 %v563
        %v2029 = vunpack.c.l.b16 %v564
        %v2030 = vunpack.c.h.b16 %v564
        %v2031 = vunpack.c.l.b16 %v565
        %v2032 = vunpack.c.h.b16 %v565
        %v2033 = vunpack.c.l.b16 %v566
        %v2034 = vunpack.c.h.b16 %v566
        %v2035 = vunpack.c.l.b16 %v567
        %v2036 = vunpack.c.h.b16 %v567
        %v2037 = vunpack.c.l.b16 %v568
        %v2038 = vunpack.c.h.b16 %v568
        %v2039 = vunpack.c.l.b16 %v569
        %v2040 = vunpack.c.h.b16 %v569
        %v2041 = vunpack.c.l.b16 %v570
        %v2042 = vunpack.c.h.b16 %v570
        %v2043 = vunpack.c.l.b16 %v571
        %v2044 = vunpack.c.h.b16 %v571
        %v2045 = vunpack.c.l.b16 %v572
        %v2046 = vunpack.c.h.b16 %v572
        %v2047 = vunpack.c.l.b16 %v573
        %v2048 = vunpack.c.h.b16 %v573
        %v2049 = vunpack.c.l.b16 %v574
        %v2050 = vunpack.c.h.b16 %v574
        %v2051 = vunpack.c.l.b16 %v575
        %v2052 = vunpack.c.h.b16 %v575
        %v2053 = vunpack.c.l.b16 %v576
        %v2054 = vunpack.c.h.b16 %v576
        %v2055 = vunpack.c.l.b16 %v577
        %v2056 = vunpack.c.h.b16 %v577
        %v2057 = vunpack.c.l.b16 %v578
        %v2058 = vunpack.c.h.b16 %v578
        %v2059 = vunpack.c.l.b16 %v579
        %v2060 = vunpack.c.h.b16 %v579
        %v2061 = vunpack.c.l.b16 %v580
        %v2062 = vunpack.c.h.b16 %v580
        %v2063 = vunpack.c.l.b16 %v581
        %v2064 = vunpack.c.h.b16 %v581
        %v2065 = vunpack.c.l.b16 %v582
        %v2066 = vunpack.c.h.b16 %v582
        %v2067 = vunpack.c.l.b16 %v583
        %v2068 = vunpack.c.h.b16 %v583
        %v2069 = vunpack.c.l.b16 %v584
        %v2070 = vunpack.c.h.b16 %v584
        %v2071 = vunpack.c.l.b16 %v585
        %v2072 = vunpack.c.h.b16 %v585
        %v2073 = vunpack.c.l.b16 %v586
        %v2074 = vunpack.c.h.b16 %v586
        %v2075 = vunpack.c.l.b16 %v587
        %v2076 = vunpack.c.h.b16 %v587
        %v2077 = vunpack.c.l.b16 %v588
        %v2078 = vunpack.c.h.b16 %v588
        %v2079 = vunpack.c.l.b16 %v589
        %v2080 = vunpack.c.h.b16 %v589
        %v2081 = vunpack.c.l.b16 %v590
        %v2082 = vunpack.c.h.b16 %v590
        %v2083 = vunpack.c.l.b16 %v591
        %v2084 = vunpack.c.h.b16 %v591
        %v2085 = vunpack.c.l.b16 %v592
        %v2086 = vunpack.c.h.b16 %v592
        %v2087 = vunpack.c.l.b16 %v593
        %v2088 = vunpack.c.h.b16 %v593
        %v2089 = vunpack.c.l.b16 %v594
        %v2090 = vunpack.c.h.b16 %v594
        %v2091 = vunpack.c.l.b16 %v595
        %v2092 = vunpack.c.h.b16 %v595
        %v2093 = vunpack.c.l.b16 %v596
        %v2094 = vunpack.c.h.b16 %v596
        %v2095 = vunpack.c.l.b16 %v597
        %v2096 = vunpack.c.h.b16 %v597
        %v2097 = vunpack.c.l.b16 %v598
        %v2098 = vunpack.c.h.b16 %v598
        %v2099 = vunpack.c.l.b16 %v599
        %v2100 = vunpack.c.h.b16 %v599
        %v2101 = vunpack.c.l.b16 %v600
        %v2102 = vunpack.c.h.b16 %v600
        %v2103 = vunpack.c.l.b16 %v601
        %v2104 = vunpack.c.h.b16 %v601
        %v2105 = vunpack.c.l.b16 %v602
        %v2106 = vunpack.c.h.b16 %v602
        %v2107 = vunpack.c.l.b16 %v603
        %v2108 = vunpack.c.h.b16 %v603
        %v2109 = vunpack.c.l.b16 %v604
        %v2110 = vunpack.c.h.b16 %v604
        %v2111 = vunpack.c.l.b16 %v605
        %v2112 = vunpack.c.h.b16 %v605
        %v2113 = vunpack.c.l.b16 %v606
        %v2114 = vunpack.c.h.b16 %v606
        %v2115 = vunpack.c.l.b16 %v607
        %v2116 = vunpack.c.h.b16 %v607
        %v2117 = vunpack.c.l.b16 %v608
        %v2118 = vunpack.c.h.b16 %v608
        %v2119 = vunpack.c.l.b16 %v609
        %v2120 = vunpack.c.h.b16 %v609
        %v2121 = vunpack.c.l.b16 %v610
        %v2122 = vunpack.c.h.b16 %v610
        %v2123 = vunpack.c.l.b16 %v611
        %v2124 = vunpack.c.h.b16 %v611
        %v2125 = vunpack.c.l.b16 %v612
        %v2126 = vunpack.c.h.b16 %v612
        %v2127 = vunpack.c.l.b16 %v613
        %v2128 = vunpack.c.h.b16 %v613
        %v2129 = vunpack.c.l.b16 %v614
        %v2130 = vunpack.c.h.b16 %v614
        %v2131 = vunpack.c.l.b16 %v615
        %v2132 = vunpack.c.h.b16 %v615
        %v2133 = vunpack.c.l.b16 %v616
        %v2134 = vunpack.c.h.b16 %v616
        %v2135 = vunpack.c.l.b16 %v617
        %v2136 = vunpack.c.h.b16 %v617
        %v2137 = vunpack.c.l.b16 %v618
        %v2138 = vunpack.c.h.b16 %v618
        %v2139 = vunpack.c.l.b16 %v619
        %v2140 = vunpack.c.h.b16 %v619
        %v2141 = vunpack.c.l.b16 %v620
        %v2142 = vunpack.c.h.b16 %v620
        %v2143 = vunpack.c.l.b16 %v621
        %v2144 = vunpack.c.h.b16 %v621
        %v2145 = vunpack.c.l.b16 %v622
        %v2146 = vunpack.c.h.b16 %v622
        %v2147 = vunpack.c.l.b16 %v623
        %v2148 = vunpack.c.h.b16 %v623
        %v2149 = vunpack.c.l.b16 %v624
        %v2150 = vunpack.c.h.b16 %v624
        %v2151 = vunpack.c.l.b16 %v625
        %v2152 = vunpack.c.h.b16 %v625
        %v2153 = vunpack.c.l.b16 %v626
        %v2154 = vunpack.c.h.b16 %v626
        %v2155 = vunpack.c.l.b16 %v627
        %v2156 = vunpack.c.h.b16 %v627
        %v2157 = vunpack.c.l.b16 %v628
        %v2158 = vunpack.c.h.b16 %v628
        %v2159 = vunpack.c.l.b16 %v629
        %v2160 = vunpack.c.h.b16 %v629
        %v2161 = vunpack.c.l.b16 %v630
        %v2162 = vunpack.c.h.b16 %v630
        %v2163 = vunpack.c.l.b16 %v631
        %v2164 = vunpack.c.h.b16 %v631
        %v2165 = vunpack.c.l.b16 %v632
        %v2166 = vunpack.c.h.b16 %v632
        %v2167 = vunpack.c.l.b16 %v633
        %v2168 = vunpack.c.h.b16 %v633
        %v2169 = vunpack.c.l.b16 %v634
        %v2170 = vunpack.c.h.b16 %v634
        %v2171 = vunpack.c.l.b16 %v635
        %v2172 = vunpack.c.h.b16 %v635
        %v2173 = vunpack.c.l.b16 %v636
        %v2174 = vunpack.c.h.b16 %v636
        %v2175 = vunpack.c.l.b16 %v637
        %v2176 = vunpack.c.h.b16 %v637
        %v2177 = vunpack.c.l.b16 %v638
        %v2178 = vunpack.c.h.b16 %v638
        %v2179 = vunpack.c.l.b16 %v639
        %v2180 = vunpack.c.h.b16 %v639
        %v2181 = vunpack.c.l.b16 %v640
        %v2182 = vunpack.c.h.b16 %v640
        %v2183 = vunpack.c.l.b16 %v641
        %v2184 = vunpack.c.h.b16 %v641
        %v2185 = vunpack.c.l.b16 %v642
        %v2186 = vunpack.c.h.b16 %v642
        %v2187 = vunpack.c.l.b16 %v643
        %v2188 = vunpack.c.h.b16 %v643
        %v2189 = vunpack.c.l.b16 %v644
        %v2190 = vunpack.c.h.b16 %v644
        %v2191 = vunpack.c.l.b16 %v645
        %v2192 = vunpack.c.h.b16 %v645
        %v2193 = vunpack.c.l.b16 %v646
        %v2194 = vunpack.c.h.b16 %v646
        %v2195 = vunpack.c.l.b16 %v647
        %v2196 = vunpack.c.h.b16 %v647
        %v2197 = vunpack.c.l.b16 %v648
        %v2198 = vunpack.c.h.b16 %v648
        %v2199 = vunpack.c.l.b16 %v649
        %v2200 = vunpack.c.h.b16 %v649
        %v2201 = vunpack.c.l.b16 %v650
        %v2202 = vunpack.c.h.b16 %v650
        %v2203 = vunpack.c.l.b16 %v651
        %v2204 = vunpack.c.h.b16 %v651
        %v2205 = vunpack.c.l.b16 %v652
        %v2206 = vunpack.c.h.b16 %v652
        %v2207 = vunpack.c.l.b16 %v653
        %v2208 = vunpack.c.h.b16 %v653
        %v2209 = vunpack.c.l.b16 %v654
        %v2210 = vunpack.c.h.b16 %v654
        %v2211 = vunpack.c.l.b16 %v655
        %v2212 = vunpack.c.h.b16 %v655
        %v2213 = vunpack.c.l.b16 %v656
        %v2214 = vunpack.c.h.b16 %v656
        %v2215 = vunpack.c.l.b16 %v657
        %v2216 = vunpack.c.h.b16 %v657
        %v2217 = vunpack.c.l.b16 %v658
        %v2218 = vunpack.c.h.b16 %v658
        %v2219 = vunpack.c.l.b16 %v659
        %v2220 = vunpack.c.h.b16 %v659
        %v2221 = vunpack.c.l.b16 %v660
        %v2222 = vunpack.c.h.b16 %v660
        %v2223 = vunpack.c.l.b16 %v661
        %v2224 = vunpack.c.h.b16 %v661
        %v2225 = vunpack.c.l.b16 %v662
        %v2226 = vunpack.c.h.b16 %v662
        %v2227 = vunpack.c.l.b16 %v663
        %v2228 = vunpack.c.h.b16 %v663
        %v2229 = vunpack.c.l.b16 %v664
        %v2230 = vunpack.c.h.b16 %v664
        %v2231 = vunpack.c.l.b16 %v665
        %v2232 = vunpack.c.h.b16 %v665
        %v2233 = vunpack.c.l.b16 %v666
        %v2234 = vunpack.c.h.b16 %v666
        %v2235 = vunpack.c.l.b16 %v667
        %v2236 = vunpack.c.h.b16 %v667
        %v2237 = vunpack.c.l.b16 %v668
        %v2238 = vunpack.c.h.b16 %v668
        %v2239 = vunpack.c.l.b16 %v669
        %v2240 = vunpack.c.h.b16 %v669
        %v2241 = vunpack.c.l.b16 %v670
        %v2242 = vunpack.c.h.b16 %v670
        %v2243 = vunpack.c.l.b16 %v671
        %v2244 = vunpack.c.h.b16 %v671
        %v2245 = vunpack.c.l.b16 %v672
        %v2246 = vunpack.c.h.b16 %v672
        %v2247 = vunpack.c.l.b16 %v673
        %v2248 = vunpack.c.h.b16 %v673
        %v2249 = vunpack.c.l.b16 %v674
        %v2250 = vunpack.c.h.b16 %v674
        %v2251 = vunpack.c.l.b16 %v675
        %v2252 = vunpack.c.h.b16 %v675
        %v2253 = vunpack.c.l.b16 %v676
        %v2254 = vunpack.c.h.b16 %v676
        %v2255 = vunpack.c.l.b16 %v677
        %v2256 = vunpack.c.h.b16 %v677
        %v2257 = vunpack.c.l.b16 %v678
        %v2258 = vunpack.c.h.b16 %v678
        %v2259 = vunpack.c.l.b16 %v679
        %v2260 = vunpack.c.h.b16 %v679
        %v2261 = vunpack.c.l.b16 %v680
        %v2262 = vunpack.c.h.b16 %v680
        %v2263 = vunpack.c.l.b16 %v681
        %v2264 = vunpack.c.h.b16 %v681
        %v2265 = vunpack.c.l.b16 %v682
        %v2266 = vunpack.c.h.b16 %v682
        %v2267 = vunpack.c.l.b16 %v683
        %v2268 = vunpack.c.h.b16 %v683
        %v2269 = vunpack.c.l.b16 %v684
        %v2270 = vunpack.c.h.b16 %v684
        %v2271 = vunpack.c.l.b16 %v685
        %v2272 = vunpack.c.h.b16 %v685
        %v2273 = vunpack.c.l.b16 %v686
        %v2274 = vunpack.c.h.b16 %v686
        %v2275 = vunpack.c.l.b16 %v687
        %v2276 = vunpack.c.h.b16 %v687
        %v2277 = vunpack.c.l.b16 %v688
        %v2278 = vunpack.c.h.b16 %v688
        %v2279 = vunpack.c.l.b16 %v689
        %v2280 = vunpack.c.h.b16 %v689
        %v2281 = vunpack.c.l.b16 %v690
        %v2282 = vunpack.c.h.b16 %v690
        %v2283 = vunpack.c.l.b16 %v691
        %v2284 = vunpack.c.h.b16 %v691
        %v2285 = vunpack.c.l.b16 %v692
        %v2286 = vunpack.c.h.b16 %v692
        %v2287 = vunpack.c.l.b16 %v693
        %v2288 = vunpack.c.h.b16 %v693
        %v2289 = vunpack.c.l.b16 %v694
        %v2290 = vunpack.c.h.b16 %v694
        %v2291 = vunpack.c.l.b16 %v695
        %v2292 = vunpack.c.h.b16 %v695
        %v2293 = vunpack.c.l.b16 %v696
        %v2294 = vunpack.c.h.b16 %v696
        %v2295 = vunpack.c.l.b16 %v697
        %v2296 = vunpack.c.h.b16 %v697
        %v2297 = vunpack.c.l.b16 %v698
        %v2298 = vunpack.c.h.b16 %v698
        %v2299 = vunpack.c.l.b16 %v699
        %v2300 = vunpack.c.h.b16 %v699
        %v2301 = vunpack.c.l.b16 %v700
        %v2302 = vunpack.c.h.b16 %v700
        %v2303 = vunpack.c.l.b16 %v701
        %v2304 = vunpack.c.h.b16 %v701
        %v2305 = vunpack.c.l.b16 %v702
        %v2306 = vunpack.c.h.b16 %v702
        %v2307 = vunpack.c.l.b16 %v703
        %v2308 = vunpack.c.h.b16 %v703
        %v2309 = vunpack.c.l.b16 %v704
        %v2310 = vunpack.c.h.b16 %v704
        %v2311 = vunpack.c.l.b16 %v705
        %v2312 = vunpack.c.h.b16 %v705
        %v2313 = vunpack.c.l.b16 %v706
        %v2314 = vunpack.c.h.b16 %v706
        %v2315 = vunpack.c.l.b16 %v707
        %v2316 = vunpack.c.h.b16 %v707
        %v2317 = vunpack.c.l.b16 %v708
        %v2318 = vunpack.c.h.b16 %v708
        %v2319 = vunpack.c.l.b16 %v709
        %v2320 = vunpack.c.h.b16 %v709
        %v2321 = vunpack.c.l.b16 %v710
        %v2322 = vunpack.c.h.b16 %v710
        %v2323 = vunpack.c.l.b16 %v711
        %v2324 = vunpack.c.h.b16 %v711
        %v2325 = vunpack.c.l.b16 %v712
        %v2326 = vunpack.c.h.b16 %v712
        %v2327 = vunpack.c.l.b16 %v713
        %v2328 = vunpack.c.h.b16 %v713
        %v2329 = vunpack.c.l.b16 %v714
        %v2330 = vunpack.c.h.b16 %v714
        %v2331 = vunpack.c.l.b16 %v715
        %v2332 = vunpack.c.h.b16 %v715
        %v2333 = vunpack.c.l.b16 %v716
        %v2334 = vunpack.c.h.b16 %v716
        %v2335 = vunpack.c.l.b16 %v717
        %v2336 = vunpack.c.h.b16 %v717
        %v2337 = vunpack.c.l.b16 %v718
        %v2338 = vunpack.c.h.b16 %v718
        %v2339 = vunpack.c.l.b16 %v719
        %v2340 = vunpack.c.h.b16 %v719
        %v2341 = vunpack.c.l.b16 %v720
        %v2342 = vunpack.c.h.b16 %v720
        %v2343 = vunpack.c.l.b16 %v721
        %v2344 = vunpack.c.h.b16 %v721
        %v2345 = vunpack.c.l.b16 %v722
        %v2346 = vunpack.c.h.b16 %v722
        %v2347 = vunpack.c.l.b16 %v723
        %v2348 = vunpack.c.h.b16 %v723
        %v2349 = vunpack.c.l.b16 %v724
        %v2350 = vunpack.c.h.b16 %v724
        %v2351 = vunpack.c.l.b16 %v725
        %v2352 = vunpack.c.h.b16 %v725
        %v2353 = vunpack.c.l.b16 %v726
        %v2354 = vunpack.c.h.b16 %v726
        %v2355 = vunpack.c.l.b16 %v727
        %v2356 = vunpack.c.h.b16 %v727
        %v2357 = vunpack.c.l.b16 %v728
        %v2358 = vunpack.c.h.b16 %v728
        %v2359 = vunpack.c.l.b16 %v729
        %v2360 = vunpack.c.h.b16 %v729
        %v2361 = vunpack.c.l.b16 %v730
        %v2362 = vunpack.c.h.b16 %v730
        %v2363 = vunpack.c.l.b16 %v731
        %v2364 = vunpack.c.h.b16 %v731
        %v2365 = vunpack.c.l.b16 %v732
        %v2366 = vunpack.c.h.b16 %v732
        %v2367 = vunpack.c.l.b16 %v733
        %v2368 = vunpack.c.h.b16 %v733
        %v2369 = vunpack.c.l.b16 %v734
        %v2370 = vunpack.c.h.b16 %v734
        %v2371 = vunpack.c.l.b16 %v735
        %v2372 = vunpack.c.h.b16 %v735
        %v2373 = vunpack.c.l.b16 %v736
        %v2374 = vunpack.c.h.b16 %v736
        %v2375 = vunpack.c.l.b16 %v737
        %v2376 = vunpack.c.h.b16 %v737
        %v2377 = vunpack.c.l.b16 %v738
        %v2378 = vunpack.c.h.b16 %v738
        %v2379 = vunpack.c.l.b16 %v739
        %v2380 = vunpack.c.h.b16 %v739
        %v2381 = vunpack.c.l.b16 %v740
        %v2382 = vunpack.c.h.b16 %v740
        %v2383 = vunpack.c.l.b16 %v741
        %v2384 = vunpack.c.h.b16 %v741
        %v2385 = vunpack.c.l.b16 %v742
        %v2386 = vunpack.c.h.b16 %v742
        %v2387 = vunpack.c.l.b16 %v743
        %v2388 = vunpack.c.h.b16 %v743
        %v2389 = vunpack.c.l.b16 %v744
        %v2390 = vunpack.c.h.b16 %v744
        %v2391 = vunpack.c.l.b16 %v745
        %v2392 = vunpack.c.h.b16 %v745
        %v2393 = vunpack.c.l.b16 %v746
        %v2394 = vunpack.c.h.b16 %v746
        %v2395 = vunpack.c.l.b16 %v747
        %v2396 = vunpack.c.h.b16 %v747
        %v2397 = vunpack.c.l.b16 %v748
        %v2398 = vunpack.c.h.b16 %v748
        %v2399 = vunpack.c.l.b16 %v749
        %v2400 = vunpack.c.h.b16 %v749
        %v2401 = vunpack.c.l.b16 %v750
        %v2402 = vunpack.c.h.b16 %v750
        %v2403 = vunpack.c.l.b16 %v751
        %v2404 = vunpack.c.h.b16 %v751
        %v2405 = vunpack.c.l.b16 %v752
        %v2406 = vunpack.c.h.b16 %v752
        %v2407 = vunpack.c.l.b16 %v753
        %v2408 = vunpack.c.h.b16 %v753
        %v2409 = vunpack.c.l.b16 %v754
        %v2410 = vunpack.c.h.b16 %v754
        %v2411 = vunpack.c.l.b16 %v755
        %v2412 = vunpack.c.h.b16 %v755
        %v2413 = vunpack.c.l.b16 %v756
        %v2414 = vunpack.c.h.b16 %v756
        %v2415 = vunpack.c.l.b16 %v757
        %v2416 = vunpack.c.h.b16 %v757
        %v2417 = vunpack.c.l.b16 %v758
        %v2418 = vunpack.c.h.b16 %v758
        %v2419 = vunpack.c.l.b16 %v759
        %v2420 = vunpack.c.h.b16 %v759
        %v2421 = vunpack.c.l.b16 %v760
        %v2422 = vunpack.c.h.b16 %v760
        %v2423 = vunpack.c.l.b16 %v761
        %v2424 = vunpack.c.h.b16 %v761
        %v2425 = vunpack.c.l.b16 %v762
        %v2426 = vunpack.c.h.b16 %v762
        %v2427 = vunpack.c.l.b16 %v763
        %v2428 = vunpack.c.h.b16 %v763
        %v2429 = vunpack.c.l.b16 %v764
        %v2430 = vunpack.c.h.b16 %v764
        %v2431 = vunpack.c.l.b16 %v765
        %v2432 = vunpack.c.h.b16 %v765
        %v2433 = vunpack.c.l.b16 %v766
        %v2434 = vunpack.c.h.b16 %v766
        %v2435 = vunpack.c.l.b16 %v767
        %v2436 = vunpack.c.h.b16 %v767
        %v2437 = vunpack.c.l.b16 %v768
        %v2438 = vunpack.c.h.b16 %v768
        %v2439 = vunpack.c.l.b16 %v769
        %v2440 = vunpack.c.h.b16 %v769
        %v2441 = vunpack.c.l.b16 %v770
        %v2442 = vunpack.c.h.b16 %v770
        %v2443 = vunpack.c.l.b16 %v771
        %v2444 = vunpack.c.h.b16 %v771
        %v2445 = vunpack.c.l.b16 %v772
        %v2446 = vunpack.c.h.b16 %v772
        %v2447 = vunpack.c.l.b16 %v773
        %v2448 = vunpack.c.h.b16 %v773
        %v2449 = vunpack.c.l.b16 %v774
        %v2450 = vunpack.c.h.b16 %v774
        %v2451 = vunpack.c.l.b16 %v775
        %v2452 = vunpack.c.h.b16 %v775
        %v2453 = vunpack.c.l.b16 %v776
        %v2454 = vunpack.c.h.b16 %v776
        %v2455 = vunpack.c.l.b16 %v777
        %v2456 = vunpack.c.h.b16 %v777
        %v2457 = vunpack.c.l.b16 %v778
        %v2458 = vunpack.c.h.b16 %v778
        %v2459 = vunpack.c.l.b16 %v779
        %v2460 = vunpack.c.h.b16 %v779
        %v2461 = vunpack.c.l.b16 %v780
        %v2462 = vunpack.c.h.b16 %v780
        %v2463 = vunpack.c.l.b16 %v781
        %v2464 = vunpack.c.h.b16 %v781
        %v2465 = vunpack.c.l.b16 %v782
        %v2466 = vunpack.c.h.b16 %v782
        %v2467 = vunpack.c.l.b16 %v783
        %v2468 = vunpack.c.h.b16 %v783
        %v2469 = vunpack.c.l.b16 %v784
        %v2470 = vunpack.c.h.b16 %v784
        %v2471 = vunpack.c.l.b16 %v785
        %v2472 = vunpack.c.h.b16 %v785
        %v2473 = vunpack.c.l.b16 %v786
        %v2474 = vunpack.c.h.b16 %v786
        %v2475 = vunpack.c.l.b16 %v787
        %v2476 = vunpack.c.h.b16 %v787
        %v2477 = vunpack.c.l.b16 %v788
        %v2478 = vunpack.c.h.b16 %v788
        %v2479 = vunpack.c.l.b16 %v789
        %v2480 = vunpack.c.h.b16 %v789
        %v2481 = vunpack.c.l.b16 %v790
        %v2482 = vunpack.c.h.b16 %v790
        %v2483 = vunpack.c.l.b16 %v791
        %v2484 = vunpack.c.h.b16 %v791
        %v2485 = vunpack.c.l.b16 %v792
        %v2486 = vunpack.c.h.b16 %v792
        %v2487 = vunpack.c.l.b16 %v793
        %v2488 = vunpack.c.h.b16 %v793
        %v2489 = vunpack.c.l.b16 %v794
        %v2490 = vunpack.c.h.b16 %v794
        %v2491 = vunpack.c.l.b16 %v795
        %v2492 = vunpack.c.h.b16 %v795
        %v2493 = vunpack.c.l.b16 %v796
        %v2494 = vunpack.c.h.b16 %v796
        %v2495 = vunpack.c.l.b16 %v797
        %v2496 = vunpack.c.h.b16 %v797
        %v2497 = vunpack.c.l.b16 %v798
        %v2498 = vunpack.c.h.b16 %v798
        %v2499 = vunpack.c.l.b16 %v799
        %v2500 = vunpack.c.h.b16 %v799
        %v2501 = vunpack.c.l.b16 %v800
        %v2502 = vunpack.c.h.b16 %v800
        %v2503 = vunpack.c.l.b16 %v801
        %v2504 = vunpack.c.h.b16 %v801
        %v2505 = vunpack.c.l.b16 %v802
        %v2506 = vunpack.c.h.b16 %v802
        %v2507 = vunpack.c.l.b16 %v803
        %v2508 = vunpack.c.h.b16 %v803
        %v2509 = vunpack.c.l.b16 %v804
        %v2510 = vunpack.c.h.b16 %v804
        %v2511 = vunpack.c.l.b16 %v805
        %v2512 = vunpack.c.h.b16 %v805
        %v2513 = vunpack.c.l.b16 %v806
        %v2514 = vunpack.c.h.b16 %v806
        %v2515 = vunpack.c.l.b16 %v807
        %v2516 = vunpack.c.h.b16 %v807
        %v2517 = vunpack.c.l.b16 %v808
        %v2518 = vunpack.c.h.b16 %v808
        %v2519 = vunpack.c.l.b16 %v809
        %v2520 = vunpack.c.h.b16 %v809
        %v2521 = vunpack.c.l.b16 %v810
        %v2522 = vunpack.c.h.b16 %v810
        %v2523 = vunpack.c.l.b16 %v811
        %v2524 = vunpack.c.h.b16 %v811
        %v2525 = vunpack.c.l.b16 %v812
        %v2526 = vunpack.c.h.b16 %v812
        %v2527 = vunpack.c.l.b16 %v813
        %v2528 = vunpack.c.h.b16 %v813
        %v2529 = vunpack.c.l.b16 %v814
        %v2530 = vunpack.c.h.b16 %v814
        %v2531 = vunpack.c.l.b16 %v815
        %v2532 = vunpack.c.h.b16 %v815
        %v2533 = vunpack.c.l.b16 %v816
        %v2534 = vunpack.c.h.b16 %v816
        %v2535 = vunpack.c.l.b16 %v817
        %v2536 = vunpack.c.h.b16 %v817
        %v2537 = vunpack.c.l.b16 %v818
        %v2538 = vunpack.c.h.b16 %v818
        %v2539 = vunpack.c.l.b16 %v819
        %v2540 = vunpack.c.h.b16 %v819
        %v2541 = vunpack.c.l.b16 %v820
        %v2542 = vunpack.c.h.b16 %v820
        %v2543 = vunpack.c.l.b16 %v821
        %v2544 = vunpack.c.h.b16 %v821
        %v2545 = vunpack.c.l.b16 %v822
        %v2546 = vunpack.c.h.b16 %v822
        %v2547 = vunpack.c.l.b16 %v823
        %v2548 = vunpack.c.h.b16 %v823
        %v2549 = vunpack.c.l.b16 %v824
        %v2550 = vunpack.c.h.b16 %v824
        %v2551 = vunpack.c.l.b16 %v825
        %v2552 = vunpack.c.h.b16 %v825
        %v2553 = vunpack.c.l.b16 %v826
        %v2554 = vunpack.c.h.b16 %v826
        %v2555 = vunpack.c.l.b16 %v827
        %v2556 = vunpack.c.h.b16 %v827
        %v2557 = vunpack.c.l.b16 %v828
        %v2558 = vunpack.c.h.b16 %v828
        %v2559 = vunpack.c.l.b16 %v829
        %v2560 = vunpack.c.h.b16 %v829
        %v2561 = vunpack.c.l.b16 %v830
        %v2562 = vunpack.c.h.b16 %v830
        %v2563 = vunpack.c.l.b16 %v831
        %v2564 = vunpack.c.h.b16 %v831
        %v2565 = vunpack.c.l.b16 %v832
        %v2566 = vunpack.c.h.b16 %v832
        %v2567 = vunpack.c.l.b16 %v833
        %v2568 = vunpack.c.h.b16 %v833
        %v2569 = vunpack.c.l.b16 %v834
        %v2570 = vunpack.c.h.b16 %v834
        %v2571 = vunpack.c.l.b16 %v835
        %v2572 = vunpack.c.h.b16 %v835
        %v2573 = vunpack.c.l.b16 %v836
        %v2574 = vunpack.c.h.b16 %v836
        %v2575 = vunpack.c.l.b16 %v837
        %v2576 = vunpack.c.h.b16 %v837
        %v2577 = vunpack.c.l.b16 %v838
        %v2578 = vunpack.c.h.b16 %v838
        %v2579 = vunpack.c.l.b16 %v839
        %v2580 = vunpack.c.h.b16 %v839
        %v2581 = vunpack.c.l.b16 %v840
        %v2582 = vunpack.c.h.b16 %v840
        %v2583 = vunpack.c.l.b16 %v841
        %v2584 = vunpack.c.h.b16 %v841
        %v2585 = vunpack.c.l.b16 %v842
        %v2586 = vunpack.c.h.b16 %v842
        %v2587 = vunpack.c.l.b16 %v843
        %v2588 = vunpack.c.h.b16 %v843
        %v2589 = vunpack.c.l.b16 %v844
        %v2590 = vunpack.c.h.b16 %v844
        %v2591 = vunpack.c.l.b16 %v845
        %v2592 = vunpack.c.h.b16 %v845
        %v2593 = vunpack.c.l.b16 %v846
        %v2594 = vunpack.c.h.b16 %v846
        %v2595 = vunpack.c.l.b16 %v847
        %v2596 = vunpack.c.h.b16 %v847
        %v2597 = vunpack.c.l.b16 %v848
        %v2598 = vunpack.c.h.b16 %v848
        %v2599 = vunpack.c.l.b16 %v849
        %v2600 = vunpack.c.h.b16 %v849
        %v2601 = vunpack.c.l.b16 %v850
        %v2602 = vunpack.c.h.b16 %v850
        %v2603 = vunpack.c.l.b16 %v851
        %v2604 = vunpack.c.h.b16 %v851
        %v2605 = vunpack.c.l.b16 %v852
        %v2606 = vunpack.c.h.b16 %v852
        %v2607 = vunpack.c.l.b16 %v853
        %v2608 = vunpack.c.h.b16 %v853
        %v2609 = vunpack.c.l.b16 %v854
        %v2610 = vunpack.c.h.b16 %v854
        %v2611 = vunpack.c.l.b16 %v855
        %v2612 = vunpack.c.h.b16 %v855
        %v2613 = vunpack.c.l.b16 %v856
        %v2614 = vunpack.c.h.b16 %v856
        %v2615 = vunpack.c.l.b16 %v857
        %v2616 = vunpack.c.h.b16 %v857
        %v2617 = vunpack.c.l.b16 %v858
        %v2618 = vunpack.c.h.b16 %v858
        %v2619 = vunpack.c.l.b16 %v859
        %v2620 = vunpack.c.h.b16 %v859
        %v2621 = vunpack.c.l.b16 %v860
        %v2622 = vunpack.c.h.b16 %v860
        %v2623 = vunpack.c.l.b16 %v861
        %v2624 = vunpack.c.h.b16 %v861
        %v2625 = vunpack.c.l.b16 %v862
        %v2626 = vunpack.c.h.b16 %v862
        %v2627 = vunpack.c.l.b16 %v863
        %v2628 = vunpack.c.h.b16 %v863
        %v2629 = vunpack.c.l.b16 %v864
        %v2630 = vunpack.c.h.b16 %v864
        %v2631 = vunpack.c.l.b16 %v865
        %v2632 = vunpack.c.h.b16 %v865
        %v2633 = vunpack.c.l.b16 %v866
        %v2634 = vunpack.c.h.b16 %v866
        %v2635 = vunpack.c.l.b16 %v867
        %v2636 = vunpack.c.h.b16 %v867
        %v2637 = vunpack.c.l.b16 %v868
        %v2638 = vunpack.c.h.b16 %v868
        %v2639 = vunpack.c.l.b16 %v869
        %v2640 = vunpack.c.h.b16 %v869
        %v2641 = vunpack.c.l.b16 %v870
        %v2642 = vunpack.c.h.b16 %v870
        %v2643 = vunpack.c.l.b16 %v871
        %v2644 = vunpack.c.h.b16 %v871
        %v2645 = vunpack.c.l.b16 %v872
        %v2646 = vunpack.c.h.b16 %v872
        %v2647 = vunpack.c.l.b16 %v873
        %v2648 = vunpack.c.h.b16 %v873
        %v2649 = vunpack.c.l.b16 %v874
        %v2650 = vunpack.c.h.b16 %v874
        %v2651 = vunpack.c.l.b16 %v875
        %v2652 = vunpack.c.h.b16 %v875
        %v2653 = vunpack.c.l.b16 %v876
        %v2654 = vunpack.c.h.b16 %v876
        %v2655 = vunpack.c.l.b16 %v877
        %v2656 = vunpack.c.h.b16 %v877
        %v2657 = vunpack.c.l.b16 %v878
        %v2658 = vunpack.c.h.b16 %v878
        %v2659 = vunpack.c.l.b16 %v879
        %v2660 = vunpack.c.h.b16 %v879
        %v2661 = vunpack.c.l.b16 %v880
        %v2662 = vunpack.c.h.b16 %v880
        %v2663 = vunpack.c.l.b16 %v881
        %v2664 = vunpack.c.h.b16 %v881
        %v2665 = vunpack.c.l.b16 %v882
        %v2666 = vunpack.c.h.b16 %v882
        %v2667 = vunpack.c.l.b16 %v883
        %v2668 = vunpack.c.h.b16 %v883
        %v2669 = vunpack.c.l.b16 %v884
        %v2670 = vunpack.c.h.b16 %v884
        %v2671 = vunpack.c.l.b16 %v885
        %v2672 = vunpack.c.h.b16 %v885
        %v2673 = vunpack.c.l.b16 %v886
        %v2674 = vunpack.c.h.b16 %v886
        %v2675 = vunpack.c.l.b16 %v887
        %v2676 = vunpack.c.h.b16 %v887
        %v2677 = vunpack.c.l.b16 %v888
        %v2678 = vunpack.c.h.b16 %v888
        %v2679 = vunpack.c.l.b16 %v889
        %v2680 = vunpack.c.h.b16 %v889
        %v2681 = vunpack.c.l.b16 %v890
        %v2682 = vunpack.c.h.b16 %v890
        %v2683 = vunpack.c.l.b16 %v891
        %v2684 = vunpack.c.h.b16 %v891
        %v2685 = vunpack.c.l.b16 %v892
        %v2686 = vunpack.c.h.b16 %v892
        %v2687 = vunpack.c.l.b16 %v893
        %v2688 = vunpack.c.h.b16 %v893
        %v2689 = vunpack.c.l.b16 %v894
        %v2690 = vunpack.c.h.b16 %v894
        %v2691 = vunpack.c.l.b16 %v895
        %v2692 = vunpack.c.h.b16 %v895
        %v2693 = vunpack.c.l.b16 %v896
        %v2694 = vunpack.c.h.b16 %v896
        %v2695 = vunpack.c.l.b16 %v897
        %v2696 = vunpack.c.h.b16 %v897
        %v2697 = vunpack.c.l.b16 %v898
        %v2698 = vunpack.c.h.b16 %v898
        %v2699 = vunpack.c.l.b16 %v899
        %v2700 = vunpack.c.h.b16 %v899
        %v2701 = vunpack.c.l.b16 %v900
        %v2702 = vunpack.c.h.b16 %v900
        %v2703 = vunpack.c.l.b16 %v901
        %v2704 = vunpack.c.h.b16 %v901
        %v2705 = vunpack.c.l.b16 %v902
        %v2706 = vunpack.c.h.b16 %v902
        %v2707 = vunpack.c.l.b16 %v903
        %v2708 = vunpack.c.h.b16 %v903
        %v2709 = vunpack.c.l.b16 %v904
        %v2710 = vunpack.c.h.b16 %v904
        %v2711 = vunpack.c.l.b16 %v905
        %v2712 = vunpack.c.h.b16 %v905
        %v2713 = vunpack.c.l.b16 %v906
        %v2714 = vunpack.c.h.b16 %v906
        %v2715 = vunpack.c.l.b16 %v907
        %v2716 = vunpack.c.h.b16 %v907
        %v2717 = vunpack.c.l.b16 %v908
        %v2718 = vunpack.c.h.b16 %v908
        %v2719 = vunpack.c.l.b16 %v909
        %v2720 = vunpack.c.h.b16 %v909
        %v2721 = vunpack.c.l.b16 %v910
        %v2722 = vunpack.c.h.b16 %v910
        %v2723 = vunpack.c.l.b16 %v911
        %v2724 = vunpack.c.h.b16 %v911
        %v2725 = vunpack.c.l.b16 %v912
        %v2726 = vunpack.c.h.b16 %v912
        %v2727 = vunpack.c.l.b16 %v913
        %v2728 = vunpack.c.h.b16 %v913
        %v2729 = vunpack.c.l.b16 %v914
        %v2730 = vunpack.c.h.b16 %v914
        %v2731 = vunpack.c.l.b16 %v915
        %v2732 = vunpack.c.h.b16 %v915
        %v2733 = vunpack.c.l.b16 %v916
        %v2734 = vunpack.c.h.b16 %v916
        %v2735 = vunpack.c.l.b16 %v917
        %v2736 = vunpack.c.h.b16 %v917
        %v2737 = vunpack.c.l.b16 %v918
        %v2738 = vunpack.c.h.b16 %v918
        %v2739 = vunpack.c.l.b16 %v919
        %v2740 = vunpack.c.h.b16 %v919
        %v2741 = vunpack.c.l.b16 %v920
        %v2742 = vunpack.c.h.b16 %v920
        %v2743 = vunpack.c.l.b16 %v921
        %v2744 = vunpack.c.h.b16 %v921
        %v2745 = vunpack.c.l.b16 %v922
        %v2746 = vunpack.c.h.b16 %v922
        %v2747 = vunpack.c.l.b16 %v923
        %v2748 = vunpack.c.h.b16 %v923
        %v2749 = vunpack.c.l.b16 %v924
        %v2750 = vunpack.c.h.b16 %v924
        %v2751 = vunpack.c.l.b16 %v925
        %v2752 = vunpack.c.h.b16 %v925
        %v2753 = vunpack.c.l.b16 %v926
        %v2754 = vunpack.c.h.b16 %v926
        %v2755 = vunpack.c.l.b16 %v927
        %v2756 = vunpack.c.h.b16 %v927
        %v2757 = vunpack.c.l.b16 %v928
        %v2758 = vunpack.c.h.b16 %v928
        %v2759 = vunpack.c.l.b16 %v929
        %v2760 = vunpack.c.h.b16 %v929
        %v2761 = vunpack.c.l.b16 %v930
        %v2762 = vunpack.c.h.b16 %v930
        %v2763 = vunpack.c.l.b16 %v931
        %v2764 = vunpack.c.h.b16 %v931
        %v2765 = vunpack.c.l.b16 %v932
        %v2766 = vunpack.c.h.b16 %v932
        %v2767 = vunpack.c.l.b16 %v933
        %v2768 = vunpack.c.h.b16 %v933
        %v2769 = vunpack.c.l.b16 %v934
        %v2770 = vunpack.c.h.b16 %v934
        %v2771 = vunpack.c.l.b16 %v935
        %v2772 = vunpack.c.h.b16 %v935
        %v2773 = vunpack.c.l.b16 %v936
        %v2774 = vunpack.c.h.b16 %v936
        %v2775 = vunpack.c.l.b16 %v937
        %v2776 = vunpack.c.h.b16 %v937
        %v2777 = vunpack.c.l.b16 %v938
        %v2778 = vunpack.c.h.b16 %v938
        %v2779 = vunpack.c.l.b16 %v939
        %v2780 = vunpack.c.h.b16 %v939
        %v2781 = vunpack.c.l.b16 %v940
        %v2782 = vunpack.c.h.b16 %v940
        %v2783 = vunpack.c.l.b16 %v941
        %v2784 = vunpack.c.h.b16 %v941
        %v2785 = vunpack.c.l.b16 %v942
        %v2786 = vunpack.c.h.b16 %v942
        %v2787 = vunpack.c.l.b16 %v943
        %v2788 = vunpack.c.h.b16 %v943
        %v2789 = vunpack.c.l.b16 %v944
        %v2790 = vunpack.c.h.b16 %v944
        %v2791 = vunpack.c.l.b16 %v945
        %v2792 = vunpack.c.h.b16 %v945
        %v2793 = vunpack.c.l.b16 %v946
        %v2794 = vunpack.c.h.b16 %v946
        %v2795 = vunpack.c.l.b16 %v947
        %v2796 = vunpack.c.h.b16 %v947
        %v2797 = vunpack.c.l.b16 %v948
        %v2798 = vunpack.c.h.b16 %v948
        %v2799 = vunpack.c.l.b16 %v949
        %v2800 = vunpack.c.h.b16 %v949
        %v2801 = vunpack.c.l.b16 %v950
        %v2802 = vunpack.c.h.b16 %v950
        %v2803 = vunpack.c.l.b16 %v951
        %v2804 = vunpack.c.h.b16 %v951
        %v2805 = vunpack.c.l.b16 %v952
        %v2806 = vunpack.c.h.b16 %v952
        %v2807 = vunpack.c.l.b16 %v953
        %v2808 = vunpack.c.h.b16 %v953
        %v2809 = vunpack.c.l.b16 %v954
        %v2810 = vunpack.c.h.b16 %v954
        %v2811 = vunpack.c.l.b16 %v955
        %v2812 = vunpack.c.h.b16 %v955
        %v2813 = vunpack.c.l.b16 %v956
        %v2814 = vunpack.c.h.b16 %v956
        %v2815 = vunpack.c.l.b16 %v957
        %v2816 = vunpack.c.h.b16 %v957
        %v2817 = vunpack.c.l.b16 %v958
        %v2818 = vunpack.c.h.b16 %v958
        %v2819 = vunpack.c.l.b16 %v959
        %v2820 = vunpack.c.h.b16 %v959
        %v2821 = vunpack.c.l.b16 %v960
        %v2822 = vunpack.c.h.b16 %v960
        %v2823 = vunpack.c.l.b16 %v961
        %v2824 = vunpack.c.h.b16 %v961
        %v2825 = vunpack.c.l.b16 %v962
        %v2826 = vunpack.c.h.b16 %v962
        %v2827 = vunpack.c.l.b16 %v963
        %v2828 = vunpack.c.h.b16 %v963
        %v2829 = vunpack.c.l.b16 %v964
        %v2830 = vunpack.c.h.b16 %v964
        %v2831 = vunpack.c.l.b16 %v965
        %v2832 = vunpack.c.h.b16 %v965
        %v2833 = vunpack.c.l.b16 %v966
        %v2834 = vunpack.c.h.b16 %v966
        %v2835 = vunpack.c.l.b16 %v967
        %v2836 = vunpack.c.h.b16 %v967
        %v2837 = vunpack.c.l.b16 %v968
        %v2838 = vunpack.c.h.b16 %v968
        %v2839 = vunpack.c.l.b16 %v969
        %v2840 = vunpack.c.h.b16 %v969
        %v2841 = vunpack.c.l.b16 %v970
        %v2842 = vunpack.c.h.b16 %v970
        %v2843 = vunpack.c.l.b16 %v971
        %v2844 = vunpack.c.h.b16 %v971
        %v2845 = vunpack.c.l.b16 %v972
        %v2846 = vunpack.c.h.b16 %v972
        %v2847 = vunpack.c.l.b16 %v973
        %v2848 = vunpack.c.h.b16 %v973
        %v2849 = vunpack.c.l.b16 %v974
        %v2850 = vunpack.c.h.b16 %v974
        %v2851 = vunpack.c.l.b16 %v975
        %v2852 = vunpack.c.h.b16 %v975
        %v2853 = vunpack.c.l.b16 %v976
        %v2854 = vunpack.c.h.b16 %v976
        %v2855 = vunpack.c.l.b16 %v977
        %v2856 = vunpack.c.h.b16 %v977
        %v2857 = vunpack.c.l.b16 %v978
        %v2858 = vunpack.c.h.b16 %v978
        %v2859 = vunpack.c.l.b16 %v979
        %v2860 = vunpack.c.h.b16 %v979
        %v2861 = vunpack.c.l.b16 %v980
        %v2862 = vunpack.c.h.b16 %v980
        %v2863 = vunpack.c.l.b16 %v981
        %v2864 = vunpack.c.h.b16 %v981
        %v2865 = vunpack.c.l.b16 %v982
        %v2866 = vunpack.c.h.b16 %v982
        %v2867 = vunpack.c.l.b16 %v983
        %v2868 = vunpack.c.h.b16 %v983
        %v2869 = vunpack.c.l.b16 %v984
        %v2870 = vunpack.c.h.b16 %v984
        %v2871 = vunpack.c.l.b16 %v985
        %v2872 = vunpack.c.h.b16 %v985
        %v2873 = vunpack.c.l.b16 %v986
        %v2874 = vunpack.c.h.b16 %v986
        %v2875 = vunpack.c.l.b16 %v987
        %v2876 = vunpack.c.h.b16 %v987
        %v2877 = vunpack.c.l.b16 %v988
        %v2878 = vunpack.c.h.b16 %v988
        %v2879 = vunpack.c.l.b16 %v989
        %v2880 = vunpack.c.h.b16 %v989
        %v2881 = vunpack.c.l.b16 %v990
        %v2882 = vunpack.c.h.b16 %v990
        %v2883 = vunpack.c.l.b16 %v991
        %v2884 = vunpack.c.h.b16 %v991
        %v2885 = vunpack.c.l.b16 %v992
        %v2886 = vunpack.c.h.b16 %v992
        %v2887 = vunpack.c.l.b16 %v993
        %v2888 = vunpack.c.h.b16 %v993
        %v2889 = vunpack.c.l.b16 %v994
        %v2890 = vunpack.c.h.b16 %v994
        %v2891 = vunpack.c.l.b16 %v995
        %v2892 = vunpack.c.h.b16 %v995
        %v2893 = vunpack.c.l.b16 %v996
        %v2894 = vunpack.c.h.b16 %v996
        %v2895 = vunpack.c.l.b16 %v997
        %v2896 = vunpack.c.h.b16 %v997
        %v2897 = vunpack.c.l.b16 %v998
        %v2898 = vunpack.c.h.b16 %v998
        %v2899 = vunpack.c.l.b16 %v999
        %v2900 = vunpack.c.h.b16 %v999
        %v2901 = vunpack.c.l.b16 %v1000
        %v2902 = vunpack.c.h.b16 %v1000
        %v2903 = vunpack.c.l.b16 %v1001
        %v2904 = vunpack.c.h.b16 %v1001
        %v2905 = vunpack.c.l.b16 %v1002
        %v2906 = vunpack.c.h.b16 %v1002
        %v2907 = vunpack.c.l.b16 %v1003
        %v2908 = vunpack.c.h.b16 %v1003
        %v2909 = vunpack.c.l.b16 %v1004
        %v2910 = vunpack.c.h.b16 %v1004
        %v2911 = vunpack.c.l.b16 %v1005
        %v2912 = vunpack.c.h.b16 %v1005
        %v2913 = vunpack.c.l.b16 %v1006
        %v2914 = vunpack.c.h.b16 %v1006
        %v2915 = vunpack.c.l.b16 %v1007
        %v2916 = vunpack.c.h.b16 %v1007
        %v2917 = vunpack.c.l.b16 %v1008
        %v2918 = vunpack.c.h.b16 %v1008
        %v2919 = vunpack.c.l.b16 %v1009
        %v2920 = vunpack.c.h.b16 %v1009
        %v2921 = vunpack.c.l.b16 %v1010
        %v2922 = vunpack.c.h.b16 %v1010
        %v2923 = vunpack.c.l.b16 %v1011
        %v2924 = vunpack.c.h.b16 %v1011
        %v2925 = vunpack.c.l.b16 %v1012
        %v2926 = vunpack.c.h.b16 %v1012
        %v2927 = vunpack.c.l.b16 %v1013
        %v2928 = vunpack.c.h.b16 %v1013
        %v2929 = vunpack.c.l.b16 %v1014
        %v2930 = vunpack.c.h.b16 %v1014
        %v2931 = vunpack.c.l.b16 %v1015
        %v2932 = vunpack.c.h.b16 %v1015
        %v2933 = vunpack.c.l.b16 %v1016
        %v2934 = vunpack.c.h.b16 %v1016
        %v2935 = vunpack.c.l.b16 %v1017
        %v2936 = vunpack.c.h.b16 %v1017
        %v2937 = vunpack.c.l.b16 %v1018
        %v2938 = vunpack.c.h.b16 %v1018
        %v2939 = vunpack.c.l.b16 %v1019
        %v2940 = vunpack.c.h.b16 %v1019
        %v2941 = vunpack.c.l.b16 %v1020
        %v2942 = vunpack.c.h.b16 %v1020
        %v2943 = vunpack.c.l.b16 %v1021
        %v2944 = vunpack.c.h.b16 %v1021
        %v2945 = vunpack.c.l.b16 %v1022
        %v2946 = vunpack.c.h.b16 %v1022
        %v2947 = vunpack.c.l.b16 %v1023
        %v2948 = vunpack.c.h.b16 %v1023
        %v2949 = vunpack.c.l.b16 %v1024
        %v2950 = vunpack.c.h.b16 %v1024
        %v2951 = vunpack.c.l.b16 %v1025
        %v2952 = vunpack.c.h.b16 %v1025
        %v2953 = vunpack.c.l.b16 %v1026
        %v2954 = vunpack.c.h.b16 %v1026
        %v2955 = vunpack.c.l.b16 %v1027
        %v2956 = vunpack.c.h.b16 %v1027
        %v2957 = vunpack.c.l.b16 %v1028
        %v2958 = vunpack.c.h.b16 %v1028
        %v2959 = vunpack.c.l.b16 %v1029
        %v2960 = vunpack.c.h.b16 %v1029
        %v2961 = vunpack.c.l.b16 %v1030
        %v2962 = vunpack.c.h.b16 %v1030
        %v2963 = vunpack.c.l.b16 %v1031
        %v2964 = vunpack.c.h.b16 %v1031
        %v2965 = vunpack.c.l.b16 %v1032
        %v2966 = vunpack.c.h.b16 %v1032
        %v2967 = vunpack.c.l.b16 %v1033
        %v2968 = vunpack.c.h.b16 %v1033
        %v2969 = vunpack.c.l.b16 %v1034
        %v2970 = vunpack.c.h.b16 %v1034
        %v2971 = vunpack.c.l.b16 %v1035
        %v2972 = vunpack.c.h.b16 %v1035
        %v2973 = vunpack.c.l.b16 %v1036
        %v2974 = vunpack.c.h.b16 %v1036
        %v2975 = vunpack.c.l.b16 %v1037
        %v2976 = vunpack.c.h.b16 %v1037
        %v2977 = vunpack.c.l.b16 %v1038
        %v2978 = vunpack.c.h.b16 %v1038
        %v2979 = vunpack.c.l.b16 %v1039
        %v2980 = vunpack.c.h.b16 %v1039
        %v2981 = vunpack.c.l.b16 %v1040
        %v2982 = vunpack.c.h.b16 %v1040
        %v2983 = vunpack.c.l.b16 %v1041
        %v2984 = vunpack.c.h.b16 %v1041
        %v2985 = vunpack.c.l.b16 %v1042
        %v2986 = vunpack.c.h.b16 %v1042
        %v2987 = vunpack.c.l.b16 %v1043
        %v2988 = vunpack.c.h.b16 %v1043
        %v2989 = vunpack.c.l.b16 %v1044
        %v2990 = vunpack.c.h.b16 %v1044
        %v2991 = vunpack.c.l.b16 %v1045
        %v2992 = vunpack.c.h.b16 %v1045
        %v2993 = vunpack.c.l.b16 %v1046
        %v2994 = vunpack.c.h.b16 %v1046
        %v2995 = vunpack.c.l.b16 %v1047
        %v2996 = vunpack.c.h.b16 %v1047
        %v2997 = vunpack.c.l.b16 %v1048
        %v2998 = vunpack.c.h.b16 %v1048
        %v2999 = vunpack.c.l.b16 %v1049
        %v3000 = vunpack.c.h.b16 %v1049
        %v3001 = vunpack.c.l.b16 %v1050
        %v3002 = vunpack.c.h.b16 %v1050
        %v3003 = vunpack.c.l.b16 %v1051
        %v3004 = vunpack.c.h.b16 %v1051
        %v3005 = vunpack.c.l.b16 %v1052
        %v3006 = vunpack.c.h.b16 %v1052
        %v3007 = vunpack.c.l.b16 %v1053
        %v3008 = vunpack.c.h.b16 %v1053
        %v3009 = vunpack.c.l.b16 %v1054
        %v3010 = vunpack.c.h.b16 %v1054
        %v3011 = vunpack.c.l.b16 %v1055
        %v3012 = vunpack.c.h.b16 %v1055
        %v3013 = vunpack.c.l.b16 %v1056
        %v3014 = vunpack.c.h.b16 %v1056
        %v3015 = vunpack.c.l.b16 %v1057
        %v3016 = vunpack.c.h.b16 %v1057
        %v3017 = vunpack.c.l.b16 %v1058
        %v3018 = vunpack.c.h.b16 %v1058
        %v3019 = vunpack.c.l.b16 %v1059
        %v3020 = vunpack.c.h.b16 %v1059
        %v3021 = vunpack.c.l.b16 %v1060
        %v3022 = vunpack.c.h.b16 %v1060
        %v3023 = vunpack.c.l.b16 %v1061
        %v3024 = vunpack.c.h.b16 %v1061
        %v3025 = vunpack.c.l.b16 %v1062
        %v3026 = vunpack.c.h.b16 %v1062
        %v3027 = vunpack.c.l.b16 %v1063
        %v3028 = vunpack.c.h.b16 %v1063
        %v3029 = vunpack.c.l.b16 %v1064
        %v3030 = vunpack.c.h.b16 %v1064
        %v3031 = vunpack.c.l.b16 %v1065
        %v3032 = vunpack.c.h.b16 %v1065
        %v3033 = vunpack.c.l.b16 %v1066
        %v3034 = vunpack.c.h.b16 %v1066
        %v3035 = vunpack.c.l.b16 %v1067
        %v3036 = vunpack.c.h.b16 %v1067
        %v3037 = vunpack.c.l.b16 %v1068
        %v3038 = vunpack.c.h.b16 %v1068
        %v3039 = vunpack.c.l.b16 %v1069
        %v3040 = vunpack.c.h.b16 %v1069
        %v3041 = vunpack.c.l.b16 %v1070
        %v3042 = vunpack.c.h.b16 %v1070
        %v3043 = vunpack.c.l.b16 %v1071
        %v3044 = vunpack.c.h.b16 %v1071
        %v3045 = vunpack.c.l.b16 %v1072
        %v3046 = vunpack.c.h.b16 %v1072
        %v3047 = vunpack.c.l.b16 %v1073
        %v3048 = vunpack.c.h.b16 %v1073
        %v3049 = vunpack.c.l.b16 %v1074
        %v3050 = vunpack.c.h.b16 %v1074
        %v3051 = vunpack.c.l.b16 %v1075
        %v3052 = vunpack.c.h.b16 %v1075
        %v3053 = vunpack.c.l.b16 %v1076
        %v3054 = vunpack.c.h.b16 %v1076
        %v3055 = vunpack.c.l.b16 %v1077
        %v3056 = vunpack.c.h.b16 %v1077
        %v3057 = vunpack.c.l.b16 %v1078
        %v3058 = vunpack.c.h.b16 %v1078
        %v3059 = vunpack.c.l.b16 %v1079
        %v3060 = vunpack.c.h.b16 %v1079
        %v3061 = vunpack.c.l.b16 %v1080
        %v3062 = vunpack.c.h.b16 %v1080
        %v3063 = vunpack.c.l.b16 %v1081
        %v3064 = vunpack.c.h.b16 %v1081
        %v3065 = vunpack.c.l.b16 %v1082
        %v3066 = vunpack.c.h.b16 %v1082
        %v3067 = vunpack.c.l.b16 %v1083
        %v3068 = vunpack.c.h.b16 %v1083
        %v3069 = vunpack.c.l.b16 %v1084
        %v3070 = vunpack.c.h.b16 %v1084
        %v3071 = vunpack.c.l.b16 %v1085
        %v3072 = vunpack.c.h.b16 %v1085
        %v3073 = vunpack.c.l.b16 %v1086
        %v3074 = vunpack.c.h.b16 %v1086
        %v3075 = vunpack.c.l.b16 %v1087
        %v3076 = vunpack.c.h.b16 %v1087
        %v3077 = vunpack.c.l.b16 %v1088
        %v3078 = vunpack.c.h.b16 %v1088
        %v3079 = vunpack.c.l.b16 %v1089
        %v3080 = vunpack.c.h.b16 %v1089
        %v3081 = vunpack.c.l.b16 %v1090
        %v3082 = vunpack.c.h.b16 %v1090
        %v3083 = vunpack.c.l.b16 %v1091
        %v3084 = vunpack.c.h.b16 %v1091
        %v3085 = vunpack.c.l.b16 %v1092
        %v3086 = vunpack.c.h.b16 %v1092
        %v3087 = vunpack.c.l.b16 %v1093
        %v3088 = vunpack.c.h.b16 %v1093
        %v3089 = vunpack.c.l.b16 %v1094
        %v3090 = vunpack.c.h.b16 %v1094
        %v3091 = vunpack.c.l.b16 %v1095
        %v3092 = vunpack.c.h.b16 %v1095
        %v3093 = vunpack.c.l.b16 %v1096
        %v3094 = vunpack.c.h.b16 %v1096
        %v3095 = vunpack.c.l.b16 %v1097
        %v3096 = vunpack.c.h.b16 %v1097
        %v3097 = vunpack.c.l.b16 %v1098
        %v3098 = vunpack.c.h.b16 %v1098
        %v3099 = vunpack.c.l.b16 %v1099
        %v3100 = vunpack.c.h.b16 %v1099
        %v3101 = vunpack.c.l.b16 %v1100
        %v3102 = vunpack.c.h.b16 %v1100
        %v3103 = vunpack.c.l.b16 %v1101
        %v3104 = vunpack.c.h.b16 %v1101
        %v3105 = vunpack.c.l.b16 %v1102
        %v3106 = vunpack.c.h.b16 %v1102
        %v3107 = vunpack.c.l.b16 %v1103
        %v3108 = vunpack.c.h.b16 %v1103
        %v3109 = vunpack.c.l.b16 %v1104
        %v3110 = vunpack.c.h.b16 %v1104
        %v3111 = vunpack.c.l.b16 %v1105
        %v3112 = vunpack.c.h.b16 %v1105
        %v3113 = vunpack.c.l.b16 %v1106
        %v3114 = vunpack.c.h.b16 %v1106
        %v3115 = vunpack.c.l.b16 %v1107
        %v3116 = vunpack.c.h.b16 %v1107
        %v3117 = vunpack.c.l.b16 %v1108
        %v3118 = vunpack.c.h.b16 %v1108
        %v3119 = vunpack.c.l.b16 %v1109
        %v3120 = vunpack.c.h.b16 %v1109
        %v3121 = vunpack.c.l.b16 %v1110
        %v3122 = vunpack.c.h.b16 %v1110
        %v3123 = vunpack.c.l.b16 %v1111
        %v3124 = vunpack.c.h.b16 %v1111
        %v3125 = vunpack.c.l.b16 %v1112
        %v3126 = vunpack.c.h.b16 %v1112
        %v3127 = vunpack.c.l.b16 %v1113
        %v3128 = vunpack.c.h.b16 %v1113
        %v3129 = vunpack.c.l.b16 %v1114
        %v3130 = vunpack.c.h.b16 %v1114
        %v3131 = vunpack.c.l.b16 %v1115
        %v3132 = vunpack.c.h.b16 %v1115
        %v3133 = vunpack.c.l.b16 %v1116
        %v3134 = vunpack.c.h.b16 %v1116
        %v3135 = vunpack.c.l.b16 %v1117
        %v3136 = vunpack.c.h.b16 %v1117
        %v3137 = vunpack.c.l.b16 %v1118
        %v3138 = vunpack.c.h.b16 %v1118
        %v3139 = vunpack.c.l.b16 %v1119
        %v3140 = vunpack.c.h.b16 %v1119
        %v3141 = vunpack.c.l.b16 %v1120
        %v3142 = vunpack.c.h.b16 %v1120
        %v3143 = vunpack.c.l.b16 %v1121
        %v3144 = vunpack.c.h.b16 %v1121
        %v3145 = vunpack.c.l.b16 %v1122
        %v3146 = vunpack.c.h.b16 %v1122
        %v3147 = vunpack.c.l.b16 %v1123
        %v3148 = vunpack.c.h.b16 %v1123
        %v3149 = vunpack.c.l.b16 %v1124
        %v3150 = vunpack.c.h.b16 %v1124
        %v3151 = vunpack.c.l.b16 %v1125
        %v3152 = vunpack.c.h.b16 %v1125
        %v3153 = vunpack.c.l.b16 %v1126
        %v3154 = vunpack.c.h.b16 %v1126
        %v3155 = vunpack.c.l.b16 %v1127
        %v3156 = vunpack.c.h.b16 %v1127
        %v3157 = vunpack.c.l.b16 %v1128
        %v3158 = vunpack.c.h.b16 %v1128
        %v3159 = vunpack.c.l.b16 %v1129
        %v3160 = vunpack.c.h.b16 %v1129
        %v3161 = vunpack.c.l.b16 %v1130
        %v3162 = vunpack.c.h.b16 %v1130
        %v3163 = vpack.c.b16 %v1893, %v1883
        %v3164 = vpack.c.b16 %v1894, %v1884
        %v3165 = vpack.c.b16 %v1895, %v1885
        %v3166 = vpack.c.b16 %v1896, %v1886
        %v3167 = vpack.c.b16 %v1897, %v1887
        %v3168 = vpack.c.b16 %v1898, %v1888
        %v3169 = vpack.c.b16 %v1899, %v1889
        %v3170 = vpack.c.b16 %v1900, %v1890
        %v3171 = vpack.c.b16 %v1901, %v1891
        %v3172 = vpack.c.b16 %v1902, %v1892
        %v3173 = vpack.c.b16 %v1913, %v1903
        %v3174 = vpack.c.b16 %v1914, %v1904
        %v3175 = vpack.c.b16 %v1915, %v1905
        %v3176 = vpack.c.b16 %v1916, %v1906
        %v3177 = vpack.c.b16 %v1917, %v1907
        %v3178 = vpack.c.b16 %v1918, %v1908
        %v3179 = vpack.c.b16 %v1919, %v1909
        %v3180 = vpack.c.b16 %v1920, %v1910
        %v3181 = vpack.c.b16 %v1921, %v1911
        %v3182 = vpack.c.b16 %v1922, %v1912
        %v3183 = vpack.c.b16 %v1933, %v1923
        %v3184 = vpack.c.b16 %v1934, %v1924
        %v3185 = vpack.c.b16 %v1935, %v1925
        %v3186 = vpack.c.b16 %v1936, %v1926
        %v3187 = vpack.c.b16 %v1937, %v1927
        %v3188 = vpack.c.b16 %v1938, %v1928
        %v3189 = vpack.c.b16 %v1939, %v1929
        %v3190 = vpack.c.b16 %v1940, %v1930
        %v3191 = vpack.c.b16 %v1941, %v1931
        %v3192 = vpack.c.b16 %v1942, %v1932
        %v3193 = vpack.c.b16 %v1953, %v1943
        %v3194 = vpack.c.b16 %v1954, %v1944
        %v3195 = vpack.c.b16 %v1955, %v1945
        %v3196 = vpack.c.b16 %v1956, %v1946
        %v3197 = vpack.c.b16 %v1957, %v1947
        %v3198 = vpack.c.b16 %v1958, %v1948
        %v3199 = vpack.c.b16 %v1959, %v1949
        %v3200 = vpack.c.b16 %v1960, %v1950
        %v3201 = vpack.c.b16 %v1961, %v1951
        %v3202 = vpack.c.b16 %v1962, %v1952
        %v3203 = vpack.c.b16 %v1973, %v1963
        %v3204 = vpack.c.b16 %v1974, %v1964
        %v3205 = vpack.c.b16 %v1975, %v1965
        %v3206 = vpack.c.b16 %v1976, %v1966
        %v3207 = vpack.c.b16 %v1977, %v1967
        %v3208 = vpack.c.b16 %v1978, %v1968
        %v3209 = vpack.c.b16 %v1979, %v1969
        %v3210 = vpack.c.b16 %v1980, %v1970
        %v3211 = vpack.c.b16 %v1981, %v1971
        %v3212 = vpack.c.b16 %v1982, %v1972
        %v3213 = vpack.c.b16 %v1993, %v1983
        %v3214 = vpack.c.b16 %v1994, %v1984
        %v3215 = vpack.c.b16 %v1995, %v1985
        %v3216 = vpack.c.b16 %v1996, %v1986
        %v3217 = vpack.c.b16 %v1997, %v1987
        %v3218 = vpack.c.b16 %v1998, %v1988
        %v3219 = vpack.c.b16 %v1999, %v1989
        %v3220 = vpack.c.b16 %v2000, %v1990
        %v3221 = vpack.c.b16 %v2001, %v1991
        %v3222 = vpack.c.b16 %v2002, %v1992
        %v3223 = vpack.c.b16 %v2013, %v2003
        %v3224 = vpack.c.b16 %v2014, %v2004
        %v3225 = vpack.c.b16 %v2015, %v2005
        %v3226 = vpack.c.b16 %v2016, %v2006
        %v3227 = vpack.c.b16 %v2017, %v2007
        %v3228 = vpack.c.b16 %v2018, %v2008
        %v3229 = vpack.c.b16 %v2019, %v2009
        %v3230 = vpack.c.b16 %v2020, %v2010
        %v3231 = vpack.c.b16 %v2021, %v2011
        %v3232 = vpack.c.b16 %v2022, %v2012
        %v3233 = vpack.c.b16 %v2033, %v2023
        %v3234 = vpack.c.b16 %v2034, %v2024
        %v3235 = vpack.c.b16 %v2035, %v2025
        %v3236 = vpack.c.b16 %v2036, %v2026
        %v3237 = vpack.c.b16 %v2037, %v2027
        %v3238 = vpack.c.b16 %v2038, %v2028
        %v3239 = vpack.c.b16 %v2039, %v2029
        %v3240 = vpack.c.b16 %v2040, %v2030
        %v3241 = vpack.c.b16 %v2041, %v2031
        %v3242 = vpack.c.b16 %v2042, %v2032
        %v3243 = vpack.c.b16 %v2053, %v2043
        %v3244 = vpack.c.b16 %v2054, %v2044
        %v3245 = vpack.c.b16 %v2055, %v2045
        %v3246 = vpack.c.b16 %v2056, %v2046
        %v3247 = vpack.c.b16 %v2057, %v2047
        %v3248 = vpack.c.b16 %v2058, %v2048
        %v3249 = vpack.c.b16 %v2059, %v2049
        %v3250 = vpack.c.b16 %v2060, %v2050
        %v3251 = vpack.c.b16 %v2061, %v2051
        %v3252 = vpack.c.b16 %v2062, %v2052
        %v3253 = vpack.c.b16 %v2073, %v2063
        %v3254 = vpack.c.b16 %v2074, %v2064
        %v3255 = vpack.c.b16 %v2075, %v2065
        %v3256 = vpack.c.b16 %v2076, %v2066
        %v3257 = vpack.c.b16 %v2077, %v2067
        %v3258 = vpack.c.b16 %v2078, %v2068
        %v3259 = vpack.c.b16 %v2079, %v2069
        %v3260 = vpack.c.b16 %v2080, %v2070
        %v3261 = vpack.c.b16 %v2081, %v2071
        %v3262 = vpack.c.b16 %v2082, %v2072
        %v3263 = vpack.c.b16 %v2093, %v2083
        %v3264 = vpack.c.b16 %v2094, %v2084
        %v3265 = vpack.c.b16 %v2095, %v2085
        %v3266 = vpack.c.b16 %v2096, %v2086
        %v3267 = vpack.c.b16 %v2097, %v2087
        %v3268 = vpack.c.b16 %v2098, %v2088
        %v3269 = vpack.c.b16 %v2099, %v2089
        %v3270 = vpack.c.b16 %v2100, %v2090
        %v3271 = vpack.c.b16 %v2101, %v2091
        %v3272 = vpack.c.b16 %v2102, %v2092
        %v3273 = vpack.c.b16 %v2113, %v2103
        %v3274 = vpack.c.b16 %v2114, %v2104
        %v3275 = vpack.c.b16 %v2115, %v2105
        %v3276 = vpack.c.b16 %v2116, %v2106
        %v3277 = vpack.c.b16 %v2117, %v2107
        %v3278 = vpack.c.b16 %v2118, %v2108
        %v3279 = vpack.c.b16 %v2119, %v2109
        %v3280 = vpack.c.b16 %v2120, %v2110
        %v3281 = vpack.c.b16 %v2121, %v2111
        %v3282 = vpack.c.b16 %v2122, %v2112
        %v3283 = vpack.c.b16 %v2133, %v2123
        %v3284 = vpack.c.b16 %v2134, %v2124
        %v3285 = vpack.c.b16 %v2135, %v2125
        %v3286 = vpack.c.b16 %v2136, %v2126
        %v3287 = vpack.c.b16 %v2137, %v2127
        %v3288 = vpack.c.b16 %v2138, %v2128
        %v3289 = vpack.c.b16 %v2139, %v2129
        %v3290 = vpack.c.b16 %v2140, %v2130
        %v3291 = vpack.c.b16 %v2141, %v2131
        %v3292 = vpack.c.b16 %v2142, %v2132
        %v3293 = vpack.c.b16 %v2153, %v2143
        %v3294 = vpack.c.b16 %v2154, %v2144
        %v3295 = vpack.c.b16 %v2155, %v2145
        %v3296 = vpack.c.b16 %v2156, %v2146
        %v3297 = vpack.c.b16 %v2157, %v2147
        %v3298 = vpack.c.b16 %v2158, %v2148
        %v3299 = vpack.c.b16 %v2159, %v2149
        %v3300 = vpack.c.b16 %v2160, %v2150
        %v3301 = vpack.c.b16 %v2161, %v2151
        %v3302 = vpack.c.b16 %v2162, %v2152
        %v3303 = vpack.c.b16 %v2173, %v2163
        %v3304 = vpack.c.b16 %v2174, %v2164
        %v3305 = vpack.c.b16 %v2175, %v2165
        %v3306 = vpack.c.b16 %v2176, %v2166
        %v3307 = vpack.c.b16 %v2177, %v2167
        %v3308 = vpack.c.b16 %v2178, %v2168
        %v3309 = vpack.c.b16 %v2179, %v2169
        %v3310 = vpack.c.b16 %v2180, %v2170
        %v3311 = vpack.c.b16 %v2181, %v2171
        %v3312 = vpack.c.b16 %v2182, %v2172
        %v3313 = vpack.c.b16 %v2193, %v2183
        %v3314 = vpack.c.b16 %v2194, %v2184
        %v3315 = vpack.c.b16 %v2195, %v2185
        %v3316 = vpack.c.b16 %v2196, %v2186
        %v3317 = vpack.c.b16 %v2197, %v2187
        %v3318 = vpack.c.b16 %v2198, %v2188
        %v3319 = vpack.c.b16 %v2199, %v2189
        %v3320 = vpack.c.b16 %v2200, %v2190
        %v3321 = vpack.c.b16 %v2201, %v2191
        %v3322 = vpack.c.b16 %v2202, %v2192
        %v3323 = vpack.c.b16 %v2213, %v2203
        %v3324 = vpack.c.b16 %v2214, %v2204
        %v3325 = vpack.c.b16 %v2215, %v2205
        %v3326 = vpack.c.b16 %v2216, %v2206
        %v3327 = vpack.c.b16 %v2217, %v2207
        %v3328 = vpack.c.b16 %v2218, %v2208
        %v3329 = vpack.c.b16 %v2219, %v2209
        %v3330 = vpack.c.b16 %v2220, %v2210
        %v3331 = vpack.c.b16 %v2221, %v2211
        %v3332 = vpack.c.b16 %v2222, %v2212
        %v3333 = vpack.c.b16 %v2233, %v2223
        %v3334 = vpack.c.b16 %v2234, %v2224
        %v3335 = vpack.c.b16 %v2235, %v2225
        %v3336 = vpack.c.b16 %v2236, %v2226
        %v3337 = vpack.c.b16 %v2237, %v2227
        %v3338 = vpack.c.b16 %v2238, %v2228
        %v3339 = vpack.c.b16 %v2239, %v2229
        %v3340 = vpack.c.b16 %v2240, %v2230
        %v3341 = vpack.c.b16 %v2241, %v2231
        %v3342 = vpack.c.b16 %v2242, %v2232
        %v3343 = vpack.c.b16 %v2253, %v2243
        %v3344 = vpack.c.b16 %v2254, %v2244
        %v3345 = vpack.c.b16 %v2255, %v2245
        %v3346 = vpack.c.b16 %v2256, %v2246
        %v3347 = vpack.c.b16 %v2257, %v2247
        %v3348 = vpack.c.b16 %v2258, %v2248
        %v3349 = vpack.c.b16 %v2259, %v2249
        %v3350 = vpack.c.b16 %v2260, %v2250
        %v3351 = vpack.c.b16 %v2261, %v2251
        %v3352 = vpack.c.b16 %v2262, %v2252
        %v3353 = vpack.c.b16 %v2273, %v2263
        %v3354 = vpack.c.b16 %v2274, %v2264
        %v3355 = vpack.c.b16 %v2275, %v2265
        %v3356 = vpack.c.b16 %v2276, %v2266
        %v3357 = vpack.c.b16 %v2277, %v2267
        %v3358 = vpack.c.b16 %v2278, %v2268
        %v3359 = vpack.c.b16 %v2279, %v2269
        %v3360 = vpack.c.b16 %v2280, %v2270
        %v3361 = vpack.c.b16 %v2281, %v2271
        %v3362 = vpack.c.b16 %v2282, %v2272
        %v3363 = vpack.c.b16 %v2293, %v2283
        %v3364 = vpack.c.b16 %v2294, %v2284
        %v3365 = vpack.c.b16 %v2295, %v2285
        %v3366 = vpack.c.b16 %v2296, %v2286
        %v3367 = vpack.c.b16 %v2297, %v2287
        %v3368 = vpack.c.b16 %v2298, %v2288
        %v3369 = vpack.c.b16 %v2299, %v2289
        %v3370 = vpack.c.b16 %v2300, %v2290
        %v3371 = vpack.c.b16 %v2301, %v2291
        %v3372 = vpack.c.b16 %v2302, %v2292
        %v3373 = vpack.c.b16 %v2313, %v2303
        %v3374 = vpack.c.b16 %v2314, %v2304
        %v3375 = vpack.c.b16 %v2315, %v2305
        %v3376 = vpack.c.b16 %v2316, %v2306
        %v3377 = vpack.c.b16 %v2317, %v2307
        %v3378 = vpack.c.b16 %v2318, %v2308
        %v3379 = vpack.c.b16 %v2319, %v2309
        %v3380 = vpack.c.b16 %v2320, %v2310
        %v3381 = vpack.c.b16 %v2321, %v2311
        %v3382 = vpack.c.b16 %v2322, %v2312
        %v3383 = vpack.c.b16 %v2333, %v2323
        %v3384 = vpack.c.b16 %v2334, %v2324
        %v3385 = vpack.c.b16 %v2335, %v2325
        %v3386 = vpack.c.b16 %v2336, %v2326
        %v3387 = vpack.c.b16 %v2337, %v2327
        %v3388 = vpack.c.b16 %v2338, %v2328
        %v3389 = vpack.c.b16 %v2339, %v2329
        %v3390 = vpack.c.b16 %v2340, %v2330
        %v3391 = vpack.c.b16 %v2341, %v2331
        %v3392 = vpack.c.b16 %v2342, %v2332
        %v3393 = vpack.c.b16 %v2353, %v2343
        %v3394 = vpack.c.b16 %v2354, %v2344
        %v3395 = vpack.c.b16 %v2355, %v2345
        %v3396 = vpack.c.b16 %v2356, %v2346
        %v3397 = vpack.c.b16 %v2357, %v2347
        %v3398 = vpack.c.b16 %v2358, %v2348
        %v3399 = vpack.c.b16 %v2359, %v2349
        %v3400 = vpack.c.b16 %v2360, %v2350
        %v3401 = vpack.c.b16 %v2361, %v2351
        %v3402 = vpack.c.b16 %v2362, %v2352
        %v3403 = vpack.c.b16 %v2373, %v2363
        %v3404 = vpack.c.b16 %v2374, %v2364
        %v3405 = vpack.c.b16 %v2375, %v2365
        %v3406 = vpack.c.b16 %v2376, %v2366
        %v3407 = vpack.c.b16 %v2377, %v2367
        %v3408 = vpack.c.b16 %v2378, %v2368
        %v3409 = vpack.c.b16 %v2379, %v2369
        %v3410 = vpack.c.b16 %v2380, %v2370
        %v3411 = vpack.c.b16 %v2381, %v2371
        %v3412 = vpack.c.b16 %v2382, %v2372
        %v3413 = vpack.c.b16 %v2393, %v2383
        %v3414 = vpack.c.b16 %v2394, %v2384
        %v3415 = vpack.c.b16 %v2395, %v2385
        %v3416 = vpack.c.b16 %v2396, %v2386
        %v3417 = vpack.c.b16 %v2397, %v2387
        %v3418 = vpack.c.b16 %v2398, %v2388
        %v3419 = vpack.c.b16 %v2399, %v2389
        %v3420 = vpack.c.b16 %v2400, %v2390
        %v3421 = vpack.c.b16 %v2401, %v2391
        %v3422 = vpack.c.b16 %v2402, %v2392
        %v3423 = vpack.c.b16 %v2413, %v2403
        %v3424 = vpack.c.b16 %v2414, %v2404
        %v3425 = vpack.c.b16 %v2415, %v2405
        %v3426 = vpack.c.b16 %v2416, %v2406
        %v3427 = vpack.c.b16 %v2417, %v2407
        %v3428 = vpack.c.b16 %v2418, %v2408
        %v3429 = vpack.c.b16 %v2419, %v2409
        %v3430 = vpack.c.b16 %v2420, %v2410
        %v3431 = vpack.c.b16 %v2421, %v2411
        %v3432 = vpack.c.b16 %v2422, %v2412
        %v3433 = vpack.c.b16 %v2433, %v2423
        %v3434 = vpack.c.b16 %v2434, %v2424
        %v3435 = vpack.c.b16 %v2435, %v2425
        %v3436 = vpack.c.b16 %v2436, %v2426
        %v3437 = vpack.c.b16 %v2437, %v2427
        %v3438 = vpack.c.b16 %v2438, %v2428
        %v3439 = vpack.c.b16 %v2439, %v2429
        %v3440 = vpack.c.b16 %v2440, %v2430
        %v3441 = vpack.c.b16 %v2441, %v2431
        %v3442 = vpack.c.b16 %v2442, %v2432
        %v3443 = vpack.c.b16 %v2453, %v2443
        %v3444 = vpack.c.b16 %v2454, %v2444
        %v3445 = vpack.c.b16 %v2455, %v2445
        %v3446 = vpack.c.b16 %v2456, %v2446
        %v3447 = vpack.c.b16 %v2457, %v2447
        %v3448 = vpack.c.b16 %v2458, %v2448
        %v3449 = vpack.c.b16 %v2459, %v2449
        %v3450 = vpack.c.b16 %v2460, %v2450
        %v3451 = vpack.c.b16 %v2461, %v2451
        %v3452 = vpack.c.b16 %v2462, %v2452
        %v3453 = vpack.c.b16 %v2473, %v2463
        %v3454 = vpack.c.b16 %v2474, %v2464
        %v3455 = vpack.c.b16 %v2475, %v2465
        %v3456 = vpack.c.b16 %v2476, %v2466
        %v3457 = vpack.c.b16 %v2477, %v2467
        %v3458 = vpack.c.b16 %v2478, %v2468
        %v3459 = vpack.c.b16 %v2479, %v2469
        %v3460 = vpack.c.b16 %v2480, %v2470
        %v3461 = vpack.c.b16 %v2481, %v2471
        %v3462 = vpack.c.b16 %v2482, %v2472
        %v3463 = vpack.c.b16 %v2493, %v2483
        %v3464 = vpack.c.b16 %v2494, %v2484
        %v3465 = vpack.c.b16 %v2495, %v2485
        %v3466 = vpack.c.b16 %v2496, %v2486
        %v3467 = vpack.c.b16 %v2497, %v2487
        %v3468 = vpack.c.b16 %v2498, %v2488
        %v3469 = vpack.c.b16 %v2499, %v2489
        %v3470 = vpack.c.b16 %v2500, %v2490
        %v3471 = vpack.c.b16 %v2501, %v2491
        %v3472 = vpack.c.b16 %v2502, %v2492
        %v3473 = vpack.c.b16 %v2513, %v2503
        %v3474 = vpack.c.b16 %v2514, %v2504
        %v3475 = vpack.c.b16 %v2515, %v2505
        %v3476 = vpack.c.b16 %v2516, %v2506
        %v3477 = vpack.c.b16 %v2517, %v2507
        %v3478 = vpack.c.b16 %v2518, %v2508
        %v3479 = vpack.c.b16 %v2519, %v2509
        %v3480 = vpack.c.b16 %v2520, %v2510
        %v3481 = vpack.c.b16 %v2521, %v2511
        %v3482 = vpack.c.b16 %v2522, %v2512
        %v3483 = vpack.c.b16 %v2533, %v2523
        %v3484 = vpack.c.b16 %v2534, %v2524
        %v3485 = vpack.c.b16 %v2535, %v2525
        %v3486 = vpack.c.b16 %v2536, %v2526
        %v3487 = vpack.c.b16 %v2537, %v2527
        %v3488 = vpack.c.b16 %v2538, %v2528
        %v3489 = vpack.c.b16 %v2539, %v2529
        %v3490 = vpack.c.b16 %v2540, %v2530
        %v3491 = vpack.c.b16 %v2541, %v2531
        %v3492 = vpack.c.b16 %v2542, %v2532
        %v3493 = vpack.c.b16 %v2553, %v2543
        %v3494 = vpack.c.b16 %v2554, %v2544
        %v3495 = vpack.c.b16 %v2555, %v2545
        %v3496 = vpack.c.b16 %v2556, %v2546
        %v3497 = vpack.c.b16 %v2557, %v2547
        %v3498 = vpack.c.b16 %v2558, %v2548
        %v3499 = vpack.c.b16 %v2559, %v2549
        %v3500 = vpack.c.b16 %v2560, %v2550
        %v3501 = vpack.c.b16 %v2561, %v2551
        %v3502 = vpack.c.b16 %v2562, %v2552
        %v3503 = vpack.c.b16 %v2573, %v2563
        %v3504 = vpack.c.b16 %v2574, %v2564
        %v3505 = vpack.c.b16 %v2575, %v2565
        %v3506 = vpack.c.b16 %v2576, %v2566
        %v3507 = vpack.c.b16 %v2577, %v2567
        %v3508 = vpack.c.b16 %v2578, %v2568
        %v3509 = vpack.c.b16 %v2579, %v2569
        %v3510 = vpack.c.b16 %v2580, %v2570
        %v3511 = vpack.c.b16 %v2581, %v2571
        %v3512 = vpack.c.b16 %v2582, %v2572
        %v3513 = vpack.c.b16 %v2593, %v2583
        %v3514 = vpack.c.b16 %v2594, %v2584
        %v3515 = vpack.c.b16 %v2595, %v2585
        %v3516 = vpack.c.b16 %v2596, %v2586
        %v3517 = vpack.c.b16 %v2597, %v2587
        %v3518 = vpack.c.b16 %v2598, %v2588
        %v3519 = vpack.c.b16 %v2599, %v2589
        %v3520 = vpack.c.b16 %v2600, %v2590
        %v3521 = vpack.c.b16 %v2601, %v2591
        %v3522 = vpack.c.b16 %v2602, %v2592
        %v3523 = vpack.c.b16 %v2613, %v2603
        %v3524 = vpack.c.b16 %v2614, %v2604
        %v3525 = vpack.c.b16 %v2615, %v2605
        %v3526 = vpack.c.b16 %v2616, %v2606
        %v3527 = vpack.c.b16 %v2617, %v2607
        %v3528 = vpack.c.b16 %v2618, %v2608
        %v3529 = vpack.c.b16 %v2619, %v2609
        %v3530 = vpack.c.b16 %v2620, %v2610
        %v3531 = vpack.c.b16 %v2621, %v2611
        %v3532 = vpack.c.b16 %v2622, %v2612
        %v3533 = vpack.c.b16 %v2633, %v2623
        %v3534 = vpack.c.b16 %v2634, %v2624
        %v3535 = vpack.c.b16 %v2635, %v2625
        %v3536 = vpack.c.b16 %v2636, %v2626
        %v3537 = vpack.c.b16 %v2637, %v2627
        %v3538 = vpack.c.b16 %v2638, %v2628
        %v3539 = vpack.c.b16 %v2639, %v2629
        %v3540 = vpack.c.b16 %v2640, %v2630
        %v3541 = vpack.c.b16 %v2641, %v2631
        %v3542 = vpack.c.b16 %v2642, %v2632
        %v3543 = vpack.c.b16 %v2653, %v2643
        %v3544 = vpack.c.b16 %v2654, %v2644
        %v3545 = vpack.c.b16 %v2655, %v2645
        %v3546 = vpack.c.b16 %v2656, %v2646
        %v3547 = vpack.c.b16 %v2657, %v2647
        %v3548 = vpack.c.b16 %v2658, %v2648
        %v3549 = vpack.c.b16 %v2659, %v2649
        %v3550 = vpack.c.b16 %v2660, %v2650
        %v3551 = vpack.c.b16 %v2661, %v2651
        %v3552 = vpack.c.b16 %v2662, %v2652
        %v3553 = vpack.c.b16 %v2673, %v2663
        %v3554 = vpack.c.b16 %v2674, %v2664
        %v3555 = vpack.c.b16 %v2675, %v2665
        %v3556 = vpack.c.b16 %v2676, %v2666
        %v3557 = vpack.c.b16 %v2677, %v2667
        %v3558 = vpack.c.b16 %v2678, %v2668
        %v3559 = vpack.c.b16 %v2679, %v2669
        %v3560 = vpack.c.b16 %v2680, %v2670
        %v3561 = vpack.c.b16 %v2681, %v2671
        %v3562 = vpack.c.b16 %v2682, %v2672
        %v3563 = vpack.c.b16 %v2693, %v2683
        %v3564 = vpack.c.b16 %v2694, %v2684
        %v3565 = vpack.c.b16 %v2695, %v2685
        %v3566 = vpack.c.b16 %v2696, %v2686
        %v3567 = vpack.c.b16 %v2697, %v2687
        %v3568 = vpack.c.b16 %v2698, %v2688
        %v3569 = vpack.c.b16 %v2699, %v2689
        %v3570 = vpack.c.b16 %v2700, %v2690
        %v3571 = vpack.c.b16 %v2701, %v2691
        %v3572 = vpack.c.b16 %v2702, %v2692
        %v3573 = vpack.c.b16 %v2713, %v2703
        %v3574 = vpack.c.b16 %v2714, %v2704
        %v3575 = vpack.c.b16 %v2715, %v2705
        %v3576 = vpack.c.b16 %v2716, %v2706
        %v3577 = vpack.c.b16 %v2717, %v2707
        %v3578 = vpack.c.b16 %v2718, %v2708
        %v3579 = vpack.c.b16 %v2719, %v2709
        %v3580 = vpack.c.b16 %v2720, %v2710
        %v3581 = vpack.c.b16 %v2721, %v2711
        %v3582 = vpack.c.b16 %v2722, %v2712
        %v3583 = vpack.c.b16 %v2733, %v2723
        %v3584 = vpack.c.b16 %v2734, %v2724
        %v3585 = vpack.c.b16 %v2735, %v2725
        %v3586 = vpack.c.b16 %v2736, %v2726
        %v3587 = vpack.c.b16 %v2737, %v2727
        %v3588 = vpack.c.b16 %v2738, %v2728
        %v3589 = vpack.c.b16 %v2739, %v2729
        %v3590 = vpack.c.b16 %v2740, %v2730
        %v3591 = vpack.c.b16 %v2741, %v2731
        %v3592 = vpack.c.b16 %v2742, %v2732
        %v3593 = vpack.c.b16 %v2753, %v2743
        %v3594 = vpack.c.b16 %v2754, %v2744
        %v3595 = vpack.c.b16 %v2755, %v2745
        %v3596 = vpack.c.b16 %v2756, %v2746
        %v3597 = vpack.c.b16 %v2757, %v2747
        %v3598 = vpack.c.b16 %v2758, %v2748
        %v3599 = vpack.c.b16 %v2759, %v2749
        %v3600 = vpack.c.b16 %v2760, %v2750
        %v3601 = vpack.c.b16 %v2761, %v2751
        %v3602 = vpack.c.b16 %v2762, %v2752
        %v3603 = vpack.c.b16 %v2773, %v2763
        %v3604 = vpack.c.b16 %v2774, %v2764
        %v3605 = vpack.c.b16 %v2775, %v2765
        %v3606 = vpack.c.b16 %v2776, %v2766
        %v3607 = vpack.c.b16 %v2777, %v2767
        %v3608 = vpack.c.b16 %v2778, %v2768
        %v3609 = vpack.c.b16 %v2779, %v2769
        %v3610 = vpack.c.b16 %v2780, %v2770
        %v3611 = vpack.c.b16 %v2781, %v2771
        %v3612 = vpack.c.b16 %v2782, %v2772
        %v3613 = vpack.c.b16 %v2793, %v2783
        %v3614 = vpack.c.b16 %v2794, %v2784
        %v3615 = vpack.c.b16 %v2795, %v2785
        %v3616 = vpack.c.b16 %v2796, %v2786
        %v3617 = vpack.c.b16 %v2797, %v2787
        %v3618 = vpack.c.b16 %v2798, %v2788
        %v3619 = vpack.c.b16 %v2799, %v2789
        %v3620 = vpack.c.b16 %v2800, %v2790
        %v3621 = vpack.c.b16 %v2801, %v2791
        %v3622 = vpack.c.b16 %v2802, %v2792
        %v3623 = vpack.c.b16 %v2813, %v2803
        %v3624 = vpack.c.b16 %v2814, %v2804
        %v3625 = vpack.c.b16 %v2815, %v2805
        %v3626 = vpack.c.b16 %v2816, %v2806
        %v3627 = vpack.c.b16 %v2817, %v2807
        %v3628 = vpack.c.b16 %v2818, %v2808
        %v3629 = vpack.c.b16 %v2819, %v2809
        %v3630 = vpack.c.b16 %v2820, %v2810
        %v3631 = vpack.c.b16 %v2821, %v2811
        %v3632 = vpack.c.b16 %v2822, %v2812
        %v3633 = vpack.c.b16 %v2833, %v2823
        %v3634 = vpack.c.b16 %v2834, %v2824
        %v3635 = vpack.c.b16 %v2835, %v2825
        %v3636 = vpack.c.b16 %v2836, %v2826
        %v3637 = vpack.c.b16 %v2837, %v2827
        %v3638 = vpack.c.b16 %v2838, %v2828
        %v3639 = vpack.c.b16 %v2839, %v2829
        %v3640 = vpack.c.b16 %v2840, %v2830
        %v3641 = vpack.c.b16 %v2841, %v2831
        %v3642 = vpack.c.b16 %v2842, %v2832
        %v3643 = vpack.c.b16 %v2853, %v2843
        %v3644 = vpack.c.b16 %v2854, %v2844
        %v3645 = vpack.c.b16 %v2855, %v2845
        %v3646 = vpack.c.b16 %v2856, %v2846
        %v3647 = vpack.c.b16 %v2857, %v2847
        %v3648 = vpack.c.b16 %v2858, %v2848
        %v3649 = vpack.c.b16 %v2859, %v2849
        %v3650 = vpack.c.b16 %v2860, %v2850
        %v3651 = vpack.c.b16 %v2861, %v2851
        %v3652 = vpack.c.b16 %v2862, %v2852
        %v3653 = vpack.c.b16 %v2873, %v2863
        %v3654 = vpack.c.b16 %v2874, %v2864
        %v3655 = vpack.c.b16 %v2875, %v2865
        %v3656 = vpack.c.b16 %v2876, %v2866
        %v3657 = vpack.c.b16 %v2877, %v2867
        %v3658 = vpack.c.b16 %v2878, %v2868
        %v3659 = vpack.c.b16 %v2879, %v2869
        %v3660 = vpack.c.b16 %v2880, %v2870
        %v3661 = vpack.c.b16 %v2881, %v2871
        %v3662 = vpack.c.b16 %v2882, %v2872
        %v3663 = vpack.c.b16 %v2893, %v2883
        %v3664 = vpack.c.b16 %v2894, %v2884
        %v3665 = vpack.c.b16 %v2895, %v2885
        %v3666 = vpack.c.b16 %v2896, %v2886
        %v3667 = vpack.c.b16 %v2897, %v2887
        %v3668 = vpack.c.b16 %v2898, %v2888
        %v3669 = vpack.c.b16 %v2899, %v2889
        %v3670 = vpack.c.b16 %v2900, %v2890
        %v3671 = vpack.c.b16 %v2901, %v2891
        %v3672 = vpack.c.b16 %v2902, %v2892
        %v3673 = vpack.c.b16 %v2913, %v2903
        %v3674 = vpack.c.b16 %v2914, %v2904
        %v3675 = vpack.c.b16 %v2915, %v2905
        %v3676 = vpack.c.b16 %v2916, %v2906
        %v3677 = vpack.c.b16 %v2917, %v2907
        %v3678 = vpack.c.b16 %v2918, %v2908
        %v3679 = vpack.c.b16 %v2919, %v2909
        %v3680 = vpack.c.b16 %v2920, %v2910
        %v3681 = vpack.c.b16 %v2921, %v2911
        %v3682 = vpack.c.b16 %v2922, %v2912
        %v3683 = vpack.c.b16 %v2933, %v2923
        %v3684 = vpack.c.b16 %v2934, %v2924
        %v3685 = vpack.c.b16 %v2935, %v2925
        %v3686 = vpack.c.b16 %v2936, %v2926
        %v3687 = vpack.c.b16 %v2937, %v2927
        %v3688 = vpack.c.b16 %v2938, %v2928
        %v3689 = vpack.c.b16 %v2939, %v2929
        %v3690 = vpack.c.b16 %v2940, %v2930
        %v3691 = vpack.c.b16 %v2941, %v2931
        %v3692 = vpack.c.b16 %v2942, %v2932
        %v3693 = vpack.c.b16 %v2953, %v2943
        %v3694 = vpack.c.b16 %v2954, %v2944
        %v3695 = vpack.c.b16 %v2955, %v2945
        %v3696 = vpack.c.b16 %v2956, %v2946
        %v3697 = vpack.c.b16 %v2957, %v2947
        %v3698 = vpack.c.b16 %v2958, %v2948
        %v3699 = vpack.c.b16 %v2959, %v2949
        %v3700 = vpack.c.b16 %v2960, %v2950
        %v3701 = vpack.c.b16 %v2961, %v2951
        %v3702 = vpack.c.b16 %v2962, %v2952
        %v3703 = vpack.c.b16 %v2973, %v2963
        %v3704 = vpack.c.b16 %v2974, %v2964
        %v3705 = vpack.c.b16 %v2975, %v2965
        %v3706 = vpack.c.b16 %v2976, %v2966
        %v3707 = vpack.c.b16 %v2977, %v2967
        %v3708 = vpack.c.b16 %v2978, %v2968
        %v3709 = vpack.c.b16 %v2979, %v2969
        %v3710 = vpack.c.b16 %v2980, %v2970
        %v3711 = vpack.c.b16 %v2981, %v2971
        %v3712 = vpack.c.b16 %v2982, %v2972
        %v3713 = vpack.c.b16 %v2993, %v2983
        %v3714 = vpack.c.b16 %v2994, %v2984
        %v3715 = vpack.c.b16 %v2995, %v2985
        %v3716 = vpack.c.b16 %v2996, %v2986
        %v3717 = vpack.c.b16 %v2997, %v2987
        %v3718 = vpack.c.b16 %v2998, %v2988
        %v3719 = vpack.c.b16 %v2999, %v2989
        %v3720 = vpack.c.b16 %v3000, %v2990
        %v3721 = vpack.c.b16 %v3001, %v2991
        %v3722 = vpack.c.b16 %v3002, %v2992
        %v3723 = vpack.c.b16 %v3013, %v3003
        %v3724 = vpack.c.b16 %v3014, %v3004
        %v3725 = vpack.c.b16 %v3015, %v3005
        %v3726 = vpack.c.b16 %v3016, %v3006
        %v3727 = vpack.c.b16 %v3017, %v3007
        %v3728 = vpack.c.b16 %v3018, %v3008
        %v3729 = vpack.c.b16 %v3019, %v3009
        %v3730 = vpack.c.b16 %v3020, %v3010
        %v3731 = vpack.c.b16 %v3021, %v3011
        %v3732 = vpack.c.b16 %v3022, %v3012
        %v3733 = vpack.c.b16 %v3033, %v3023
        %v3734 = vpack.c.b16 %v3034, %v3024
        %v3735 = vpack.c.b16 %v3035, %v3025
        %v3736 = vpack.c.b16 %v3036, %v3026
        %v3737 = vpack.c.b16 %v3037, %v3027
        %v3738 = vpack.c.b16 %v3038, %v3028
        %v3739 = vpack.c.b16 %v3039, %v3029
        %v3740 = vpack.c.b16 %v3040, %v3030
        %v3741 = vpack.c.b16 %v3041, %v3031
        %v3742 = vpack.c.b16 %v3042, %v3032
        %v3743 = vpack.c.b16 %v3053, %v3043
        %v3744 = vpack.c.b16 %v3054, %v3044
        %v3745 = vpack.c.b16 %v3055, %v3045
        %v3746 = vpack.c.b16 %v3056, %v3046
        %v3747 = vpack.c.b16 %v3057, %v3047
        %v3748 = vpack.c.b16 %v3058, %v3048
        %v3749 = vpack.c.b16 %v3059, %v3049
        %v3750 = vpack.c.b16 %v3060, %v3050
        %v3751 = vpack.c.b16 %v3061, %v3051
        %v3752 = vpack.c.b16 %v3062, %v3052
        %v3753 = vpack.c.b16 %v3073, %v3063
        %v3754 = vpack.c.b16 %v3074, %v3064
        %v3755 = vpack.c.b16 %v3075, %v3065
        %v3756 = vpack.c.b16 %v3076, %v3066
        %v3757 = vpack.c.b16 %v3077, %v3067
        %v3758 = vpack.c.b16 %v3078, %v3068
        %v3759 = vpack.c.b16 %v3079, %v3069
        %v3760 = vpack.c.b16 %v3080, %v3070
        %v3761 = vpack.c.b16 %v3081, %v3071
        %v3762 = vpack.c.b16 %v3082, %v3072
        %v3763 = vpack.c.b16 %v3093, %v3083
        %v3764 = vpack.c.b16 %v3094, %v3084
        %v3765 = vpack.c.b16 %v3095, %v3085
        %v3766 = vpack.c.b16 %v3096, %v3086
        %v3767 = vpack.c.b16 %v3097, %v3087
        %v3768 = vpack.c.b16 %v3098, %v3088
        %v3769 = vpack.c.b16 %v3099, %v3089
        %v3770 = vpack.c.b16 %v3100, %v3090
        %v3771 = vpack.c.b16 %v3101, %v3091
        %v3772 = vpack.c.b16 %v3102, %v3092
        %v3773 = vpack.c.b16 %v3113, %v3103
        %v3774 = vpack.c.b16 %v3114, %v3104
        %v3775 = vpack.c.b16 %v3115, %v3105
        %v3776 = vpack.c.b16 %v3116, %v3106
        %v3777 = vpack.c.b16 %v3117, %v3107
        %v3778 = vpack.c.b16 %v3118, %v3108
        %v3779 = vpack.c.b16 %v3119, %v3109
        %v3780 = vpack.c.b16 %v3120, %v3110
        %v3781 = vpack.c.b16 %v3121, %v3111
        %v3782 = vpack.c.b16 %v3122, %v3112
        %v3783 = vpack.c.b16 %v3133, %v3123
        %v3784 = vpack.c.b16 %v3134, %v3124
        %v3785 = vpack.c.b16 %v3135, %v3125
        %v3786 = vpack.c.b16 %v3136, %v3126
        %v3787 = vpack.c.b16 %v3137, %v3127
        %v3788 = vpack.c.b16 %v3138, %v3128
        %v3789 = vpack.c.b16 %v3139, %v3129
        %v3790 = vpack.c.b16 %v3140, %v3130
        %v3791 = vpack.c.b16 %v3141, %v3131
        %v3792 = vpack.c.b16 %v3142, %v3132
        %v3793 = vpack.c.b16 %v3153, %v3143
        %v3794 = vpack.c.b16 %v3154, %v3144
        %v3795 = vpack.c.b16 %v3155, %v3145
        %v3796 = vpack.c.b16 %v3156, %v3146
        %v3797 = vpack.c.b16 %v3157, %v3147
        %v3798 = vpack.c.b16 %v3158, %v3148
        %v3799 = vpack.c.b16 %v3159, %v3149
        %v3800 = vpack.c.b16 %v3160, %v3150
        %v3801 = vpack.c.b16 %v3161, %v3151
        %v3802 = vpack.c.b16 %v3162, %v3152
        %4443 = vmatprep.subr.bf16.mxu0 %v3164
        %4444 = vmatpush1.bf16.msra.mxu0 %v3163
        %4445 = vmatprep.subr.bf16.mxu0 %v3174
        %4446 = vmatpush1.bf16.msra.mxu0 %v3173
        %4447 = vmatprep.subr.bf16.mxu0 %v3184
        %4448 = vmatpush1.bf16.msra.mxu0 %v3183
        %4449 = vmatprep.subr.bf16.mxu0 %v3194
        %4450 = vmatpush1.bf16.msra.mxu0 %v3193
        %4451 = vmatprep.subr.bf16.mxu0 %v3204
        %4452 = vmatpush1.bf16.msra.mxu0 %v3203
        %4453 = vmatprep.subr.bf16.mxu0 %v3214
        %4454 = vmatpush1.bf16.msra.mxu0 %v3213
        %4455 = vmatprep.subr.bf16.mxu0 %v3224
        %4456 = vmatpush1.bf16.msra.mxu0 %v3223
        %4457 = vmatprep.subr.bf16.mxu0 %v3234
        %4458 = vmatpush1.bf16.msra.mxu0 %v3233
        %4459 = vmatprep.subr.bf16.mxu0 %v3244
        %4460 = vmatpush1.bf16.msra.mxu0 %v3243
        %4461 = vmatprep.subr.bf16.mxu0 %v3254
        %4462 = vmatpush1.bf16.msra.mxu0 %v3253
        %4463 = vmatprep.subr.bf16.mxu0 %v3264
        %4464 = vmatpush1.bf16.msra.mxu0 %v3263
        %4465 = vmatprep.subr.bf16.mxu0 %v3274
        %4466 = vmatpush1.bf16.msra.mxu0 %v3273
        %4467 = vmatprep.subr.bf16.mxu0 %v3284
        %4468 = vmatpush1.bf16.msra.mxu0 %v3283
        %4469 = vmatprep.subr.bf16.mxu0 %v3294
        %4470 = vmatpush1.bf16.msra.mxu0 %v3293
        %4471 = vmatprep.subr.bf16.mxu0 %v3304
        %4472 = vmatpush1.bf16.msra.mxu0 %v3303
        %4473 = vmatprep.subr.bf16.mxu0 %v3314
        %4474 = vmatpush1.bf16.msra.mxu0 %v3313
        %4475 = vmatprep.mubr.bf16.mxu0 %v1223
        %4476 = vmatmul.mubr.bf16.gmra.mrb[0].mxu0 %v1209
        %v4477 = vpop.f32.mrb[0].mxu0
        %v4478 = vadd.f32 %v1138, %v4477
        %v4479 = vpop.f32.mrb[0].mxu0
        %v4480 = vadd.f32 %v1142, %v4479
        %v4481 = vpop.f32.mrb[0].mxu0
        %v4482 = vpop.f32.mrb[0].mxu0
        %4483 = vdwg.mxu0
        %4484 = vmatprep.subr.bf16.mxu0 %v3324
        %4485 = vmatpush1.bf16.msra.mxu0 %v3323
        %4486 = vmatprep.subr.bf16.mxu0 %v3334
        %4487 = vmatpush1.bf16.msra.mxu0 %v3333
        %4488 = vmatprep.subr.bf16.mxu0 %v3344
        %4489 = vmatpush1.bf16.msra.mxu0 %v3343
        %4490 = vmatprep.subr.bf16.mxu0 %v3354
        %4491 = vmatpush1.bf16.msra.mxu0 %v3353
        %4492 = vmatprep.subr.bf16.mxu0 %v3364
        %4493 = vmatpush1.bf16.msra.mxu0 %v3363
        %4494 = vmatprep.subr.bf16.mxu0 %v3374
        %4495 = vmatpush1.bf16.msra.mxu0 %v3373
        %4496 = vmatprep.subr.bf16.mxu0 %v3384
        %4497 = vmatpush1.bf16.msra.mxu0 %v3383
        %4498 = vmatprep.subr.bf16.mxu0 %v3394
        %4499 = vmatpush1.bf16.msra.mxu0 %v3393
        %4500 = vmatprep.subr.bf16.mxu0 %v3404
        %4501 = vmatpush1.bf16.msra.mxu0 %v3403
        %4502 = vmatprep.subr.bf16.mxu0 %v3414
        %4503 = vmatpush1.bf16.msra.mxu0 %v3413
        %4504 = vmatprep.subr.bf16.mxu0 %v3424
        %4505 = vmatpush1.bf16.msra.mxu0 %v3423
        %4506 = vmatprep.subr.bf16.mxu0 %v3434
        %4507 = vmatpush1.bf16.msra.mxu0 %v3433
        %4508 = vmatprep.subr.bf16.mxu0 %v3444
        %4509 = vmatpush1.bf16.msra.mxu0 %v3443
        %4510 = vmatprep.subr.bf16.mxu0 %v3454
        %4511 = vmatpush1.bf16.msra.mxu0 %v3453
        %4512 = vmatprep.subr.bf16.mxu0 %v3464
        %4513 = vmatpush1.bf16.msra.mxu0 %v3463
        %4514 = vmatprep.subr.bf16.mxu0 %v3474
        %4515 = vmatpush1.bf16.msra.mxu0 %v3473
        %4516 = vmatprep.mubr.bf16.mxu0 %v1233
        %4517 = vmatmul.mubr.bf16.gmra.mrb[0].mxu0 %v1231
        %v4518 = vpop.f32.mrb[0].mxu0
        %v4519 = vadd.f32 %v4478, %v4518
        %v4520 = vpop.f32.mrb[0].mxu0
        %v4521 = vadd.f32 %v4480, %v4520
        %v4522 = vpop.f32.mrb[0].mxu0
        %v4523 = vpop.f32.mrb[0].mxu0
        %4524 = vdwg.mxu0
        %4525 = vmatprep.subr.bf16.mxu0 %v3484
        %4526 = vmatpush1.bf16.msra.mxu0 %v3483
        %4527 = vmatprep.subr.bf16.mxu0 %v3494
        %4528 = vmatpush1.bf16.msra.mxu0 %v3493
        %4529 = vmatprep.subr.bf16.mxu0 %v3504
        %4530 = vmatpush1.bf16.msra.mxu0 %v3503
        %4531 = vmatprep.subr.bf16.mxu0 %v3514
        %4532 = vmatpush1.bf16.msra.mxu0 %v3513
        %4533 = vmatprep.subr.bf16.mxu0 %v3524
        %4534 = vmatpush1.bf16.msra.mxu0 %v3523
        %4535 = vmatprep.subr.bf16.mxu0 %v3534
        %4536 = vmatpush1.bf16.msra.mxu0 %v3533
        %4537 = vmatprep.subr.bf16.mxu0 %v3544
        %4538 = vmatpush1.bf16.msra.mxu0 %v3543
        %4539 = vmatprep.subr.bf16.mxu0 %v3554
        %4540 = vmatpush1.bf16.msra.mxu0 %v3553
        %4541 = vmatprep.subr.bf16.mxu0 %v3564
        %4542 = vmatpush1.bf16.msra.mxu0 %v3563
        %4543 = vmatprep.subr.bf16.mxu0 %v3574
        %4544 = vmatpush1.bf16.msra.mxu0 %v3573
        %4545 = vmatprep.subr.bf16.mxu0 %v3584
        %4546 = vmatpush1.bf16.msra.mxu0 %v3583
        %4547 = vmatprep.subr.bf16.mxu0 %v3594
        %4548 = vmatpush1.bf16.msra.mxu0 %v3593
        %4549 = vmatprep.subr.bf16.mxu0 %v3604
        %4550 = vmatpush1.bf16.msra.mxu0 %v3603
        %4551 = vmatprep.subr.bf16.mxu0 %v3614
        %4552 = vmatpush1.bf16.msra.mxu0 %v3613
        %4553 = vmatprep.subr.bf16.mxu0 %v3624
        %4554 = vmatpush1.bf16.msra.mxu0 %v3623
        %4555 = vmatprep.subr.bf16.mxu0 %v3634
        %4556 = vmatpush1.bf16.msra.mxu0 %v3633
        %4557 = vmatprep.mubr.bf16.mxu0 %v1230
        %4558 = vmatmul.mubr.bf16.gmra.mrb[0].mxu0 %v1216
        %v4559 = vpop.f32.mrb[0].mxu0
        %v4560 = vadd.f32 %v4519, %v4559
        %v4561 = vpop.f32.mrb[0].mxu0
        %v4562 = vadd.f32 %v4521, %v4561
        %v4563 = vpop.f32.mrb[0].mxu0
        %v4564 = vpop.f32.mrb[0].mxu0
        %4565 = vdwg.mxu0
        %4566 = vmatprep.subr.bf16.mxu0 %v3644
        %4567 = vmatpush1.bf16.msra.mxu0 %v3643
        %4568 = vmatprep.subr.bf16.mxu0 %v3654
        %4569 = vmatpush1.bf16.msra.mxu0 %v3653
        %4570 = vmatprep.subr.bf16.mxu0 %v3664
        %4571 = vmatpush1.bf16.msra.mxu0 %v3663
        %4572 = vmatprep.subr.bf16.mxu0 %v3674
        %4573 = vmatpush1.bf16.msra.mxu0 %v3673
        %4574 = vmatprep.subr.bf16.mxu0 %v3684
        %4575 = vmatpush1.bf16.msra.mxu0 %v3683
        %4576 = vmatprep.subr.bf16.mxu0 %v3694
        %4577 = vmatpush1.bf16.msra.mxu0 %v3693
        %4578 = vmatprep.subr.bf16.mxu0 %v3704
        %4579 = vmatpush1.bf16.msra.mxu0 %v3703
        %4580 = vmatprep.subr.bf16.mxu0 %v3714
        %4581 = vmatpush1.bf16.msra.mxu0 %v3713
        %4582 = vmatprep.subr.bf16.mxu0 %v3724
        %4583 = vmatpush1.bf16.msra.mxu0 %v3723
        %4584 = vmatprep.subr.bf16.mxu0 %v3734
        %4585 = vmatpush1.bf16.msra.mxu0 %v3733
        %4586 = vmatprep.subr.bf16.mxu0 %v3744
        %4587 = vmatpush1.bf16.msra.mxu0 %v3743
        %4588 = vmatprep.subr.bf16.mxu0 %v3754
        %4589 = vmatpush1.bf16.msra.mxu0 %v3753
        %4590 = vmatprep.subr.bf16.mxu0 %v3764
        %4591 = vmatpush1.bf16.msra.mxu0 %v3763
        %4592 = vmatprep.subr.bf16.mxu0 %v3774
        %4593 = vmatpush1.bf16.msra.mxu0 %v3773
        %4594 = vmatprep.subr.bf16.mxu0 %v3784
        %4595 = vmatpush1.bf16.msra.mxu0 %v3783
        %4596 = vmatprep.subr.bf16.mxu0 %v3794
        %4597 = vmatpush1.bf16.msra.mxu0 %v3793
        %4598 = vmatprep.mubr.bf16.mxu0 %v1234
        %4599 = vmatmul.mubr.bf16.gmra.mrb[0].mxu0 %v1232
        %v4600 = vpop.f32.mrb[0].mxu0
        %v4601 = vadd.f32 %v4560, %v4600
        %v4602 = vpop.f32.mrb[0].mxu0
        %v4603 = vadd.f32 %v4562, %v4602
        %v4604 = vpop.f32.mrb[0].mxu0
        %v4605 = vpop.f32.mrb[0].mxu0
        %4606 = vdwg.mxu0
        %4607 = vmatprep.subr.bf16.mxu0 %v3166
        %4608 = vmatpush1.bf16.msra.mxu0 %v3165
        %4609 = vmatprep.subr.bf16.mxu0 %v3176
        %4610 = vmatpush1.bf16.msra.mxu0 %v3175
        %4611 = vmatprep.subr.bf16.mxu0 %v3186
        %4612 = vmatpush1.bf16.msra.mxu0 %v3185
        %4613 = vmatprep.subr.bf16.mxu0 %v3196
        %4614 = vmatpush1.bf16.msra.mxu0 %v3195
        %4615 = vmatprep.subr.bf16.mxu0 %v3206
        %4616 = vmatpush1.bf16.msra.mxu0 %v3205
        %4617 = vmatprep.subr.bf16.mxu0 %v3216
        %4618 = vmatpush1.bf16.msra.mxu0 %v3215
        %4619 = vmatprep.subr.bf16.mxu0 %v3226
        %4620 = vmatpush1.bf16.msra.mxu0 %v3225
        %4621 = vmatprep.subr.bf16.mxu0 %v3236
        %4622 = vmatpush1.bf16.msra.mxu0 %v3235
        %4623 = vmatprep.subr.bf16.mxu0 %v3246
        %4624 = vmatpush1.bf16.msra.mxu0 %v3245
        %4625 = vmatprep.subr.bf16.mxu0 %v3256
        %4626 = vmatpush1.bf16.msra.mxu0 %v3255
        %4627 = vmatprep.subr.bf16.mxu0 %v3266
        %4628 = vmatpush1.bf16.msra.mxu0 %v3265
        %4629 = vmatprep.subr.bf16.mxu0 %v3276
        %4630 = vmatpush1.bf16.msra.mxu0 %v3275
        %4631 = vmatprep.subr.bf16.mxu0 %v3286
        %4632 = vmatpush1.bf16.msra.mxu0 %v3285
        %4633 = vmatprep.subr.bf16.mxu0 %v3296
        %4634 = vmatpush1.bf16.msra.mxu0 %v3295
        %4635 = vmatprep.subr.bf16.mxu0 %v3306
        %4636 = vmatpush1.bf16.msra.mxu0 %v3305
        %4637 = vmatprep.subr.bf16.mxu0 %v3316
        %4638 = vmatpush1.bf16.msra.mxu0 %v3315
        %4639 = vmatprep.mubr.bf16.mxu0 %v1223
        %4640 = vmatmul.mubr.bf16.gmra.mrb[0].mxu0 %v1209
        %v4641 = vpop.f32.mrb[0].mxu0
        %v4642 = vadd.f32 %v1146, %v4641
        %v4643 = vpop.f32.mrb[0].mxu0
        %v4644 = vadd.f32 %v1150, %v4643
        %v4645 = vpop.f32.mrb[0].mxu0
        %v4646 = vpop.f32.mrb[0].mxu0
        %4647 = vdwg.mxu0
        %4648 = vmatprep.subr.bf16.mxu0 %v3326
        %4649 = vmatpush1.bf16.msra.mxu0 %v3325
        %4650 = vmatprep.subr.bf16.mxu0 %v3336
        %4651 = vmatpush1.bf16.msra.mxu0 %v3335
        %4652 = vmatprep.subr.bf16.mxu0 %v3346
        %4653 = vmatpush1.bf16.msra.mxu0 %v3345
        %4654 = vmatprep.subr.bf16.mxu0 %v3356
        %4655 = vmatpush1.bf16.msra.mxu0 %v3355
        %4656 = vmatprep.subr.bf16.mxu0 %v3366
        %4657 = vmatpush1.bf16.msra.mxu0 %v3365
        %4658 = vmatprep.subr.bf16.mxu0 %v3376
        %4659 = vmatpush1.bf16.msra.mxu0 %v3375
        %4660 = vmatprep.subr.bf16.mxu0 %v3386
        %4661 = vmatpush1.bf16.msra.mxu0 %v3385
        %4662 = vmatprep.subr.bf16.mxu0 %v3396
        %4663 = vmatpush1.bf16.msra.mxu0 %v3395
        %4664 = vmatprep.subr.bf16.mxu0 %v3406
        %4665 = vmatpush1.bf16.msra.mxu0 %v3405
        %4666 = vmatprep.subr.bf16.mxu0 %v3416
        %4667 = vmatpush1.bf16.msra.mxu0 %v3415
        %4668 = vmatprep.subr.bf16.mxu0 %v3426
        %4669 = vmatpush1.bf16.msra.mxu0 %v3425
        %4670 = vmatprep.subr.bf16.mxu0 %v3436
        %4671 = vmatpush1.bf16.msra.mxu0 %v3435
        %4672 = vmatprep.subr.bf16.mxu0 %v3446
        %4673 = vmatpush1.bf16.msra.mxu0 %v3445
        %4674 = vmatprep.subr.bf16.mxu0 %v3456
        %4675 = vmatpush1.bf16.msra.mxu0 %v3455
        %4676 = vmatprep.subr.bf16.mxu0 %v3466
        %4677 = vmatpush1.bf16.msra.mxu0 %v3465
        %4678 = vmatprep.subr.bf16.mxu0 %v3476
        %4679 = vmatpush1.bf16.msra.mxu0 %v3475
        %4680 = vmatprep.mubr.bf16.mxu0 %v1233
        %4681 = vmatmul.mubr.bf16.gmra.mrb[0].mxu0 %v1231
        %v4682 = vpop.f32.mrb[0].mxu0
        %v4683 = vadd.f32 %v4642, %v4682
        %v4684 = vpop.f32.mrb[0].mxu0
        %v4685 = vadd.f32 %v4644, %v4684
        %v4686 = vpop.f32.mrb[0].mxu0
        %v4687 = vpop.f32.mrb[0].mxu0
        %4688 = vdwg.mxu0
        %4689 = vmatprep.subr.bf16.mxu0 %v3486
        %4690 = vmatpush1.bf16.msra.mxu0 %v3485
        %4691 = vmatprep.subr.bf16.mxu0 %v3496
        %4692 = vmatpush1.bf16.msra.mxu0 %v3495
        %4693 = vmatprep.subr.bf16.mxu0 %v3506
        %4694 = vmatpush1.bf16.msra.mxu0 %v3505
        %4695 = vmatprep.subr.bf16.mxu0 %v3516
        %4696 = vmatpush1.bf16.msra.mxu0 %v3515
        %4697 = vmatprep.subr.bf16.mxu0 %v3526
        %4698 = vmatpush1.bf16.msra.mxu0 %v3525
        %4699 = vmatprep.subr.bf16.mxu0 %v3536
        %4700 = vmatpush1.bf16.msra.mxu0 %v3535
        %4701 = vmatprep.subr.bf16.mxu0 %v3546
        %4702 = vmatpush1.bf16.msra.mxu0 %v3545
        %4703 = vmatprep.subr.bf16.mxu0 %v3556
        %4704 = vmatpush1.bf16.msra.mxu0 %v3555
        %4705 = vmatprep.subr.bf16.mxu0 %v3566
        %4706 = vmatpush1.bf16.msra.mxu0 %v3565
        %4707 = vmatprep.subr.bf16.mxu0 %v3576
        %4708 = vmatpush1.bf16.msra.mxu0 %v3575
        %4709 = vmatprep.subr.bf16.mxu0 %v3586
        %4710 = vmatpush1.bf16.msra.mxu0 %v3585
        %4711 = vmatprep.subr.bf16.mxu0 %v3596
        %4712 = vmatpush1.bf16.msra.mxu0 %v3595
        %4713 = vmatprep.subr.bf16.mxu0 %v3606
        %4714 = vmatpush1.bf16.msra.mxu0 %v3605
        %4715 = vmatprep.subr.bf16.mxu0 %v3616
        %4716 = vmatpush1.bf16.msra.mxu0 %v3615
        %4717 = vmatprep.subr.bf16.mxu0 %v3626
        %4718 = vmatpush1.bf16.msra.mxu0 %v3625
        %4719 = vmatprep.subr.bf16.mxu0 %v3636
        %4720 = vmatpush1.bf16.msra.mxu0 %v3635
        %4721 = vmatprep.mubr.bf16.mxu0 %v1230
        %4722 = vmatmul.mubr.bf16.gmra.mrb[0].mxu0 %v1216
        %v4723 = vpop.f32.mrb[0].mxu0
        %v4724 = vadd.f32 %v4683, %v4723
        %v4725 = vpop.f32.mrb[0].mxu0
        %v4726 = vadd.f32 %v4685, %v4725
        %v4727 = vpop.f32.mrb[0].mxu0
        %v4728 = vpop.f32.mrb[0].mxu0
        %4729 = vdwg.mxu0
        %4730 = vmatprep.subr.bf16.mxu0 %v3646
        %4731 = vmatpush1.bf16.msra.mxu0 %v3645
        %4732 = vmatprep.subr.bf16.mxu0 %v3656
        %4733 = vmatpush1.bf16.msra.mxu0 %v3655
        %4734 = vmatprep.subr.bf16.mxu0 %v3666
        %4735 = vmatpush1.bf16.msra.mxu0 %v3665
        %4736 = vmatprep.subr.bf16.mxu0 %v3676
        %4737 = vmatpush1.bf16.msra.mxu0 %v3675
        %4738 = vmatprep.subr.bf16.mxu0 %v3686
        %4739 = vmatpush1.bf16.msra.mxu0 %v3685
        %4740 = vmatprep.subr.bf16.mxu0 %v3696
        %4741 = vmatpush1.bf16.msra.mxu0 %v3695
        %4742 = vmatprep.subr.bf16.mxu0 %v3706
        %4743 = vmatpush1.bf16.msra.mxu0 %v3705
        %4744 = vmatprep.subr.bf16.mxu0 %v3716
        %4745 = vmatpush1.bf16.msra.mxu0 %v3715
        %4746 = vmatprep.subr.bf16.mxu0 %v3726
        %4747 = vmatpush1.bf16.msra.mxu0 %v3725
        %4748 = vmatprep.subr.bf16.mxu0 %v3736
        %4749 = vmatpush1.bf16.msra.mxu0 %v3735
        %4750 = vmatprep.subr.bf16.mxu0 %v3746
        %4751 = vmatpush1.bf16.msra.mxu0 %v3745
        %4752 = vmatprep.subr.bf16.mxu0 %v3756
        %4753 = vmatpush1.bf16.msra.mxu0 %v3755
        %4754 = vmatprep.subr.bf16.mxu0 %v3766
        %4755 = vmatpush1.bf16.msra.mxu0 %v3765
        %4756 = vmatprep.subr.bf16.mxu0 %v3776
        %4757 = vmatpush1.bf16.msra.mxu0 %v3775
        %4758 = vmatprep.subr.bf16.mxu0 %v3786
        %4759 = vmatpush1.bf16.msra.mxu0 %v3785
        %4760 = vmatprep.subr.bf16.mxu0 %v3796
        %4761 = vmatpush1.bf16.msra.mxu0 %v3795
        %4762 = vmatprep.mubr.bf16.mxu0 %v1234
        %4763 = vmatmul.mubr.bf16.gmra.mrb[0].mxu0 %v1232
        %v4764 = vpop.f32.mrb[0].mxu0
        %v4765 = vadd.f32 %v4724, %v4764
        %v4766 = vpop.f32.mrb[0].mxu0
        %v4767 = vadd.f32 %v4726, %v4766
        %v4768 = vpop.f32.mrb[0].mxu0
        %v4769 = vpop.f32.mrb[0].mxu0
        %4770 = vdwg.mxu0
        %4771 = vmatprep.subr.bf16.mxu0 %v3168
        %4772 = vmatpush1.bf16.msra.mxu0 %v3167
        %4773 = vmatprep.subr.bf16.mxu0 %v3178
        %4774 = vmatpush1.bf16.msra.mxu0 %v3177
        %4775 = vmatprep.subr.bf16.mxu0 %v3188
        %4776 = vmatpush1.bf16.msra.mxu0 %v3187
        %4777 = vmatprep.subr.bf16.mxu0 %v3198
        %4778 = vmatpush1.bf16.msra.mxu0 %v3197
        %4779 = vmatprep.subr.bf16.mxu0 %v3208
        %4780 = vmatpush1.bf16.msra.mxu0 %v3207
        %4781 = vmatprep.subr.bf16.mxu0 %v3218
        %4782 = vmatpush1.bf16.msra.mxu0 %v3217
        %4783 = vmatprep.subr.bf16.mxu0 %v3228
        %4784 = vmatpush1.bf16.msra.mxu0 %v3227
        %4785 = vmatprep.subr.bf16.mxu0 %v3238
        %4786 = vmatpush1.bf16.msra.mxu0 %v3237
        %4787 = vmatprep.subr.bf16.mxu0 %v3248
        %4788 = vmatpush1.bf16.msra.mxu0 %v3247
        %4789 = vmatprep.subr.bf16.mxu0 %v3258
        %4790 = vmatpush1.bf16.msra.mxu0 %v3257
        %4791 = vmatprep.subr.bf16.mxu0 %v3268
        %4792 = vmatpush1.bf16.msra.mxu0 %v3267
        %4793 = vmatprep.subr.bf16.mxu0 %v3278
        %4794 = vmatpush1.bf16.msra.mxu0 %v3277
        %4795 = vmatprep.subr.bf16.mxu0 %v3288
        %4796 = vmatpush1.bf16.msra.mxu0 %v3287
        %4797 = vmatprep.subr.bf16.mxu0 %v3298
        %4798 = vmatpush1.bf16.msra.mxu0 %v3297
        %4799 = vmatprep.subr.bf16.mxu0 %v3308
        %4800 = vmatpush1.bf16.msra.mxu0 %v3307
        %4801 = vmatprep.subr.bf16.mxu0 %v3318
        %4802 = vmatpush1.bf16.msra.mxu0 %v3317
        %4803 = vmatprep.mubr.bf16.mxu0 %v1223
        %4804 = vmatmul.mubr.bf16.gmra.mrb[0].mxu0 %v1209
        %v4805 = vpop.f32.mrb[0].mxu0
        %v4806 = vadd.f32 %v1154, %v4805
        %v4807 = vpop.f32.mrb[0].mxu0
        %v4808 = vadd.f32 %v1158, %v4807
        %v4809 = vpop.f32.mrb[0].mxu0
        %v4810 = vpop.f32.mrb[0].mxu0
        %4811 = vdwg.mxu0
        %4812 = vmatprep.subr.bf16.mxu0 %v3328
        %4813 = vmatpush1.bf16.msra.mxu0 %v3327
        %4814 = vmatprep.subr.bf16.mxu0 %v3338
        %4815 = vmatpush1.bf16.msra.mxu0 %v3337
        %4816 = vmatprep.subr.bf16.mxu0 %v3348
        %4817 = vmatpush1.bf16.msra.mxu0 %v3347
        %4818 = vmatprep.subr.bf16.mxu0 %v3358
        %4819 = vmatpush1.bf16.msra.mxu0 %v3357
        %4820 = vmatprep.subr.bf16.mxu0 %v3368
        %4821 = vmatpush1.bf16.msra.mxu0 %v3367
        %4822 = vmatprep.subr.bf16.mxu0 %v3378
        %4823 = vmatpush1.bf16.msra.mxu0 %v3377
        %4824 = vmatprep.subr.bf16.mxu0 %v3388
        %4825 = vmatpush1.bf16.msra.mxu0 %v3387
        %4826 = vmatprep.subr.bf16.mxu0 %v3398
        %4827 = vmatpush1.bf16.msra.mxu0 %v3397
        %4828 = vmatprep.subr.bf16.mxu0 %v3408
        %4829 = vmatpush1.bf16.msra.mxu0 %v3407
        %4830 = vmatprep.subr.bf16.mxu0 %v3418
        %4831 = vmatpush1.bf16.msra.mxu0 %v3417
        %4832 = vmatprep.subr.bf16.mxu0 %v3428
        %4833 = vmatpush1.bf16.msra.mxu0 %v3427
        %4834 = vmatprep.subr.bf16.mxu0 %v3438
        %4835 = vmatpush1.bf16.msra.mxu0 %v3437
        %4836 = vmatprep.subr.bf16.mxu0 %v3448
        %4837 = vmatpush1.bf16.msra.mxu0 %v3447
        %4838 = vmatprep.subr.bf16.mxu0 %v3458
        %4839 = vmatpush1.bf16.msra.mxu0 %v3457
        %4840 = vmatprep.subr.bf16.mxu0 %v3468
        %4841 = vmatpush1.bf16.msra.mxu0 %v3467
        %4842 = vmatprep.subr.bf16.mxu0 %v3478
        %4843 = vmatpush1.bf16.msra.mxu0 %v3477
        %4844 = vmatprep.mubr.bf16.mxu0 %v1233
        %4845 = vmatmul.mubr.bf16.gmra.mrb[0].mxu0 %v1231
        %v4846 = vpop.f32.mrb[0].mxu0
        %v4847 = vadd.f32 %v4806, %v4846
        %v4848 = vpop.f32.mrb[0].mxu0
        %v4849 = vadd.f32 %v4808, %v4848
        %v4850 = vpop.f32.mrb[0].mxu0
        %v4851 = vpop.f32.mrb[0].mxu0
        %4852 = vdwg.mxu0
        %4853 = vmatprep.subr.bf16.mxu0 %v3488
        %4854 = vmatpush1.bf16.msra.mxu0 %v3487
        %4855 = vmatprep.subr.bf16.mxu0 %v3498
        %4856 = vmatpush1.bf16.msra.mxu0 %v3497
        %4857 = vmatprep.subr.bf16.mxu0 %v3508
        %4858 = vmatpush1.bf16.msra.mxu0 %v3507
        %4859 = vmatprep.subr.bf16.mxu0 %v3518
        %4860 = vmatpush1.bf16.msra.mxu0 %v3517
        %4861 = vmatprep.subr.bf16.mxu0 %v3528
        %4862 = vmatpush1.bf16.msra.mxu0 %v3527
        %4863 = vmatprep.subr.bf16.mxu0 %v3538
        %4864 = vmatpush1.bf16.msra.mxu0 %v3537
        %4865 = vmatprep.subr.bf16.mxu0 %v3548
        %4866 = vmatpush1.bf16.msra.mxu0 %v3547
        %4867 = vmatprep.subr.bf16.mxu0 %v3558
        %4868 = vmatpush1.bf16.msra.mxu0 %v3557
        %4869 = vmatprep.subr.bf16.mxu0 %v3568
        %4870 = vmatpush1.bf16.msra.mxu0 %v3567
        %4871 = vmatprep.subr.bf16.mxu0 %v3578
        %4872 = vmatpush1.bf16.msra.mxu0 %v3577
        %4873 = vmatprep.subr.bf16.mxu0 %v3588
        %4874 = vmatpush1.bf16.msra.mxu0 %v3587
        %4875 = vmatprep.subr.bf16.mxu0 %v3598
        %4876 = vmatpush1.bf16.msra.mxu0 %v3597
        %4877 = vmatprep.subr.bf16.mxu0 %v3608
        %4878 = vmatpush1.bf16.msra.mxu0 %v3607
        %4879 = vmatprep.subr.bf16.mxu0 %v3618
        %4880 = vmatpush1.bf16.msra.mxu0 %v3617
        %4881 = vmatprep.subr.bf16.mxu0 %v3628
        %4882 = vmatpush1.bf16.msra.mxu0 %v3627
        %4883 = vmatprep.subr.bf16.mxu0 %v3638
        %4884 = vmatpush1.bf16.msra.mxu0 %v3637
        %4885 = vmatprep.mubr.bf16.mxu0 %v1230
        %4886 = vmatmul.mubr.bf16.gmra.mrb[0].mxu0 %v1216
        %v4887 = vpop.f32.mrb[0].mxu0
        %v4888 = vadd.f32 %v4847, %v4887
        %v4889 = vpop.f32.mrb[0].mxu0
        %v4890 = vadd.f32 %v4849, %v4889
        %v4891 = vpop.f32.mrb[0].mxu0
        %v4892 = vpop.f32.mrb[0].mxu0
        %4893 = vdwg.mxu0
        %4894 = vmatprep.subr.bf16.mxu0 %v3648
        %4895 = vmatpush1.bf16.msra.mxu0 %v3647
        %4896 = vmatprep.subr.bf16.mxu0 %v3658
        %4897 = vmatpush1.bf16.msra.mxu0 %v3657
        %4898 = vmatprep.subr.bf16.mxu0 %v3668
        %4899 = vmatpush1.bf16.msra.mxu0 %v3667
        %4900 = vmatprep.subr.bf16.mxu0 %v3678
        %4901 = vmatpush1.bf16.msra.mxu0 %v3677
        %4902 = vmatprep.subr.bf16.mxu0 %v3688
        %4903 = vmatpush1.bf16.msra.mxu0 %v3687
        %4904 = vmatprep.subr.bf16.mxu0 %v3698
        %4905 = vmatpush1.bf16.msra.mxu0 %v3697
        %4906 = vmatprep.subr.bf16.mxu0 %v3708
        %4907 = vmatpush1.bf16.msra.mxu0 %v3707
        %4908 = vmatprep.subr.bf16.mxu0 %v3718
        %4909 = vmatpush1.bf16.msra.mxu0 %v3717
        %4910 = vmatprep.subr.bf16.mxu0 %v3728
        %4911 = vmatpush1.bf16.msra.mxu0 %v3727
        %4912 = vmatprep.subr.bf16.mxu0 %v3738
        %4913 = vmatpush1.bf16.msra.mxu0 %v3737
        %4914 = vmatprep.subr.bf16.mxu0 %v3748
        %4915 = vmatpush1.bf16.msra.mxu0 %v3747
        %4916 = vmatprep.subr.bf16.mxu0 %v3758
        %4917 = vmatpush1.bf16.msra.mxu0 %v3757
        %4918 = vmatprep.subr.bf16.mxu0 %v3768
        %4919 = vmatpush1.bf16.msra.mxu0 %v3767
        %4920 = vmatprep.subr.bf16.mxu0 %v3778
        %4921 = vmatpush1.bf16.msra.mxu0 %v3777
        %4922 = vmatprep.subr.bf16.mxu0 %v3788
        %4923 = vmatpush1.bf16.msra.mxu0 %v3787
        %4924 = vmatprep.subr.bf16.mxu0 %v3798
        %4925 = vmatpush1.bf16.msra.mxu0 %v3797
        %4926 = vmatprep.mubr.bf16.mxu0 %v1234
        %4927 = vmatmul.mubr.bf16.gmra.mrb[0].mxu0 %v1232
        %v4928 = vpop.f32.mrb[0].mxu0
        %v4929 = vadd.f32 %v4888, %v4928
        %v4930 = vpop.f32.mrb[0].mxu0
        %v4931 = vadd.f32 %v4890, %v4930
        %v4932 = vpop.f32.mrb[0].mxu0
        %v4933 = vpop.f32.mrb[0].mxu0
        %4934 = vdwg.mxu0
        %4935 = vmatprep.subr.bf16.mxu0 %v3170
        %4936 = vmatpush1.bf16.msra.mxu0 %v3169
        %4937 = vmatprep.subr.bf16.mxu0 %v3180
        %4938 = vmatpush1.bf16.msra.mxu0 %v3179
        %4939 = vmatprep.subr.bf16.mxu0 %v3190
        %4940 = vmatpush1.bf16.msra.mxu0 %v3189
        %4941 = vmatprep.subr.bf16.mxu0 %v3200
        %4942 = vmatpush1.bf16.msra.mxu0 %v3199
        %4943 = vmatprep.subr.bf16.mxu0 %v3210
        %4944 = vmatpush1.bf16.msra.mxu0 %v3209
        %4945 = vmatprep.subr.bf16.mxu0 %v3220
        %4946 = vmatpush1.bf16.msra.mxu0 %v3219
        %4947 = vmatprep.subr.bf16.mxu0 %v3230
        %4948 = vmatpush1.bf16.msra.mxu0 %v3229
        %4949 = vmatprep.subr.bf16.mxu0 %v3240
        %4950 = vmatpush1.bf16.msra.mxu0 %v3239
        %4951 = vmatprep.subr.bf16.mxu0 %v3250
        %4952 = vmatpush1.bf16.msra.mxu0 %v3249
        %4953 = vmatprep.subr.bf16.mxu0 %v3260
        %4954 = vmatpush1.bf16.msra.mxu0 %v3259
        %4955 = vmatprep.subr.bf16.mxu0 %v3270
        %4956 = vmatpush1.bf16.msra.mxu0 %v3269
        %4957 = vmatprep.subr.bf16.mxu0 %v3280
        %4958 = vmatpush1.bf16.msra.mxu0 %v3279
        %4959 = vmatprep.subr.bf16.mxu0 %v3290
        %4960 = vmatpush1.bf16.msra.mxu0 %v3289
        %4961 = vmatprep.subr.bf16.mxu0 %v3300
        %4962 = vmatpush1.bf16.msra.mxu0 %v3299
        %4963 = vmatprep.subr.bf16.mxu0 %v3310
        %4964 = vmatpush1.bf16.msra.mxu0 %v3309
        %4965 = vmatprep.subr.bf16.mxu0 %v3320
        %4966 = vmatpush1.bf16.msra.mxu0 %v3319
        %4967 = vmatprep.mubr.bf16.mxu0 %v1223
        %4968 = vmatmul.mubr.bf16.gmra.mrb[0].mxu0 %v1209
        %v4969 = vpop.f32.mrb[0].mxu0
        %v4970 = vadd.f32 %v1162, %v4969
        %v4971 = vpop.f32.mrb[0].mxu0
        %v4972 = vadd.f32 %v1166, %v4971
        %v4973 = vpop.f32.mrb[0].mxu0
        %v4974 = vpop.f32.mrb[0].mxu0
        %4975 = vdwg.mxu0
        %4976 = vmatprep.subr.bf16.mxu0 %v3330
        %4977 = vmatpush1.bf16.msra.mxu0 %v3329
        %4978 = vmatprep.subr.bf16.mxu0 %v3340
        %4979 = vmatpush1.bf16.msra.mxu0 %v3339
        %4980 = vmatprep.subr.bf16.mxu0 %v3350
        %4981 = vmatpush1.bf16.msra.mxu0 %v3349
        %4982 = vmatprep.subr.bf16.mxu0 %v3360
        %4983 = vmatpush1.bf16.msra.mxu0 %v3359
        %4984 = vmatprep.subr.bf16.mxu0 %v3370
        %4985 = vmatpush1.bf16.msra.mxu0 %v3369
        %4986 = vmatprep.subr.bf16.mxu0 %v3380
        %4987 = vmatpush1.bf16.msra.mxu0 %v3379
        %4988 = vmatprep.subr.bf16.mxu0 %v3390
        %4989 = vmatpush1.bf16.msra.mxu0 %v3389
        %4990 = vmatprep.subr.bf16.mxu0 %v3400
        %4991 = vmatpush1.bf16.msra.mxu0 %v3399
        %4992 = vmatprep.subr.bf16.mxu0 %v3410
        %4993 = vmatpush1.bf16.msra.mxu0 %v3409
        %4994 = vmatprep.subr.bf16.mxu0 %v3420
        %4995 = vmatpush1.bf16.msra.mxu0 %v3419
        %4996 = vmatprep.subr.bf16.mxu0 %v3430
        %4997 = vmatpush1.bf16.msra.mxu0 %v3429
        %4998 = vmatprep.subr.bf16.mxu0 %v3440
        %4999 = vmatpush1.bf16.msra.mxu0 %v3439
        %5000 = vmatprep.subr.bf16.mxu0 %v3450
        %5001 = vmatpush1.bf16.msra.mxu0 %v3449
        %5002 = vmatprep.subr.bf16.mxu0 %v3460
        %5003 = vmatpush1.bf16.msra.mxu0 %v3459
        %5004 = vmatprep.subr.bf16.mxu0 %v3470
        %5005 = vmatpush1.bf16.msra.mxu0 %v3469
        %5006 = vmatprep.subr.bf16.mxu0 %v3480
        %5007 = vmatpush1.bf16.msra.mxu0 %v3479
        %5008 = vmatprep.mubr.bf16.mxu0 %v1233
        %5009 = vmatmul.mubr.bf16.gmra.mrb[0].mxu0 %v1231
        %v5010 = vpop.f32.mrb[0].mxu0
        %v5011 = vadd.f32 %v4970, %v5010
        %v5012 = vpop.f32.mrb[0].mxu0
        %v5013 = vadd.f32 %v4972, %v5012
        %v5014 = vpop.f32.mrb[0].mxu0
        %v5015 = vpop.f32.mrb[0].mxu0
        %5016 = vdwg.mxu0
        %5017 = vmatprep.subr.bf16.mxu0 %v3490
        %5018 = vmatpush1.bf16.msra.mxu0 %v3489
        %5019 = vmatprep.subr.bf16.mxu0 %v3500
        %5020 = vmatpush1.bf16.msra.mxu0 %v3499
        %5021 = vmatprep.subr.bf16.mxu0 %v3510
        %5022 = vmatpush1.bf16.msra.mxu0 %v3509
        %5023 = vmatprep.subr.bf16.mxu0 %v3520
        %5024 = vmatpush1.bf16.msra.mxu0 %v3519
        %5025 = vmatprep.subr.bf16.mxu0 %v3530
        %5026 = vmatpush1.bf16.msra.mxu0 %v3529
        %5027 = vmatprep.subr.bf16.mxu0 %v3540
        %5028 = vmatpush1.bf16.msra.mxu0 %v3539
        %5029 = vmatprep.subr.bf16.mxu0 %v3550
        %5030 = vmatpush1.bf16.msra.mxu0 %v3549
        %5031 = vmatprep.subr.bf16.mxu0 %v3560
        %5032 = vmatpush1.bf16.msra.mxu0 %v3559
        %5033 = vmatprep.subr.bf16.mxu0 %v3570
        %5034 = vmatpush1.bf16.msra.mxu0 %v3569
        %5035 = vmatprep.subr.bf16.mxu0 %v3580
        %5036 = vmatpush1.bf16.msra.mxu0 %v3579
        %5037 = vmatprep.subr.bf16.mxu0 %v3590
        %5038 = vmatpush1.bf16.msra.mxu0 %v3589
        %5039 = vmatprep.subr.bf16.mxu0 %v3600
        %5040 = vmatpush1.bf16.msra.mxu0 %v3599
        %5041 = vmatprep.subr.bf16.mxu0 %v3610
        %5042 = vmatpush1.bf16.msra.mxu0 %v3609
        %5043 = vmatprep.subr.bf16.mxu0 %v3620
        %5044 = vmatpush1.bf16.msra.mxu0 %v3619
        %5045 = vmatprep.subr.bf16.mxu0 %v3630
        %5046 = vmatpush1.bf16.msra.mxu0 %v3629
        %5047 = vmatprep.subr.bf16.mxu0 %v3640
        %5048 = vmatpush1.bf16.msra.mxu0 %v3639
        %5049 = vmatprep.mubr.bf16.mxu0 %v1230
        %5050 = vmatmul.mubr.bf16.gmra.mrb[0].mxu0 %v1216
        %v5051 = vpop.f32.mrb[0].mxu0
        %v5052 = vadd.f32 %v5011, %v5051
        %v5053 = vpop.f32.mrb[0].mxu0
        %v5054 = vadd.f32 %v5013, %v5053
        %v5055 = vpop.f32.mrb[0].mxu0
        %v5056 = vpop.f32.mrb[0].mxu0
        %5057 = vdwg.mxu0
        %5058 = vmatprep.subr.bf16.mxu0 %v3650
        %5059 = vmatpush1.bf16.msra.mxu0 %v3649
        %5060 = vmatprep.subr.bf16.mxu0 %v3660
        %5061 = vmatpush1.bf16.msra.mxu0 %v3659
        %5062 = vmatprep.subr.bf16.mxu0 %v3670
        %5063 = vmatpush1.bf16.msra.mxu0 %v3669
        %5064 = vmatprep.subr.bf16.mxu0 %v3680
        %5065 = vmatpush1.bf16.msra.mxu0 %v3679
        %5066 = vmatprep.subr.bf16.mxu0 %v3690
        %5067 = vmatpush1.bf16.msra.mxu0 %v3689
        %5068 = vmatprep.subr.bf16.mxu0 %v3700
        %5069 = vmatpush1.bf16.msra.mxu0 %v3699
        %5070 = vmatprep.subr.bf16.mxu0 %v3710
        %5071 = vmatpush1.bf16.msra.mxu0 %v3709
        %5072 = vmatprep.subr.bf16.mxu0 %v3720
        %5073 = vmatpush1.bf16.msra.mxu0 %v3719
        %5074 = vmatprep.subr.bf16.mxu0 %v3730
        %5075 = vmatpush1.bf16.msra.mxu0 %v3729
        %5076 = vmatprep.subr.bf16.mxu0 %v3740
        %5077 = vmatpush1.bf16.msra.mxu0 %v3739
        %5078 = vmatprep.subr.bf16.mxu0 %v3750
        %5079 = vmatpush1.bf16.msra.mxu0 %v3749
        %5080 = vmatprep.subr.bf16.mxu0 %v3760
        %5081 = vmatpush1.bf16.msra.mxu0 %v3759
        %5082 = vmatprep.subr.bf16.mxu0 %v3770
        %5083 = vmatpush1.bf16.msra.mxu0 %v3769
        %5084 = vmatprep.subr.bf16.mxu0 %v3780
        %5085 = vmatpush1.bf16.msra.mxu0 %v3779
        %5086 = vmatprep.subr.bf16.mxu0 %v3790
        %5087 = vmatpush1.bf16.msra.mxu0 %v3789
        %5088 = vmatprep.subr.bf16.mxu0 %v3800
        %5089 = vmatpush1.bf16.msra.mxu0 %v3799
        %5090 = vmatprep.mubr.bf16.mxu0 %v1234
        %5091 = vmatmul.mubr.bf16.gmra.mrb[0].mxu0 %v1232
        %v5092 = vpop.f32.mrb[0].mxu0
        %v5093 = vadd.f32 %v5052, %v5092
        %v5094 = vpop.f32.mrb[0].mxu0
        %v5095 = vadd.f32 %v5054, %v5094
        %v5096 = vpop.f32.mrb[0].mxu0
        %v5097 = vpop.f32.mrb[0].mxu0
        %5098 = vdwg.mxu0
        %5099 = vmatprep.subr.bf16.mxu0 %v3172
        %5100 = vmatpush1.bf16.msra.mxu0 %v3171
        %5101 = vmatprep.subr.bf16.mxu0 %v3182
        %5102 = vmatpush1.bf16.msra.mxu0 %v3181
        %5103 = vmatprep.subr.bf16.mxu0 %v3192
        %5104 = vmatpush1.bf16.msra.mxu0 %v3191
        %5105 = vmatprep.subr.bf16.mxu0 %v3202
        %5106 = vmatpush1.bf16.msra.mxu0 %v3201
        %5107 = vmatprep.subr.bf16.mxu0 %v3212
        %5108 = vmatpush1.bf16.msra.mxu0 %v3211
        %5109 = vmatprep.subr.bf16.mxu0 %v3222
        %5110 = vmatpush1.bf16.msra.mxu0 %v3221
        %5111 = vmatprep.subr.bf16.mxu0 %v3232
        %5112 = vmatpush1.bf16.msra.mxu0 %v3231
        %5113 = vmatprep.subr.bf16.mxu0 %v3242
        %5114 = vmatpush1.bf16.msra.mxu0 %v3241
        %5115 = vmatprep.subr.bf16.mxu0 %v3252
        %5116 = vmatpush1.bf16.msra.mxu0 %v3251
        %5117 = vmatprep.subr.bf16.mxu0 %v3262
        %5118 = vmatpush1.bf16.msra.mxu0 %v3261
        %5119 = vmatprep.subr.bf16.mxu0 %v3272
        %5120 = vmatpush1.bf16.msra.mxu0 %v3271
        %5121 = vmatprep.subr.bf16.mxu0 %v3282
        %5122 = vmatpush1.bf16.msra.mxu0 %v3281
        %5123 = vmatprep.subr.bf16.mxu0 %v3292
        %5124 = vmatpush1.bf16.msra.mxu0 %v3291
        %5125 = vmatprep.subr.bf16.mxu0 %v3302
        %5126 = vmatpush1.bf16.msra.mxu0 %v3301
        %5127 = vmatprep.subr.bf16.mxu0 %v3312
        %5128 = vmatpush1.bf16.msra.mxu0 %v3311
        %5129 = vmatprep.subr.bf16.mxu0 %v3322
        %5130 = vmatpush1.bf16.msra.mxu0 %v3321
        %5131 = vmatprep.mubr.bf16.mxu0 %v1223
        %5132 = vmatmul.mubr.bf16.gmra.mrb[0].mxu0 %v1209
        %v5133 = vpop.f32.mrb[0].mxu0
        %v5134 = vadd.f32 %v1170, %v5133
        %v5135 = vpop.f32.mrb[0].mxu0
        %v5136 = vadd.f32 %v1174, %v5135
        %v5137 = vpop.f32.mrb[0].mxu0
        %v5138 = vpop.f32.mrb[0].mxu0
        %5139 = vdwg.mxu0
        %5140 = vmatprep.subr.bf16.mxu0 %v3332
        %5141 = vmatpush1.bf16.msra.mxu0 %v3331
        %5142 = vmatprep.subr.bf16.mxu0 %v3342
        %5143 = vmatpush1.bf16.msra.mxu0 %v3341
        %5144 = vmatprep.subr.bf16.mxu0 %v3352
        %5145 = vmatpush1.bf16.msra.mxu0 %v3351
        %5146 = vmatprep.subr.bf16.mxu0 %v3362
        %5147 = vmatpush1.bf16.msra.mxu0 %v3361
        %5148 = vmatprep.subr.bf16.mxu0 %v3372
        %5149 = vmatpush1.bf16.msra.mxu0 %v3371
        %5150 = vmatprep.subr.bf16.mxu0 %v3382
        %5151 = vmatpush1.bf16.msra.mxu0 %v3381
        %5152 = vmatprep.subr.bf16.mxu0 %v3392
        %5153 = vmatpush1.bf16.msra.mxu0 %v3391
        %5154 = vmatprep.subr.bf16.mxu0 %v3402
        %5155 = vmatpush1.bf16.msra.mxu0 %v3401
        %5156 = vmatprep.subr.bf16.mxu0 %v3412
        %5157 = vmatpush1.bf16.msra.mxu0 %v3411
        %5158 = vmatprep.subr.bf16.mxu0 %v3422
        %5159 = vmatpush1.bf16.msra.mxu0 %v3421
        %5160 = vmatprep.subr.bf16.mxu0 %v3432
        %5161 = vmatpush1.bf16.msra.mxu0 %v3431
        %5162 = vmatprep.subr.bf16.mxu0 %v3442
        %5163 = vmatpush1.bf16.msra.mxu0 %v3441
        %5164 = vmatprep.subr.bf16.mxu0 %v3452
        %5165 = vmatpush1.bf16.msra.mxu0 %v3451
        %5166 = vmatprep.subr.bf16.mxu0 %v3462
        %5167 = vmatpush1.bf16.msra.mxu0 %v3461
        %5168 = vmatprep.subr.bf16.mxu0 %v3472
        %5169 = vmatpush1.bf16.msra.mxu0 %v3471
        %5170 = vmatprep.subr.bf16.mxu0 %v3482
        %5171 = vmatpush1.bf16.msra.mxu0 %v3481
        %5172 = vmatprep.mubr.bf16.mxu0 %v1233
        %5173 = vmatmul.mubr.bf16.gmra.mrb[0].mxu0 %v1231
        %v5174 = vpop.f32.mrb[0].mxu0
        %v5175 = vadd.f32 %v5134, %v5174
        %v5176 = vpop.f32.mrb[0].mxu0
        %v5177 = vadd.f32 %v5136, %v5176
        %v5178 = vpop.f32.mrb[0].mxu0
        %v5179 = vpop.f32.mrb[0].mxu0
        %5180 = vdwg.mxu0
        %5181 = vmatprep.subr.bf16.mxu0 %v3492
        %5182 = vmatpush1.bf16.msra.mxu0 %v3491
        %5183 = vmatprep.subr.bf16.mxu0 %v3502
        %5184 = vmatpush1.bf16.msra.mxu0 %v3501
        %5185 = vmatprep.subr.bf16.mxu0 %v3512
        %5186 = vmatpush1.bf16.msra.mxu0 %v3511
        %5187 = vmatprep.subr.bf16.mxu0 %v3522
        %5188 = vmatpush1.bf16.msra.mxu0 %v3521
        %5189 = vmatprep.subr.bf16.mxu0 %v3532
        %5190 = vmatpush1.bf16.msra.mxu0 %v3531
        %5191 = vmatprep.subr.bf16.mxu0 %v3542
        %5192 = vmatpush1.bf16.msra.mxu0 %v3541
        %5193 = vmatprep.subr.bf16.mxu0 %v3552
        %5194 = vmatpush1.bf16.msra.mxu0 %v3551
        %5195 = vmatprep.subr.bf16.mxu0 %v3562
        %5196 = vmatpush1.bf16.msra.mxu0 %v3561
        %5197 = vmatprep.subr.bf16.mxu0 %v3572
        %5198 = vmatpush1.bf16.msra.mxu0 %v3571
        %5199 = vmatprep.subr.bf16.mxu0 %v3582
        %5200 = vmatpush1.bf16.msra.mxu0 %v3581
        %5201 = vmatprep.subr.bf16.mxu0 %v3592
        %5202 = vmatpush1.bf16.msra.mxu0 %v3591
        %5203 = vmatprep.subr.bf16.mxu0 %v3602
        %5204 = vmatpush1.bf16.msra.mxu0 %v3601
        %5205 = vmatprep.subr.bf16.mxu0 %v3612
        %5206 = vmatpush1.bf16.msra.mxu0 %v3611
        %5207 = vmatprep.subr.bf16.mxu0 %v3622
        %5208 = vmatpush1.bf16.msra.mxu0 %v3621
        %5209 = vmatprep.subr.bf16.mxu0 %v3632
        %5210 = vmatpush1.bf16.msra.mxu0 %v3631
        %5211 = vmatprep.subr.bf16.mxu0 %v3642
        %5212 = vmatpush1.bf16.msra.mxu0 %v3641
        %5213 = vmatprep.mubr.bf16.mxu0 %v1230
        %5214 = vmatmul.mubr.bf16.gmra.mrb[0].mxu0 %v1216
        %v5215 = vpop.f32.mrb[0].mxu0
        %v5216 = vadd.f32 %v5175, %v5215
        %v5217 = vpop.f32.mrb[0].mxu0
        %v5218 = vadd.f32 %v5177, %v5217
        %v5219 = vpop.f32.mrb[0].mxu0
        %v5220 = vpop.f32.mrb[0].mxu0
        %5221 = vdwg.mxu0
        %5222 = vmatprep.subr.bf16.mxu0 %v3652
        %5223 = vmatpush1.bf16.msra.mxu0 %v3651
        %5224 = vmatprep.subr.bf16.mxu0 %v3662
        %5225 = vmatpush1.bf16.msra.mxu0 %v3661
        %5226 = vmatprep.subr.bf16.mxu0 %v3672
        %5227 = vmatpush1.bf16.msra.mxu0 %v3671
        %5228 = vmatprep.subr.bf16.mxu0 %v3682
        %5229 = vmatpush1.bf16.msra.mxu0 %v3681
        %5230 = vmatprep.subr.bf16.mxu0 %v3692
        %5231 = vmatpush1.bf16.msra.mxu0 %v3691
        %5232 = vmatprep.subr.bf16.mxu0 %v3702
        %5233 = vmatpush1.bf16.msra.mxu0 %v3701
        %5234 = vmatprep.subr.bf16.mxu0 %v3712
        %5235 = vmatpush1.bf16.msra.mxu0 %v3711
        %5236 = vmatprep.subr.bf16.mxu0 %v3722
        %5237 = vmatpush1.bf16.msra.mxu0 %v3721
        %5238 = vmatprep.subr.bf16.mxu0 %v3732
        %5239 = vmatpush1.bf16.msra.mxu0 %v3731
        %5240 = vmatprep.subr.bf16.mxu0 %v3742
        %5241 = vmatpush1.bf16.msra.mxu0 %v3741
        %5242 = vmatprep.subr.bf16.mxu0 %v3752
        %5243 = vmatpush1.bf16.msra.mxu0 %v3751
        %5244 = vmatprep.subr.bf16.mxu0 %v3762
        %5245 = vmatpush1.bf16.msra.mxu0 %v3761
        %5246 = vmatprep.subr.bf16.mxu0 %v3772
        %5247 = vmatpush1.bf16.msra.mxu0 %v3771
        %5248 = vmatprep.subr.bf16.mxu0 %v3782
        %5249 = vmatpush1.bf16.msra.mxu0 %v3781
        %5250 = vmatprep.subr.bf16.mxu0 %v3792
        %5251 = vmatpush1.bf16.msra.mxu0 %v3791
        %5252 = vmatprep.subr.bf16.mxu0 %v3802
        %5253 = vmatpush1.bf16.msra.mxu0 %v3801
        %5254 = vmatprep.mubr.bf16.mxu0 %v1234
        %5255 = vmatmul.mubr.bf16.gmra.mrb[0].mxu0 %v1232
        %v5256 = vpop.f32.mrb[0].mxu0
        %v5257 = vadd.f32 %v5216, %v5256
        %v5258 = vpop.f32.mrb[0].mxu0
        %v5259 = vadd.f32 %v5218, %v5258
        %v5260 = vpop.f32.mrb[0].mxu0
        %v5261 = vpop.f32.mrb[0].mxu0
        %5262 = vdwg.mxu0
        %v5263 = vld [vmem:[#allocation2] sm:$0x3]
        %v5264 = vpack.c.bf16 %v4601, %v4601
        %v5265 = vpack.c.bf16 %v4603, %v4603
        %v5266 = vpack.c.bf16 %v4765, %v4765
        %v5267 = vpack.c.bf16 %v4767, %v4767
        %v5268 = vpack.c.bf16 %v4929, %v4929
        %v5269 = vpack.c.bf16 %v4931, %v4931
        %v5270 = vpack.c.bf16 %v5093, %v5093
        %v5271 = vpack.c.bf16 %v5095, %v5095
        %v5272 = vpack.c.bf16 %v5257, %v5257
        %v5273 = vpack.c.bf16 %v5259, %v5259
        %v5274 = vld [vmem:[%s421] sm:$0xf]
        %v5275 = vld [vmem:[%s421 + $0x4] sm:$0xf]
        %v5276 = vld [vmem:[%s421 + $0x8] sm:$0xf]
        %v5277 = vld [vmem:[%s421 + $0xc] sm:$0xf]
        %v5278 = vld [vmem:[%s421 + $0x10] sm:$0xf]
        %v5279 = vld [vmem:[%s421 + $0x14] sm:$0xf]
        %v5280 = vld [vmem:[%s421 + $0x18] sm:$0xf]
        %v5281 = vld [vmem:[%s421 + $0x1c] sm:$0xf]
        %v5282 = vld [vmem:[%s421 + $0x20] sm:$0xf]
        %v5283 = vld [vmem:[%s421 + $0x24] sm:$0xf]
        %v5284 = vld [vmem:[%s421 + $0x28] sm:$0xf]
        %v5285 = vld [vmem:[%s421 + $0x2c] sm:$0xf]
        %v5286 = vld [vmem:[%s421 + $0x30] sm:$0xf]
        %v5287 = vld [vmem:[%s421 + $0x34] sm:$0xf]
        %v5288 = vld [vmem:[%s421 + $0x38] sm:$0xf]
        %v5289 = vld [vmem:[%s421 + $0x3c] sm:$0xf]
        %v5290 = vld [vmem:[%s421 + $0x40] sm:$0xf]
        %v5291 = vld [vmem:[%s421 + $0x44] sm:$0xf]
        %v5292 = vld [vmem:[%s421 + $0x48] sm:$0xf]
        %v5293 = vld [vmem:[%s421 + $0x4c] sm:$0xf]
        %v5294 = vld [vmem:[%s421 + $0x50] sm:$0xf]
        %v5295 = vld [vmem:[%s421 + $0x54] sm:$0xf]
        %v5296 = vld [vmem:[%s421 + $0x58] sm:$0xf]
        %v5297 = vld [vmem:[%s421 + $0x5c] sm:$0xf]
        %v5298 = vld [vmem:[%s421 + $0x60] sm:$0xf]
        %v5299 = vld [vmem:[%s421 + $0x64] sm:$0xf]
        %v5300 = vld [vmem:[%s421 + $0x68] sm:$0xf]
        %v5301 = vld [vmem:[%s421 + $0x6c] sm:$0xf]
        %v5302 = vld [vmem:[%s421 + $0x70] sm:$0xf]
        %v5303 = vld [vmem:[%s421 + $0x74] sm:$0xf]
        %v5304 = vld [vmem:[%s421 + $0x78] sm:$0xf]
        %v5305 = vld [vmem:[%s421 + $0x7c] sm:$0xf]
        %v5306 = vld [vmem:[%s421 + $0x80] sm:$0xf]
        %v5307 = vld [vmem:[%s421 + $0x84] sm:$0xf]
        %v5308 = vld [vmem:[%s421 + $0x88] sm:$0xf]
        %v5309 = vld [vmem:[%s421 + $0x8c] sm:$0xf]
        %v5310 = vld [vmem:[%s421 + $0x90] sm:$0xf]
        %v5311 = vld [vmem:[%s421 + $0x94] sm:$0xf]
        %v5312 = vld [vmem:[%s421 + $0x98] sm:$0xf]
        %v5313 = vld [vmem:[%s421 + $0x9c] sm:$0xf]
        %v5314 = vld [vmem:[%s421 + $0xa0] sm:$0xf]
        %v5315 = vld [vmem:[%s421 + $0xa4] sm:$0xf]
        %v5316 = vld [vmem:[%s421 + $0xa8] sm:$0xf]
        %v5317 = vld [vmem:[%s421 + $0xac] sm:$0xf]
        %v5318 = vld [vmem:[%s421 + $0xb0] sm:$0xf]
        %v5319 = vld [vmem:[%s421 + $0xb4] sm:$0xf]
        %v5320 = vld [vmem:[%s421 + $0xb8] sm:$0xf]
        %v5321 = vld [vmem:[%s421 + $0xbc] sm:$0xf]
        %v5322 = vld [vmem:[%s421 + $0xc0] sm:$0xf]
        %v5323 = vld [vmem:[%s421 + $0xc4] sm:$0xf]
        %v5324 = vld [vmem:[%s421 + $0xc8] sm:$0xf]
        %v5325 = vld [vmem:[%s421 + $0xcc] sm:$0xf]
        %v5326 = vld [vmem:[%s421 + $0xd0] sm:$0xf]
        %v5327 = vld [vmem:[%s421 + $0xd4] sm:$0xf]
        %v5328 = vld [vmem:[%s421 + $0xd8] sm:$0xf]
        %v5329 = vld [vmem:[%s421 + $0xdc] sm:$0xf]
        %v5330 = vld [vmem:[%s421 + $0xe0] sm:$0xf]
        %v5331 = vld [vmem:[%s421 + $0xe4] sm:$0xf]
        %v5332 = vld [vmem:[%s421 + $0xe8] sm:$0xf]
        %v5333 = vld [vmem:[%s421 + $0xec] sm:$0xf]
        %v5334 = vld [vmem:[%s421 + $0xf0] sm:$0xf]
        %v5335 = vld [vmem:[%s421 + $0xf4] sm:$0xf]
        %v5336 = vld [vmem:[%s421 + $0xf8] sm:$0xf]
        %v5337 = vld [vmem:[%s421 + $0xfc] sm:$0xf]
        %v5338 = vld [vmem:[%s421 + $0x100] sm:$0xf]
        %v5339 = vld [vmem:[%s421 + $0x104] sm:$0xf]
        %v5340 = vld [vmem:[%s421 + $0x108] sm:$0xf]
        %v5341 = vld [vmem:[%s421 + $0x10c] sm:$0xf]
        %v5342 = vld [vmem:[%s421 + $0x110] sm:$0xf]
        %v5343 = vld [vmem:[%s421 + $0x114] sm:$0xf]
        %v5344 = vld [vmem:[%s421 + $0x118] sm:$0xf]
        %v5345 = vld [vmem:[%s421 + $0x11c] sm:$0xf]
        %v5346 = vld [vmem:[%s421 + $0x120] sm:$0xf]
        %v5347 = vld [vmem:[%s421 + $0x124] sm:$0xf]
        %v5348 = vld [vmem:[%s421 + $0x128] sm:$0xf]
        %v5349 = vld [vmem:[%s421 + $0x12c] sm:$0xf]
        %v5350 = vld [vmem:[%s421 + $0x130] sm:$0xf]
        %v5351 = vld [vmem:[%s421 + $0x134] sm:$0xf]
        %v5352 = vld [vmem:[%s421 + $0x138] sm:$0xf]
        %v5353 = vld [vmem:[%s421 + $0x13c] sm:$0xf]
        %v5354 = vld [vmem:[%s421 + $0x140] sm:$0xf]
        %v5355 = vld [vmem:[%s421 + $0x144] sm:$0xf]
        %v5356 = vld [vmem:[%s421 + $0x148] sm:$0xf]
        %v5357 = vld [vmem:[%s421 + $0x14c] sm:$0xf]
        %v5358 = vld [vmem:[%s421 + $0x150] sm:$0xf]
        %v5359 = vld [vmem:[%s421 + $0x154] sm:$0xf]
        %v5360 = vld [vmem:[%s421 + $0x158] sm:$0xf]
        %v5361 = vld [vmem:[%s421 + $0x15c] sm:$0xf]
        %v5362 = vld [vmem:[%s421 + $0x160] sm:$0xf]
        %v5363 = vld [vmem:[%s421 + $0x164] sm:$0xf]
        %v5364 = vld [vmem:[%s421 + $0x168] sm:$0xf]
        %v5365 = vld [vmem:[%s421 + $0x16c] sm:$0xf]
        %v5366 = vld [vmem:[%s421 + $0x170] sm:$0xf]
        %v5367 = vld [vmem:[%s421 + $0x174] sm:$0xf]
        %v5368 = vld [vmem:[%s421 + $0x178] sm:$0xf]
        %v5369 = vld [vmem:[%s421 + $0x17c] sm:$0xf]
        %v5370 = vld [vmem:[%s421 + $0x180] sm:$0xf]
        %v5371 = vld [vmem:[%s421 + $0x184] sm:$0xf]
        %v5372 = vld [vmem:[%s421 + $0x188] sm:$0xf]
        %v5373 = vld [vmem:[%s421 + $0x18c] sm:$0xf]
        %v5374 = vld [vmem:[%s421 + $0x190] sm:$0xf]
        %v5375 = vld [vmem:[%s421 + $0x194] sm:$0xf]
        %v5376 = vld [vmem:[%s421 + $0x198] sm:$0xf]
        %v5377 = vld [vmem:[%s421 + $0x19c] sm:$0xf]
        %v5378 = vld [vmem:[%s421 + $0x1a0] sm:$0xf]
        %v5379 = vld [vmem:[%s421 + $0x1a4] sm:$0xf]
        %v5380 = vld [vmem:[%s421 + $0x1a8] sm:$0xf]
        %v5381 = vld [vmem:[%s421 + $0x1ac] sm:$0xf]
        %v5382 = vld [vmem:[%s421 + $0x1b0] sm:$0xf]
        %v5383 = vld [vmem:[%s421 + $0x1b4] sm:$0xf]
        %v5384 = vld [vmem:[%s421 + $0x1b8] sm:$0xf]
        %v5385 = vld [vmem:[%s421 + $0x1bc] sm:$0xf]
        %v5386 = vld [vmem:[%s421 + $0x1c0] sm:$0xf]
        %v5387 = vld [vmem:[%s421 + $0x1c4] sm:$0xf]
        %v5388 = vld [vmem:[%s421 + $0x1c8] sm:$0xf]
        %v5389 = vld [vmem:[%s421 + $0x1cc] sm:$0xf]
        %v5390 = vld [vmem:[%s421 + $0x1d0] sm:$0xf]
        %v5391 = vld [vmem:[%s421 + $0x1d4] sm:$0xf]
        %v5392 = vld [vmem:[%s421 + $0x1d8] sm:$0xf]
        %v5393 = vld [vmem:[%s421 + $0x1dc] sm:$0xf]
        %v5394 = vld [vmem:[%s421 + $0x1e0] sm:$0xf]
        %v5395 = vld [vmem:[%s421 + $0x1e4] sm:$0xf]
        %v5396 = vld [vmem:[%s421 + $0x1e8] sm:$0xf]
        %v5397 = vld [vmem:[%s421 + $0x1ec] sm:$0xf]
        %v5398 = vld [vmem:[%s421 + $0x1f0] sm:$0xf]
        %v5399 = vld [vmem:[%s421 + $0x1f4] sm:$0xf]
        %v5400 = vld [vmem:[%s421 + $0x1f8] sm:$0xf]
        %v5401 = vld [vmem:[%s421 + $0x1fc] sm:$0xf]
        %v5402 = vld [vmem:[%s421 + $0x200] sm:$0xf]
        %v5403 = vld [vmem:[%s421 + $0x204] sm:$0xf]
        %v5404 = vld [vmem:[%s421 + $0x208] sm:$0xf]
        %v5405 = vld [vmem:[%s421 + $0x20c] sm:$0xf]
        %v5406 = vld [vmem:[%s421 + $0x210] sm:$0xf]
        %v5407 = vld [vmem:[%s421 + $0x214] sm:$0xf]
        %v5408 = vld [vmem:[%s421 + $0x218] sm:$0xf]
        %v5409 = vld [vmem:[%s421 + $0x21c] sm:$0xf]
        %v5410 = vld [vmem:[%s421 + $0x220] sm:$0xf]
        %v5411 = vld [vmem:[%s421 + $0x224] sm:$0xf]
        %v5412 = vld [vmem:[%s421 + $0x228] sm:$0xf]
        %v5413 = vld [vmem:[%s421 + $0x22c] sm:$0xf]
        %v5414 = vld [vmem:[%s421 + $0x230] sm:$0xf]
        %v5415 = vld [vmem:[%s421 + $0x234] sm:$0xf]
        %v5416 = vld [vmem:[%s421 + $0x238] sm:$0xf]
        %v5417 = vld [vmem:[%s421 + $0x23c] sm:$0xf]
        %v5418 = vld [vmem:[%s421 + $0x240] sm:$0xf]
        %v5419 = vld [vmem:[%s421 + $0x244] sm:$0xf]
        %v5420 = vld [vmem:[%s421 + $0x248] sm:$0xf]
        %v5421 = vld [vmem:[%s421 + $0x24c] sm:$0xf]
        %v5422 = vld [vmem:[%s421 + $0x250] sm:$0xf]
        %v5423 = vld [vmem:[%s421 + $0x254] sm:$0xf]
        %v5424 = vld [vmem:[%s421 + $0x258] sm:$0xf]
        %v5425 = vld [vmem:[%s421 + $0x25c] sm:$0xf]
        %v5426 = vld [vmem:[%s421 + $0x260] sm:$0xf]
        %v5427 = vld [vmem:[%s421 + $0x264] sm:$0xf]
        %v5428 = vld [vmem:[%s421 + $0x268] sm:$0xf]
        %v5429 = vld [vmem:[%s421 + $0x26c] sm:$0xf]
        %v5430 = vld [vmem:[%s421 + $0x270] sm:$0xf]
        %v5431 = vld [vmem:[%s421 + $0x274] sm:$0xf]
        %v5432 = vld [vmem:[%s421 + $0x278] sm:$0xf]
        %v5433 = vld [vmem:[%s421 + $0x27c] sm:$0xf]
        %v5594 = vunpack.c.l.b16 %v5274
        %v5595 = vunpack.c.l.b16 %v5275
        %v5596 = vunpack.c.l.b16 %v5276
        %v5597 = vunpack.c.l.b16 %v5277
        %v5598 = vunpack.c.l.b16 %v5278
        %v5599 = vunpack.c.l.b16 %v5279
        %v5600 = vunpack.c.l.b16 %v5280
        %v5601 = vunpack.c.l.b16 %v5281
        %v5602 = vunpack.c.l.b16 %v5282
        %v5603 = vunpack.c.l.b16 %v5283
        %v5604 = vunpack.c.l.b16 %v5284
        %v5605 = vunpack.c.l.b16 %v5285
        %v5606 = vunpack.c.l.b16 %v5286
        %v5607 = vunpack.c.l.b16 %v5287
        %v5608 = vunpack.c.l.b16 %v5288
        %v5609 = vunpack.c.l.b16 %v5289
        %v5610 = vunpack.c.l.b16 %v5290
        %v5611 = vunpack.c.l.b16 %v5291
        %v5612 = vunpack.c.l.b16 %v5292
        %v5613 = vunpack.c.l.b16 %v5293
        %v5614 = vunpack.c.l.b16 %v5294
        %v5615 = vunpack.c.l.b16 %v5295
        %v5616 = vunpack.c.l.b16 %v5296
        %v5617 = vunpack.c.l.b16 %v5297
        %v5618 = vunpack.c.l.b16 %v5298
        %v5619 = vunpack.c.l.b16 %v5299
        %v5620 = vunpack.c.l.b16 %v5300
        %v5621 = vunpack.c.l.b16 %v5301
        %v5622 = vunpack.c.l.b16 %v5302
        %v5623 = vunpack.c.l.b16 %v5303
        %v5624 = vunpack.c.l.b16 %v5304
        %v5625 = vunpack.c.l.b16 %v5305
        %v5626 = vunpack.c.l.b16 %v5306
        %v5627 = vunpack.c.l.b16 %v5307
        %v5628 = vunpack.c.l.b16 %v5308
        %v5629 = vunpack.c.l.b16 %v5309
        %v5630 = vunpack.c.l.b16 %v5310
        %v5631 = vunpack.c.l.b16 %v5311
        %v5632 = vunpack.c.l.b16 %v5312
        %v5633 = vunpack.c.l.b16 %v5313
        %v5634 = vunpack.c.l.b16 %v5314
        %v5635 = vunpack.c.l.b16 %v5315
        %v5636 = vunpack.c.l.b16 %v5316
        %v5637 = vunpack.c.l.b16 %v5317
        %v5638 = vunpack.c.l.b16 %v5318
        %v5639 = vunpack.c.l.b16 %v5319
        %v5640 = vunpack.c.l.b16 %v5320
        %v5641 = vunpack.c.l.b16 %v5321
        %v5642 = vunpack.c.l.b16 %v5322
        %v5643 = vunpack.c.l.b16 %v5323
        %v5644 = vunpack.c.l.b16 %v5324
        %v5645 = vunpack.c.l.b16 %v5325
        %v5646 = vunpack.c.l.b16 %v5326
        %v5647 = vunpack.c.l.b16 %v5327
        %v5648 = vunpack.c.l.b16 %v5328
        %v5649 = vunpack.c.l.b16 %v5329
        %v5650 = vunpack.c.l.b16 %v5330
        %v5651 = vunpack.c.l.b16 %v5331
        %v5652 = vunpack.c.l.b16 %v5332
        %v5653 = vunpack.c.l.b16 %v5333
        %v5654 = vunpack.c.l.b16 %v5334
        %v5655 = vunpack.c.l.b16 %v5335
        %v5656 = vunpack.c.l.b16 %v5336
        %v5657 = vunpack.c.l.b16 %v5337
        %v5658 = vunpack.c.l.b16 %v5338
        %v5659 = vunpack.c.l.b16 %v5339
        %v5660 = vunpack.c.l.b16 %v5340
        %v5661 = vunpack.c.l.b16 %v5341
        %v5662 = vunpack.c.l.b16 %v5342
        %v5663 = vunpack.c.l.b16 %v5343
        %v5664 = vunpack.c.l.b16 %v5344
        %v5665 = vunpack.c.l.b16 %v5345
        %v5666 = vunpack.c.l.b16 %v5346
        %v5667 = vunpack.c.l.b16 %v5347
        %v5668 = vunpack.c.l.b16 %v5348
        %v5669 = vunpack.c.l.b16 %v5349
        %v5670 = vunpack.c.l.b16 %v5350
        %v5671 = vunpack.c.l.b16 %v5351
        %v5672 = vunpack.c.l.b16 %v5352
        %v5673 = vunpack.c.l.b16 %v5353
        %v5674 = vunpack.c.l.b16 %v5354
        %v5675 = vunpack.c.l.b16 %v5355
        %v5676 = vunpack.c.l.b16 %v5356
        %v5677 = vunpack.c.l.b16 %v5357
        %v5678 = vunpack.c.l.b16 %v5358
        %v5679 = vunpack.c.l.b16 %v5359
        %v5680 = vunpack.c.l.b16 %v5360
        %v5681 = vunpack.c.l.b16 %v5361
        %v5682 = vunpack.c.l.b16 %v5362
        %v5683 = vunpack.c.l.b16 %v5363
        %v5684 = vunpack.c.l.b16 %v5364
        %v5685 = vunpack.c.l.b16 %v5365
        %v5686 = vunpack.c.l.b16 %v5366
        %v5687 = vunpack.c.l.b16 %v5367
        %v5688 = vunpack.c.l.b16 %v5368
        %v5689 = vunpack.c.l.b16 %v5369
        %v5690 = vunpack.c.l.b16 %v5370
        %v5691 = vunpack.c.l.b16 %v5371
        %v5692 = vunpack.c.l.b16 %v5372
        %v5693 = vunpack.c.l.b16 %v5373
        %v5694 = vunpack.c.l.b16 %v5374
        %v5695 = vunpack.c.l.b16 %v5375
        %v5696 = vunpack.c.l.b16 %v5376
        %v5697 = vunpack.c.l.b16 %v5377
        %v5698 = vunpack.c.l.b16 %v5378
        %v5699 = vunpack.c.l.b16 %v5379
        %v5700 = vunpack.c.l.b16 %v5380
        %v5701 = vunpack.c.l.b16 %v5381
        %v5702 = vunpack.c.l.b16 %v5382
        %v5703 = vunpack.c.l.b16 %v5383
        %v5704 = vunpack.c.l.b16 %v5384
        %v5705 = vunpack.c.l.b16 %v5385
        %v5706 = vunpack.c.l.b16 %v5386
        %v5707 = vunpack.c.l.b16 %v5387
        %v5708 = vunpack.c.l.b16 %v5388
        %v5709 = vunpack.c.l.b16 %v5389
        %v5710 = vunpack.c.l.b16 %v5390
        %v5711 = vunpack.c.l.b16 %v5391
        %v5712 = vunpack.c.l.b16 %v5392
        %v5713 = vunpack.c.l.b16 %v5393
        %v5714 = vunpack.c.l.b16 %v5394
        %v5715 = vunpack.c.l.b16 %v5395
        %v5716 = vunpack.c.l.b16 %v5396
        %v5717 = vunpack.c.l.b16 %v5397
        %v5718 = vunpack.c.l.b16 %v5398
        %v5719 = vunpack.c.l.b16 %v5399
        %v5720 = vunpack.c.l.b16 %v5400
        %v5721 = vunpack.c.l.b16 %v5401
        %v5722 = vunpack.c.l.b16 %v5402
        %v5723 = vunpack.c.l.b16 %v5403
        %v5724 = vunpack.c.l.b16 %v5404
        %v5725 = vunpack.c.l.b16 %v5405
        %v5726 = vunpack.c.l.b16 %v5406
        %v5727 = vunpack.c.l.b16 %v5407
        %v5728 = vunpack.c.l.b16 %v5408
        %v5729 = vunpack.c.l.b16 %v5409
        %v5730 = vunpack.c.l.b16 %v5410
        %v5731 = vunpack.c.l.b16 %v5411
        %v5732 = vunpack.c.l.b16 %v5412
        %v5733 = vunpack.c.l.b16 %v5413
        %v5734 = vunpack.c.l.b16 %v5414
        %v5735 = vunpack.c.l.b16 %v5415
        %v5736 = vunpack.c.l.b16 %v5416
        %v5737 = vunpack.c.l.b16 %v5417
        %v5738 = vunpack.c.l.b16 %v5418
        %v5739 = vunpack.c.l.b16 %v5419
        %v5740 = vunpack.c.l.b16 %v5420
        %v5741 = vunpack.c.l.b16 %v5421
        %v5742 = vunpack.c.l.b16 %v5422
        %v5743 = vunpack.c.l.b16 %v5423
        %v5744 = vunpack.c.l.b16 %v5424
        %v5745 = vunpack.c.l.b16 %v5425
        %v5746 = vunpack.c.l.b16 %v5426
        %v5747 = vunpack.c.l.b16 %v5427
        %v5748 = vunpack.c.l.b16 %v5428
        %v5749 = vunpack.c.l.b16 %v5429
        %v5750 = vunpack.c.l.b16 %v5430
        %v5751 = vunpack.c.l.b16 %v5431
        %v5752 = vunpack.c.l.b16 %v5432
        %v5753 = vunpack.c.l.b16 %v5433
        %v5754 = vpack.c.b16 %v5595, %v5594
        %v5755 = vpack.c.b16 %v5597, %v5596
        %v5756 = vpack.c.b16 %v5599, %v5598
        %v5757 = vpack.c.b16 %v5601, %v5600
        %v5758 = vpack.c.b16 %v5603, %v5602
        %v5759 = vpack.c.b16 %v5605, %v5604
        %v5760 = vpack.c.b16 %v5607, %v5606
        %v5761 = vpack.c.b16 %v5609, %v5608
        %v5762 = vpack.c.b16 %v5611, %v5610
        %v5763 = vpack.c.b16 %v5613, %v5612
        %v5764 = vpack.c.b16 %v5615, %v5614
        %v5765 = vpack.c.b16 %v5617, %v5616
        %v5766 = vpack.c.b16 %v5619, %v5618
        %v5767 = vpack.c.b16 %v5621, %v5620
        %v5768 = vpack.c.b16 %v5623, %v5622
        %v5769 = vpack.c.b16 %v5625, %v5624
        %v5770 = vpack.c.b16 %v5627, %v5626
        %v5771 = vpack.c.b16 %v5629, %v5628
        %v5772 = vpack.c.b16 %v5631, %v5630
        %v5773 = vpack.c.b16 %v5633, %v5632
        %v5774 = vpack.c.b16 %v5635, %v5634
        %v5775 = vpack.c.b16 %v5637, %v5636
        %v5776 = vpack.c.b16 %v5639, %v5638
        %v5777 = vpack.c.b16 %v5641, %v5640
        %v5778 = vpack.c.b16 %v5643, %v5642
        %v5779 = vpack.c.b16 %v5645, %v5644
        %v5780 = vpack.c.b16 %v5647, %v5646
        %v5781 = vpack.c.b16 %v5649, %v5648
        %v5782 = vpack.c.b16 %v5651, %v5650
        %v5783 = vpack.c.b16 %v5653, %v5652
        %v5784 = vpack.c.b16 %v5655, %v5654
        %v5785 = vpack.c.b16 %v5657, %v5656
        %v5786 = vpack.c.b16 %v5659, %v5658
        %v5787 = vpack.c.b16 %v5661, %v5660
        %v5788 = vpack.c.b16 %v5663, %v5662
        %v5789 = vpack.c.b16 %v5665, %v5664
        %v5790 = vpack.c.b16 %v5667, %v5666
        %v5791 = vpack.c.b16 %v5669, %v5668
        %v5792 = vpack.c.b16 %v5671, %v5670
        %v5793 = vpack.c.b16 %v5673, %v5672
        %v5794 = vpack.c.b16 %v5675, %v5674
        %v5795 = vpack.c.b16 %v5677, %v5676
        %v5796 = vpack.c.b16 %v5679, %v5678
        %v5797 = vpack.c.b16 %v5681, %v5680
        %v5798 = vpack.c.b16 %v5683, %v5682
        %v5799 = vpack.c.b16 %v5685, %v5684
        %v5800 = vpack.c.b16 %v5687, %v5686
        %v5801 = vpack.c.b16 %v5689, %v5688
        %v5802 = vpack.c.b16 %v5691, %v5690
        %v5803 = vpack.c.b16 %v5693, %v5692
        %v5804 = vpack.c.b16 %v5695, %v5694
        %v5805 = vpack.c.b16 %v5697, %v5696
        %v5806 = vpack.c.b16 %v5699, %v5698
        %v5807 = vpack.c.b16 %v5701, %v5700
        %v5808 = vpack.c.b16 %v5703, %v5702
        %v5809 = vpack.c.b16 %v5705, %v5704
        %v5810 = vpack.c.b16 %v5707, %v5706
        %v5811 = vpack.c.b16 %v5709, %v5708
        %v5812 = vpack.c.b16 %v5711, %v5710
        %v5813 = vpack.c.b16 %v5713, %v5712
        %v5814 = vpack.c.b16 %v5715, %v5714
        %v5815 = vpack.c.b16 %v5717, %v5716
        %v5816 = vpack.c.b16 %v5719, %v5718
        %v5817 = vpack.c.b16 %v5721, %v5720
        %v5818 = vpack.c.b16 %v5723, %v5722
        %v5819 = vpack.c.b16 %v5725, %v5724
        %v5820 = vpack.c.b16 %v5727, %v5726
        %v5821 = vpack.c.b16 %v5729, %v5728
        %v5822 = vpack.c.b16 %v5731, %v5730
        %v5823 = vpack.c.b16 %v5733, %v5732
        %v5824 = vpack.c.b16 %v5735, %v5734
        %v5825 = vpack.c.b16 %v5737, %v5736
        %v5826 = vpack.c.b16 %v5739, %v5738
        %v5827 = vpack.c.b16 %v5741, %v5740
        %v5828 = vpack.c.b16 %v5743, %v5742
        %v5829 = vpack.c.b16 %v5745, %v5744
        %v5830 = vpack.c.b16 %v5747, %v5746
        %v5831 = vpack.c.b16 %v5749, %v5748
        %v5832 = vpack.c.b16 %v5751, %v5750
        %v5833 = vpack.c.b16 %v5753, %v5752
        %5914 = vmatprep.subr.bf16.mxu0 0
        %5915 = vmatpush1.bf16.msra.mxu0 %v5754
        %5916 = vmatprep.subr.bf16.mxu0 0
        %5917 = vmatpush1.bf16.msra.mxu0 %v5755
        %5918 = vmatprep.subr.bf16.mxu0 0
        %5919 = vmatpush1.bf16.msra.mxu0 %v5756
        %5920 = vmatprep.subr.bf16.mxu0 0
        %5921 = vmatpush1.bf16.msra.mxu0 %v5757
        %5922 = vmatprep.subr.bf16.mxu0 0
        %5923 = vmatpush1.bf16.msra.mxu0 %v5758
        %5924 = vmatprep.subr.bf16.mxu0 0
        %5925 = vmatpush1.bf16.msra.mxu0 %v5759
        %5926 = vmatprep.subr.bf16.mxu0 0
        %5927 = vmatpush1.bf16.msra.mxu0 %v5760
        %5928 = vmatprep.subr.bf16.mxu0 0
        %5929 = vmatpush1.bf16.msra.mxu0 %v5761
        %5930 = vmatprep.subr.bf16.mxu0 0
        %5931 = vmatpush1.bf16.msra.mxu0 %v5762
        %5932 = vmatprep.subr.bf16.mxu0 0
        %5933 = vmatpush1.bf16.msra.mxu0 %v5763
        %5934 = vmatprep.subr.bf16.mxu0 0
        %5935 = vmatpush1.bf16.msra.mxu0 %v5764
        %5936 = vmatprep.subr.bf16.mxu0 0
        %5937 = vmatpush1.bf16.msra.mxu0 %v5765
        %5938 = vmatprep.subr.bf16.mxu0 0
        %5939 = vmatpush1.bf16.msra.mxu0 %v5766
        %5940 = vmatprep.subr.bf16.mxu0 0
        %5941 = vmatpush1.bf16.msra.mxu0 %v5767
        %5942 = vmatprep.subr.bf16.mxu0 0
        %5943 = vmatpush1.bf16.msra.mxu0 %v5768
        %5944 = vmatprep.subr.bf16.mxu0 0
        %5945 = vmatpush1.bf16.msra.mxu0 %v5769
        %5946 = vmatprep.mubr.bf16.mxu0 %v5265
        %5947 = vmatmul.mubr.bf16.gmra.mrb[0].mxu0 %v5264
        %v5948 = vpop.f32.mrb[0].mxu0
        %v5949 = vadd.f32 0.0, %v5948
        %v5950 = vpop.f32.mrb[0].mxu0
        %v5951 = vpop.f32.mrb[0].mxu0
        %v5952 = vpop.f32.mrb[0].mxu0
        %5953 = vdwg.mxu0
        %5954 = vmatprep.subr.bf16.mxu0 0
        %5955 = vmatpush1.bf16.msra.mxu0 %v5770
        %5956 = vmatprep.subr.bf16.mxu0 0
        %5957 = vmatpush1.bf16.msra.mxu0 %v5771
        %5958 = vmatprep.subr.bf16.mxu0 0
        %5959 = vmatpush1.bf16.msra.mxu0 %v5772
        %5960 = vmatprep.subr.bf16.mxu0 0
        %5961 = vmatpush1.bf16.msra.mxu0 %v5773
        %5962 = vmatprep.subr.bf16.mxu0 0
        %5963 = vmatpush1.bf16.msra.mxu0 %v5774
        %5964 = vmatprep.subr.bf16.mxu0 0
        %5965 = vmatpush1.bf16.msra.mxu0 %v5775
        %5966 = vmatprep.subr.bf16.mxu0 0
        %5967 = vmatpush1.bf16.msra.mxu0 %v5776
        %5968 = vmatprep.subr.bf16.mxu0 0
        %5969 = vmatpush1.bf16.msra.mxu0 %v5777
        %5970 = vmatprep.subr.bf16.mxu0 0
        %5971 = vmatpush1.bf16.msra.mxu0 %v5778
        %5972 = vmatprep.subr.bf16.mxu0 0
        %5973 = vmatpush1.bf16.msra.mxu0 %v5779
        %5974 = vmatprep.subr.bf16.mxu0 0
        %5975 = vmatpush1.bf16.msra.mxu0 %v5780
        %5976 = vmatprep.subr.bf16.mxu0 0
        %5977 = vmatpush1.bf16.msra.mxu0 %v5781
        %5978 = vmatprep.subr.bf16.mxu0 0
        %5979 = vmatpush1.bf16.msra.mxu0 %v5782
        %5980 = vmatprep.subr.bf16.mxu0 0
        %5981 = vmatpush1.bf16.msra.mxu0 %v5783
        %5982 = vmatprep.subr.bf16.mxu0 0
        %5983 = vmatpush1.bf16.msra.mxu0 %v5784
        %5984 = vmatprep.subr.bf16.mxu0 0
        %5985 = vmatpush1.bf16.msra.mxu0 %v5785
        %5986 = vmatprep.mubr.bf16.mxu0 %v5267
        %5987 = vmatmul.mubr.bf16.gmra.mrb[0].mxu0 %v5266
        %v5988 = vpop.f32.mrb[0].mxu0
        %v5989 = vadd.f32 %v5949, %v5988
        %v5990 = vpop.f32.mrb[0].mxu0
        %v5991 = vpop.f32.mrb[0].mxu0
        %v5992 = vpop.f32.mrb[0].mxu0
        %5993 = vdwg.mxu0
        %5994 = vmatprep.subr.bf16.mxu0 0
        %5995 = vmatpush1.bf16.msra.mxu0 %v5786
        %5996 = vmatprep.subr.bf16.mxu0 0
        %5997 = vmatpush1.bf16.msra.mxu0 %v5787
        %5998 = vmatprep.subr.bf16.mxu0 0
        %5999 = vmatpush1.bf16.msra.mxu0 %v5788
        %6000 = vmatprep.subr.bf16.mxu0 0
        %6001 = vmatpush1.bf16.msra.mxu0 %v5789
        %6002 = vmatprep.subr.bf16.mxu0 0
        %6003 = vmatpush1.bf16.msra.mxu0 %v5790
        %6004 = vmatprep.subr.bf16.mxu0 0
        %6005 = vmatpush1.bf16.msra.mxu0 %v5791
        %6006 = vmatprep.subr.bf16.mxu0 0
        %6007 = vmatpush1.bf16.msra.mxu0 %v5792
        %6008 = vmatprep.subr.bf16.mxu0 0
        %6009 = vmatpush1.bf16.msra.mxu0 %v5793
        %6010 = vmatprep.subr.bf16.mxu0 0
        %6011 = vmatpush1.bf16.msra.mxu0 %v5794
        %6012 = vmatprep.subr.bf16.mxu0 0
        %6013 = vmatpush1.bf16.msra.mxu0 %v5795
        %6014 = vmatprep.subr.bf16.mxu0 0
        %6015 = vmatpush1.bf16.msra.mxu0 %v5796
        %6016 = vmatprep.subr.bf16.mxu0 0
        %6017 = vmatpush1.bf16.msra.mxu0 %v5797
        %6018 = vmatprep.subr.bf16.mxu0 0
        %6019 = vmatpush1.bf16.msra.mxu0 %v5798
        %6020 = vmatprep.subr.bf16.mxu0 0
        %6021 = vmatpush1.bf16.msra.mxu0 %v5799
        %6022 = vmatprep.subr.bf16.mxu0 0
        %6023 = vmatpush1.bf16.msra.mxu0 %v5800
        %6024 = vmatprep.subr.bf16.mxu0 0
        %6025 = vmatpush1.bf16.msra.mxu0 %v5801
        %6026 = vmatprep.mubr.bf16.mxu0 %v5269
        %6027 = vmatmul.mubr.bf16.gmra.mrb[0].mxu0 %v5268
        %v6028 = vpop.f32.mrb[0].mxu0
        %v6029 = vadd.f32 %v5989, %v6028
        %v6030 = vpop.f32.mrb[0].mxu0
        %v6031 = vpop.f32.mrb[0].mxu0
        %v6032 = vpop.f32.mrb[0].mxu0
        %6033 = vdwg.mxu0
        %6034 = vmatprep.subr.bf16.mxu0 0
        %6035 = vmatpush1.bf16.msra.mxu0 %v5802
        %6036 = vmatprep.subr.bf16.mxu0 0
        %6037 = vmatpush1.bf16.msra.mxu0 %v5803
        %6038 = vmatprep.subr.bf16.mxu0 0
        %6039 = vmatpush1.bf16.msra.mxu0 %v5804
        %6040 = vmatprep.subr.bf16.mxu0 0
        %6041 = vmatpush1.bf16.msra.mxu0 %v5805
        %6042 = vmatprep.subr.bf16.mxu0 0
        %6043 = vmatpush1.bf16.msra.mxu0 %v5806
        %6044 = vmatprep.subr.bf16.mxu0 0
        %6045 = vmatpush1.bf16.msra.mxu0 %v5807
        %6046 = vmatprep.subr.bf16.mxu0 0
        %6047 = vmatpush1.bf16.msra.mxu0 %v5808
        %6048 = vmatprep.subr.bf16.mxu0 0
        %6049 = vmatpush1.bf16.msra.mxu0 %v5809
        %6050 = vmatprep.subr.bf16.mxu0 0
        %6051 = vmatpush1.bf16.msra.mxu0 %v5810
        %6052 = vmatprep.subr.bf16.mxu0 0
        %6053 = vmatpush1.bf16.msra.mxu0 %v5811
        %6054 = vmatprep.subr.bf16.mxu0 0
        %6055 = vmatpush1.bf16.msra.mxu0 %v5812
        %6056 = vmatprep.subr.bf16.mxu0 0
        %6057 = vmatpush1.bf16.msra.mxu0 %v5813
        %6058 = vmatprep.subr.bf16.mxu0 0
        %6059 = vmatpush1.bf16.msra.mxu0 %v5814
        %6060 = vmatprep.subr.bf16.mxu0 0
        %6061 = vmatpush1.bf16.msra.mxu0 %v5815
        %6062 = vmatprep.subr.bf16.mxu0 0
        %6063 = vmatpush1.bf16.msra.mxu0 %v5816
        %6064 = vmatprep.subr.bf16.mxu0 0
        %6065 = vmatpush1.bf16.msra.mxu0 %v5817
        %6066 = vmatprep.mubr.bf16.mxu0 %v5271
        %6067 = vmatmul.mubr.bf16.gmra.mrb[0].mxu0 %v5270
        %v6068 = vpop.f32.mrb[0].mxu0
        %v6069 = vadd.f32 %v6029, %v6068
        %v6070 = vpop.f32.mrb[0].mxu0
        %v6071 = vpop.f32.mrb[0].mxu0
        %v6072 = vpop.f32.mrb[0].mxu0
        %6073 = vdwg.mxu0
        %6074 = vmatprep.subr.bf16.mxu0 0
        %6075 = vmatpush1.bf16.msra.mxu0 %v5818
        %6076 = vmatprep.subr.bf16.mxu0 0
        %6077 = vmatpush1.bf16.msra.mxu0 %v5819
        %6078 = vmatprep.subr.bf16.mxu0 0
        %6079 = vmatpush1.bf16.msra.mxu0 %v5820
        %6080 = vmatprep.subr.bf16.mxu0 0
        %6081 = vmatpush1.bf16.msra.mxu0 %v5821
        %6082 = vmatprep.subr.bf16.mxu0 0
        %6083 = vmatpush1.bf16.msra.mxu0 %v5822
        %6084 = vmatprep.subr.bf16.mxu0 0
        %6085 = vmatpush1.bf16.msra.mxu0 %v5823
        %6086 = vmatprep.subr.bf16.mxu0 0
        %6087 = vmatpush1.bf16.msra.mxu0 %v5824
        %6088 = vmatprep.subr.bf16.mxu0 0
        %6089 = vmatpush1.bf16.msra.mxu0 %v5825
        %6090 = vmatprep.subr.bf16.mxu0 0
        %6091 = vmatpush1.bf16.msra.mxu0 %v5826
        %6092 = vmatprep.subr.bf16.mxu0 0
        %6093 = vmatpush1.bf16.msra.mxu0 %v5827
        %6094 = vmatprep.subr.bf16.mxu0 0
        %6095 = vmatpush1.bf16.msra.mxu0 %v5828
        %6096 = vmatprep.subr.bf16.mxu0 0
        %6097 = vmatpush1.bf16.msra.mxu0 %v5829
        %6098 = vmatprep.subr.bf16.mxu0 0
        %6099 = vmatpush1.bf16.msra.mxu0 %v5830
        %6100 = vmatprep.subr.bf16.mxu0 0
        %6101 = vmatpush1.bf16.msra.mxu0 %v5831
        %6102 = vmatprep.subr.bf16.mxu0 0
        %6103 = vmatpush1.bf16.msra.mxu0 %v5832
        %6104 = vmatprep.subr.bf16.mxu0 0
        %6105 = vmatpush1.bf16.msra.mxu0 %v5833
        %6106 = vmatprep.mubr.bf16.mxu0 %v5273
        %6107 = vmatmul.mubr.bf16.gmra.mrb[0].mxu0 %v5272
        %v6108 = vpop.f32.mrb[0].mxu0
        %v6109 = vadd.f32 %v6069, %v6108
        %v6110 = vpop.f32.mrb[0].mxu0
        %v6111 = vpop.f32.mrb[0].mxu0
        %v6112 = vpop.f32.mrb[0].mxu0
        %6113 = vdwg.mxu0
        %v6114 = vadd.f32 %v5263, %v6109
        %6115 = vst [vmem:[#allocation2] sm:$0x3] %v6114
        %p6116 = scmp.eq.s32.totalorder %s30, 1
        // Predicated region
        $region93: #{baseline_adapter_transformer.1} parent=55 // pred_check
          %p6117 = pneg %p6116
        $region94: #{baseline_adapter_transformer.1} parent=55 // pred_check_branch
          %6119 = sbr.rel (%p6117) target = $region96
        $region95: #{baseline_adapter_transformer.1} parent=55 // pred_region
          %v6120 = vld [vmem:[#allocation2] sm:$0x3]
          %v6121 = vld [vmem:[#allocation9] sm:$0x1]
          %v6123 = vlaneseq
          %v6124 = vshrl.u32 %v6123, 7
          %v6125 = vsub.s32 0, %v6124
          %v6126 = vrot.slane %v6121, %v6125
          %v6128 = vadd.f32 %v6120, %v6126
          %v6129 = vmax.f32 %v6128, 0.0
          %v6130 = vpack.c.bf16 %v6129, %v6129
          %v6131 = vld [vmem:[#allocation11] sm:$0xff]
          %v6132 = vld [vmem:[#allocation11 + $0x8] sm:$0xff]
          %v6133 = vld [vmem:[#allocation11 + $0x10] sm:$0xff]
          %v6134 = vld [vmem:[#allocation11 + $0x18] sm:$0xff]
          %v6135 = vld [vmem:[#allocation11 + $0x20] sm:$0xff]
          %v6136 = vld [vmem:[#allocation11 + $0x28] sm:$0xff]
          %v6137 = vld [vmem:[#allocation11 + $0x30] sm:$0xff]
          %v6138 = vld [vmem:[#allocation11 + $0x38] sm:$0xff]
          %v6139 = vld [vmem:[#allocation11 + $0x40] sm:$0xff]
          %v6140 = vld [vmem:[#allocation11 + $0x48] sm:$0xff]
          %v6141 = vld [vmem:[#allocation11 + $0x50] sm:$0xff]
          %v6142 = vld [vmem:[#allocation11 + $0x58] sm:$0xff]
          %v6143 = vld [vmem:[#allocation11 + $0x60] sm:$0xff]
          %v6144 = vld [vmem:[#allocation11 + $0x68] sm:$0xff]
          %v6145 = vld [vmem:[#allocation11 + $0x70] sm:$0xff]
          %v6146 = vld [vmem:[#allocation11 + $0x78] sm:$0xff]
          %v6147 = vld [vmem:[#allocation11 + $0x80] sm:$0xff]
          %v6148 = vld [vmem:[#allocation11 + $0x88] sm:$0xff]
          %v6149 = vld [vmem:[#allocation11 + $0x90] sm:$0xff]
          %v6150 = vld [vmem:[#allocation11 + $0x98] sm:$0xff]
          %v6151 = vld [vmem:[#allocation11 + $0xa0] sm:$0xff]
          %v6152 = vld [vmem:[#allocation11 + $0xa8] sm:$0xff]
          %v6153 = vld [vmem:[#allocation11 + $0xb0] sm:$0xff]
          %v6154 = vld [vmem:[#allocation11 + $0xb8] sm:$0xff]
          %v6155 = vld [vmem:[#allocation11 + $0xc0] sm:$0xff]
          %v6156 = vld [vmem:[#allocation11 + $0xc8] sm:$0xff]
          %v6157 = vld [vmem:[#allocation11 + $0xd0] sm:$0xff]
          %v6158 = vld [vmem:[#allocation11 + $0xd8] sm:$0xff]
          %v6159 = vld [vmem:[#allocation11 + $0xe0] sm:$0xff]
          %v6160 = vld [vmem:[#allocation11 + $0xe8] sm:$0xff]
          %v6161 = vld [vmem:[#allocation11 + $0xf0] sm:$0xff]
          %v6162 = vld [vmem:[#allocation11 + $0xf8] sm:$0xff]
          %v6163 = vld [vmem:[#allocation11 + $0x100] sm:$0xff]
          %v6164 = vld [vmem:[#allocation11 + $0x108] sm:$0xff]
          %v6165 = vld [vmem:[#allocation11 + $0x110] sm:$0xff]
          %v6166 = vld [vmem:[#allocation11 + $0x118] sm:$0xff]
          %v6167 = vld [vmem:[#allocation11 + $0x120] sm:$0xff]
          %v6168 = vld [vmem:[#allocation11 + $0x128] sm:$0xff]
          %v6169 = vld [vmem:[#allocation11 + $0x130] sm:$0xff]
          %v6170 = vld [vmem:[#allocation11 + $0x138] sm:$0xff]
          %v6171 = vld [vmem:[#allocation11 + $0x140] sm:$0xff]
          %v6172 = vld [vmem:[#allocation11 + $0x148] sm:$0xff]
          %v6173 = vld [vmem:[#allocation11 + $0x150] sm:$0xff]
          %v6174 = vld [vmem:[#allocation11 + $0x158] sm:$0xff]
          %v6175 = vld [vmem:[#allocation11 + $0x160] sm:$0xff]
          %v6176 = vld [vmem:[#allocation11 + $0x168] sm:$0xff]
          %v6177 = vld [vmem:[#allocation11 + $0x170] sm:$0xff]
          %v6178 = vld [vmem:[#allocation11 + $0x178] sm:$0xff]
          %v6179 = vld [vmem:[#allocation11 + $0x180] sm:$0xff]
          %v6180 = vld [vmem:[#allocation11 + $0x188] sm:$0xff]
          %v6181 = vld [vmem:[#allocation11 + $0x190] sm:$0xff]
          %v6182 = vld [vmem:[#allocation11 + $0x198] sm:$0xff]
          %v6183 = vld [vmem:[#allocation11 + $0x1a0] sm:$0xff]
          %v6184 = vld [vmem:[#allocation11 + $0x1a8] sm:$0xff]
          %v6185 = vld [vmem:[#allocation11 + $0x1b0] sm:$0xff]
          %v6186 = vld [vmem:[#allocation11 + $0x1b8] sm:$0xff]
          %v6187 = vld [vmem:[#allocation11 + $0x1c0] sm:$0xff]
          %v6188 = vld [vmem:[#allocation11 + $0x1c8] sm:$0xff]
          %v6189 = vld [vmem:[#allocation11 + $0x1d0] sm:$0xff]
          %v6190 = vld [vmem:[#allocation11 + $0x1d8] sm:$0xff]
          %v6191 = vld [vmem:[#allocation11 + $0x1e0] sm:$0xff]
          %v6192 = vld [vmem:[#allocation11 + $0x1e8] sm:$0xff]
          %v6193 = vld [vmem:[#allocation11 + $0x1f0] sm:$0xff]
          %v6194 = vld [vmem:[#allocation11 + $0x1f8] sm:$0xff]
          %v6195 = vld [vmem:[#allocation11 + $0x200] sm:$0xff]
          %v6196 = vld [vmem:[#allocation11 + $0x208] sm:$0xff]
          %v6197 = vld [vmem:[#allocation11 + $0x210] sm:$0xff]
          %v6198 = vld [vmem:[#allocation11 + $0x218] sm:$0xff]
          %v6199 = vld [vmem:[#allocation11 + $0x220] sm:$0xff]
          %v6200 = vld [vmem:[#allocation11 + $0x228] sm:$0xff]
          %v6201 = vld [vmem:[#allocation11 + $0x230] sm:$0xff]
          %v6202 = vld [vmem:[#allocation11 + $0x238] sm:$0xff]
          %v6203 = vld [vmem:[#allocation11 + $0x240] sm:$0xff]
          %v6204 = vld [vmem:[#allocation11 + $0x248] sm:$0xff]
          %v6205 = vld [vmem:[#allocation11 + $0x250] sm:$0xff]
          %v6206 = vld [vmem:[#allocation11 + $0x258] sm:$0xff]
          %v6207 = vld [vmem:[#allocation11 + $0x260] sm:$0xff]
          %v6208 = vld [vmem:[#allocation11 + $0x268] sm:$0xff]
          %v6209 = vld [vmem:[#allocation11 + $0x270] sm:$0xff]
          %v6210 = vld [vmem:[#allocation11 + $0x278] sm:$0xff]
          %v6211 = vld [vmem:[#allocation11 + $0x280] sm:$0xff]
          %v6212 = vld [vmem:[#allocation11 + $0x288] sm:$0xff]
          %v6213 = vld [vmem:[#allocation11 + $0x290] sm:$0xff]
          %v6214 = vld [vmem:[#allocation11 + $0x298] sm:$0xff]
          %v6215 = vld [vmem:[#allocation11 + $0x2a0] sm:$0xff]
          %v6216 = vld [vmem:[#allocation11 + $0x2a8] sm:$0xff]
          %v6217 = vld [vmem:[#allocation11 + $0x2b0] sm:$0xff]
          %v6218 = vld [vmem:[#allocation11 + $0x2b8] sm:$0xff]
          %v6219 = vld [vmem:[#allocation11 + $0x2c0] sm:$0xff]
          %v6220 = vld [vmem:[#allocation11 + $0x2c8] sm:$0xff]
          %v6221 = vld [vmem:[#allocation11 + $0x2d0] sm:$0xff]
          %v6222 = vld [vmem:[#allocation11 + $0x2d8] sm:$0xff]
          %v6223 = vld [vmem:[#allocation11 + $0x2e0] sm:$0xff]
          %v6224 = vld [vmem:[#allocation11 + $0x2e8] sm:$0xff]
          %v6225 = vld [vmem:[#allocation11 + $0x2f0] sm:$0xff]
          %v6226 = vld [vmem:[#allocation11 + $0x2f8] sm:$0xff]
          %v6227 = vld [vmem:[#allocation11 + $0x300] sm:$0xff]
          %v6228 = vld [vmem:[#allocation11 + $0x308] sm:$0xff]
          %v6229 = vld [vmem:[#allocation11 + $0x310] sm:$0xff]
          %v6230 = vld [vmem:[#allocation11 + $0x318] sm:$0xff]
          %v6231 = vld [vmem:[#allocation11 + $0x320] sm:$0xff]
          %v6232 = vld [vmem:[#allocation11 + $0x328] sm:$0xff]
          %v6233 = vld [vmem:[#allocation11 + $0x330] sm:$0xff]
          %v6234 = vld [vmem:[#allocation11 + $0x338] sm:$0xff]
          %v6235 = vld [vmem:[#allocation11 + $0x340] sm:$0xff]
          %v6236 = vld [vmem:[#allocation11 + $0x348] sm:$0xff]
          %v6237 = vld [vmem:[#allocation11 + $0x350] sm:$0xff]
          %v6238 = vld [vmem:[#allocation11 + $0x358] sm:$0xff]
          %v6239 = vld [vmem:[#allocation11 + $0x360] sm:$0xff]
          %v6240 = vld [vmem:[#allocation11 + $0x368] sm:$0xff]
          %v6241 = vld [vmem:[#allocation11 + $0x370] sm:$0xff]
          %v6242 = vld [vmem:[#allocation11 + $0x378] sm:$0xff]
          %v6243 = vld [vmem:[#allocation11 + $0x380] sm:$0xff]
          %v6244 = vld [vmem:[#allocation11 + $0x388] sm:$0xff]
          %v6245 = vld [vmem:[#allocation11 + $0x390] sm:$0xff]
          %v6246 = vld [vmem:[#allocation11 + $0x398] sm:$0xff]
          %v6247 = vld [vmem:[#allocation11 + $0x3a0] sm:$0xff]
          %v6248 = vld [vmem:[#allocation11 + $0x3a8] sm:$0xff]
          %v6249 = vld [vmem:[#allocation11 + $0x3b0] sm:$0xff]
          %v6250 = vld [vmem:[#allocation11 + $0x3b8] sm:$0xff]
          %v6251 = vld [vmem:[#allocation11 + $0x3c0] sm:$0xff]
          %v6252 = vld [vmem:[#allocation11 + $0x3c8] sm:$0xff]
          %v6253 = vld [vmem:[#allocation11 + $0x3d0] sm:$0xff]
          %v6254 = vld [vmem:[#allocation11 + $0x3d8] sm:$0xff]
          %v6255 = vld [vmem:[#allocation11 + $0x3e0] sm:$0xff]
          %v6256 = vld [vmem:[#allocation11 + $0x3e8] sm:$0xff]
          %v6257 = vld [vmem:[#allocation11 + $0x3f0] sm:$0xff]
          %v6258 = vld [vmem:[#allocation11 + $0x3f8] sm:$0xff]
          %v6259 = vld [vmem:[#allocation11 + $0x400] sm:$0xff]
          %v6260 = vld [vmem:[#allocation11 + $0x408] sm:$0xff]
          %v6261 = vld [vmem:[#allocation11 + $0x410] sm:$0xff]
          %v6262 = vld [vmem:[#allocation11 + $0x418] sm:$0xff]
          %v6263 = vld [vmem:[#allocation11 + $0x420] sm:$0xff]
          %v6264 = vld [vmem:[#allocation11 + $0x428] sm:$0xff]
          %v6265 = vld [vmem:[#allocation11 + $0x430] sm:$0xff]
          %v6266 = vld [vmem:[#allocation11 + $0x438] sm:$0xff]
          %v6267 = vld [vmem:[#allocation11 + $0x440] sm:$0xff]
          %v6268 = vld [vmem:[#allocation11 + $0x448] sm:$0xff]
          %v6269 = vld [vmem:[#allocation11 + $0x450] sm:$0xff]
          %v6270 = vld [vmem:[#allocation11 + $0x458] sm:$0xff]
          %v6271 = vld [vmem:[#allocation11 + $0x460] sm:$0xff]
          %v6272 = vld [vmem:[#allocation11 + $0x468] sm:$0xff]
          %v6273 = vld [vmem:[#allocation11 + $0x470] sm:$0xff]
          %v6274 = vld [vmem:[#allocation11 + $0x478] sm:$0xff]
          %v6275 = vld [vmem:[#allocation11 + $0x480] sm:$0xff]
          %v6276 = vld [vmem:[#allocation11 + $0x488] sm:$0xff]
          %v6277 = vld [vmem:[#allocation11 + $0x490] sm:$0xff]
          %v6278 = vld [vmem:[#allocation11 + $0x498] sm:$0xff]
          %v6279 = vld [vmem:[#allocation11 + $0x4a0] sm:$0xff]
          %v6280 = vld [vmem:[#allocation11 + $0x4a8] sm:$0xff]
          %v6281 = vld [vmem:[#allocation11 + $0x4b0] sm:$0xff]
          %v6282 = vld [vmem:[#allocation11 + $0x4b8] sm:$0xff]
          %v6283 = vld [vmem:[#allocation11 + $0x4c0] sm:$0xff]
          %v6284 = vld [vmem:[#allocation11 + $0x4c8] sm:$0xff]
          %v6285 = vld [vmem:[#allocation11 + $0x4d0] sm:$0xff]
          %v6286 = vld [vmem:[#allocation11 + $0x4d8] sm:$0xff]
          %v6287 = vld [vmem:[#allocation11 + $0x4e0] sm:$0xff]
          %v6288 = vld [vmem:[#allocation11 + $0x4e8] sm:$0xff]
          %v6289 = vld [vmem:[#allocation11 + $0x4f0] sm:$0xff]
          %v6290 = vld [vmem:[#allocation11 + $0x4f8] sm:$0xff]
          %v6291 = vld [vmem:[#allocation12] sm:$0xff]
          %v6292 = vld [vmem:[#allocation12 + $0x8] sm:$0xff]
          %v6293 = vld [vmem:[#allocation12 + $0x10] sm:$0xf]
          %v6297 = vlaneseq
          %v6298 = vshrl.u32 %v6297, 7
          %v6299 = vsub.s32 0, %v6298
          %v6300 = vrot.slane %v6291, %v6299
          %v6301 = vlaneseq
          %v6302 = vshrl.u32 %v6301, 7
          %v6303 = vsub.s32 1, %v6302
          %v6304 = vrot.slane %v6291, %v6303
          %v6305 = vlaneseq
          %v6306 = vshrl.u32 %v6305, 7
          %v6307 = vsub.s32 2, %v6306
          %v6308 = vrot.slane %v6291, %v6307
          %v6309 = vlaneseq
          %v6310 = vshrl.u32 %v6309, 7
          %v6311 = vsub.s32 3, %v6310
          %v6312 = vrot.slane %v6291, %v6311
          %v6313 = vlaneseq
          %v6314 = vshrl.u32 %v6313, 7
          %v6315 = vsub.s32 4, %v6314
          %v6316 = vrot.slane %v6291, %v6315
          %v6317 = vlaneseq
          %v6318 = vshrl.u32 %v6317, 7
          %v6319 = vsub.s32 5, %v6318
          %v6320 = vrot.slane %v6291, %v6319
          %v6321 = vlaneseq
          %v6322 = vshrl.u32 %v6321, 7
          %v6323 = vsub.s32 6, %v6322
          %v6324 = vrot.slane %v6291, %v6323
          %v6325 = vlaneseq
          %v6326 = vshrl.u32 %v6325, 7
          %v6327 = vsub.s32 7, %v6326
          %v6328 = vrot.slane %v6291, %v6327
          %v6329 = vlaneseq
          %v6330 = vshrl.u32 %v6329, 7
          %v6331 = vsub.s32 0, %v6330
          %v6332 = vrot.slane %v6292, %v6331
          %v6333 = vlaneseq
          %v6334 = vshrl.u32 %v6333, 7
          %v6335 = vsub.s32 1, %v6334
          %v6336 = vrot.slane %v6292, %v6335
          %v6337 = vlaneseq
          %v6338 = vshrl.u32 %v6337, 7
          %v6339 = vsub.s32 2, %v6338
          %v6340 = vrot.slane %v6292, %v6339
          %v6341 = vlaneseq
          %v6342 = vshrl.u32 %v6341, 7
          %v6343 = vsub.s32 3, %v6342
          %v6344 = vrot.slane %v6292, %v6343
          %v6345 = vlaneseq
          %v6346 = vshrl.u32 %v6345, 7
          %v6347 = vsub.s32 4, %v6346
          %v6348 = vrot.slane %v6292, %v6347
          %v6349 = vlaneseq
          %v6350 = vshrl.u32 %v6349, 7
          %v6351 = vsub.s32 5, %v6350
          %v6352 = vrot.slane %v6292, %v6351
          %v6353 = vlaneseq
          %v6354 = vshrl.u32 %v6353, 7
          %v6355 = vsub.s32 6, %v6354
          %v6356 = vrot.slane %v6292, %v6355
          %v6357 = vlaneseq
          %v6358 = vshrl.u32 %v6357, 7
          %v6359 = vsub.s32 7, %v6358
          %v6360 = vrot.slane %v6292, %v6359
          %v6361 = vlaneseq
          %v6362 = vshrl.u32 %v6361, 7
          %v6363 = vsub.s32 0, %v6362
          %v6364 = vrot.slane %v6293, %v6363
          %v6365 = vlaneseq
          %v6366 = vshrl.u32 %v6365, 7
          %v6367 = vsub.s32 1, %v6366
          %v6368 = vrot.slane %v6293, %v6367
          %v6369 = vlaneseq
          %v6370 = vshrl.u32 %v6369, 7
          %v6371 = vsub.s32 2, %v6370
          %v6372 = vrot.slane %v6293, %v6371
          %v6373 = vlaneseq
          %v6374 = vshrl.u32 %v6373, 7
          %v6375 = vsub.s32 3, %v6374
          %v6376 = vrot.slane %v6293, %v6375
          %v6557 = vunpack.c.l.b16 %v6131
          %v6558 = vunpack.c.h.b16 %v6131
          %v6559 = vunpack.c.l.b16 %v6132
          %v6560 = vunpack.c.h.b16 %v6132
          %v6561 = vunpack.c.l.b16 %v6133
          %v6562 = vunpack.c.h.b16 %v6133
          %v6563 = vunpack.c.l.b16 %v6134
          %v6564 = vunpack.c.h.b16 %v6134
          %v6565 = vunpack.c.l.b16 %v6135
          %v6566 = vunpack.c.h.b16 %v6135
          %v6567 = vunpack.c.l.b16 %v6136
          %v6568 = vunpack.c.h.b16 %v6136
          %v6569 = vunpack.c.l.b16 %v6137
          %v6570 = vunpack.c.h.b16 %v6137
          %v6571 = vunpack.c.l.b16 %v6138
          %v6572 = vunpack.c.h.b16 %v6138
          %v6573 = vunpack.c.l.b16 %v6139
          %v6574 = vunpack.c.h.b16 %v6139
          %v6575 = vunpack.c.l.b16 %v6140
          %v6576 = vunpack.c.h.b16 %v6140
          %v6577 = vunpack.c.l.b16 %v6141
          %v6578 = vunpack.c.h.b16 %v6141
          %v6579 = vunpack.c.l.b16 %v6142
          %v6580 = vunpack.c.h.b16 %v6142
          %v6581 = vunpack.c.l.b16 %v6143
          %v6582 = vunpack.c.h.b16 %v6143
          %v6583 = vunpack.c.l.b16 %v6144
          %v6584 = vunpack.c.h.b16 %v6144
          %v6585 = vunpack.c.l.b16 %v6145
          %v6586 = vunpack.c.h.b16 %v6145
          %v6587 = vunpack.c.l.b16 %v6146
          %v6588 = vunpack.c.h.b16 %v6146
          %v6589 = vunpack.c.l.b16 %v6147
          %v6590 = vunpack.c.h.b16 %v6147
          %v6591 = vunpack.c.l.b16 %v6148
          %v6592 = vunpack.c.h.b16 %v6148
          %v6593 = vunpack.c.l.b16 %v6149
          %v6594 = vunpack.c.h.b16 %v6149
          %v6595 = vunpack.c.l.b16 %v6150
          %v6596 = vunpack.c.h.b16 %v6150
          %v6597 = vunpack.c.l.b16 %v6151
          %v6598 = vunpack.c.h.b16 %v6151
          %v6599 = vunpack.c.l.b16 %v6152
          %v6600 = vunpack.c.h.b16 %v6152
          %v6601 = vunpack.c.l.b16 %v6153
          %v6602 = vunpack.c.h.b16 %v6153
          %v6603 = vunpack.c.l.b16 %v6154
          %v6604 = vunpack.c.h.b16 %v6154
          %v6605 = vunpack.c.l.b16 %v6155
          %v6606 = vunpack.c.h.b16 %v6155
          %v6607 = vunpack.c.l.b16 %v6156
          %v6608 = vunpack.c.h.b16 %v6156
          %v6609 = vunpack.c.l.b16 %v6157
          %v6610 = vunpack.c.h.b16 %v6157
          %v6611 = vunpack.c.l.b16 %v6158
          %v6612 = vunpack.c.h.b16 %v6158
          %v6613 = vunpack.c.l.b16 %v6159
          %v6614 = vunpack.c.h.b16 %v6159
          %v6615 = vunpack.c.l.b16 %v6160
          %v6616 = vunpack.c.h.b16 %v6160
          %v6617 = vunpack.c.l.b16 %v6161
          %v6618 = vunpack.c.h.b16 %v6161
          %v6619 = vunpack.c.l.b16 %v6162
          %v6620 = vunpack.c.h.b16 %v6162
          %v6621 = vunpack.c.l.b16 %v6163
          %v6622 = vunpack.c.h.b16 %v6163
          %v6623 = vunpack.c.l.b16 %v6164
          %v6624 = vunpack.c.h.b16 %v6164
          %v6625 = vunpack.c.l.b16 %v6165
          %v6626 = vunpack.c.h.b16 %v6165
          %v6627 = vunpack.c.l.b16 %v6166
          %v6628 = vunpack.c.h.b16 %v6166
          %v6629 = vunpack.c.l.b16 %v6167
          %v6630 = vunpack.c.h.b16 %v6167
          %v6631 = vunpack.c.l.b16 %v6168
          %v6632 = vunpack.c.h.b16 %v6168
          %v6633 = vunpack.c.l.b16 %v6169
          %v6634 = vunpack.c.h.b16 %v6169
          %v6635 = vunpack.c.l.b16 %v6170
          %v6636 = vunpack.c.h.b16 %v6170
          %v6637 = vunpack.c.l.b16 %v6171
          %v6638 = vunpack.c.h.b16 %v6171
          %v6639 = vunpack.c.l.b16 %v6172
          %v6640 = vunpack.c.h.b16 %v6172
          %v6641 = vunpack.c.l.b16 %v6173
          %v6642 = vunpack.c.h.b16 %v6173
          %v6643 = vunpack.c.l.b16 %v6174
          %v6644 = vunpack.c.h.b16 %v6174
          %v6645 = vunpack.c.l.b16 %v6175
          %v6646 = vunpack.c.h.b16 %v6175
          %v6647 = vunpack.c.l.b16 %v6176
          %v6648 = vunpack.c.h.b16 %v6176
          %v6649 = vunpack.c.l.b16 %v6177
          %v6650 = vunpack.c.h.b16 %v6177
          %v6651 = vunpack.c.l.b16 %v6178
          %v6652 = vunpack.c.h.b16 %v6178
          %v6653 = vunpack.c.l.b16 %v6179
          %v6654 = vunpack.c.h.b16 %v6179
          %v6655 = vunpack.c.l.b16 %v6180
          %v6656 = vunpack.c.h.b16 %v6180
          %v6657 = vunpack.c.l.b16 %v6181
          %v6658 = vunpack.c.h.b16 %v6181
          %v6659 = vunpack.c.l.b16 %v6182
          %v6660 = vunpack.c.h.b16 %v6182
          %v6661 = vunpack.c.l.b16 %v6183
          %v6662 = vunpack.c.h.b16 %v6183
          %v6663 = vunpack.c.l.b16 %v6184
          %v6664 = vunpack.c.h.b16 %v6184
          %v6665 = vunpack.c.l.b16 %v6185
          %v6666 = vunpack.c.h.b16 %v6185
          %v6667 = vunpack.c.l.b16 %v6186
          %v6668 = vunpack.c.h.b16 %v6186
          %v6669 = vunpack.c.l.b16 %v6187
          %v6670 = vunpack.c.h.b16 %v6187
          %v6671 = vunpack.c.l.b16 %v6188
          %v6672 = vunpack.c.h.b16 %v6188
          %v6673 = vunpack.c.l.b16 %v6189
          %v6674 = vunpack.c.h.b16 %v6189
          %v6675 = vunpack.c.l.b16 %v6190
          %v6676 = vunpack.c.h.b16 %v6190
          %v6677 = vunpack.c.l.b16 %v6191
          %v6678 = vunpack.c.h.b16 %v6191
          %v6679 = vunpack.c.l.b16 %v6192
          %v6680 = vunpack.c.h.b16 %v6192
          %v6681 = vunpack.c.l.b16 %v6193
          %v6682 = vunpack.c.h.b16 %v6193
          %v6683 = vunpack.c.l.b16 %v6194
          %v6684 = vunpack.c.h.b16 %v6194
          %v6685 = vunpack.c.l.b16 %v6195
          %v6686 = vunpack.c.h.b16 %v6195
          %v6687 = vunpack.c.l.b16 %v6196
          %v6688 = vunpack.c.h.b16 %v6196
          %v6689 = vunpack.c.l.b16 %v6197
          %v6690 = vunpack.c.h.b16 %v6197
          %v6691 = vunpack.c.l.b16 %v6198
          %v6692 = vunpack.c.h.b16 %v6198
          %v6693 = vunpack.c.l.b16 %v6199
          %v6694 = vunpack.c.h.b16 %v6199
          %v6695 = vunpack.c.l.b16 %v6200
          %v6696 = vunpack.c.h.b16 %v6200
          %v6697 = vunpack.c.l.b16 %v6201
          %v6698 = vunpack.c.h.b16 %v6201
          %v6699 = vunpack.c.l.b16 %v6202
          %v6700 = vunpack.c.h.b16 %v6202
          %v6701 = vunpack.c.l.b16 %v6203
          %v6702 = vunpack.c.h.b16 %v6203
          %v6703 = vunpack.c.l.b16 %v6204
          %v6704 = vunpack.c.h.b16 %v6204
          %v6705 = vunpack.c.l.b16 %v6205
          %v6706 = vunpack.c.h.b16 %v6205
          %v6707 = vunpack.c.l.b16 %v6206
          %v6708 = vunpack.c.h.b16 %v6206
          %v6709 = vunpack.c.l.b16 %v6207
          %v6710 = vunpack.c.h.b16 %v6207
          %v6711 = vunpack.c.l.b16 %v6208
          %v6712 = vunpack.c.h.b16 %v6208
          %v6713 = vunpack.c.l.b16 %v6209
          %v6714 = vunpack.c.h.b16 %v6209
          %v6715 = vunpack.c.l.b16 %v6210
          %v6716 = vunpack.c.h.b16 %v6210
          %v6717 = vunpack.c.l.b16 %v6211
          %v6718 = vunpack.c.h.b16 %v6211
          %v6719 = vunpack.c.l.b16 %v6212
          %v6720 = vunpack.c.h.b16 %v6212
          %v6721 = vunpack.c.l.b16 %v6213
          %v6722 = vunpack.c.h.b16 %v6213
          %v6723 = vunpack.c.l.b16 %v6214
          %v6724 = vunpack.c.h.b16 %v6214
          %v6725 = vunpack.c.l.b16 %v6215
          %v6726 = vunpack.c.h.b16 %v6215
          %v6727 = vunpack.c.l.b16 %v6216
          %v6728 = vunpack.c.h.b16 %v6216
          %v6729 = vunpack.c.l.b16 %v6217
          %v6730 = vunpack.c.h.b16 %v6217
          %v6731 = vunpack.c.l.b16 %v6218
          %v6732 = vunpack.c.h.b16 %v6218
          %v6733 = vunpack.c.l.b16 %v6219
          %v6734 = vunpack.c.h.b16 %v6219
          %v6735 = vunpack.c.l.b16 %v6220
          %v6736 = vunpack.c.h.b16 %v6220
          %v6737 = vunpack.c.l.b16 %v6221
          %v6738 = vunpack.c.h.b16 %v6221
          %v6739 = vunpack.c.l.b16 %v6222
          %v6740 = vunpack.c.h.b16 %v6222
          %v6741 = vunpack.c.l.b16 %v6223
          %v6742 = vunpack.c.h.b16 %v6223
          %v6743 = vunpack.c.l.b16 %v6224
          %v6744 = vunpack.c.h.b16 %v6224
          %v6745 = vunpack.c.l.b16 %v6225
          %v6746 = vunpack.c.h.b16 %v6225
          %v6747 = vunpack.c.l.b16 %v6226
          %v6748 = vunpack.c.h.b16 %v6226
          %v6749 = vunpack.c.l.b16 %v6227
          %v6750 = vunpack.c.h.b16 %v6227
          %v6751 = vunpack.c.l.b16 %v6228
          %v6752 = vunpack.c.h.b16 %v6228
          %v6753 = vunpack.c.l.b16 %v6229
          %v6754 = vunpack.c.h.b16 %v6229
          %v6755 = vunpack.c.l.b16 %v6230
          %v6756 = vunpack.c.h.b16 %v6230
          %v6757 = vunpack.c.l.b16 %v6231
          %v6758 = vunpack.c.h.b16 %v6231
          %v6759 = vunpack.c.l.b16 %v6232
          %v6760 = vunpack.c.h.b16 %v6232
          %v6761 = vunpack.c.l.b16 %v6233
          %v6762 = vunpack.c.h.b16 %v6233
          %v6763 = vunpack.c.l.b16 %v6234
          %v6764 = vunpack.c.h.b16 %v6234
          %v6765 = vunpack.c.l.b16 %v6235
          %v6766 = vunpack.c.h.b16 %v6235
          %v6767 = vunpack.c.l.b16 %v6236
          %v6768 = vunpack.c.h.b16 %v6236
          %v6769 = vunpack.c.l.b16 %v6237
          %v6770 = vunpack.c.h.b16 %v6237
          %v6771 = vunpack.c.l.b16 %v6238
          %v6772 = vunpack.c.h.b16 %v6238
          %v6773 = vunpack.c.l.b16 %v6239
          %v6774 = vunpack.c.h.b16 %v6239
          %v6775 = vunpack.c.l.b16 %v6240
          %v6776 = vunpack.c.h.b16 %v6240
          %v6777 = vunpack.c.l.b16 %v6241
          %v6778 = vunpack.c.h.b16 %v6241
          %v6779 = vunpack.c.l.b16 %v6242
          %v6780 = vunpack.c.h.b16 %v6242
          %v6781 = vunpack.c.l.b16 %v6243
          %v6782 = vunpack.c.h.b16 %v6243
          %v6783 = vunpack.c.l.b16 %v6244
          %v6784 = vunpack.c.h.b16 %v6244
          %v6785 = vunpack.c.l.b16 %v6245
          %v6786 = vunpack.c.h.b16 %v6245
          %v6787 = vunpack.c.l.b16 %v6246
          %v6788 = vunpack.c.h.b16 %v6246
          %v6789 = vunpack.c.l.b16 %v6247
          %v6790 = vunpack.c.h.b16 %v6247
          %v6791 = vunpack.c.l.b16 %v6248
          %v6792 = vunpack.c.h.b16 %v6248
          %v6793 = vunpack.c.l.b16 %v6249
          %v6794 = vunpack.c.h.b16 %v6249
          %v6795 = vunpack.c.l.b16 %v6250
          %v6796 = vunpack.c.h.b16 %v6250
          %v6797 = vunpack.c.l.b16 %v6251
          %v6798 = vunpack.c.h.b16 %v6251
          %v6799 = vunpack.c.l.b16 %v6252
          %v6800 = vunpack.c.h.b16 %v6252
          %v6801 = vunpack.c.l.b16 %v6253
          %v6802 = vunpack.c.h.b16 %v6253
          %v6803 = vunpack.c.l.b16 %v6254
          %v6804 = vunpack.c.h.b16 %v6254
          %v6805 = vunpack.c.l.b16 %v6255
          %v6806 = vunpack.c.h.b16 %v6255
          %v6807 = vunpack.c.l.b16 %v6256
          %v6808 = vunpack.c.h.b16 %v6256
          %v6809 = vunpack.c.l.b16 %v6257
          %v6810 = vunpack.c.h.b16 %v6257
          %v6811 = vunpack.c.l.b16 %v6258
          %v6812 = vunpack.c.h.b16 %v6258
          %v6813 = vunpack.c.l.b16 %v6259
          %v6814 = vunpack.c.h.b16 %v6259
          %v6815 = vunpack.c.l.b16 %v6260
          %v6816 = vunpack.c.h.b16 %v6260
          %v6817 = vunpack.c.l.b16 %v6261
          %v6818 = vunpack.c.h.b16 %v6261
          %v6819 = vunpack.c.l.b16 %v6262
          %v6820 = vunpack.c.h.b16 %v6262
          %v6821 = vunpack.c.l.b16 %v6263
          %v6822 = vunpack.c.h.b16 %v6263
          %v6823 = vunpack.c.l.b16 %v6264
          %v6824 = vunpack.c.h.b16 %v6264
          %v6825 = vunpack.c.l.b16 %v6265
          %v6826 = vunpack.c.h.b16 %v6265
          %v6827 = vunpack.c.l.b16 %v6266
          %v6828 = vunpack.c.h.b16 %v6266
          %v6829 = vunpack.c.l.b16 %v6267
          %v6830 = vunpack.c.h.b16 %v6267
          %v6831 = vunpack.c.l.b16 %v6268
          %v6832 = vunpack.c.h.b16 %v6268
          %v6833 = vunpack.c.l.b16 %v6269
          %v6834 = vunpack.c.h.b16 %v6269
          %v6835 = vunpack.c.l.b16 %v6270
          %v6836 = vunpack.c.h.b16 %v6270
          %v6837 = vunpack.c.l.b16 %v6271
          %v6838 = vunpack.c.h.b16 %v6271
          %v6839 = vunpack.c.l.b16 %v6272
          %v6840 = vunpack.c.h.b16 %v6272
          %v6841 = vunpack.c.l.b16 %v6273
          %v6842 = vunpack.c.h.b16 %v6273
          %v6843 = vunpack.c.l.b16 %v6274
          %v6844 = vunpack.c.h.b16 %v6274
          %v6845 = vunpack.c.l.b16 %v6275
          %v6846 = vunpack.c.h.b16 %v6275
          %v6847 = vunpack.c.l.b16 %v6276
          %v6848 = vunpack.c.h.b16 %v6276
          %v6849 = vunpack.c.l.b16 %v6277
          %v6850 = vunpack.c.h.b16 %v6277
          %v6851 = vunpack.c.l.b16 %v6278
          %v6852 = vunpack.c.h.b16 %v6278
          %v6853 = vunpack.c.l.b16 %v6279
          %v6854 = vunpack.c.h.b16 %v6279
          %v6855 = vunpack.c.l.b16 %v6280
          %v6856 = vunpack.c.h.b16 %v6280
          %v6857 = vunpack.c.l.b16 %v6281
          %v6858 = vunpack.c.h.b16 %v6281
          %v6859 = vunpack.c.l.b16 %v6282
          %v6860 = vunpack.c.h.b16 %v6282
          %v6861 = vunpack.c.l.b16 %v6283
          %v6862 = vunpack.c.h.b16 %v6283
          %v6863 = vunpack.c.l.b16 %v6284
          %v6864 = vunpack.c.h.b16 %v6284
          %v6865 = vunpack.c.l.b16 %v6285
          %v6866 = vunpack.c.h.b16 %v6285
          %v6867 = vunpack.c.l.b16 %v6286
          %v6868 = vunpack.c.h.b16 %v6286
          %v6869 = vunpack.c.l.b16 %v6287
          %v6870 = vunpack.c.h.b16 %v6287
          %v6871 = vunpack.c.l.b16 %v6288
          %v6872 = vunpack.c.h.b16 %v6288
          %v6873 = vunpack.c.l.b16 %v6289
          %v6874 = vunpack.c.h.b16 %v6289
          %v6875 = vunpack.c.l.b16 %v6290
          %v6876 = vunpack.c.h.b16 %v6290
          %v6877 = vpack.c.b16 %v6577, %v6557
          %v6878 = vpack.c.b16 %v6578, %v6558
          %v6879 = vpack.c.b16 %v6579, %v6559
          %v6880 = vpack.c.b16 %v6580, %v6560
          %v6881 = vpack.c.b16 %v6581, %v6561
          %v6882 = vpack.c.b16 %v6582, %v6562
          %v6883 = vpack.c.b16 %v6583, %v6563
          %v6884 = vpack.c.b16 %v6584, %v6564
          %v6885 = vpack.c.b16 %v6585, %v6565
          %v6886 = vpack.c.b16 %v6586, %v6566
          %v6887 = vpack.c.b16 %v6587, %v6567
          %v6888 = vpack.c.b16 %v6588, %v6568
          %v6889 = vpack.c.b16 %v6589, %v6569
          %v6890 = vpack.c.b16 %v6590, %v6570
          %v6891 = vpack.c.b16 %v6591, %v6571
          %v6892 = vpack.c.b16 %v6592, %v6572
          %v6893 = vpack.c.b16 %v6593, %v6573
          %v6894 = vpack.c.b16 %v6594, %v6574
          %v6895 = vpack.c.b16 %v6595, %v6575
          %v6896 = vpack.c.b16 %v6596, %v6576
          %v6897 = vpack.c.b16 %v6617, %v6597
          %v6898 = vpack.c.b16 %v6618, %v6598
          %v6899 = vpack.c.b16 %v6619, %v6599
          %v6900 = vpack.c.b16 %v6620, %v6600
          %v6901 = vpack.c.b16 %v6621, %v6601
          %v6902 = vpack.c.b16 %v6622, %v6602
          %v6903 = vpack.c.b16 %v6623, %v6603
          %v6904 = vpack.c.b16 %v6624, %v6604
          %v6905 = vpack.c.b16 %v6625, %v6605
          %v6906 = vpack.c.b16 %v6626, %v6606
          %v6907 = vpack.c.b16 %v6627, %v6607
          %v6908 = vpack.c.b16 %v6628, %v6608
          %v6909 = vpack.c.b16 %v6629, %v6609
          %v6910 = vpack.c.b16 %v6630, %v6610
          %v6911 = vpack.c.b16 %v6631, %v6611
          %v6912 = vpack.c.b16 %v6632, %v6612
          %v6913 = vpack.c.b16 %v6633, %v6613
          %v6914 = vpack.c.b16 %v6634, %v6614
          %v6915 = vpack.c.b16 %v6635, %v6615
          %v6916 = vpack.c.b16 %v6636, %v6616
          %v6917 = vpack.c.b16 %v6657, %v6637
          %v6918 = vpack.c.b16 %v6658, %v6638
          %v6919 = vpack.c.b16 %v6659, %v6639
          %v6920 = vpack.c.b16 %v6660, %v6640
          %v6921 = vpack.c.b16 %v6661, %v6641
          %v6922 = vpack.c.b16 %v6662, %v6642
          %v6923 = vpack.c.b16 %v6663, %v6643
          %v6924 = vpack.c.b16 %v6664, %v6644
          %v6925 = vpack.c.b16 %v6665, %v6645
          %v6926 = vpack.c.b16 %v6666, %v6646
          %v6927 = vpack.c.b16 %v6667, %v6647
          %v6928 = vpack.c.b16 %v6668, %v6648
          %v6929 = vpack.c.b16 %v6669, %v6649
          %v6930 = vpack.c.b16 %v6670, %v6650
          %v6931 = vpack.c.b16 %v6671, %v6651
          %v6932 = vpack.c.b16 %v6672, %v6652
          %v6933 = vpack.c.b16 %v6673, %v6653
          %v6934 = vpack.c.b16 %v6674, %v6654
          %v6935 = vpack.c.b16 %v6675, %v6655
          %v6936 = vpack.c.b16 %v6676, %v6656
          %v6937 = vpack.c.b16 %v6697, %v6677
          %v6938 = vpack.c.b16 %v6698, %v6678
          %v6939 = vpack.c.b16 %v6699, %v6679
          %v6940 = vpack.c.b16 %v6700, %v6680
          %v6941 = vpack.c.b16 %v6701, %v6681
          %v6942 = vpack.c.b16 %v6702, %v6682
          %v6943 = vpack.c.b16 %v6703, %v6683
          %v6944 = vpack.c.b16 %v6704, %v6684
          %v6945 = vpack.c.b16 %v6705, %v6685
          %v6946 = vpack.c.b16 %v6706, %v6686
          %v6947 = vpack.c.b16 %v6707, %v6687
          %v6948 = vpack.c.b16 %v6708, %v6688
          %v6949 = vpack.c.b16 %v6709, %v6689
          %v6950 = vpack.c.b16 %v6710, %v6690
          %v6951 = vpack.c.b16 %v6711, %v6691
          %v6952 = vpack.c.b16 %v6712, %v6692
          %v6953 = vpack.c.b16 %v6713, %v6693
          %v6954 = vpack.c.b16 %v6714, %v6694
          %v6955 = vpack.c.b16 %v6715, %v6695
          %v6956 = vpack.c.b16 %v6716, %v6696
          %v6957 = vpack.c.b16 %v6737, %v6717
          %v6958 = vpack.c.b16 %v6738, %v6718
          %v6959 = vpack.c.b16 %v6739, %v6719
          %v6960 = vpack.c.b16 %v6740, %v6720
          %v6961 = vpack.c.b16 %v6741, %v6721
          %v6962 = vpack.c.b16 %v6742, %v6722
          %v6963 = vpack.c.b16 %v6743, %v6723
          %v6964 = vpack.c.b16 %v6744, %v6724
          %v6965 = vpack.c.b16 %v6745, %v6725
          %v6966 = vpack.c.b16 %v6746, %v6726
          %v6967 = vpack.c.b16 %v6747, %v6727
          %v6968 = vpack.c.b16 %v6748, %v6728
          %v6969 = vpack.c.b16 %v6749, %v6729
          %v6970 = vpack.c.b16 %v6750, %v6730
          %v6971 = vpack.c.b16 %v6751, %v6731
          %v6972 = vpack.c.b16 %v6752, %v6732
          %v6973 = vpack.c.b16 %v6753, %v6733
          %v6974 = vpack.c.b16 %v6754, %v6734
          %v6975 = vpack.c.b16 %v6755, %v6735
          %v6976 = vpack.c.b16 %v6756, %v6736
          %v6977 = vpack.c.b16 %v6777, %v6757
          %v6978 = vpack.c.b16 %v6778, %v6758
          %v6979 = vpack.c.b16 %v6779, %v6759
          %v6980 = vpack.c.b16 %v6780, %v6760
          %v6981 = vpack.c.b16 %v6781, %v6761
          %v6982 = vpack.c.b16 %v6782, %v6762
          %v6983 = vpack.c.b16 %v6783, %v6763
          %v6984 = vpack.c.b16 %v6784, %v6764
          %v6985 = vpack.c.b16 %v6785, %v6765
          %v6986 = vpack.c.b16 %v6786, %v6766
          %v6987 = vpack.c.b16 %v6787, %v6767
          %v6988 = vpack.c.b16 %v6788, %v6768
          %v6989 = vpack.c.b16 %v6789, %v6769
          %v6990 = vpack.c.b16 %v6790, %v6770
          %v6991 = vpack.c.b16 %v6791, %v6771
          %v6992 = vpack.c.b16 %v6792, %v6772
          %v6993 = vpack.c.b16 %v6793, %v6773
          %v6994 = vpack.c.b16 %v6794, %v6774
          %v6995 = vpack.c.b16 %v6795, %v6775
          %v6996 = vpack.c.b16 %v6796, %v6776
          %v6997 = vpack.c.b16 %v6817, %v6797
          %v6998 = vpack.c.b16 %v6818, %v6798
          %v6999 = vpack.c.b16 %v6819, %v6799
          %v7000 = vpack.c.b16 %v6820, %v6800
          %v7001 = vpack.c.b16 %v6821, %v6801
          %v7002 = vpack.c.b16 %v6822, %v6802
          %v7003 = vpack.c.b16 %v6823, %v6803
          %v7004 = vpack.c.b16 %v6824, %v6804
          %v7005 = vpack.c.b16 %v6825, %v6805
          %v7006 = vpack.c.b16 %v6826, %v6806
          %v7007 = vpack.c.b16 %v6827, %v6807
          %v7008 = vpack.c.b16 %v6828, %v6808
          %v7009 = vpack.c.b16 %v6829, %v6809
          %v7010 = vpack.c.b16 %v6830, %v6810
          %v7011 = vpack.c.b16 %v6831, %v6811
          %v7012 = vpack.c.b16 %v6832, %v6812
          %v7013 = vpack.c.b16 %v6833, %v6813
          %v7014 = vpack.c.b16 %v6834, %v6814
          %v7015 = vpack.c.b16 %v6835, %v6815
          %v7016 = vpack.c.b16 %v6836, %v6816
          %v7017 = vpack.c.b16 %v6857, %v6837
          %v7018 = vpack.c.b16 %v6858, %v6838
          %v7019 = vpack.c.b16 %v6859, %v6839
          %v7020 = vpack.c.b16 %v6860, %v6840
          %v7021 = vpack.c.b16 %v6861, %v6841
          %v7022 = vpack.c.b16 %v6862, %v6842
          %v7023 = vpack.c.b16 %v6863, %v6843
          %v7024 = vpack.c.b16 %v6864, %v6844
          %v7025 = vpack.c.b16 %v6865, %v6845
          %v7026 = vpack.c.b16 %v6866, %v6846
          %v7027 = vpack.c.b16 %v6867, %v6847
          %v7028 = vpack.c.b16 %v6868, %v6848
          %v7029 = vpack.c.b16 %v6869, %v6849
          %v7030 = vpack.c.b16 %v6870, %v6850
          %v7031 = vpack.c.b16 %v6871, %v6851
          %v7032 = vpack.c.b16 %v6872, %v6852
          %v7033 = vpack.c.b16 %v6873, %v6853
          %v7034 = vpack.c.b16 %v6874, %v6854
          %v7035 = vpack.c.b16 %v6875, %v6855
          %v7036 = vpack.c.b16 %v6876, %v6856
          %7197 = vmatprep.subr.bf16.mxu0 %v6878
          %7198 = vmatpush1.bf16.msra.mxu0 %v6877
          %7199 = vmatprep.subr.bf16.mxu0 %v6898
          %7200 = vmatpush1.bf16.msra.mxu0 %v6897
          %7201 = vmatprep.subr.bf16.mxu0 %v6918
          %7202 = vmatpush1.bf16.msra.mxu0 %v6917
          %7203 = vmatprep.subr.bf16.mxu0 %v6938
          %7204 = vmatpush1.bf16.msra.mxu0 %v6937
          %7205 = vmatprep.subr.bf16.mxu0 %v6958
          %7206 = vmatpush1.bf16.msra.mxu0 %v6957
          %7207 = vmatprep.subr.bf16.mxu0 %v6978
          %7208 = vmatpush1.bf16.msra.mxu0 %v6977
          %7209 = vmatprep.subr.bf16.mxu0 %v6998
          %7210 = vmatpush1.bf16.msra.mxu0 %v6997
          %7211 = vmatprep.subr.bf16.mxu0 %v7018
          %7212 = vmatpush1.bf16.msra.mxu0 %v7017
          %7213 = vmatprep.subr.bf16.mxu0 0
          %7214 = vmatpush1.bf16.msra.mxu0 0
          %7215 = vmatprep.subr.bf16.mxu0 0
          %7216 = vmatpush1.bf16.msra.mxu0 0
          %7217 = vmatprep.subr.bf16.mxu0 0
          %7218 = vmatpush1.bf16.msra.mxu0 0
          %7219 = vmatprep.subr.bf16.mxu0 0
          %7220 = vmatpush1.bf16.msra.mxu0 0
          %7221 = vmatprep.subr.bf16.mxu0 0
          %7222 = vmatpush1.bf16.msra.mxu0 0
          %7223 = vmatprep.subr.bf16.mxu0 0
          %7224 = vmatpush1.bf16.msra.mxu0 0
          %7225 = vmatprep.subr.bf16.mxu0 0
          %7226 = vmatpush1.bf16.msra.mxu0 0
          %7227 = vmatprep.subr.bf16.mxu0 0
          %7228 = vmatpush1.bf16.msra.mxu0 0
          %7229 = vmatprep.mubr.bf16.mxu0 0
          %7230 = vmatmul.mubr.bf16.gmra.mrb[0].mxu0 %v6130
          %v7231 = vpop.f32.mrb[0].mxu0
          %v7232 = vadd.f32 %v6300, %v7231
          %v7233 = vpop.f32.mrb[0].mxu0
          %v7234 = vadd.f32 %v6304, %v7233
          %v7235 = vpop.f32.mrb[0].mxu0
          %v7236 = vpop.f32.mrb[0].mxu0
          %7237 = vdwg.mxu0
          %7238 = vmatprep.subr.bf16.mxu0 %v6880
          %7239 = vmatpush1.bf16.msra.mxu0 %v6879
          %7240 = vmatprep.subr.bf16.mxu0 %v6900
          %7241 = vmatpush1.bf16.msra.mxu0 %v6899
          %7242 = vmatprep.subr.bf16.mxu0 %v6920
          %7243 = vmatpush1.bf16.msra.mxu0 %v6919
          %7244 = vmatprep.subr.bf16.mxu0 %v6940
          %7245 = vmatpush1.bf16.msra.mxu0 %v6939
          %7246 = vmatprep.subr.bf16.mxu0 %v6960
          %7247 = vmatpush1.bf16.msra.mxu0 %v6959
          %7248 = vmatprep.subr.bf16.mxu0 %v6980
          %7249 = vmatpush1.bf16.msra.mxu0 %v6979
          %7250 = vmatprep.subr.bf16.mxu0 %v7000
          %7251 = vmatpush1.bf16.msra.mxu0 %v6999
          %7252 = vmatprep.subr.bf16.mxu0 %v7020
          %7253 = vmatpush1.bf16.msra.mxu0 %v7019
          %7254 = vmatprep.subr.bf16.mxu0 0
          %7255 = vmatpush1.bf16.msra.mxu0 0
          %7256 = vmatprep.subr.bf16.mxu0 0
          %7257 = vmatpush1.bf16.msra.mxu0 0
          %7258 = vmatprep.subr.bf16.mxu0 0
          %7259 = vmatpush1.bf16.msra.mxu0 0
          %7260 = vmatprep.subr.bf16.mxu0 0
          %7261 = vmatpush1.bf16.msra.mxu0 0
          %7262 = vmatprep.subr.bf16.mxu0 0
          %7263 = vmatpush1.bf16.msra.mxu0 0
          %7264 = vmatprep.subr.bf16.mxu0 0
          %7265 = vmatpush1.bf16.msra.mxu0 0
          %7266 = vmatprep.subr.bf16.mxu0 0
          %7267 = vmatpush1.bf16.msra.mxu0 0
          %7268 = vmatprep.subr.bf16.mxu0 0
          %7269 = vmatpush1.bf16.msra.mxu0 0
          %7270 = vmatprep.mubr.bf16.mxu0 0
          %7271 = vmatmul.mubr.bf16.gmra.mrb[0].mxu0 %v6130
          %v7272 = vpop.f32.mrb[0].mxu0
          %v7273 = vadd.f32 %v6308, %v7272
          %v7274 = vpop.f32.mrb[0].mxu0
          %v7275 = vadd.f32 %v6312, %v7274
          %v7276 = vpop.f32.mrb[0].mxu0
          %v7277 = vpop.f32.mrb[0].mxu0
          %7278 = vdwg.mxu0
          %7279 = vmatprep.subr.bf16.mxu0 %v6882
          %7280 = vmatpush1.bf16.msra.mxu0 %v6881
          %7281 = vmatprep.subr.bf16.mxu0 %v6902
          %7282 = vmatpush1.bf16.msra.mxu0 %v6901
          %7283 = vmatprep.subr.bf16.mxu0 %v6922
          %7284 = vmatpush1.bf16.msra.mxu0 %v6921
          %7285 = vmatprep.subr.bf16.mxu0 %v6942
          %7286 = vmatpush1.bf16.msra.mxu0 %v6941
          %7287 = vmatprep.subr.bf16.mxu0 %v6962
          %7288 = vmatpush1.bf16.msra.mxu0 %v6961
          %7289 = vmatprep.subr.bf16.mxu0 %v6982
          %7290 = vmatpush1.bf16.msra.mxu0 %v6981
          %7291 = vmatprep.subr.bf16.mxu0 %v7002
          %7292 = vmatpush1.bf16.msra.mxu0 %v7001
          %7293 = vmatprep.subr.bf16.mxu0 %v7022
          %7294 = vmatpush1.bf16.msra.mxu0 %v7021
          %7295 = vmatprep.subr.bf16.mxu0 0
          %7296 = vmatpush1.bf16.msra.mxu0 0
          %7297 = vmatprep.subr.bf16.mxu0 0
          %7298 = vmatpush1.bf16.msra.mxu0 0
          %7299 = vmatprep.subr.bf16.mxu0 0
          %7300 = vmatpush1.bf16.msra.mxu0 0
          %7301 = vmatprep.subr.bf16.mxu0 0
          %7302 = vmatpush1.bf16.msra.mxu0 0
          %7303 = vmatprep.subr.bf16.mxu0 0
          %7304 = vmatpush1.bf16.msra.mxu0 0
          %7305 = vmatprep.subr.bf16.mxu0 0
          %7306 = vmatpush1.bf16.msra.mxu0 0
          %7307 = vmatprep.subr.bf16.mxu0 0
          %7308 = vmatpush1.bf16.msra.mxu0 0
          %7309 = vmatprep.subr.bf16.mxu0 0
          %7310 = vmatpush1.bf16.msra.mxu0 0
          %7311 = vmatprep.mubr.bf16.mxu0 0
          %7312 = vmatmul.mubr.bf16.gmra.mrb[0].mxu0 %v6130
          %v7313 = vpop.f32.mrb[0].mxu0
          %v7314 = vadd.f32 %v6316, %v7313
          %v7315 = vpop.f32.mrb[0].mxu0
          %v7316 = vadd.f32 %v6320, %v7315
          %v7317 = vpop.f32.mrb[0].mxu0
          %v7318 = vpop.f32.mrb[0].mxu0
          %7319 = vdwg.mxu0
          %7320 = vmatprep.subr.bf16.mxu0 %v6884
          %7321 = vmatpush1.bf16.msra.mxu0 %v6883
          %7322 = vmatprep.subr.bf16.mxu0 %v6904
          %7323 = vmatpush1.bf16.msra.mxu0 %v6903
          %7324 = vmatprep.subr.bf16.mxu0 %v6924
          %7325 = vmatpush1.bf16.msra.mxu0 %v6923
          %7326 = vmatprep.subr.bf16.mxu0 %v6944
          %7327 = vmatpush1.bf16.msra.mxu0 %v6943
          %7328 = vmatprep.subr.bf16.mxu0 %v6964
          %7329 = vmatpush1.bf16.msra.mxu0 %v6963
          %7330 = vmatprep.subr.bf16.mxu0 %v6984
          %7331 = vmatpush1.bf16.msra.mxu0 %v6983
          %7332 = vmatprep.subr.bf16.mxu0 %v7004
          %7333 = vmatpush1.bf16.msra.mxu0 %v7003
          %7334 = vmatprep.subr.bf16.mxu0 %v7024
          %7335 = vmatpush1.bf16.msra.mxu0 %v7023
          %7336 = vmatprep.subr.bf16.mxu0 0
          %7337 = vmatpush1.bf16.msra.mxu0 0
          %7338 = vmatprep.subr.bf16.mxu0 0
          %7339 = vmatpush1.bf16.msra.mxu0 0
          %7340 = vmatprep.subr.bf16.mxu0 0
          %7341 = vmatpush1.bf16.msra.mxu0 0
          %7342 = vmatprep.subr.bf16.mxu0 0
          %7343 = vmatpush1.bf16.msra.mxu0 0
          %7344 = vmatprep.subr.bf16.mxu0 0
          %7345 = vmatpush1.bf16.msra.mxu0 0
          %7346 = vmatprep.subr.bf16.mxu0 0
          %7347 = vmatpush1.bf16.msra.mxu0 0
          %7348 = vmatprep.subr.bf16.mxu0 0
          %7349 = vmatpush1.bf16.msra.mxu0 0
          %7350 = vmatprep.subr.bf16.mxu0 0
          %7351 = vmatpush1.bf16.msra.mxu0 0
          %7352 = vmatprep.mubr.bf16.mxu0 0
          %7353 = vmatmul.mubr.bf16.gmra.mrb[0].mxu0 %v6130
          %v7354 = vpop.f32.mrb[0].mxu0
          %v7355 = vadd.f32 %v6324, %v7354
          %v7356 = vpop.f32.mrb[0].mxu0
          %v7357 = vadd.f32 %v6328, %v7356
          %v7358 = vpop.f32.mrb[0].mxu0
          %v7359 = vpop.f32.mrb[0].mxu0
          %7360 = vdwg.mxu0
          %7361 = vmatprep.subr.bf16.mxu0 %v6886
          %7362 = vmatpush1.bf16.msra.mxu0 %v6885
          %7363 = vmatprep.subr.bf16.mxu0 %v6906
          %7364 = vmatpush1.bf16.msra.mxu0 %v6905
          %7365 = vmatprep.subr.bf16.mxu0 %v6926
          %7366 = vmatpush1.bf16.msra.mxu0 %v6925
          %7367 = vmatprep.subr.bf16.mxu0 %v6946
          %7368 = vmatpush1.bf16.msra.mxu0 %v6945
          %7369 = vmatprep.subr.bf16.mxu0 %v6966
          %7370 = vmatpush1.bf16.msra.mxu0 %v6965
          %7371 = vmatprep.subr.bf16.mxu0 %v6986
          %7372 = vmatpush1.bf16.msra.mxu0 %v6985
          %7373 = vmatprep.subr.bf16.mxu0 %v7006
          %7374 = vmatpush1.bf16.msra.mxu0 %v7005
          %7375 = vmatprep.subr.bf16.mxu0 %v7026
          %7376 = vmatpush1.bf16.msra.mxu0 %v7025
          %7377 = vmatprep.subr.bf16.mxu0 0
          %7378 = vmatpush1.bf16.msra.mxu0 0
          %7379 = vmatprep.subr.bf16.mxu0 0
          %7380 = vmatpush1.bf16.msra.mxu0 0
          %7381 = vmatprep.subr.bf16.mxu0 0
          %7382 = vmatpush1.bf16.msra.mxu0 0
          %7383 = vmatprep.subr.bf16.mxu0 0
          %7384 = vmatpush1.bf16.msra.mxu0 0
          %7385 = vmatprep.subr.bf16.mxu0 0
          %7386 = vmatpush1.bf16.msra.mxu0 0
          %7387 = vmatprep.subr.bf16.mxu0 0
          %7388 = vmatpush1.bf16.msra.mxu0 0
          %7389 = vmatprep.subr.bf16.mxu0 0
          %7390 = vmatpush1.bf16.msra.mxu0 0
          %7391 = vmatprep.subr.bf16.mxu0 0
          %7392 = vmatpush1.bf16.msra.mxu0 0
          %7393 = vmatprep.mubr.bf16.mxu0 0
          %7394 = vmatmul.mubr.bf16.gmra.mrb[0].mxu0 %v6130
          %v7395 = vpop.f32.mrb[0].mxu0
          %v7396 = vadd.f32 %v6332, %v7395
          %v7397 = vpop.f32.mrb[0].mxu0
          %v7398 = vadd.f32 %v6336, %v7397
          %v7399 = vpop.f32.mrb[0].mxu0
          %v7400 = vpop.f32.mrb[0].mxu0
          %7401 = vdwg.mxu0
          %7402 = vmatprep.subr.bf16.mxu0 %v6888
          %7403 = vmatpush1.bf16.msra.mxu0 %v6887
          %7404 = vmatprep.subr.bf16.mxu0 %v6908
          %7405 = vmatpush1.bf16.msra.mxu0 %v6907
          %7406 = vmatprep.subr.bf16.mxu0 %v6928
          %7407 = vmatpush1.bf16.msra.mxu0 %v6927
          %7408 = vmatprep.subr.bf16.mxu0 %v6948
          %7409 = vmatpush1.bf16.msra.mxu0 %v6947
          %7410 = vmatprep.subr.bf16.mxu0 %v6968
          %7411 = vmatpush1.bf16.msra.mxu0 %v6967
          %7412 = vmatprep.subr.bf16.mxu0 %v6988
          %7413 = vmatpush1.bf16.msra.mxu0 %v6987
          %7414 = vmatprep.subr.bf16.mxu0 %v7008
          %7415 = vmatpush1.bf16.msra.mxu0 %v7007
          %7416 = vmatprep.subr.bf16.mxu0 %v7028
          %7417 = vmatpush1.bf16.msra.mxu0 %v7027
          %7418 = vmatprep.subr.bf16.mxu0 0
          %7419 = vmatpush1.bf16.msra.mxu0 0
          %7420 = vmatprep.subr.bf16.mxu0 0
          %7421 = vmatpush1.bf16.msra.mxu0 0
          %7422 = vmatprep.subr.bf16.mxu0 0
          %7423 = vmatpush1.bf16.msra.mxu0 0
          %7424 = vmatprep.subr.bf16.mxu0 0
          %7425 = vmatpush1.bf16.msra.mxu0 0
          %7426 = vmatprep.subr.bf16.mxu0 0
          %7427 = vmatpush1.bf16.msra.mxu0 0
          %7428 = vmatprep.subr.bf16.mxu0 0
          %7429 = vmatpush1.bf16.msra.mxu0 0
          %7430 = vmatprep.subr.bf16.mxu0 0
          %7431 = vmatpush1.bf16.msra.mxu0 0
          %7432 = vmatprep.subr.bf16.mxu0 0
          %7433 = vmatpush1.bf16.msra.mxu0 0
          %7434 = vmatprep.mubr.bf16.mxu0 0
          %7435 = vmatmul.mubr.bf16.gmra.mrb[0].mxu0 %v6130
          %v7436 = vpop.f32.mrb[0].mxu0
          %v7437 = vadd.f32 %v6340, %v7436
          %v7438 = vpop.f32.mrb[0].mxu0
          %v7439 = vadd.f32 %v6344, %v7438
          %v7440 = vpop.f32.mrb[0].mxu0
          %v7441 = vpop.f32.mrb[0].mxu0
          %7442 = vdwg.mxu0
          %7443 = vmatprep.subr.bf16.mxu0 %v6890
          %7444 = vmatpush1.bf16.msra.mxu0 %v6889
          %7445 = vmatprep.subr.bf16.mxu0 %v6910
          %7446 = vmatpush1.bf16.msra.mxu0 %v6909
          %7447 = vmatprep.subr.bf16.mxu0 %v6930
          %7448 = vmatpush1.bf16.msra.mxu0 %v6929
          %7449 = vmatprep.subr.bf16.mxu0 %v6950
          %7450 = vmatpush1.bf16.msra.mxu0 %v6949
          %7451 = vmatprep.subr.bf16.mxu0 %v6970
          %7452 = vmatpush1.bf16.msra.mxu0 %v6969
          %7453 = vmatprep.subr.bf16.mxu0 %v6990
          %7454 = vmatpush1.bf16.msra.mxu0 %v6989
          %7455 = vmatprep.subr.bf16.mxu0 %v7010
          %7456 = vmatpush1.bf16.msra.mxu0 %v7009
          %7457 = vmatprep.subr.bf16.mxu0 %v7030
          %7458 = vmatpush1.bf16.msra.mxu0 %v7029
          %7459 = vmatprep.subr.bf16.mxu0 0
          %7460 = vmatpush1.bf16.msra.mxu0 0
          %7461 = vmatprep.subr.bf16.mxu0 0
          %7462 = vmatpush1.bf16.msra.mxu0 0
          %7463 = vmatprep.subr.bf16.mxu0 0
          %7464 = vmatpush1.bf16.msra.mxu0 0
          %7465 = vmatprep.subr.bf16.mxu0 0
          %7466 = vmatpush1.bf16.msra.mxu0 0
          %7467 = vmatprep.subr.bf16.mxu0 0
          %7468 = vmatpush1.bf16.msra.mxu0 0
          %7469 = vmatprep.subr.bf16.mxu0 0
          %7470 = vmatpush1.bf16.msra.mxu0 0
          %7471 = vmatprep.subr.bf16.mxu0 0
          %7472 = vmatpush1.bf16.msra.mxu0 0
          %7473 = vmatprep.subr.bf16.mxu0 0
          %7474 = vmatpush1.bf16.msra.mxu0 0
          %7475 = vmatprep.mubr.bf16.mxu0 0
          %7476 = vmatmul.mubr.bf16.gmra.mrb[0].mxu0 %v6130
          %v7477 = vpop.f32.mrb[0].mxu0
          %v7478 = vadd.f32 %v6348, %v7477
          %v7479 = vpop.f32.mrb[0].mxu0
          %v7480 = vadd.f32 %v6352, %v7479
          %v7481 = vpop.f32.mrb[0].mxu0
          %v7482 = vpop.f32.mrb[0].mxu0
          %7483 = vdwg.mxu0
          %7484 = vmatprep.subr.bf16.mxu0 %v6892
          %7485 = vmatpush1.bf16.msra.mxu0 %v6891
          %7486 = vmatprep.subr.bf16.mxu0 %v6912
          %7487 = vmatpush1.bf16.msra.mxu0 %v6911
          %7488 = vmatprep.subr.bf16.mxu0 %v6932
          %7489 = vmatpush1.bf16.msra.mxu0 %v6931
          %7490 = vmatprep.subr.bf16.mxu0 %v6952
          %7491 = vmatpush1.bf16.msra.mxu0 %v6951
          %7492 = vmatprep.subr.bf16.mxu0 %v6972
          %7493 = vmatpush1.bf16.msra.mxu0 %v6971
          %7494 = vmatprep.subr.bf16.mxu0 %v6992
          %7495 = vmatpush1.bf16.msra.mxu0 %v6991
          %7496 = vmatprep.subr.bf16.mxu0 %v7012
          %7497 = vmatpush1.bf16.msra.mxu0 %v7011
          %7498 = vmatprep.subr.bf16.mxu0 %v7032
          %7499 = vmatpush1.bf16.msra.mxu0 %v7031
          %7500 = vmatprep.subr.bf16.mxu0 0
          %7501 = vmatpush1.bf16.msra.mxu0 0
          %7502 = vmatprep.subr.bf16.mxu0 0
          %7503 = vmatpush1.bf16.msra.mxu0 0
          %7504 = vmatprep.subr.bf16.mxu0 0
          %7505 = vmatpush1.bf16.msra.mxu0 0
          %7506 = vmatprep.subr.bf16.mxu0 0
          %7507 = vmatpush1.bf16.msra.mxu0 0
          %7508 = vmatprep.subr.bf16.mxu0 0
          %7509 = vmatpush1.bf16.msra.mxu0 0
          %7510 = vmatprep.subr.bf16.mxu0 0
          %7511 = vmatpush1.bf16.msra.mxu0 0
          %7512 = vmatprep.subr.bf16.mxu0 0
          %7513 = vmatpush1.bf16.msra.mxu0 0
          %7514 = vmatprep.subr.bf16.mxu0 0
          %7515 = vmatpush1.bf16.msra.mxu0 0
          %7516 = vmatprep.mubr.bf16.mxu0 0
          %7517 = vmatmul.mubr.bf16.gmra.mrb[0].mxu0 %v6130
          %v7518 = vpop.f32.mrb[0].mxu0
          %v7519 = vadd.f32 %v6356, %v7518
          %v7520 = vpop.f32.mrb[0].mxu0
          %v7521 = vadd.f32 %v6360, %v7520
          %v7522 = vpop.f32.mrb[0].mxu0
          %v7523 = vpop.f32.mrb[0].mxu0
          %7524 = vdwg.mxu0
          %7525 = vmatprep.subr.bf16.mxu0 %v6894
          %7526 = vmatpush1.bf16.msra.mxu0 %v6893
          %7527 = vmatprep.subr.bf16.mxu0 %v6914
          %7528 = vmatpush1.bf16.msra.mxu0 %v6913
          %7529 = vmatprep.subr.bf16.mxu0 %v6934
          %7530 = vmatpush1.bf16.msra.mxu0 %v6933
          %7531 = vmatprep.subr.bf16.mxu0 %v6954
          %7532 = vmatpush1.bf16.msra.mxu0 %v6953
          %7533 = vmatprep.subr.bf16.mxu0 %v6974
          %7534 = vmatpush1.bf16.msra.mxu0 %v6973
          %7535 = vmatprep.subr.bf16.mxu0 %v6994
          %7536 = vmatpush1.bf16.msra.mxu0 %v6993
          %7537 = vmatprep.subr.bf16.mxu0 %v7014
          %7538 = vmatpush1.bf16.msra.mxu0 %v7013
          %7539 = vmatprep.subr.bf16.mxu0 %v7034
          %7540 = vmatpush1.bf16.msra.mxu0 %v7033
          %7541 = vmatprep.subr.bf16.mxu0 0
          %7542 = vmatpush1.bf16.msra.mxu0 0
          %7543 = vmatprep.subr.bf16.mxu0 0
          %7544 = vmatpush1.bf16.msra.mxu0 0
          %7545 = vmatprep.subr.bf16.mxu0 0
          %7546 = vmatpush1.bf16.msra.mxu0 0
          %7547 = vmatprep.subr.bf16.mxu0 0
          %7548 = vmatpush1.bf16.msra.mxu0 0
          %7549 = vmatprep.subr.bf16.mxu0 0
          %7550 = vmatpush1.bf16.msra.mxu0 0
          %7551 = vmatprep.subr.bf16.mxu0 0
          %7552 = vmatpush1.bf16.msra.mxu0 0
          %7553 = vmatprep.subr.bf16.mxu0 0
          %7554 = vmatpush1.bf16.msra.mxu0 0
          %7555 = vmatprep.subr.bf16.mxu0 0
          %7556 = vmatpush1.bf16.msra.mxu0 0
          %7557 = vmatprep.mubr.bf16.mxu0 0
          %7558 = vmatmul.mubr.bf16.gmra.mrb[0].mxu0 %v6130
          %v7559 = vpop.f32.mrb[0].mxu0
          %v7560 = vadd.f32 %v6364, %v7559
          %v7561 = vpop.f32.mrb[0].mxu0
          %v7562 = vadd.f32 %v6368, %v7561
          %v7563 = vpop.f32.mrb[0].mxu0
          %v7564 = vpop.f32.mrb[0].mxu0
          %7565 = vdwg.mxu0
          %7566 = vmatprep.subr.bf16.mxu0 %v6896
          %7567 = vmatpush1.bf16.msra.mxu0 %v6895
          %7568 = vmatprep.subr.bf16.mxu0 %v6916
          %7569 = vmatpush1.bf16.msra.mxu0 %v6915
          %7570 = vmatprep.subr.bf16.mxu0 %v6936
          %7571 = vmatpush1.bf16.msra.mxu0 %v6935
          %7572 = vmatprep.subr.bf16.mxu0 %v6956
          %7573 = vmatpush1.bf16.msra.mxu0 %v6955
          %7574 = vmatprep.subr.bf16.mxu0 %v6976
          %7575 = vmatpush1.bf16.msra.mxu0 %v6975
          %7576 = vmatprep.subr.bf16.mxu0 %v6996
          %7577 = vmatpush1.bf16.msra.mxu0 %v6995
          %7578 = vmatprep.subr.bf16.mxu0 %v7016
          %7579 = vmatpush1.bf16.msra.mxu0 %v7015
          %7580 = vmatprep.subr.bf16.mxu0 %v7036
          %7581 = vmatpush1.bf16.msra.mxu0 %v7035
          %7582 = vmatprep.subr.bf16.mxu0 0
          %7583 = vmatpush1.bf16.msra.mxu0 0
          %7584 = vmatprep.subr.bf16.mxu0 0
          %7585 = vmatpush1.bf16.msra.mxu0 0
          %7586 = vmatprep.subr.bf16.mxu0 0
          %7587 = vmatpush1.bf16.msra.mxu0 0
          %7588 = vmatprep.subr.bf16.mxu0 0
          %7589 = vmatpush1.bf16.msra.mxu0 0
          %7590 = vmatprep.subr.bf16.mxu0 0
          %7591 = vmatpush1.bf16.msra.mxu0 0
          %7592 = vmatprep.subr.bf16.mxu0 0
          %7593 = vmatpush1.bf16.msra.mxu0 0
          %7594 = vmatprep.subr.bf16.mxu0 0
          %7595 = vmatpush1.bf16.msra.mxu0 0
          %7596 = vmatprep.subr.bf16.mxu0 0
          %7597 = vmatpush1.bf16.msra.mxu0 0
          %7598 = vmatprep.mubr.bf16.mxu0 0
          %7599 = vmatmul.mubr.bf16.gmra.mrb[0].mxu0 %v6130
          %v7600 = vpop.f32.mrb[0].mxu0
          %v7601 = vadd.f32 %v6372, %v7600
          %v7602 = vpop.f32.mrb[0].mxu0
          %v7603 = vadd.f32 %v6376, %v7602
          %v7604 = vpop.f32.mrb[0].mxu0
          %v7605 = vpop.f32.mrb[0].mxu0
          %7606 = vdwg.mxu0
          %v7607 = vmax.f32 %v7232, 0.0
          %v7608 = vmax.f32 %v7234, 0.0
          %v7609 = vmax.f32 %v7273, 0.0
          %v7610 = vmax.f32 %v7275, 0.0
          %v7611 = vmax.f32 %v7314, 0.0
          %v7612 = vmax.f32 %v7316, 0.0
          %v7613 = vmax.f32 %v7355, 0.0
          %v7614 = vmax.f32 %v7357, 0.0
          %v7615 = vmax.f32 %v7396, 0.0
          %v7616 = vmax.f32 %v7398, 0.0
          %v7617 = vmax.f32 %v7437, 0.0
          %v7618 = vmax.f32 %v7439, 0.0
          %v7619 = vmax.f32 %v7478, 0.0
          %v7620 = vmax.f32 %v7480, 0.0
          %v7621 = vmax.f32 %v7519, 0.0
          %v7622 = vmax.f32 %v7521, 0.0
          %v7623 = vmax.f32 %v7560, 0.0
          %v7624 = vmax.f32 %v7562, 0.0
          %v7625 = vmax.f32 %v7601, 0.0
          %v7626 = vmax.f32 %v7603, 0.0
          %v7627 = vpack.c.bf16 %v7607, %v7607
          %v7628 = vpack.c.bf16 %v7608, %v7608
          %v7629 = vpack.c.bf16 %v7609, %v7609
          %v7630 = vpack.c.bf16 %v7610, %v7610
          %v7631 = vpack.c.bf16 %v7611, %v7611
          %v7632 = vpack.c.bf16 %v7612, %v7612
          %v7633 = vpack.c.bf16 %v7613, %v7613
          %v7634 = vpack.c.bf16 %v7614, %v7614
          %v7635 = vpack.c.bf16 %v7615, %v7615
          %v7636 = vpack.c.bf16 %v7616, %v7616
          %v7637 = vpack.c.bf16 %v7617, %v7617
          %v7638 = vpack.c.bf16 %v7618, %v7618
          %v7639 = vpack.c.bf16 %v7619, %v7619
          %v7640 = vpack.c.bf16 %v7620, %v7620
          %v7641 = vpack.c.bf16 %v7621, %v7621
          %v7642 = vpack.c.bf16 %v7622, %v7622
          %v7643 = vpack.c.bf16 %v7623, %v7623
          %v7644 = vpack.c.bf16 %v7624, %v7624
          %v7645 = vpack.c.bf16 %v7625, %v7625
          %v7646 = vpack.c.bf16 %v7626, %v7626
          %v7647 = vld [vmem:[#allocation14] sm:$0xf]
          %v7648 = vld [vmem:[#allocation14 + $0x4] sm:$0xf]
          %v7649 = vld [vmem:[#allocation14 + $0x8] sm:$0xf]
          %v7650 = vld [vmem:[#allocation14 + $0xc] sm:$0xf]
          %v7651 = vld [vmem:[#allocation14 + $0x10] sm:$0xf]
          %v7652 = vld [vmem:[#allocation14 + $0x14] sm:$0xf]
          %v7653 = vld [vmem:[#allocation14 + $0x18] sm:$0xf]
          %v7654 = vld [vmem:[#allocation14 + $0x1c] sm:$0xf]
          %v7655 = vld [vmem:[#allocation14 + $0x20] sm:$0xf]
          %v7656 = vld [vmem:[#allocation14 + $0x24] sm:$0xf]
          %v7657 = vld [vmem:[#allocation14 + $0x28] sm:$0xf]
          %v7658 = vld [vmem:[#allocation14 + $0x2c] sm:$0xf]
          %v7659 = vld [vmem:[#allocation14 + $0x30] sm:$0xf]
          %v7660 = vld [vmem:[#allocation14 + $0x34] sm:$0xf]
          %v7661 = vld [vmem:[#allocation14 + $0x38] sm:$0xf]
          %v7662 = vld [vmem:[#allocation14 + $0x3c] sm:$0xf]
          %v7663 = vld [vmem:[#allocation14 + $0x40] sm:$0xf]
          %v7664 = vld [vmem:[#allocation14 + $0x44] sm:$0xf]
          %v7665 = vld [vmem:[#allocation14 + $0x48] sm:$0xf]
          %v7666 = vld [vmem:[#allocation14 + $0x4c] sm:$0xf]
          %v7667 = vld [vmem:[#allocation14 + $0x50] sm:$0xf]
          %v7668 = vld [vmem:[#allocation14 + $0x54] sm:$0xf]
          %v7669 = vld [vmem:[#allocation14 + $0x58] sm:$0xf]
          %v7670 = vld [vmem:[#allocation14 + $0x5c] sm:$0xf]
          %v7671 = vld [vmem:[#allocation14 + $0x60] sm:$0xf]
          %v7672 = vld [vmem:[#allocation14 + $0x64] sm:$0xf]
          %v7673 = vld [vmem:[#allocation14 + $0x68] sm:$0xf]
          %v7674 = vld [vmem:[#allocation14 + $0x6c] sm:$0xf]
          %v7675 = vld [vmem:[#allocation14 + $0x70] sm:$0xf]
          %v7676 = vld [vmem:[#allocation14 + $0x74] sm:$0xf]
          %v7677 = vld [vmem:[#allocation14 + $0x78] sm:$0xf]
          %v7678 = vld [vmem:[#allocation14 + $0x7c] sm:$0xf]
          %v7679 = vld [vmem:[#allocation14 + $0x80] sm:$0xf]
          %v7680 = vld [vmem:[#allocation14 + $0x84] sm:$0xf]
          %v7681 = vld [vmem:[#allocation14 + $0x88] sm:$0xf]
          %v7682 = vld [vmem:[#allocation14 + $0x8c] sm:$0xf]
          %v7683 = vld [vmem:[#allocation14 + $0x90] sm:$0xf]
          %v7684 = vld [vmem:[#allocation14 + $0x94] sm:$0xf]
          %v7685 = vld [vmem:[#allocation14 + $0x98] sm:$0xf]
          %v7686 = vld [vmem:[#allocation14 + $0x9c] sm:$0xf]
          %v7687 = vld [vmem:[#allocation14 + $0xa0] sm:$0xf]
          %v7688 = vld [vmem:[#allocation14 + $0xa4] sm:$0xf]
          %v7689 = vld [vmem:[#allocation14 + $0xa8] sm:$0xf]
          %v7690 = vld [vmem:[#allocation14 + $0xac] sm:$0xf]
          %v7691 = vld [vmem:[#allocation14 + $0xb0] sm:$0xf]
          %v7692 = vld [vmem:[#allocation14 + $0xb4] sm:$0xf]
          %v7693 = vld [vmem:[#allocation14 + $0xb8] sm:$0xf]
          %v7694 = vld [vmem:[#allocation14 + $0xbc] sm:$0xf]
          %v7695 = vld [vmem:[#allocation14 + $0xc0] sm:$0xf]
          %v7696 = vld [vmem:[#allocation14 + $0xc4] sm:$0xf]
          %v7697 = vld [vmem:[#allocation14 + $0xc8] sm:$0xf]
          %v7698 = vld [vmem:[#allocation14 + $0xcc] sm:$0xf]
          %v7699 = vld [vmem:[#allocation14 + $0xd0] sm:$0xf]
          %v7700 = vld [vmem:[#allocation14 + $0xd4] sm:$0xf]
          %v7701 = vld [vmem:[#allocation14 + $0xd8] sm:$0xf]
          %v7702 = vld [vmem:[#allocation14 + $0xdc] sm:$0xf]
          %v7703 = vld [vmem:[#allocation14 + $0xe0] sm:$0xf]
          %v7704 = vld [vmem:[#allocation14 + $0xe4] sm:$0xf]
          %v7705 = vld [vmem:[#allocation14 + $0xe8] sm:$0xf]
          %v7706 = vld [vmem:[#allocation14 + $0xec] sm:$0xf]
          %v7707 = vld [vmem:[#allocation14 + $0xf0] sm:$0xf]
          %v7708 = vld [vmem:[#allocation14 + $0xf4] sm:$0xf]
          %v7709 = vld [vmem:[#allocation14 + $0xf8] sm:$0xf]
          %v7710 = vld [vmem:[#allocation14 + $0xfc] sm:$0xf]
          %v7711 = vld [vmem:[#allocation14 + $0x100] sm:$0xf]
          %v7712 = vld [vmem:[#allocation14 + $0x104] sm:$0xf]
          %v7713 = vld [vmem:[#allocation14 + $0x108] sm:$0xf]
          %v7714 = vld [vmem:[#allocation14 + $0x10c] sm:$0xf]
          %v7715 = vld [vmem:[#allocation14 + $0x110] sm:$0xf]
          %v7716 = vld [vmem:[#allocation14 + $0x114] sm:$0xf]
          %v7717 = vld [vmem:[#allocation14 + $0x118] sm:$0xf]
          %v7718 = vld [vmem:[#allocation14 + $0x11c] sm:$0xf]
          %v7719 = vld [vmem:[#allocation14 + $0x120] sm:$0xf]
          %v7720 = vld [vmem:[#allocation14 + $0x124] sm:$0xf]
          %v7721 = vld [vmem:[#allocation14 + $0x128] sm:$0xf]
          %v7722 = vld [vmem:[#allocation14 + $0x12c] sm:$0xf]
          %v7723 = vld [vmem:[#allocation14 + $0x130] sm:$0xf]
          %v7724 = vld [vmem:[#allocation14 + $0x134] sm:$0xf]
          %v7725 = vld [vmem:[#allocation14 + $0x138] sm:$0xf]
          %v7726 = vld [vmem:[#allocation14 + $0x13c] sm:$0xf]
          %v7727 = vld [vmem:[#allocation14 + $0x140] sm:$0xf]
          %v7728 = vld [vmem:[#allocation14 + $0x144] sm:$0xf]
          %v7729 = vld [vmem:[#allocation14 + $0x148] sm:$0xf]
          %v7730 = vld [vmem:[#allocation14 + $0x14c] sm:$0xf]
          %v7731 = vld [vmem:[#allocation14 + $0x150] sm:$0xf]
          %v7732 = vld [vmem:[#allocation14 + $0x154] sm:$0xf]
          %v7733 = vld [vmem:[#allocation14 + $0x158] sm:$0xf]
          %v7734 = vld [vmem:[#allocation14 + $0x15c] sm:$0xf]
          %v7735 = vld [vmem:[#allocation14 + $0x160] sm:$0xf]
          %v7736 = vld [vmem:[#allocation14 + $0x164] sm:$0xf]
          %v7737 = vld [vmem:[#allocation14 + $0x168] sm:$0xf]
          %v7738 = vld [vmem:[#allocation14 + $0x16c] sm:$0xf]
          %v7739 = vld [vmem:[#allocation14 + $0x170] sm:$0xf]
          %v7740 = vld [vmem:[#allocation14 + $0x174] sm:$0xf]
          %v7741 = vld [vmem:[#allocation14 + $0x178] sm:$0xf]
          %v7742 = vld [vmem:[#allocation14 + $0x17c] sm:$0xf]
          %v7743 = vld [vmem:[#allocation14 + $0x180] sm:$0xf]
          %v7744 = vld [vmem:[#allocation14 + $0x184] sm:$0xf]
          %v7745 = vld [vmem:[#allocation14 + $0x188] sm:$0xf]
          %v7746 = vld [vmem:[#allocation14 + $0x18c] sm:$0xf]
          %v7747 = vld [vmem:[#allocation14 + $0x190] sm:$0xf]
          %v7748 = vld [vmem:[#allocation14 + $0x194] sm:$0xf]
          %v7749 = vld [vmem:[#allocation14 + $0x198] sm:$0xf]
          %v7750 = vld [vmem:[#allocation14 + $0x19c] sm:$0xf]
          %v7751 = vld [vmem:[#allocation14 + $0x1a0] sm:$0xf]
          %v7752 = vld [vmem:[#allocation14 + $0x1a4] sm:$0xf]
          %v7753 = vld [vmem:[#allocation14 + $0x1a8] sm:$0xf]
          %v7754 = vld [vmem:[#allocation14 + $0x1ac] sm:$0xf]
          %v7755 = vld [vmem:[#allocation14 + $0x1b0] sm:$0xf]
          %v7756 = vld [vmem:[#allocation14 + $0x1b4] sm:$0xf]
          %v7757 = vld [vmem:[#allocation14 + $0x1b8] sm:$0xf]
          %v7758 = vld [vmem:[#allocation14 + $0x1bc] sm:$0xf]
          %v7759 = vld [vmem:[#allocation14 + $0x1c0] sm:$0xf]
          %v7760 = vld [vmem:[#allocation14 + $0x1c4] sm:$0xf]
          %v7761 = vld [vmem:[#allocation14 + $0x1c8] sm:$0xf]
          %v7762 = vld [vmem:[#allocation14 + $0x1cc] sm:$0xf]
          %v7763 = vld [vmem:[#allocation14 + $0x1d0] sm:$0xf]
          %v7764 = vld [vmem:[#allocation14 + $0x1d4] sm:$0xf]
          %v7765 = vld [vmem:[#allocation14 + $0x1d8] sm:$0xf]
          %v7766 = vld [vmem:[#allocation14 + $0x1dc] sm:$0xf]
          %v7767 = vld [vmem:[#allocation14 + $0x1e0] sm:$0xf]
          %v7768 = vld [vmem:[#allocation14 + $0x1e4] sm:$0xf]
          %v7769 = vld [vmem:[#allocation14 + $0x1e8] sm:$0xf]
          %v7770 = vld [vmem:[#allocation14 + $0x1ec] sm:$0xf]
          %v7771 = vld [vmem:[#allocation14 + $0x1f0] sm:$0xf]
          %v7772 = vld [vmem:[#allocation14 + $0x1f4] sm:$0xf]
          %v7773 = vld [vmem:[#allocation14 + $0x1f8] sm:$0xf]
          %v7774 = vld [vmem:[#allocation14 + $0x1fc] sm:$0xf]
          %v7775 = vld [vmem:[#allocation14 + $0x200] sm:$0xf]
          %v7776 = vld [vmem:[#allocation14 + $0x204] sm:$0xf]
          %v7777 = vld [vmem:[#allocation14 + $0x208] sm:$0xf]
          %v7778 = vld [vmem:[#allocation14 + $0x20c] sm:$0xf]
          %v7779 = vld [vmem:[#allocation14 + $0x210] sm:$0xf]
          %v7780 = vld [vmem:[#allocation14 + $0x214] sm:$0xf]
          %v7781 = vld [vmem:[#allocation14 + $0x218] sm:$0xf]
          %v7782 = vld [vmem:[#allocation14 + $0x21c] sm:$0xf]
          %v7783 = vld [vmem:[#allocation14 + $0x220] sm:$0xf]
          %v7784 = vld [vmem:[#allocation14 + $0x224] sm:$0xf]
          %v7785 = vld [vmem:[#allocation14 + $0x228] sm:$0xf]
          %v7786 = vld [vmem:[#allocation14 + $0x22c] sm:$0xf]
          %v7787 = vld [vmem:[#allocation14 + $0x230] sm:$0xf]
          %v7788 = vld [vmem:[#allocation14 + $0x234] sm:$0xf]
          %v7789 = vld [vmem:[#allocation14 + $0x238] sm:$0xf]
          %v7790 = vld [vmem:[#allocation14 + $0x23c] sm:$0xf]
          %v7791 = vld [vmem:[#allocation14 + $0x240] sm:$0xf]
          %v7792 = vld [vmem:[#allocation14 + $0x244] sm:$0xf]
          %v7793 = vld [vmem:[#allocation14 + $0x248] sm:$0xf]
          %v7794 = vld [vmem:[#allocation14 + $0x24c] sm:$0xf]
          %v7795 = vld [vmem:[#allocation14 + $0x250] sm:$0xf]
          %v7796 = vld [vmem:[#allocation14 + $0x254] sm:$0xf]
          %v7797 = vld [vmem:[#allocation14 + $0x258] sm:$0xf]
          %v7798 = vld [vmem:[#allocation14 + $0x25c] sm:$0xf]
          %v7799 = vld [vmem:[#allocation14 + $0x260] sm:$0xf]
          %v7800 = vld [vmem:[#allocation14 + $0x264] sm:$0xf]
          %v7801 = vld [vmem:[#allocation14 + $0x268] sm:$0xf]
          %v7802 = vld [vmem:[#allocation14 + $0x26c] sm:$0xf]
          %v7803 = vld [vmem:[#allocation14 + $0x270] sm:$0xf]
          %v7804 = vld [vmem:[#allocation14 + $0x274] sm:$0xf]
          %v7805 = vld [vmem:[#allocation14 + $0x278] sm:$0xf]
          %v7806 = vld [vmem:[#allocation14 + $0x27c] sm:$0xf]
          %v7807 = vld [vmem:[#allocation14 + $0x280] sm:$0xf]
          %v7808 = vld [vmem:[#allocation14 + $0x284] sm:$0xf]
          %v7809 = vld [vmem:[#allocation14 + $0x288] sm:$0xf]
          %v7810 = vld [vmem:[#allocation14 + $0x28c] sm:$0xf]
          %v7811 = vld [vmem:[#allocation14 + $0x290] sm:$0xf]
          %v7812 = vld [vmem:[#allocation14 + $0x294] sm:$0xf]
          %v7813 = vld [vmem:[#allocation14 + $0x298] sm:$0xf]
          %v7814 = vld [vmem:[#allocation14 + $0x29c] sm:$0xf]
          %v7815 = vld [vmem:[#allocation14 + $0x2a0] sm:$0xf]
          %v7816 = vld [vmem:[#allocation14 + $0x2a4] sm:$0xf]
          %v7817 = vld [vmem:[#allocation14 + $0x2a8] sm:$0xf]
          %v7818 = vld [vmem:[#allocation14 + $0x2ac] sm:$0xf]
          %v7819 = vld [vmem:[#allocation14 + $0x2b0] sm:$0xf]
          %v7820 = vld [vmem:[#allocation14 + $0x2b4] sm:$0xf]
          %v7821 = vld [vmem:[#allocation14 + $0x2b8] sm:$0xf]
          %v7822 = vld [vmem:[#allocation14 + $0x2bc] sm:$0xf]
          %v7823 = vld [vmem:[#allocation14 + $0x2c0] sm:$0xf]
          %v7824 = vld [vmem:[#allocation14 + $0x2c4] sm:$0xf]
          %v7825 = vld [vmem:[#allocation14 + $0x2c8] sm:$0xf]
          %v7826 = vld [vmem:[#allocation14 + $0x2cc] sm:$0xf]
          %v7827 = vld [vmem:[#allocation14 + $0x2d0] sm:$0xf]
          %v7828 = vld [vmem:[#allocation14 + $0x2d4] sm:$0xf]
          %v7829 = vld [vmem:[#allocation14 + $0x2d8] sm:$0xf]
          %v7830 = vld [vmem:[#allocation14 + $0x2dc] sm:$0xf]
          %v7831 = vld [vmem:[#allocation14 + $0x2e0] sm:$0xf]
          %v7832 = vld [vmem:[#allocation14 + $0x2e4] sm:$0xf]
          %v7833 = vld [vmem:[#allocation14 + $0x2e8] sm:$0xf]
          %v7834 = vld [vmem:[#allocation14 + $0x2ec] sm:$0xf]
          %v7835 = vld [vmem:[#allocation14 + $0x2f0] sm:$0xf]
          %v7836 = vld [vmem:[#allocation14 + $0x2f4] sm:$0xf]
          %v7837 = vld [vmem:[#allocation14 + $0x2f8] sm:$0xf]
          %v7838 = vld [vmem:[#allocation14 + $0x2fc] sm:$0xf]
          %v7839 = vld [vmem:[#allocation14 + $0x300] sm:$0xf]
          %v7840 = vld [vmem:[#allocation14 + $0x304] sm:$0xf]
          %v7841 = vld [vmem:[#allocation14 + $0x308] sm:$0xf]
          %v7842 = vld [vmem:[#allocation14 + $0x30c] sm:$0xf]
          %v7843 = vld [vmem:[#allocation14 + $0x310] sm:$0xf]
          %v7844 = vld [vmem:[#allocation14 + $0x314] sm:$0xf]
          %v7845 = vld [vmem:[#allocation14 + $0x318] sm:$0xf]
          %v7846 = vld [vmem:[#allocation14 + $0x31c] sm:$0xf]
          %v7847 = vld [vmem:[#allocation14 + $0x320] sm:$0xf]
          %v7848 = vld [vmem:[#allocation14 + $0x324] sm:$0xf]
          %v7849 = vld [vmem:[#allocation14 + $0x328] sm:$0xf]
          %v7850 = vld [vmem:[#allocation14 + $0x32c] sm:$0xf]
          %v7851 = vld [vmem:[#allocation14 + $0x330] sm:$0xf]
          %v7852 = vld [vmem:[#allocation14 + $0x334] sm:$0xf]
          %v7853 = vld [vmem:[#allocation14 + $0x338] sm:$0xf]
          %v7854 = vld [vmem:[#allocation14 + $0x33c] sm:$0xf]
          %v7855 = vld [vmem:[#allocation14 + $0x340] sm:$0xf]
          %v7856 = vld [vmem:[#allocation14 + $0x344] sm:$0xf]
          %v7857 = vld [vmem:[#allocation14 + $0x348] sm:$0xf]
          %v7858 = vld [vmem:[#allocation14 + $0x34c] sm:$0xf]
          %v7859 = vld [vmem:[#allocation14 + $0x350] sm:$0xf]
          %v7860 = vld [vmem:[#allocation14 + $0x354] sm:$0xf]
          %v7861 = vld [vmem:[#allocation14 + $0x358] sm:$0xf]
          %v7862 = vld [vmem:[#allocation14 + $0x35c] sm:$0xf]
          %v7863 = vld [vmem:[#allocation14 + $0x360] sm:$0xf]
          %v7864 = vld [vmem:[#allocation14 + $0x364] sm:$0xf]
          %v7865 = vld [vmem:[#allocation14 + $0x368] sm:$0xf]
          %v7866 = vld [vmem:[#allocation14 + $0x36c] sm:$0xf]
          %v7867 = vld [vmem:[#allocation14 + $0x370] sm:$0xf]
          %v7868 = vld [vmem:[#allocation14 + $0x374] sm:$0xf]
          %v7869 = vld [vmem:[#allocation14 + $0x378] sm:$0xf]
          %v7870 = vld [vmem:[#allocation14 + $0x37c] sm:$0xf]
          %v7871 = vld [vmem:[#allocation14 + $0x380] sm:$0xf]
          %v7872 = vld [vmem:[#allocation14 + $0x384] sm:$0xf]
          %v7873 = vld [vmem:[#allocation14 + $0x388] sm:$0xf]
          %v7874 = vld [vmem:[#allocation14 + $0x38c] sm:$0xf]
          %v7875 = vld [vmem:[#allocation14 + $0x390] sm:$0xf]
          %v7876 = vld [vmem:[#allocation14 + $0x394] sm:$0xf]
          %v7877 = vld [vmem:[#allocation14 + $0x398] sm:$0xf]
          %v7878 = vld [vmem:[#allocation14 + $0x39c] sm:$0xf]
          %v7879 = vld [vmem:[#allocation14 + $0x3a0] sm:$0xf]
          %v7880 = vld [vmem:[#allocation14 + $0x3a4] sm:$0xf]
          %v7881 = vld [vmem:[#allocation14 + $0x3a8] sm:$0xf]
          %v7882 = vld [vmem:[#allocation14 + $0x3ac] sm:$0xf]
          %v7883 = vld [vmem:[#allocation14 + $0x3b0] sm:$0xf]
          %v7884 = vld [vmem:[#allocation14 + $0x3b4] sm:$0xf]
          %v7885 = vld [vmem:[#allocation14 + $0x3b8] sm:$0xf]
          %v7886 = vld [vmem:[#allocation14 + $0x3bc] sm:$0xf]
          %v7887 = vld [vmem:[#allocation14 + $0x3c0] sm:$0xf]
          %v7888 = vld [vmem:[#allocation14 + $0x3c4] sm:$0xf]
          %v7889 = vld [vmem:[#allocation14 + $0x3c8] sm:$0xf]
          %v7890 = vld [vmem:[#allocation14 + $0x3cc] sm:$0xf]
          %v7891 = vld [vmem:[#allocation14 + $0x3d0] sm:$0xf]
          %v7892 = vld [vmem:[#allocation14 + $0x3d4] sm:$0xf]
          %v7893 = vld [vmem:[#allocation14 + $0x3d8] sm:$0xf]
          %v7894 = vld [vmem:[#allocation14 + $0x3dc] sm:$0xf]
          %v7895 = vld [vmem:[#allocation14 + $0x3e0] sm:$0xf]
          %v7896 = vld [vmem:[#allocation14 + $0x3e4] sm:$0xf]
          %v7897 = vld [vmem:[#allocation14 + $0x3e8] sm:$0xf]
          %v7898 = vld [vmem:[#allocation14 + $0x3ec] sm:$0xf]
          %v7899 = vld [vmem:[#allocation14 + $0x3f0] sm:$0xf]
          %v7900 = vld [vmem:[#allocation14 + $0x3f4] sm:$0xf]
          %v7901 = vld [vmem:[#allocation14 + $0x3f8] sm:$0xf]
          %v7902 = vld [vmem:[#allocation14 + $0x3fc] sm:$0xf]
          %v7903 = vld [vmem:[#allocation14 + $0x400] sm:$0xf]
          %v7904 = vld [vmem:[#allocation14 + $0x404] sm:$0xf]
          %v7905 = vld [vmem:[#allocation14 + $0x408] sm:$0xf]
          %v7906 = vld [vmem:[#allocation14 + $0x40c] sm:$0xf]
          %v7907 = vld [vmem:[#allocation14 + $0x410] sm:$0xf]
          %v7908 = vld [vmem:[#allocation14 + $0x414] sm:$0xf]
          %v7909 = vld [vmem:[#allocation14 + $0x418] sm:$0xf]
          %v7910 = vld [vmem:[#allocation14 + $0x41c] sm:$0xf]
          %v7911 = vld [vmem:[#allocation14 + $0x420] sm:$0xf]
          %v7912 = vld [vmem:[#allocation14 + $0x424] sm:$0xf]
          %v7913 = vld [vmem:[#allocation14 + $0x428] sm:$0xf]
          %v7914 = vld [vmem:[#allocation14 + $0x42c] sm:$0xf]
          %v7915 = vld [vmem:[#allocation14 + $0x430] sm:$0xf]
          %v7916 = vld [vmem:[#allocation14 + $0x434] sm:$0xf]
          %v7917 = vld [vmem:[#allocation14 + $0x438] sm:$0xf]
          %v7918 = vld [vmem:[#allocation14 + $0x43c] sm:$0xf]
          %v7919 = vld [vmem:[#allocation14 + $0x440] sm:$0xf]
          %v7920 = vld [vmem:[#allocation14 + $0x444] sm:$0xf]
          %v7921 = vld [vmem:[#allocation14 + $0x448] sm:$0xf]
          %v7922 = vld [vmem:[#allocation14 + $0x44c] sm:$0xf]
          %v7923 = vld [vmem:[#allocation14 + $0x450] sm:$0xf]
          %v7924 = vld [vmem:[#allocation14 + $0x454] sm:$0xf]
          %v7925 = vld [vmem:[#allocation14 + $0x458] sm:$0xf]
          %v7926 = vld [vmem:[#allocation14 + $0x45c] sm:$0xf]
          %v7927 = vld [vmem:[#allocation14 + $0x460] sm:$0xf]
          %v7928 = vld [vmem:[#allocation14 + $0x464] sm:$0xf]
          %v7929 = vld [vmem:[#allocation14 + $0x468] sm:$0xf]
          %v7930 = vld [vmem:[#allocation14 + $0x46c] sm:$0xf]
          %v7931 = vld [vmem:[#allocation14 + $0x470] sm:$0xf]
          %v7932 = vld [vmem:[#allocation14 + $0x474] sm:$0xf]
          %v7933 = vld [vmem:[#allocation14 + $0x478] sm:$0xf]
          %v7934 = vld [vmem:[#allocation14 + $0x47c] sm:$0xf]
          %v7935 = vld [vmem:[#allocation14 + $0x480] sm:$0xf]
          %v7936 = vld [vmem:[#allocation14 + $0x484] sm:$0xf]
          %v7937 = vld [vmem:[#allocation14 + $0x488] sm:$0xf]
          %v7938 = vld [vmem:[#allocation14 + $0x48c] sm:$0xf]
          %v7939 = vld [vmem:[#allocation14 + $0x490] sm:$0xf]
          %v7940 = vld [vmem:[#allocation14 + $0x494] sm:$0xf]
          %v7941 = vld [vmem:[#allocation14 + $0x498] sm:$0xf]
          %v7942 = vld [vmem:[#allocation14 + $0x49c] sm:$0xf]
          %v7943 = vld [vmem:[#allocation14 + $0x4a0] sm:$0xf]
          %v7944 = vld [vmem:[#allocation14 + $0x4a4] sm:$0xf]
          %v7945 = vld [vmem:[#allocation14 + $0x4a8] sm:$0xf]
          %v7946 = vld [vmem:[#allocation14 + $0x4ac] sm:$0xf]
          %v7947 = vld [vmem:[#allocation14 + $0x4b0] sm:$0xf]
          %v7948 = vld [vmem:[#allocation14 + $0x4b4] sm:$0xf]
          %v7949 = vld [vmem:[#allocation14 + $0x4b8] sm:$0xf]
          %v7950 = vld [vmem:[#allocation14 + $0x4bc] sm:$0xf]
          %v7951 = vld [vmem:[#allocation14 + $0x4c0] sm:$0xf]
          %v7952 = vld [vmem:[#allocation14 + $0x4c4] sm:$0xf]
          %v7953 = vld [vmem:[#allocation14 + $0x4c8] sm:$0xf]
          %v7954 = vld [vmem:[#allocation14 + $0x4cc] sm:$0xf]
          %v7955 = vld [vmem:[#allocation14 + $0x4d0] sm:$0xf]
          %v7956 = vld [vmem:[#allocation14 + $0x4d4] sm:$0xf]
          %v7957 = vld [vmem:[#allocation14 + $0x4d8] sm:$0xf]
          %v7958 = vld [vmem:[#allocation14 + $0x4dc] sm:$0xf]
          %v7959 = vld [vmem:[#allocation14 + $0x4e0] sm:$0xf]
          %v7960 = vld [vmem:[#allocation14 + $0x4e4] sm:$0xf]
          %v7961 = vld [vmem:[#allocation14 + $0x4e8] sm:$0xf]
          %v7962 = vld [vmem:[#allocation14 + $0x4ec] sm:$0xf]
          %v7963 = vld [vmem:[#allocation14 + $0x4f0] sm:$0xf]
          %v7964 = vld [vmem:[#allocation14 + $0x4f4] sm:$0xf]
          %v7965 = vld [vmem:[#allocation14 + $0x4f8] sm:$0xf]
          %v7966 = vld [vmem:[#allocation14 + $0x4fc] sm:$0xf]
          %v7967 = vld [vmem:[#allocation15] sm:$0x1]
          %v7969 = vlaneseq
          %v7970 = vshrl.u32 %v7969, 7
          %v7971 = vsub.s32 0, %v7970
          %v7972 = vrot.slane %v7967, %v7971
          %v8294 = vunpack.c.l.b16 %v7647
          %v8295 = vunpack.c.l.b16 %v7648
          %v8296 = vunpack.c.l.b16 %v7649
          %v8297 = vunpack.c.l.b16 %v7650
          %v8298 = vunpack.c.l.b16 %v7651
          %v8299 = vunpack.c.l.b16 %v7652
          %v8300 = vunpack.c.l.b16 %v7653
          %v8301 = vunpack.c.l.b16 %v7654
          %v8302 = vunpack.c.l.b16 %v7655
          %v8303 = vunpack.c.l.b16 %v7656
          %v8304 = vunpack.c.l.b16 %v7657
          %v8305 = vunpack.c.l.b16 %v7658
          %v8306 = vunpack.c.l.b16 %v7659
          %v8307 = vunpack.c.l.b16 %v7660
          %v8308 = vunpack.c.l.b16 %v7661
          %v8309 = vunpack.c.l.b16 %v7662
          %v8310 = vunpack.c.l.b16 %v7663
          %v8311 = vunpack.c.l.b16 %v7664
          %v8312 = vunpack.c.l.b16 %v7665
          %v8313 = vunpack.c.l.b16 %v7666
          %v8314 = vunpack.c.l.b16 %v7667
          %v8315 = vunpack.c.l.b16 %v7668
          %v8316 = vunpack.c.l.b16 %v7669
          %v8317 = vunpack.c.l.b16 %v7670
          %v8318 = vunpack.c.l.b16 %v7671
          %v8319 = vunpack.c.l.b16 %v7672
          %v8320 = vunpack.c.l.b16 %v7673
          %v8321 = vunpack.c.l.b16 %v7674
          %v8322 = vunpack.c.l.b16 %v7675
          %v8323 = vunpack.c.l.b16 %v7676
          %v8324 = vunpack.c.l.b16 %v7677
          %v8325 = vunpack.c.l.b16 %v7678
          %v8326 = vunpack.c.l.b16 %v7679
          %v8327 = vunpack.c.l.b16 %v7680
          %v8328 = vunpack.c.l.b16 %v7681
          %v8329 = vunpack.c.l.b16 %v7682
          %v8330 = vunpack.c.l.b16 %v7683
          %v8331 = vunpack.c.l.b16 %v7684
          %v8332 = vunpack.c.l.b16 %v7685
          %v8333 = vunpack.c.l.b16 %v7686
          %v8334 = vunpack.c.l.b16 %v7687
          %v8335 = vunpack.c.l.b16 %v7688
          %v8336 = vunpack.c.l.b16 %v7689
          %v8337 = vunpack.c.l.b16 %v7690
          %v8338 = vunpack.c.l.b16 %v7691
          %v8339 = vunpack.c.l.b16 %v7692
          %v8340 = vunpack.c.l.b16 %v7693
          %v8341 = vunpack.c.l.b16 %v7694
          %v8342 = vunpack.c.l.b16 %v7695
          %v8343 = vunpack.c.l.b16 %v7696
          %v8344 = vunpack.c.l.b16 %v7697
          %v8345 = vunpack.c.l.b16 %v7698
          %v8346 = vunpack.c.l.b16 %v7699
          %v8347 = vunpack.c.l.b16 %v7700
          %v8348 = vunpack.c.l.b16 %v7701
          %v8349 = vunpack.c.l.b16 %v7702
          %v8350 = vunpack.c.l.b16 %v7703
          %v8351 = vunpack.c.l.b16 %v7704
          %v8352 = vunpack.c.l.b16 %v7705
          %v8353 = vunpack.c.l.b16 %v7706
          %v8354 = vunpack.c.l.b16 %v7707
          %v8355 = vunpack.c.l.b16 %v7708
          %v8356 = vunpack.c.l.b16 %v7709
          %v8357 = vunpack.c.l.b16 %v7710
          %v8358 = vunpack.c.l.b16 %v7711
          %v8359 = vunpack.c.l.b16 %v7712
          %v8360 = vunpack.c.l.b16 %v7713
          %v8361 = vunpack.c.l.b16 %v7714
          %v8362 = vunpack.c.l.b16 %v7715
          %v8363 = vunpack.c.l.b16 %v7716
          %v8364 = vunpack.c.l.b16 %v7717
          %v8365 = vunpack.c.l.b16 %v7718
          %v8366 = vunpack.c.l.b16 %v7719
          %v8367 = vunpack.c.l.b16 %v7720
          %v8368 = vunpack.c.l.b16 %v7721
          %v8369 = vunpack.c.l.b16 %v7722
          %v8370 = vunpack.c.l.b16 %v7723
          %v8371 = vunpack.c.l.b16 %v7724
          %v8372 = vunpack.c.l.b16 %v7725
          %v8373 = vunpack.c.l.b16 %v7726
          %v8374 = vunpack.c.l.b16 %v7727
          %v8375 = vunpack.c.l.b16 %v7728
          %v8376 = vunpack.c.l.b16 %v7729
          %v8377 = vunpack.c.l.b16 %v7730
          %v8378 = vunpack.c.l.b16 %v7731
          %v8379 = vunpack.c.l.b16 %v7732
          %v8380 = vunpack.c.l.b16 %v7733
          %v8381 = vunpack.c.l.b16 %v7734
          %v8382 = vunpack.c.l.b16 %v7735
          %v8383 = vunpack.c.l.b16 %v7736
          %v8384 = vunpack.c.l.b16 %v7737
          %v8385 = vunpack.c.l.b16 %v7738
          %v8386 = vunpack.c.l.b16 %v7739
          %v8387 = vunpack.c.l.b16 %v7740
          %v8388 = vunpack.c.l.b16 %v7741
          %v8389 = vunpack.c.l.b16 %v7742
          %v8390 = vunpack.c.l.b16 %v7743
          %v8391 = vunpack.c.l.b16 %v7744
          %v8392 = vunpack.c.l.b16 %v7745
          %v8393 = vunpack.c.l.b16 %v7746
          %v8394 = vunpack.c.l.b16 %v7747
          %v8395 = vunpack.c.l.b16 %v7748
          %v8396 = vunpack.c.l.b16 %v7749
          %v8397 = vunpack.c.l.b16 %v7750
          %v8398 = vunpack.c.l.b16 %v7751
          %v8399 = vunpack.c.l.b16 %v7752
          %v8400 = vunpack.c.l.b16 %v7753
          %v8401 = vunpack.c.l.b16 %v7754
          %v8402 = vunpack.c.l.b16 %v7755
          %v8403 = vunpack.c.l.b16 %v7756
          %v8404 = vunpack.c.l.b16 %v7757
          %v8405 = vunpack.c.l.b16 %v7758
          %v8406 = vunpack.c.l.b16 %v7759
          %v8407 = vunpack.c.l.b16 %v7760
          %v8408 = vunpack.c.l.b16 %v7761
          %v8409 = vunpack.c.l.b16 %v7762
          %v8410 = vunpack.c.l.b16 %v7763
          %v8411 = vunpack.c.l.b16 %v7764
          %v8412 = vunpack.c.l.b16 %v7765
          %v8413 = vunpack.c.l.b16 %v7766
          %v8414 = vunpack.c.l.b16 %v7767
          %v8415 = vunpack.c.l.b16 %v7768
          %v8416 = vunpack.c.l.b16 %v7769
          %v8417 = vunpack.c.l.b16 %v7770
          %v8418 = vunpack.c.l.b16 %v7771
          %v8419 = vunpack.c.l.b16 %v7772
          %v8420 = vunpack.c.l.b16 %v7773
          %v8421 = vunpack.c.l.b16 %v7774
          %v8422 = vunpack.c.l.b16 %v7775
          %v8423 = vunpack.c.l.b16 %v7776
          %v8424 = vunpack.c.l.b16 %v7777
          %v8425 = vunpack.c.l.b16 %v7778
          %v8426 = vunpack.c.l.b16 %v7779
          %v8427 = vunpack.c.l.b16 %v7780
          %v8428 = vunpack.c.l.b16 %v7781
          %v8429 = vunpack.c.l.b16 %v7782
          %v8430 = vunpack.c.l.b16 %v7783
          %v8431 = vunpack.c.l.b16 %v7784
          %v8432 = vunpack.c.l.b16 %v7785
          %v8433 = vunpack.c.l.b16 %v7786
          %v8434 = vunpack.c.l.b16 %v7787
          %v8435 = vunpack.c.l.b16 %v7788
          %v8436 = vunpack.c.l.b16 %v7789
          %v8437 = vunpack.c.l.b16 %v7790
          %v8438 = vunpack.c.l.b16 %v7791
          %v8439 = vunpack.c.l.b16 %v7792
          %v8440 = vunpack.c.l.b16 %v7793
          %v8441 = vunpack.c.l.b16 %v7794
          %v8442 = vunpack.c.l.b16 %v7795
          %v8443 = vunpack.c.l.b16 %v7796
          %v8444 = vunpack.c.l.b16 %v7797
          %v8445 = vunpack.c.l.b16 %v7798
          %v8446 = vunpack.c.l.b16 %v7799
          %v8447 = vunpack.c.l.b16 %v7800
          %v8448 = vunpack.c.l.b16 %v7801
          %v8449 = vunpack.c.l.b16 %v7802
          %v8450 = vunpack.c.l.b16 %v7803
          %v8451 = vunpack.c.l.b16 %v7804
          %v8452 = vunpack.c.l.b16 %v7805
          %v8453 = vunpack.c.l.b16 %v7806
          %v8454 = vunpack.c.l.b16 %v7807
          %v8455 = vunpack.c.l.b16 %v7808
          %v8456 = vunpack.c.l.b16 %v7809
          %v8457 = vunpack.c.l.b16 %v7810
          %v8458 = vunpack.c.l.b16 %v7811
          %v8459 = vunpack.c.l.b16 %v7812
          %v8460 = vunpack.c.l.b16 %v7813
          %v8461 = vunpack.c.l.b16 %v7814
          %v8462 = vunpack.c.l.b16 %v7815
          %v8463 = vunpack.c.l.b16 %v7816
          %v8464 = vunpack.c.l.b16 %v7817
          %v8465 = vunpack.c.l.b16 %v7818
          %v8466 = vunpack.c.l.b16 %v7819
          %v8467 = vunpack.c.l.b16 %v7820
          %v8468 = vunpack.c.l.b16 %v7821
          %v8469 = vunpack.c.l.b16 %v7822
          %v8470 = vunpack.c.l.b16 %v7823
          %v8471 = vunpack.c.l.b16 %v7824
          %v8472 = vunpack.c.l.b16 %v7825
          %v8473 = vunpack.c.l.b16 %v7826
          %v8474 = vunpack.c.l.b16 %v7827
          %v8475 = vunpack.c.l.b16 %v7828
          %v8476 = vunpack.c.l.b16 %v7829
          %v8477 = vunpack.c.l.b16 %v7830
          %v8478 = vunpack.c.l.b16 %v7831
          %v8479 = vunpack.c.l.b16 %v7832
          %v8480 = vunpack.c.l.b16 %v7833
          %v8481 = vunpack.c.l.b16 %v7834
          %v8482 = vunpack.c.l.b16 %v7835
          %v8483 = vunpack.c.l.b16 %v7836
          %v8484 = vunpack.c.l.b16 %v7837
          %v8485 = vunpack.c.l.b16 %v7838
          %v8486 = vunpack.c.l.b16 %v7839
          %v8487 = vunpack.c.l.b16 %v7840
          %v8488 = vunpack.c.l.b16 %v7841
          %v8489 = vunpack.c.l.b16 %v7842
          %v8490 = vunpack.c.l.b16 %v7843
          %v8491 = vunpack.c.l.b16 %v7844
          %v8492 = vunpack.c.l.b16 %v7845
          %v8493 = vunpack.c.l.b16 %v7846
          %v8494 = vunpack.c.l.b16 %v7847
          %v8495 = vunpack.c.l.b16 %v7848
          %v8496 = vunpack.c.l.b16 %v7849
          %v8497 = vunpack.c.l.b16 %v7850
          %v8498 = vunpack.c.l.b16 %v7851
          %v8499 = vunpack.c.l.b16 %v7852
          %v8500 = vunpack.c.l.b16 %v7853
          %v8501 = vunpack.c.l.b16 %v7854
          %v8502 = vunpack.c.l.b16 %v7855
          %v8503 = vunpack.c.l.b16 %v7856
          %v8504 = vunpack.c.l.b16 %v7857
          %v8505 = vunpack.c.l.b16 %v7858
          %v8506 = vunpack.c.l.b16 %v7859
          %v8507 = vunpack.c.l.b16 %v7860
          %v8508 = vunpack.c.l.b16 %v7861
          %v8509 = vunpack.c.l.b16 %v7862
          %v8510 = vunpack.c.l.b16 %v7863
          %v8511 = vunpack.c.l.b16 %v7864
          %v8512 = vunpack.c.l.b16 %v7865
          %v8513 = vunpack.c.l.b16 %v7866
          %v8514 = vunpack.c.l.b16 %v7867
          %v8515 = vunpack.c.l.b16 %v7868
          %v8516 = vunpack.c.l.b16 %v7869
          %v8517 = vunpack.c.l.b16 %v7870
          %v8518 = vunpack.c.l.b16 %v7871
          %v8519 = vunpack.c.l.b16 %v7872
          %v8520 = vunpack.c.l.b16 %v7873
          %v8521 = vunpack.c.l.b16 %v7874
          %v8522 = vunpack.c.l.b16 %v7875
          %v8523 = vunpack.c.l.b16 %v7876
          %v8524 = vunpack.c.l.b16 %v7877
          %v8525 = vunpack.c.l.b16 %v7878
          %v8526 = vunpack.c.l.b16 %v7879
          %v8527 = vunpack.c.l.b16 %v7880
          %v8528 = vunpack.c.l.b16 %v7881
          %v8529 = vunpack.c.l.b16 %v7882
          %v8530 = vunpack.c.l.b16 %v7883
          %v8531 = vunpack.c.l.b16 %v7884
          %v8532 = vunpack.c.l.b16 %v7885
          %v8533 = vunpack.c.l.b16 %v7886
          %v8534 = vunpack.c.l.b16 %v7887
          %v8535 = vunpack.c.l.b16 %v7888
          %v8536 = vunpack.c.l.b16 %v7889
          %v8537 = vunpack.c.l.b16 %v7890
          %v8538 = vunpack.c.l.b16 %v7891
          %v8539 = vunpack.c.l.b16 %v7892
          %v8540 = vunpack.c.l.b16 %v7893
          %v8541 = vunpack.c.l.b16 %v7894
          %v8542 = vunpack.c.l.b16 %v7895
          %v8543 = vunpack.c.l.b16 %v7896
          %v8544 = vunpack.c.l.b16 %v7897
          %v8545 = vunpack.c.l.b16 %v7898
          %v8546 = vunpack.c.l.b16 %v7899
          %v8547 = vunpack.c.l.b16 %v7900
          %v8548 = vunpack.c.l.b16 %v7901
          %v8549 = vunpack.c.l.b16 %v7902
          %v8550 = vunpack.c.l.b16 %v7903
          %v8551 = vunpack.c.l.b16 %v7904
          %v8552 = vunpack.c.l.b16 %v7905
          %v8553 = vunpack.c.l.b16 %v7906
          %v8554 = vunpack.c.l.b16 %v7907
          %v8555 = vunpack.c.l.b16 %v7908
          %v8556 = vunpack.c.l.b16 %v7909
          %v8557 = vunpack.c.l.b16 %v7910
          %v8558 = vunpack.c.l.b16 %v7911
          %v8559 = vunpack.c.l.b16 %v7912
          %v8560 = vunpack.c.l.b16 %v7913
          %v8561 = vunpack.c.l.b16 %v7914
          %v8562 = vunpack.c.l.b16 %v7915
          %v8563 = vunpack.c.l.b16 %v7916
          %v8564 = vunpack.c.l.b16 %v7917
          %v8565 = vunpack.c.l.b16 %v7918
          %v8566 = vunpack.c.l.b16 %v7919
          %v8567 = vunpack.c.l.b16 %v7920
          %v8568 = vunpack.c.l.b16 %v7921
          %v8569 = vunpack.c.l.b16 %v7922
          %v8570 = vunpack.c.l.b16 %v7923
          %v8571 = vunpack.c.l.b16 %v7924
          %v8572 = vunpack.c.l.b16 %v7925
          %v8573 = vunpack.c.l.b16 %v7926
          %v8574 = vunpack.c.l.b16 %v7927
          %v8575 = vunpack.c.l.b16 %v7928
          %v8576 = vunpack.c.l.b16 %v7929
          %v8577 = vunpack.c.l.b16 %v7930
          %v8578 = vunpack.c.l.b16 %v7931
          %v8579 = vunpack.c.l.b16 %v7932
          %v8580 = vunpack.c.l.b16 %v7933
          %v8581 = vunpack.c.l.b16 %v7934
          %v8582 = vunpack.c.l.b16 %v7935
          %v8583 = vunpack.c.l.b16 %v7936
          %v8584 = vunpack.c.l.b16 %v7937
          %v8585 = vunpack.c.l.b16 %v7938
          %v8586 = vunpack.c.l.b16 %v7939
          %v8587 = vunpack.c.l.b16 %v7940
          %v8588 = vunpack.c.l.b16 %v7941
          %v8589 = vunpack.c.l.b16 %v7942
          %v8590 = vunpack.c.l.b16 %v7943
          %v8591 = vunpack.c.l.b16 %v7944
          %v8592 = vunpack.c.l.b16 %v7945
          %v8593 = vunpack.c.l.b16 %v7946
          %v8594 = vunpack.c.l.b16 %v7947
          %v8595 = vunpack.c.l.b16 %v7948
          %v8596 = vunpack.c.l.b16 %v7949
          %v8597 = vunpack.c.l.b16 %v7950
          %v8598 = vunpack.c.l.b16 %v7951
          %v8599 = vunpack.c.l.b16 %v7952
          %v8600 = vunpack.c.l.b16 %v7953
          %v8601 = vunpack.c.l.b16 %v7954
          %v8602 = vunpack.c.l.b16 %v7955
          %v8603 = vunpack.c.l.b16 %v7956
          %v8604 = vunpack.c.l.b16 %v7957
          %v8605 = vunpack.c.l.b16 %v7958
          %v8606 = vunpack.c.l.b16 %v7959
          %v8607 = vunpack.c.l.b16 %v7960
          %v8608 = vunpack.c.l.b16 %v7961
          %v8609 = vunpack.c.l.b16 %v7962
          %v8610 = vunpack.c.l.b16 %v7963
          %v8611 = vunpack.c.l.b16 %v7964
          %v8612 = vunpack.c.l.b16 %v7965
          %v8613 = vunpack.c.l.b16 %v7966
          %v8614 = vpack.c.b16 %v8295, %v8294
          %v8615 = vpack.c.b16 %v8297, %v8296
          %v8616 = vpack.c.b16 %v8299, %v8298
          %v8617 = vpack.c.b16 %v8301, %v8300
          %v8618 = vpack.c.b16 %v8303, %v8302
          %v8619 = vpack.c.b16 %v8305, %v8304
          %v8620 = vpack.c.b16 %v8307, %v8306
          %v8621 = vpack.c.b16 %v8309, %v8308
          %v8622 = vpack.c.b16 %v8311, %v8310
          %v8623 = vpack.c.b16 %v8313, %v8312
          %v8624 = vpack.c.b16 %v8315, %v8314
          %v8625 = vpack.c.b16 %v8317, %v8316
          %v8626 = vpack.c.b16 %v8319, %v8318
          %v8627 = vpack.c.b16 %v8321, %v8320
          %v8628 = vpack.c.b16 %v8323, %v8322
          %v8629 = vpack.c.b16 %v8325, %v8324
          %v8630 = vpack.c.b16 %v8327, %v8326
          %v8631 = vpack.c.b16 %v8329, %v8328
          %v8632 = vpack.c.b16 %v8331, %v8330
          %v8633 = vpack.c.b16 %v8333, %v8332
          %v8634 = vpack.c.b16 %v8335, %v8334
          %v8635 = vpack.c.b16 %v8337, %v8336
          %v8636 = vpack.c.b16 %v8339, %v8338
          %v8637 = vpack.c.b16 %v8341, %v8340
          %v8638 = vpack.c.b16 %v8343, %v8342
          %v8639 = vpack.c.b16 %v8345, %v8344
          %v8640 = vpack.c.b16 %v8347, %v8346
          %v8641 = vpack.c.b16 %v8349, %v8348
          %v8642 = vpack.c.b16 %v8351, %v8350
          %v8643 = vpack.c.b16 %v8353, %v8352
          %v8644 = vpack.c.b16 %v8355, %v8354
          %v8645 = vpack.c.b16 %v8357, %v8356
          %v8646 = vpack.c.b16 %v8359, %v8358
          %v8647 = vpack.c.b16 %v8361, %v8360
          %v8648 = vpack.c.b16 %v8363, %v8362
          %v8649 = vpack.c.b16 %v8365, %v8364
          %v8650 = vpack.c.b16 %v8367, %v8366
          %v8651 = vpack.c.b16 %v8369, %v8368
          %v8652 = vpack.c.b16 %v8371, %v8370
          %v8653 = vpack.c.b16 %v8373, %v8372
          %v8654 = vpack.c.b16 %v8375, %v8374
          %v8655 = vpack.c.b16 %v8377, %v8376
          %v8656 = vpack.c.b16 %v8379, %v8378
          %v8657 = vpack.c.b16 %v8381, %v8380
          %v8658 = vpack.c.b16 %v8383, %v8382
          %v8659 = vpack.c.b16 %v8385, %v8384
          %v8660 = vpack.c.b16 %v8387, %v8386
          %v8661 = vpack.c.b16 %v8389, %v8388
          %v8662 = vpack.c.b16 %v8391, %v8390
          %v8663 = vpack.c.b16 %v8393, %v8392
          %v8664 = vpack.c.b16 %v8395, %v8394
          %v8665 = vpack.c.b16 %v8397, %v8396
          %v8666 = vpack.c.b16 %v8399, %v8398
          %v8667 = vpack.c.b16 %v8401, %v8400
          %v8668 = vpack.c.b16 %v8403, %v8402
          %v8669 = vpack.c.b16 %v8405, %v8404
          %v8670 = vpack.c.b16 %v8407, %v8406
          %v8671 = vpack.c.b16 %v8409, %v8408
          %v8672 = vpack.c.b16 %v8411, %v8410
          %v8673 = vpack.c.b16 %v8413, %v8412
          %v8674 = vpack.c.b16 %v8415, %v8414
          %v8675 = vpack.c.b16 %v8417, %v8416
          %v8676 = vpack.c.b16 %v8419, %v8418
          %v8677 = vpack.c.b16 %v8421, %v8420
          %v8678 = vpack.c.b16 %v8423, %v8422
          %v8679 = vpack.c.b16 %v8425, %v8424
          %v8680 = vpack.c.b16 %v8427, %v8426
          %v8681 = vpack.c.b16 %v8429, %v8428
          %v8682 = vpack.c.b16 %v8431, %v8430
          %v8683 = vpack.c.b16 %v8433, %v8432
          %v8684 = vpack.c.b16 %v8435, %v8434
          %v8685 = vpack.c.b16 %v8437, %v8436
          %v8686 = vpack.c.b16 %v8439, %v8438
          %v8687 = vpack.c.b16 %v8441, %v8440
          %v8688 = vpack.c.b16 %v8443, %v8442
          %v8689 = vpack.c.b16 %v8445, %v8444
          %v8690 = vpack.c.b16 %v8447, %v8446
          %v8691 = vpack.c.b16 %v8449, %v8448
          %v8692 = vpack.c.b16 %v8451, %v8450
          %v8693 = vpack.c.b16 %v8453, %v8452
          %v8694 = vpack.c.b16 %v8455, %v8454
          %v8695 = vpack.c.b16 %v8457, %v8456
          %v8696 = vpack.c.b16 %v8459, %v8458
          %v8697 = vpack.c.b16 %v8461, %v8460
          %v8698 = vpack.c.b16 %v8463, %v8462
          %v8699 = vpack.c.b16 %v8465, %v8464
          %v8700 = vpack.c.b16 %v8467, %v8466
          %v8701 = vpack.c.b16 %v8469, %v8468
          %v8702 = vpack.c.b16 %v8471, %v8470
          %v8703 = vpack.c.b16 %v8473, %v8472
          %v8704 = vpack.c.b16 %v8475, %v8474
          %v8705 = vpack.c.b16 %v8477, %v8476
          %v8706 = vpack.c.b16 %v8479, %v8478
          %v8707 = vpack.c.b16 %v8481, %v8480
          %v8708 = vpack.c.b16 %v8483, %v8482
          %v8709 = vpack.c.b16 %v8485, %v8484
          %v8710 = vpack.c.b16 %v8487, %v8486
          %v8711 = vpack.c.b16 %v8489, %v8488
          %v8712 = vpack.c.b16 %v8491, %v8490
          %v8713 = vpack.c.b16 %v8493, %v8492
          %v8714 = vpack.c.b16 %v8495, %v8494
          %v8715 = vpack.c.b16 %v8497, %v8496
          %v8716 = vpack.c.b16 %v8499, %v8498
          %v8717 = vpack.c.b16 %v8501, %v8500
          %v8718 = vpack.c.b16 %v8503, %v8502
          %v8719 = vpack.c.b16 %v8505, %v8504
          %v8720 = vpack.c.b16 %v8507, %v8506
          %v8721 = vpack.c.b16 %v8509, %v8508
          %v8722 = vpack.c.b16 %v8511, %v8510
          %v8723 = vpack.c.b16 %v8513, %v8512
          %v8724 = vpack.c.b16 %v8515, %v8514
          %v8725 = vpack.c.b16 %v8517, %v8516
          %v8726 = vpack.c.b16 %v8519, %v8518
          %v8727 = vpack.c.b16 %v8521, %v8520
          %v8728 = vpack.c.b16 %v8523, %v8522
          %v8729 = vpack.c.b16 %v8525, %v8524
          %v8730 = vpack.c.b16 %v8527, %v8526
          %v8731 = vpack.c.b16 %v8529, %v8528
          %v8732 = vpack.c.b16 %v8531, %v8530
          %v8733 = vpack.c.b16 %v8533, %v8532
          %v8734 = vpack.c.b16 %v8535, %v8534
          %v8735 = vpack.c.b16 %v8537, %v8536
          %v8736 = vpack.c.b16 %v8539, %v8538
          %v8737 = vpack.c.b16 %v8541, %v8540
          %v8738 = vpack.c.b16 %v8543, %v8542
          %v8739 = vpack.c.b16 %v8545, %v8544
          %v8740 = vpack.c.b16 %v8547, %v8546
          %v8741 = vpack.c.b16 %v8549, %v8548
          %v8742 = vpack.c.b16 %v8551, %v8550
          %v8743 = vpack.c.b16 %v8553, %v8552
          %v8744 = vpack.c.b16 %v8555, %v8554
          %v8745 = vpack.c.b16 %v8557, %v8556
          %v8746 = vpack.c.b16 %v8559, %v8558
          %v8747 = vpack.c.b16 %v8561, %v8560
          %v8748 = vpack.c.b16 %v8563, %v8562
          %v8749 = vpack.c.b16 %v8565, %v8564
          %v8750 = vpack.c.b16 %v8567, %v8566
          %v8751 = vpack.c.b16 %v8569, %v8568
          %v8752 = vpack.c.b16 %v8571, %v8570
          %v8753 = vpack.c.b16 %v8573, %v8572
          %v8754 = vpack.c.b16 %v8575, %v8574
          %v8755 = vpack.c.b16 %v8577, %v8576
          %v8756 = vpack.c.b16 %v8579, %v8578
          %v8757 = vpack.c.b16 %v8581, %v8580
          %v8758 = vpack.c.b16 %v8583, %v8582
          %v8759 = vpack.c.b16 %v8585, %v8584
          %v8760 = vpack.c.b16 %v8587, %v8586
          %v8761 = vpack.c.b16 %v8589, %v8588
          %v8762 = vpack.c.b16 %v8591, %v8590
          %v8763 = vpack.c.b16 %v8593, %v8592
          %v8764 = vpack.c.b16 %v8595, %v8594
          %v8765 = vpack.c.b16 %v8597, %v8596
          %v8766 = vpack.c.b16 %v8599, %v8598
          %v8767 = vpack.c.b16 %v8601, %v8600
          %v8768 = vpack.c.b16 %v8603, %v8602
          %v8769 = vpack.c.b16 %v8605, %v8604
          %v8770 = vpack.c.b16 %v8607, %v8606
          %v8771 = vpack.c.b16 %v8609, %v8608
          %v8772 = vpack.c.b16 %v8611, %v8610
          %v8773 = vpack.c.b16 %v8613, %v8612
          %8934 = vmatprep.subr.bf16.mxu0 0
          %8935 = vmatpush1.bf16.msra.mxu0 %v8614
          %8936 = vmatprep.subr.bf16.mxu0 0
          %8937 = vmatpush1.bf16.msra.mxu0 %v8615
          %8938 = vmatprep.subr.bf16.mxu0 0
          %8939 = vmatpush1.bf16.msra.mxu0 %v8616
          %8940 = vmatprep.subr.bf16.mxu0 0
          %8941 = vmatpush1.bf16.msra.mxu0 %v8617
          %8942 = vmatprep.subr.bf16.mxu0 0
          %8943 = vmatpush1.bf16.msra.mxu0 %v8618
          %8944 = vmatprep.subr.bf16.mxu0 0
          %8945 = vmatpush1.bf16.msra.mxu0 %v8619
          %8946 = vmatprep.subr.bf16.mxu0 0
          %8947 = vmatpush1.bf16.msra.mxu0 %v8620
          %8948 = vmatprep.subr.bf16.mxu0 0
          %8949 = vmatpush1.bf16.msra.mxu0 %v8621
          %8950 = vmatprep.subr.bf16.mxu0 0
          %8951 = vmatpush1.bf16.msra.mxu0 %v8622
          %8952 = vmatprep.subr.bf16.mxu0 0
          %8953 = vmatpush1.bf16.msra.mxu0 %v8623
          %8954 = vmatprep.subr.bf16.mxu0 0
          %8955 = vmatpush1.bf16.msra.mxu0 %v8624
          %8956 = vmatprep.subr.bf16.mxu0 0
          %8957 = vmatpush1.bf16.msra.mxu0 %v8625
          %8958 = vmatprep.subr.bf16.mxu0 0
          %8959 = vmatpush1.bf16.msra.mxu0 %v8626
          %8960 = vmatprep.subr.bf16.mxu0 0
          %8961 = vmatpush1.bf16.msra.mxu0 %v8627
          %8962 = vmatprep.subr.bf16.mxu0 0
          %8963 = vmatpush1.bf16.msra.mxu0 %v8628
          %8964 = vmatprep.subr.bf16.mxu0 0
          %8965 = vmatpush1.bf16.msra.mxu0 %v8629
          %8966 = vmatprep.mubr.bf16.mxu0 %v7628
          %8967 = vmatmul.mubr.bf16.gmra.mrb[0].mxu0 %v7627
          %v8968 = vpop.f32.mrb[0].mxu0
          %v8969 = vadd.f32 %v7972, %v8968
          %v8970 = vpop.f32.mrb[0].mxu0
          %v8971 = vpop.f32.mrb[0].mxu0
          %v8972 = vpop.f32.mrb[0].mxu0
          %8973 = vdwg.mxu0
          %8974 = vmatprep.subr.bf16.mxu0 0
          %8975 = vmatpush1.bf16.msra.mxu0 %v8630
          %8976 = vmatprep.subr.bf16.mxu0 0
          %8977 = vmatpush1.bf16.msra.mxu0 %v8631
          %8978 = vmatprep.subr.bf16.mxu0 0
          %8979 = vmatpush1.bf16.msra.mxu0 %v8632
          %8980 = vmatprep.subr.bf16.mxu0 0
          %8981 = vmatpush1.bf16.msra.mxu0 %v8633
          %8982 = vmatprep.subr.bf16.mxu0 0
          %8983 = vmatpush1.bf16.msra.mxu0 %v8634
          %8984 = vmatprep.subr.bf16.mxu0 0
          %8985 = vmatpush1.bf16.msra.mxu0 %v8635
          %8986 = vmatprep.subr.bf16.mxu0 0
          %8987 = vmatpush1.bf16.msra.mxu0 %v8636
          %8988 = vmatprep.subr.bf16.mxu0 0
          %8989 = vmatpush1.bf16.msra.mxu0 %v8637
          %8990 = vmatprep.subr.bf16.mxu0 0
          %8991 = vmatpush1.bf16.msra.mxu0 %v8638
          %8992 = vmatprep.subr.bf16.mxu0 0
          %8993 = vmatpush1.bf16.msra.mxu0 %v8639
          %8994 = vmatprep.subr.bf16.mxu0 0
          %8995 = vmatpush1.bf16.msra.mxu0 %v8640
          %8996 = vmatprep.subr.bf16.mxu0 0
          %8997 = vmatpush1.bf16.msra.mxu0 %v8641
          %8998 = vmatprep.subr.bf16.mxu0 0
          %8999 = vmatpush1.bf16.msra.mxu0 %v8642
          %9000 = vmatprep.subr.bf16.mxu0 0
          %9001 = vmatpush1.bf16.msra.mxu0 %v8643
          %9002 = vmatprep.subr.bf16.mxu0 0
          %9003 = vmatpush1.bf16.msra.mxu0 %v8644
          %9004 = vmatprep.subr.bf16.mxu0 0
          %9005 = vmatpush1.bf16.msra.mxu0 %v8645
          %9006 = vmatprep.mubr.bf16.mxu0 %v7630
          %9007 = vmatmul.mubr.bf16.gmra.mrb[0].mxu0 %v7629
          %v9008 = vpop.f32.mrb[0].mxu0
          %v9009 = vadd.f32 %v8969, %v9008
          %v9010 = vpop.f32.mrb[0].mxu0
          %v9011 = vpop.f32.mrb[0].mxu0
          %v9012 = vpop.f32.mrb[0].mxu0
          %9013 = vdwg.mxu0
          %9014 = vmatprep.subr.bf16.mxu0 0
          %9015 = vmatpush1.bf16.msra.mxu0 %v8646
          %9016 = vmatprep.subr.bf16.mxu0 0
          %9017 = vmatpush1.bf16.msra.mxu0 %v8647
          %9018 = vmatprep.subr.bf16.mxu0 0
          %9019 = vmatpush1.bf16.msra.mxu0 %v8648
          %9020 = vmatprep.subr.bf16.mxu0 0
          %9021 = vmatpush1.bf16.msra.mxu0 %v8649
          %9022 = vmatprep.subr.bf16.mxu0 0
          %9023 = vmatpush1.bf16.msra.mxu0 %v8650
          %9024 = vmatprep.subr.bf16.mxu0 0
          %9025 = vmatpush1.bf16.msra.mxu0 %v8651
          %9026 = vmatprep.subr.bf16.mxu0 0
          %9027 = vmatpush1.bf16.msra.mxu0 %v8652
          %9028 = vmatprep.subr.bf16.mxu0 0
          %9029 = vmatpush1.bf16.msra.mxu0 %v8653
          %9030 = vmatprep.subr.bf16.mxu0 0
          %9031 = vmatpush1.bf16.msra.mxu0 %v8654
          %9032 = vmatprep.subr.bf16.mxu0 0
          %9033 = vmatpush1.bf16.msra.mxu0 %v8655
          %9034 = vmatprep.subr.bf16.mxu0 0
          %9035 = vmatpush1.bf16.msra.mxu0 %v8656
          %9036 = vmatprep.subr.bf16.mxu0 0
          %9037 = vmatpush1.bf16.msra.mxu0 %v8657
          %9038 = vmatprep.subr.bf16.mxu0 0
          %9039 = vmatpush1.bf16.msra.mxu0 %v8658
          %9040 = vmatprep.subr.bf16.mxu0 0
          %9041 = vmatpush1.bf16.msra.mxu0 %v8659
          %9042 = vmatprep.subr.bf16.mxu0 0
          %9043 = vmatpush1.bf16.msra.mxu0 %v8660
          %9044 = vmatprep.subr.bf16.mxu0 0
          %9045 = vmatpush1.bf16.msra.mxu0 %v8661
          %9046 = vmatprep.mubr.bf16.mxu0 %v7632
          %9047 = vmatmul.mubr.bf16.gmra.mrb[0].mxu0 %v7631
          %v9048 = vpop.f32.mrb[0].mxu0
          %v9049 = vadd.f32 %v9009, %v9048
          %v9050 = vpop.f32.mrb[0].mxu0
          %v9051 = vpop.f32.mrb[0].mxu0
          %v9052 = vpop.f32.mrb[0].mxu0
          %9053 = vdwg.mxu0
          %9054 = vmatprep.subr.bf16.mxu0 0
          %9055 = vmatpush1.bf16.msra.mxu0 %v8662
          %9056 = vmatprep.subr.bf16.mxu0 0
          %9057 = vmatpush1.bf16.msra.mxu0 %v8663
          %9058 = vmatprep.subr.bf16.mxu0 0
          %9059 = vmatpush1.bf16.msra.mxu0 %v8664
          %9060 = vmatprep.subr.bf16.mxu0 0
          %9061 = vmatpush1.bf16.msra.mxu0 %v8665
          %9062 = vmatprep.subr.bf16.mxu0 0
          %9063 = vmatpush1.bf16.msra.mxu0 %v8666
          %9064 = vmatprep.subr.bf16.mxu0 0
          %9065 = vmatpush1.bf16.msra.mxu0 %v8667
          %9066 = vmatprep.subr.bf16.mxu0 0
          %9067 = vmatpush1.bf16.msra.mxu0 %v8668
          %9068 = vmatprep.subr.bf16.mxu0 0
          %9069 = vmatpush1.bf16.msra.mxu0 %v8669
          %9070 = vmatprep.subr.bf16.mxu0 0
          %9071 = vmatpush1.bf16.msra.mxu0 %v8670
          %9072 = vmatprep.subr.bf16.mxu0 0
          %9073 = vmatpush1.bf16.msra.mxu0 %v8671
          %9074 = vmatprep.subr.bf16.mxu0 0
          %9075 = vmatpush1.bf16.msra.mxu0 %v8672
          %9076 = vmatprep.subr.bf16.mxu0 0
          %9077 = vmatpush1.bf16.msra.mxu0 %v8673
          %9078 = vmatprep.subr.bf16.mxu0 0
          %9079 = vmatpush1.bf16.msra.mxu0 %v8674
          %9080 = vmatprep.subr.bf16.mxu0 0
          %9081 = vmatpush1.bf16.msra.mxu0 %v8675
          %9082 = vmatprep.subr.bf16.mxu0 0
          %9083 = vmatpush1.bf16.msra.mxu0 %v8676
          %9084 = vmatprep.subr.bf16.mxu0 0
          %9085 = vmatpush1.bf16.msra.mxu0 %v8677
          %9086 = vmatprep.mubr.bf16.mxu0 %v7634
          %9087 = vmatmul.mubr.bf16.gmra.mrb[0].mxu0 %v7633
          %v9088 = vpop.f32.mrb[0].mxu0
          %v9089 = vadd.f32 %v9049, %v9088
          %v9090 = vpop.f32.mrb[0].mxu0
          %v9091 = vpop.f32.mrb[0].mxu0
          %v9092 = vpop.f32.mrb[0].mxu0
          %9093 = vdwg.mxu0
          %9094 = vmatprep.subr.bf16.mxu0 0
          %9095 = vmatpush1.bf16.msra.mxu0 %v8678
          %9096 = vmatprep.subr.bf16.mxu0 0
          %9097 = vmatpush1.bf16.msra.mxu0 %v8679
          %9098 = vmatprep.subr.bf16.mxu0 0
          %9099 = vmatpush1.bf16.msra.mxu0 %v8680
          %9100 = vmatprep.subr.bf16.mxu0 0
          %9101 = vmatpush1.bf16.msra.mxu0 %v8681
          %9102 = vmatprep.subr.bf16.mxu0 0
          %9103 = vmatpush1.bf16.msra.mxu0 %v8682
          %9104 = vmatprep.subr.bf16.mxu0 0
          %9105 = vmatpush1.bf16.msra.mxu0 %v8683
          %9106 = vmatprep.subr.bf16.mxu0 0
          %9107 = vmatpush1.bf16.msra.mxu0 %v8684
          %9108 = vmatprep.subr.bf16.mxu0 0
          %9109 = vmatpush1.bf16.msra.mxu0 %v8685
          %9110 = vmatprep.subr.bf16.mxu0 0
          %9111 = vmatpush1.bf16.msra.mxu0 %v8686
          %9112 = vmatprep.subr.bf16.mxu0 0
          %9113 = vmatpush1.bf16.msra.mxu0 %v8687
          %9114 = vmatprep.subr.bf16.mxu0 0
          %9115 = vmatpush1.bf16.msra.mxu0 %v8688
          %9116 = vmatprep.subr.bf16.mxu0 0
          %9117 = vmatpush1.bf16.msra.mxu0 %v8689
          %9118 = vmatprep.subr.bf16.mxu0 0
          %9119 = vmatpush1.bf16.msra.mxu0 %v8690
          %9120 = vmatprep.subr.bf16.mxu0 0
          %9121 = vmatpush1.bf16.msra.mxu0 %v8691
          %9122 = vmatprep.subr.bf16.mxu0 0
          %9123 = vmatpush1.bf16.msra.mxu0 %v8692
          %9124 = vmatprep.subr.bf16.mxu0 0
          %9125 = vmatpush1.bf16.msra.mxu0 %v8693
          %9126 = vmatprep.mubr.bf16.mxu0 %v7636
          %9127 = vmatmul.mubr.bf16.gmra.mrb[0].mxu0 %v7635
          %v9128 = vpop.f32.mrb[0].mxu0
          %v9129 = vadd.f32 %v9089, %v9128
          %v9130 = vpop.f32.mrb[0].mxu0
          %v9131 = vpop.f32.mrb[0].mxu0
          %v9132 = vpop.f32.mrb[0].mxu0
          %9133 = vdwg.mxu0
          %9134 = vmatprep.subr.bf16.mxu0 0
          %9135 = vmatpush1.bf16.msra.mxu0 %v8694
          %9136 = vmatprep.subr.bf16.mxu0 0
          %9137 = vmatpush1.bf16.msra.mxu0 %v8695
          %9138 = vmatprep.subr.bf16.mxu0 0
          %9139 = vmatpush1.bf16.msra.mxu0 %v8696
          %9140 = vmatprep.subr.bf16.mxu0 0
          %9141 = vmatpush1.bf16.msra.mxu0 %v8697
          %9142 = vmatprep.subr.bf16.mxu0 0
          %9143 = vmatpush1.bf16.msra.mxu0 %v8698
          %9144 = vmatprep.subr.bf16.mxu0 0
          %9145 = vmatpush1.bf16.msra.mxu0 %v8699
          %9146 = vmatprep.subr.bf16.mxu0 0
          %9147 = vmatpush1.bf16.msra.mxu0 %v8700
          %9148 = vmatprep.subr.bf16.mxu0 0
          %9149 = vmatpush1.bf16.msra.mxu0 %v8701
          %9150 = vmatprep.subr.bf16.mxu0 0
          %9151 = vmatpush1.bf16.msra.mxu0 %v8702
          %9152 = vmatprep.subr.bf16.mxu0 0
          %9153 = vmatpush1.bf16.msra.mxu0 %v8703
          %9154 = vmatprep.subr.bf16.mxu0 0
          %9155 = vmatpush1.bf16.msra.mxu0 %v8704
          %9156 = vmatprep.subr.bf16.mxu0 0
          %9157 = vmatpush1.bf16.msra.mxu0 %v8705
          %9158 = vmatprep.subr.bf16.mxu0 0
          %9159 = vmatpush1.bf16.msra.mxu0 %v8706
          %9160 = vmatprep.subr.bf16.mxu0 0
          %9161 = vmatpush1.bf16.msra.mxu0 %v8707
          %9162 = vmatprep.subr.bf16.mxu0 0
          %9163 = vmatpush1.bf16.msra.mxu0 %v8708
          %9164 = vmatprep.subr.bf16.mxu0 0
          %9165 = vmatpush1.bf16.msra.mxu0 %v8709
          %9166 = vmatprep.mubr.bf16.mxu0 %v7638
          %9167 = vmatmul.mubr.bf16.gmra.mrb[0].mxu0 %v7637
          %v9168 = vpop.f32.mrb[0].mxu0
          %v9169 = vadd.f32 %v9129, %v9168
          %v9170 = vpop.f32.mrb[0].mxu0
          %v9171 = vpop.f32.mrb[0].mxu0
          %v9172 = vpop.f32.mrb[0].mxu0
          %9173 = vdwg.mxu0
          %9174 = vmatprep.subr.bf16.mxu0 0
          %9175 = vmatpush1.bf16.msra.mxu0 %v8710
          %9176 = vmatprep.subr.bf16.mxu0 0
          %9177 = vmatpush1.bf16.msra.mxu0 %v8711
          %9178 = vmatprep.subr.bf16.mxu0 0
          %9179 = vmatpush1.bf16.msra.mxu0 %v8712
          %9180 = vmatprep.subr.bf16.mxu0 0
          %9181 = vmatpush1.bf16.msra.mxu0 %v8713
          %9182 = vmatprep.subr.bf16.mxu0 0
          %9183 = vmatpush1.bf16.msra.mxu0 %v8714
          %9184 = vmatprep.subr.bf16.mxu0 0
          %9185 = vmatpush1.bf16.msra.mxu0 %v8715
          %9186 = vmatprep.subr.bf16.mxu0 0
          %9187 = vmatpush1.bf16.msra.mxu0 %v8716
          %9188 = vmatprep.subr.bf16.mxu0 0
          %9189 = vmatpush1.bf16.msra.mxu0 %v8717
          %9190 = vmatprep.subr.bf16.mxu0 0
          %9191 = vmatpush1.bf16.msra.mxu0 %v8718
          %9192 = vmatprep.subr.bf16.mxu0 0
          %9193 = vmatpush1.bf16.msra.mxu0 %v8719
          %9194 = vmatprep.subr.bf16.mxu0 0
          %9195 = vmatpush1.bf16.msra.mxu0 %v8720
          %9196 = vmatprep.subr.bf16.mxu0 0
          %9197 = vmatpush1.bf16.msra.mxu0 %v8721
          %9198 = vmatprep.subr.bf16.mxu0 0
          %9199 = vmatpush1.bf16.msra.mxu0 %v8722
          %9200 = vmatprep.subr.bf16.mxu0 0
          %9201 = vmatpush1.bf16.msra.mxu0 %v8723
          %9202 = vmatprep.subr.bf16.mxu0 0
          %9203 = vmatpush1.bf16.msra.mxu0 %v8724
          %9204 = vmatprep.subr.bf16.mxu0 0
          %9205 = vmatpush1.bf16.msra.mxu0 %v8725
          %9206 = vmatprep.mubr.bf16.mxu0 %v7640
          %9207 = vmatmul.mubr.bf16.gmra.mrb[0].mxu0 %v7639
          %v9208 = vpop.f32.mrb[0].mxu0
          %v9209 = vadd.f32 %v9169, %v9208
          %v9210 = vpop.f32.mrb[0].mxu0
          %v9211 = vpop.f32.mrb[0].mxu0
          %v9212 = vpop.f32.mrb[0].mxu0
          %9213 = vdwg.mxu0
          %9214 = vmatprep.subr.bf16.mxu0 0
          %9215 = vmatpush1.bf16.msra.mxu0 %v8726
          %9216 = vmatprep.subr.bf16.mxu0 0
          %9217 = vmatpush1.bf16.msra.mxu0 %v8727
          %9218 = vmatprep.subr.bf16.mxu0 0
          %9219 = vmatpush1.bf16.msra.mxu0 %v8728
          %9220 = vmatprep.subr.bf16.mxu0 0
          %9221 = vmatpush1.bf16.msra.mxu0 %v8729
          %9222 = vmatprep.subr.bf16.mxu0 0
          %9223 = vmatpush1.bf16.msra.mxu0 %v8730
          %9224 = vmatprep.subr.bf16.mxu0 0
          %9225 = vmatpush1.bf16.msra.mxu0 %v8731
          %9226 = vmatprep.subr.bf16.mxu0 0
          %9227 = vmatpush1.bf16.msra.mxu0 %v8732
          %9228 = vmatprep.subr.bf16.mxu0 0
          %9229 = vmatpush1.bf16.msra.mxu0 %v8733
          %9230 = vmatprep.subr.bf16.mxu0 0
          %9231 = vmatpush1.bf16.msra.mxu0 %v8734
          %9232 = vmatprep.subr.bf16.mxu0 0
          %9233 = vmatpush1.bf16.msra.mxu0 %v8735
          %9234 = vmatprep.subr.bf16.mxu0 0
          %9235 = vmatpush1.bf16.msra.mxu0 %v8736
          %9236 = vmatprep.subr.bf16.mxu0 0
          %9237 = vmatpush1.bf16.msra.mxu0 %v8737
          %9238 = vmatprep.subr.bf16.mxu0 0
          %9239 = vmatpush1.bf16.msra.mxu0 %v8738
          %9240 = vmatprep.subr.bf16.mxu0 0
          %9241 = vmatpush1.bf16.msra.mxu0 %v8739
          %9242 = vmatprep.subr.bf16.mxu0 0
          %9243 = vmatpush1.bf16.msra.mxu0 %v8740
          %9244 = vmatprep.subr.bf16.mxu0 0
          %9245 = vmatpush1.bf16.msra.mxu0 %v8741
          %9246 = vmatprep.mubr.bf16.mxu0 %v7642
          %9247 = vmatmul.mubr.bf16.gmra.mrb[0].mxu0 %v7641
          %v9248 = vpop.f32.mrb[0].mxu0
          %v9249 = vadd.f32 %v9209, %v9248
          %v9250 = vpop.f32.mrb[0].mxu0
          %v9251 = vpop.f32.mrb[0].mxu0
          %v9252 = vpop.f32.mrb[0].mxu0
          %9253 = vdwg.mxu0
          %9254 = vmatprep.subr.bf16.mxu0 0
          %9255 = vmatpush1.bf16.msra.mxu0 %v8742
          %9256 = vmatprep.subr.bf16.mxu0 0
          %9257 = vmatpush1.bf16.msra.mxu0 %v8743
          %9258 = vmatprep.subr.bf16.mxu0 0
          %9259 = vmatpush1.bf16.msra.mxu0 %v8744
          %9260 = vmatprep.subr.bf16.mxu0 0
          %9261 = vmatpush1.bf16.msra.mxu0 %v8745
          %9262 = vmatprep.subr.bf16.mxu0 0
          %9263 = vmatpush1.bf16.msra.mxu0 %v8746
          %9264 = vmatprep.subr.bf16.mxu0 0
          %9265 = vmatpush1.bf16.msra.mxu0 %v8747
          %9266 = vmatprep.subr.bf16.mxu0 0
          %9267 = vmatpush1.bf16.msra.mxu0 %v8748
          %9268 = vmatprep.subr.bf16.mxu0 0
          %9269 = vmatpush1.bf16.msra.mxu0 %v8749
          %9270 = vmatprep.subr.bf16.mxu0 0
          %9271 = vmatpush1.bf16.msra.mxu0 %v8750
          %9272 = vmatprep.subr.bf16.mxu0 0
          %9273 = vmatpush1.bf16.msra.mxu0 %v8751
          %9274 = vmatprep.subr.bf16.mxu0 0
          %9275 = vmatpush1.bf16.msra.mxu0 %v8752
          %9276 = vmatprep.subr.bf16.mxu0 0
          %9277 = vmatpush1.bf16.msra.mxu0 %v8753
          %9278 = vmatprep.subr.bf16.mxu0 0
          %9279 = vmatpush1.bf16.msra.mxu0 %v8754
          %9280 = vmatprep.subr.bf16.mxu0 0
          %9281 = vmatpush1.bf16.msra.mxu0 %v8755
          %9282 = vmatprep.subr.bf16.mxu0 0
          %9283 = vmatpush1.bf16.msra.mxu0 %v8756
          %9284 = vmatprep.subr.bf16.mxu0 0
          %9285 = vmatpush1.bf16.msra.mxu0 %v8757
          %9286 = vmatprep.mubr.bf16.mxu0 %v7644
          %9287 = vmatmul.mubr.bf16.gmra.mrb[0].mxu0 %v7643
          %v9288 = vpop.f32.mrb[0].mxu0
          %v9289 = vadd.f32 %v9249, %v9288
          %v9290 = vpop.f32.mrb[0].mxu0
          %v9291 = vpop.f32.mrb[0].mxu0
          %v9292 = vpop.f32.mrb[0].mxu0
          %9293 = vdwg.mxu0
          %9294 = vmatprep.subr.bf16.mxu0 0
          %9295 = vmatpush1.bf16.msra.mxu0 %v8758
          %9296 = vmatprep.subr.bf16.mxu0 0
          %9297 = vmatpush1.bf16.msra.mxu0 %v8759
          %9298 = vmatprep.subr.bf16.mxu0 0
          %9299 = vmatpush1.bf16.msra.mxu0 %v8760
          %9300 = vmatprep.subr.bf16.mxu0 0
          %9301 = vmatpush1.bf16.msra.mxu0 %v8761
          %9302 = vmatprep.subr.bf16.mxu0 0
          %9303 = vmatpush1.bf16.msra.mxu0 %v8762
          %9304 = vmatprep.subr.bf16.mxu0 0
          %9305 = vmatpush1.bf16.msra.mxu0 %v8763
          %9306 = vmatprep.subr.bf16.mxu0 0
          %9307 = vmatpush1.bf16.msra.mxu0 %v8764
          %9308 = vmatprep.subr.bf16.mxu0 0
          %9309 = vmatpush1.bf16.msra.mxu0 %v8765
          %9310 = vmatprep.subr.bf16.mxu0 0
          %9311 = vmatpush1.bf16.msra.mxu0 %v8766
          %9312 = vmatprep.subr.bf16.mxu0 0
          %9313 = vmatpush1.bf16.msra.mxu0 %v8767
          %9314 = vmatprep.subr.bf16.mxu0 0
          %9315 = vmatpush1.bf16.msra.mxu0 %v8768
          %9316 = vmatprep.subr.bf16.mxu0 0
          %9317 = vmatpush1.bf16.msra.mxu0 %v8769
          %9318 = vmatprep.subr.bf16.mxu0 0
          %9319 = vmatpush1.bf16.msra.mxu0 %v8770
          %9320 = vmatprep.subr.bf16.mxu0 0
          %9321 = vmatpush1.bf16.msra.mxu0 %v8771
          %9322 = vmatprep.subr.bf16.mxu0 0
          %9323 = vmatpush1.bf16.msra.mxu0 %v8772
          %9324 = vmatprep.subr.bf16.mxu0 0
          %9325 = vmatpush1.bf16.msra.mxu0 %v8773
          %9326 = vmatprep.mubr.bf16.mxu0 %v7646
          %9327 = vmatmul.mubr.bf16.gmra.mrb[0].mxu0 %v7645
          %v9328 = vpop.f32.mrb[0].mxu0
          %v9329 = vadd.f32 %v9289, %v9328
          %v9330 = vpop.f32.mrb[0].mxu0
          %v9331 = vpop.f32.mrb[0].mxu0
          %v9332 = vpop.f32.mrb[0].mxu0
          %9333 = vdwg.mxu0
          %9334 = vst [vmem:[#allocation17] sm:$0x3] %v9329
        $region96: #{baseline_adapter_transformer.1} parent=55 // pred_fallthru
          _
        // Predicated region
        $region97: #{baseline_adapter_transformer.1} parent=55 // pred_check
          %p9335 = pneg %p247
        $region98: #{baseline_adapter_transformer.1} parent=55 // pred_check_branch
          %9337 = sbr.rel (%p9335) target = $region100
        $region99: #{baseline_adapter_transformer.1} parent=55 // pred_region
          %s9339 = ssub.s32 32, 32
          %9340 = vsyncadd [#allocation5], %s9339
          %s9342 = sshll.u32 [#allocation17], 4
          %s9343 = int_to_ptr.vmem [resolvable:$true] %s9342
          %9345 = dma.vmem_to_hbm [thread:$0]  %s9343, 32, %s9, [#allocation5]
        $region100: #{baseline_adapter_transformer.1} parent=55 // pred_fallthru
          _
        // Predicated region
        $region101: #{baseline_adapter_transformer.1} parent=55 // pred_check
          %p9346 = pneg %p247
        $region102: #{baseline_adapter_transformer.1} parent=55 // pred_check_branch
          %9348 = sbr.rel (%p9346) target = $region104
        $region103: #{baseline_adapter_transformer.1} parent=55 // pred_region
          %9349 = dma.done [#allocation5], 32
        $region104: #{baseline_adapter_transformer.1} parent=55 // pred_fallthru
          _
      $region56: #{baseline_adapter_transformer.1} parent=5 // pred_fallthru
        _
      %p9350 = scmp.le.s32.totalorder 2, %s25
      // Predicated region
      $region105: #{baseline_adapter_transformer.1} parent=5 // pred_check
        %p9351 = pneg %p9350
      $region106: #{baseline_adapter_transformer.1} parent=5 // pred_check_branch
        %9353 = sbr.rel (%p9351) target = $region108
      $region107: #{baseline_adapter_transformer.1} parent=5 // pred_region
        %s9354 = ssub.s32 %s25, 2
      $region108: #{baseline_adapter_transformer.1} parent=5 // pred_fallthru
        _
    $region6: #{baseline_adapter_transformer.1} parent=1 // loop_footer
      %s29 = sadd.s32 1, %s25
    $region7: #{baseline_adapter_transformer.1} parent=1 // loop_footer_branch
      %24 = sbr.rel target = $region3
    $region8: #{baseline_adapter_transformer.1} parent=1 // loop_exit
      _
    %9355 = vsyncpa [#allocation4], 1
    %s9356 = scalar_lea.sflag [#allocation4], 1
    %9357 = vsyncpa %s9356, 1
    %9358 = vsyncpa [#allocation7], 1
    %s9359 = scalar_lea.sflag [#allocation7], 1
    %9360 = vsyncpa %s9359, 1
    %9361 = vsyncpa [#allocation10], 1
    %9362 = vsyncpa [#allocation13], 1
    %9363 = vsyncpa [#allocation16], 1
    %9364 = vsyncpa [#allocation5], 1
    %s9365 = scalar_lea.sflag [#allocation5], 1
    %9366 = vsyncpa %s9365, 1

</llo_original>
